<compile_context>
chip_gen: v6e
topology: v6e:2x2x1
jax: 0.10.0
libtpu: 0.0.40
codegen_flags: <defaults>
</compile_context>

<pallas_src>
import functools
import math

import jax
import jax.numpy as jnp
from jax.experimental import pallas as pl
from jax.experimental.pallas import tpu as pltpu

# ----------------------------- model config (small) -----------------------------
BATCH = 2
IMG_CHANNELS = 2                 # img_shape channels
IN_CHANNELS = IMG_CHANNELS * 2   # module doubles channels
IMG_HW = 128
PATCH = 64                       # hard-coded in LocalizerVIT
EMBED_DIM = 128
NUM_HEADS = 4
HEAD_DIM = EMBED_DIM // NUM_HEADS
DEPTH = 2
FF_DIM = 256
LN_EPS = 1e-5

N_PATCHES = (IMG_HW // PATCH) ** 2   # 4 patches per image
N_TOKENS = N_PATCHES + 1             # +1 CLS token -> 5
TOKENS_PAD = 8                       # pad per-image tokens to a sublane multiple (power of 2)

BLOCK_PARAM_ORDER = (
    "ln1_g", "ln1_b", "wqkv", "bqkv", "wo", "bo",
    "ln2_g", "ln2_b", "w1", "b1", "w2", "b2",
)
PARAMS_PER_BLOCK = len(BLOCK_PARAM_ORDER)


# ----------------------------- patch-embed kernel -----------------------------
def _patch_embed_kernel(x_ref, w_ref, b_ref, o_ref, acc_ref):
    """o = x @ w + b, with the K dimension tiled along grid axis 0 (accumulator pattern)."""
    k = pl.program_id(0)

    @pl.when(k == 0)
    def _():
        acc_ref[...] = jnp.zeros_like(acc_ref)

    # bf16 x bf16 -> f32 accumulate (MXU-native path).
    acc_ref[...] += jnp.dot(x_ref[...], w_ref[...], preferred_element_type=jnp.float32)

    @pl.when(k == pl.num_programs(0) - 1)
    def _():
        o_ref[...] = (acc_ref[...] + b_ref[...].astype(jnp.float32)).astype(o_ref.dtype)


def pallas_patch_embed(patches, w, b, block_k=8192):
    """patches: (M, K) bf16, w: (K, E) bf16, b: (1, E) f32 -> (M, E) f32."""
    M, K = patches.shape
    K2, E = w.shape
    assert K == K2 and b.shape == (1, E)
    tk = min(K, block_k)
    assert K % tk == 0
    nk = K // tk
    return pl.pallas_call(
        _patch_embed_kernel,
        out_shape=jax.ShapeDtypeStruct((M, E), jnp.float32),
        grid_spec=pltpu.PrefetchScalarGridSpec(
            num_scalar_prefetch=0,
            grid=(nk,),
            in_specs=[
                pl.BlockSpec((M, tk), lambda k: (0, k)),
                pl.BlockSpec((tk, E), lambda k: (k, 0)),
                pl.BlockSpec((1, E), lambda k: (0, 0)),
            ],
            out_specs=pl.BlockSpec((M, E), lambda k: (0, 0)),
            scratch_shapes=[pltpu.VMEM((M, E), jnp.float32)],
        ),
        compiler_params=pltpu.CompilerParams(dimension_semantics=("arbitrary",)),
    )(patches, w, b)


# ----------------------------- fused transformer kernel -----------------------------
def _vit_encoder_kernel(*refs, depth, num_heads, head_dim,
                        tokens_per_batch, n_valid, scale, eps):
    """All transformer blocks + final LayerNorm, fully VMEM-resident.

    refs = [h, (12 params per block) * depth, lnf_g, lnf_b, out, attn_scratch]
    h / out: (M, E) with M = batch * tokens_per_batch (padded, batch-major).
    """
    h_ref = refs[0]
    blocks = [refs[1 + d * PARAMS_PER_BLOCK: 1 + (d + 1) * PARAMS_PER_BLOCK]
              for d in range(depth)]
    lnf_g = refs[1 + depth * PARAMS_PER_BLOCK]
    lnf_b = refs[2 + depth * PARAMS_PER_BLOCK]
    out_ref = refs[3 + depth * PARAMS_PER_BLOCK]
    attn_o = refs[4 + depth * PARAMS_PER_BLOCK]   # VMEM scratch (M, E)

    M, E = h_ref.shape

    def layernorm(x, g_ref, b_ref):
        mean = jnp.mean(x, axis=-1, keepdims=True)
        var = jnp.mean((x - mean) ** 2, axis=-1, keepdims=True)  # biased, as torch LayerNorm
        return (x - mean) * jax.lax.rsqrt(var + eps) * g_ref[...] + b_ref[...]

    # Additive attention bias over all (query, key) token pairs:
    #   block-diagonal per batch element, padded key tokens masked out.
    # tokens_per_batch is a power of two -> shift/and instead of div/mod.
    shift = int(math.log2(tokens_per_batch))
    row_idx = jax.lax.broadcasted_iota(jnp.int32, (M, M), 0)
    col_idx = jax.lax.broadcasted_iota(jnp.int32, (M, M), 1)
    row_b = jnp.right_shift(row_idx, shift)
    col_b = jnp.right_shift(col_idx, shift)
    col_t = jnp.bitwise_and(col_idx, tokens_per_batch - 1)
    valid = jnp.logical_and(row_b == col_b, col_t < n_valid)
    attn_bias = jnp.where(valid, 0.0, -1e9).astype(jnp.float32)

    h = h_ref[...].astype(jnp.float32)
    for (ln1_g, ln1_b, wqkv, bqkv, wo, bo, ln2_g, ln2_b, w1, b1, w2, b2) in blocks:
        # --- attention sub-block (pre-norm, residual) ---
        y = layernorm(h, ln1_g, ln1_b)
        qkv = jnp.dot(y, wqkv[...], preferred_element_type=jnp.float32) + bqkv[...]
        for hh in range(num_heads):
            lo = hh * head_dim
            qh = qkv[:, lo:lo + head_dim]
            kh = qkv[:, E + lo:E + lo + head_dim]
            vh = qkv[:, 2 * E + lo:2 * E + lo + head_dim]
            s = jax.lax.dot_general(qh, kh, (((1,), (1,)), ((), ())),
                                    preferred_element_type=jnp.float32)
            s = s * scale + attn_bias
            s = s - jnp.max(s, axis=-1, keepdims=True)
            p = jnp.exp(s)
            p = p * pl.reciprocal(jnp.sum(p, axis=-1, keepdims=True), approx=True)
            attn_o[:, lo:lo + head_dim] = jnp.dot(p, vh, preferred_element_type=jnp.float32)
        o = jnp.dot(attn_o[...], wo[...], preferred_element_type=jnp.float32) + bo[...]
        h = h + o

        # --- MLP sub-block (pre-norm, residual) ---
        y = layernorm(h, ln2_g, ln2_b)
        y = jnp.dot(y, w1[...], preferred_element_type=jnp.float32) + b1[...]
        # exact (erf) GELU, matching torch.nn.GELU default
        y = 0.5 * y * (1.0 + jax.lax.erf(y * (1.0 / math.sqrt(2.0))))
        y = jnp.dot(y, w2[...], preferred_element_type=jnp.float32) + b2[...]
        h = h + y

    out_ref[...] = layernorm(h, lnf_g, lnf_b).astype(out_ref.dtype)


def pallas_vit_encoder(h0, flat_params):
    """h0: (M, E) f32 padded residual stream; flat_params: flat list of 2-D weight arrays."""
    M, E = h0.shape
    args = (h0, *flat_params)
    # everything here is 2-D and fully VMEM-resident: full-array blocks, single grid step.
    in_specs = [pl.BlockSpec(a.shape, lambda i: (0, 0)) for a in args]
    kernel = functools.partial(
        _vit_encoder_kernel,
        depth=DEPTH,
        num_heads=NUM_HEADS,
        head_dim=HEAD_DIM,
        tokens_per_batch=TOKENS_PAD,
        n_valid=N_TOKENS,
        # timm-style kornia MultiheadAttention scales by head_dim ** -0.5
        scale=1.0 / math.sqrt(HEAD_DIM),
        eps=LN_EPS,
    )
    return pl.pallas_call(
        kernel,
        out_shape=jax.ShapeDtypeStruct((M, E), jnp.float32),
        grid_spec=pltpu.PrefetchScalarGridSpec(
            num_scalar_prefetch=0,
            grid=(1,),
            in_specs=in_specs,
            out_specs=pl.BlockSpec((M, E), lambda i: (0, 0)),
            scratch_shapes=[pltpu.VMEM((M, E), jnp.float32)],
        ),
        compiler_params=pltpu.CompilerParams(dimension_semantics=("arbitrary",)),
    )(*args)


# ----------------------------- parameters -----------------------------
def init_params(key):
    def nrm(k, shape, scale=0.02, dtype=jnp.float32):
        return (scale * jax.random.normal(k, shape, jnp.float32)).astype(dtype)

    keys = jax.random.split(key, 4 + DEPTH)
    params = {
        # Conv2d(Cin, E, kernel=P, stride=P) flattened to (Cin*P*P, E), stored bf16:
        # MXU-native dtype and halves the only real HBM weight stream (f32 accum in-kernel).
        "patch_w": nrm(keys[0], (IN_CHANNELS * PATCH * PATCH, EMBED_DIM), dtype=jnp.bfloat16),
        "patch_b": jnp.zeros((1, EMBED_DIM), jnp.float32),
        "cls": nrm(keys[1], (1, EMBED_DIM), 1.0),
        "pos": nrm(keys[2], (N_TOKENS, EMBED_DIM), 1.0),
        "lnf_g": jnp.ones((1, EMBED_DIM), jnp.float32),
        "lnf_b": jnp.zeros((1, EMBED_DIM), jnp.float32),
        "blocks": [],
    }
    for d in range(DEPTH):
        bk = jax.random.split(keys[4 + d], 4)
        params["blocks"].append(
            {
                "ln1_g": jnp.ones((1, EMBED_DIM), jnp.float32),
                "ln1_b": jnp.zeros((1, EMBED_DIM), jnp.float32),
                # fused Q/K/V projection: one (E, 3E) matmul per block
                "wqkv": nrm(bk[0], (EMBED_DIM, 3 * EMBED_DIM)),
                "bqkv": jnp.zeros((1, 3 * EMBED_DIM), jnp.float32),
                "wo": nrm(bk[1], (EMBED_DIM, EMBED_DIM)),
                "bo": jnp.zeros((1, EMBED_DIM), jnp.float32),
                "ln2_g": jnp.ones((1, EMBED_DIM), jnp.float32),
                "ln2_b": jnp.zeros((1, EMBED_DIM), jnp.float32),
                "w1": nrm(bk[2], (EMBED_DIM, FF_DIM)),
                "b1": jnp.zeros((1, FF_DIM), jnp.float32),
                "w2": nrm(bk[3], (FF_DIM, EMBED_DIM)),
                "b2": jnp.zeros((1, EMBED_DIM), jnp.float32),
            }
        )
    return params


# ----------------------------- forward -----------------------------
def localizer_vit_forward(x, params):
    # x: (B, Cin, H, W) float32, NCHW like PyTorch.
    B, C, H, W = x.shape
    P = PATCH
    nH, nW = H // P, W // P
    n_patches = nH * nW
    E = EMBED_DIM

    # --- patch embedding (Conv2d stride=P, kernel=P) as a bf16 matmul ---
    patches = (
        x.reshape(B, C, nH, P, nW, P)
        .transpose(0, 2, 4, 1, 3, 5)               # (B, nH, nW, C, P, P)
        .reshape(B * n_patches, C * P * P)         # patch vec ordered (c, ph, pw)
        .astype(jnp.bfloat16)
    )
    tok = pallas_patch_embed(patches, params["patch_w"], params["patch_b"])
    tok = tok.reshape(B, n_patches, E)

    # --- CLS token + positional embedding, pad tokens 5 -> 8 per image ---
    cls = jnp.broadcast_to(params["cls"][None], (B, 1, E))
    seq = jnp.concatenate([cls, tok], axis=1) + params["pos"][None]     # (B, N_TOKENS, E)
    seq = jnp.pad(seq, ((0, 0), (0, TOKENS_PAD - N_TOKENS), (0, 0)))    # zero-pad tokens
    h0 = seq.reshape(B * TOKENS_PAD, E)                                  # (16, 128)

    # --- one fused pallas_call for all transformer blocks + final LayerNorm ---
    flat = []
    for blk in params["blocks"]:
        flat += [blk[k] for k in BLOCK_PARAM_ORDER]
    flat += [params["lnf_g"], params["lnf_b"]]

    out2d = pallas_vit_encoder(h0, flat)                                 # (16, 128) f32
    out = out2d.reshape(B, TOKENS_PAD, E)[:, :N_TOKENS, :]               # drop padded tokens

    # torch autocast + .type(HalfTensor): compute kept in f32/bf16 here, output cast to fp16.
    # TODO(synk): torch Dropout layers have rate 0.0 (kornia defaults) -> identity, not modeled.
    return out.astype(jnp.float16)


# ----------------------------- main -----------------------------
if __name__ == "__main__":
    key = jax.random.PRNGKey(0)
    k_x, k_p = jax.random.split(key)
    x = jax.random.normal(k_x, (BATCH, IN_CHANNELS, IMG_HW, IMG_HW), jnp.float32)
    params = init_params(k_p)

    fwd = jax.jit(localizer_vit_forward)
    out = fwd(x, params)
    out = jax.block_until_ready(out)

    assert out.shape == (BATCH, N_TOKENS, EMBED_DIM), out.shape
    assert out.dtype == jnp.float16, out.dtype
    assert bool(jnp.all(jnp.isfinite(out.astype(jnp.float32))))
    print("KERNEL_OK")
</pallas_src>

<mosaic_0001>
module attributes {stable_mosaic.version = 11 : i64} {
  func.func @_patch_embed_kernel(%arg0: i32, %arg1: memref<8x8192xbf16, #tpu.memory_space<vmem>>, %arg2: memref<8192x128xbf16, #tpu.memory_space<vmem>>, %arg3: memref<1x128xf32, #tpu.memory_space<vmem>>, %arg4: memref<8x128xf32, #tpu.memory_space<vmem>>, %arg5: memref<8x128xf32, #tpu.memory_space<vmem>>) attributes {dimension_semantics = [#tpu.dimension_semantics<arbitrary>], iteration_bounds = array<i64: 2>, scalar_prefetch = 0 : i64, scratch_operands = 1 : i64, tpu.core_type = #tpu.core_type<tc>, window_params = [{transform_indices = @transform_0, window_bounds = array<i64: 8, 8192>}, {transform_indices = @transform_1, window_bounds = array<i64: 8192, 128>}, {pipeline_mode = #tpu.pipeline_mode<synchronous>, transform_indices = @transform_2, window_bounds = array<i64: 1, 128>}, {pipeline_mode = #tpu.pipeline_mode<synchronous>, transform_indices = @transform_3, window_bounds = array<i64: 8, 128>}]} {
    %c0_i32 = arith.constant 0 : i32
    %0 = arith.cmpi eq, %arg0, %c0_i32 : i32
    %1 = arith.extui %0 : i1 to i32
    %c0_i32_0 = arith.constant 0 : i32
    %2 = arith.cmpi ne, %1, %c0_i32_0 : i32
    scf.if %2 {
      %cst_9 = arith.constant 0.000000e+00 : f32
      %12 = vector.broadcast %cst_9 : f32 to vector<8x128xf32>
      %c0_10 = arith.constant 0 : index
      %c0_11 = arith.constant 0 : index
      %13 = vector.load %arg5[%c0_10, %c0_11] : memref<8x128xf32, #tpu.memory_space<vmem>>, vector<8x128xf32>
      tpu.vector_store %arg5[%c0_10, %c0_11], %12 {strides = array<i32>} : memref<8x128xf32, #tpu.memory_space<vmem>>, vector<8x128xf32>,
    } else {
    }
    %c0 = arith.constant 0 : index
    %c0_1 = arith.constant 0 : index
    %3 = vector.load %arg5[%c0, %c0_1] : memref<8x128xf32, #tpu.memory_space<vmem>>, vector<8x128xf32>
    %c0_2 = arith.constant 0 : index
    %c0_3 = arith.constant 0 : index
    %4 = vector.load %arg1[%c0_2, %c0_3] : memref<8x8192xbf16, #tpu.memory_space<vmem>>, vector<8x8192xbf16>
    %c0_4 = arith.constant 0 : index
    %c0_5 = arith.constant 0 : index
    %5 = vector.load %arg2[%c0_4, %c0_5] : memref<8192x128xbf16, #tpu.memory_space<vmem>>, vector<8192x128xbf16>
    %cst = arith.constant dense<0.000000e+00> : vector<8x128xf32>
    %6 = tpu.matmul %4, %5, %cst {dimension_numbers = #tpu.dot_dimension_numbers<[1], [0], [0], [1], [0, 0, 1, 1], [], []>} : vector<8x8192xbf16>, vector<8192x128xbf16>, vector<8x128xf32> -> vector<8x128xf32>
    %7 = arith.addf %3, %6 : vector<8x128xf32>
    %c0_6 = arith.constant 0 : index
    %c0_7 = arith.constant 0 : index
    %8 = vector.load %arg5[%c0_6, %c0_7] : memref<8x128xf32, #tpu.memory_space<vmem>>, vector<8x128xf32>
    tpu.vector_store %arg5[%c0_6, %c0_7], %7 {strides = array<i32>} : memref<8x128xf32, #tpu.memory_space<vmem>>, vector<8x128xf32>,
    %c1_i32 = arith.constant 1 : i32
    %9 = arith.cmpi eq, %arg0, %c1_i32 : i32
    %10 = arith.extui %9 : i1 to i32
    %c0_i32_8 = arith.constant 0 : i32
    %11 = arith.cmpi ne, %10, %c0_i32_8 : i32
    scf.if %11 {
      %c0_9 = arith.constant 0 : index
      %c0_10 = arith.constant 0 : index
      %12 = vector.load %arg5[%c0_9, %c0_10] : memref<8x128xf32, #tpu.memory_space<vmem>>, vector<8x128xf32>
      %c0_11 = arith.constant 0 : index
      %c0_12 = arith.constant 0 : index
      %13 = vector.load %arg3[%c0_11, %c0_12] : memref<1x128xf32, #tpu.memory_space<vmem>>, vector<1x128xf32>
      %14 = vector.broadcast %13 : vector<1x128xf32> to vector<8x128xf32>
      %15 = arith.addf %12, %14 : vector<8x128xf32>
      %c0_13 = arith.constant 0 : index
      %c0_14 = arith.constant 0 : index
      %16 = vector.load %arg4[%c0_13, %c0_14] : memref<8x128xf32, #tpu.memory_space<vmem>>, vector<8x128xf32>
      tpu.vector_store %arg4[%c0_13, %c0_14], %15 {strides = array<i32>} : memref<8x128xf32, #tpu.memory_space<vmem>>, vector<8x128xf32>,
    } else {
    }
    return
  }
  func.func @transform_0(%arg0: i32) -> (i32, i32) {
    %c0_i32 = arith.constant 0 : i32
    %c0_i32_0 = arith.constant 0 : i32
    return %c0_i32, %arg0 : i32, i32
  }
  func.func @transform_1(%arg0: i32) -> (i32, i32) {
    %c0_i32 = arith.constant 0 : i32
    %c0_i32_0 = arith.constant 0 : i32
    return %arg0, %c0_i32 : i32, i32
  }
  func.func @transform_2(%arg0: i32) -> (i32, i32) {
    %c0_i32 = arith.constant 0 : i32
    %c0_i32_0 = arith.constant 0 : i32
    %c0_i32_1 = arith.constant 0 : i32
    return %c0_i32, %c0_i32_0 : i32, i32
  }
  func.func @transform_3(%arg0: i32) -> (i32, i32) {
    %c0_i32 = arith.constant 0 : i32
    %c0_i32_0 = arith.constant 0 : i32
    %c0_i32_1 = arith.constant 0 : i32
    return %c0_i32, %c0_i32_0 : i32, i32
  }
}

module attributes {stable_mosaic.version = 11 : i64} {
  func.func @_vit_encoder_kernel(%arg0: i32, %arg1: memref<16x128xf32, #tpu.memory_space<vmem>>, %arg2: memref<1x128xf32, #tpu.memory_space<vmem>>, %arg3: memref<1x128xf32, #tpu.memory_space<vmem>>, %arg4: memref<128x384xf32, #tpu.memory_space<vmem>>, %arg5: memref<1x384xf32, #tpu.memory_space<vmem>>, %arg6: memref<128x128xf32, #tpu.memory_space<vmem>>, %arg7: memref<1x128xf32, #tpu.memory_space<vmem>>, %arg8: memref<1x128xf32, #tpu.memory_space<vmem>>, %arg9: memref<1x128xf32, #tpu.memory_space<vmem>>, %arg10: memref<128x256xf32, #tpu.memory_space<vmem>>, %arg11: memref<1x256xf32, #tpu.memory_space<vmem>>, %arg12: memref<256x128xf32, #tpu.memory_space<vmem>>, %arg13: memref<1x128xf32, #tpu.memory_space<vmem>>, %arg14: memref<1x128xf32, #tpu.memory_space<vmem>>, %arg15: memref<1x128xf32, #tpu.memory_space<vmem>>, %arg16: memref<128x384xf32, #tpu.memory_space<vmem>>, %arg17: memref<1x384xf32, #tpu.memory_space<vmem>>, %arg18: memref<128x128xf32, #tpu.memory_space<vmem>>, %arg19: memref<1x128xf32, #tpu.memory_space<vmem>>, %arg20: memref<1x128xf32, #tpu.memory_space<vmem>>, %arg21: memref<1x128xf32, #tpu.memory_space<vmem>>, %arg22: memref<128x256xf32, #tpu.memory_space<vmem>>, %arg23: memref<1x256xf32, #tpu.memory_space<vmem>>, %arg24: memref<256x128xf32, #tpu.memory_space<vmem>>, %arg25: memref<1x128xf32, #tpu.memory_space<vmem>>, %arg26: memref<1x128xf32, #tpu.memory_space<vmem>>, %arg27: memref<1x128xf32, #tpu.memory_space<vmem>>, %arg28: memref<16x128xf32, #tpu.memory_space<vmem>>, %arg29: memref<16x128xf32, #tpu.memory_space<vmem>>) attributes {dimension_semantics = [#tpu.dimension_semantics<arbitrary>], iteration_bounds = array<i64: 1>, scalar_prefetch = 0 : i64, scratch_operands = 1 : i64, tpu.core_type = #tpu.core_type<tc>, window_params = [{pipeline_mode = #tpu.pipeline_mode<synchronous>, transform_indices = @transform_0, window_bounds = array<i64: 16, 128>}, {pipeline_mode = #tpu.pipeline_mode<synchronous>, transform_indices = @transform_1, window_bounds = array<i64: 1, 128>}, {pipeline_mode = #tpu.pipeline_mode<synchronous>, transform_indices = @transform_2, window_bounds = array<i64: 1, 128>}, {pipeline_mode = #tpu.pipeline_mode<synchronous>, transform_indices = @transform_3, window_bounds = array<i64: 128, 384>}, {pipeline_mode = #tpu.pipeline_mode<synchronous>, transform_indices = @transform_4, window_bounds = array<i64: 1, 384>}, {pipeline_mode = #tpu.pipeline_mode<synchronous>, transform_indices = @transform_5, window_bounds = array<i64: 128, 128>}, {pipeline_mode = #tpu.pipeline_mode<synchronous>, transform_indices = @transform_6, window_bounds = array<i64: 1, 128>}, {pipeline_mode = #tpu.pipeline_mode<synchronous>, transform_indices = @transform_7, window_bounds = array<i64: 1, 128>}, {pipeline_mode = #tpu.pipeline_mode<synchronous>, transform_indices = @transform_8, window_bounds = array<i64: 1, 128>}, {pipeline_mode = #tpu.pipeline_mode<synchronous>, transform_indices = @transform_9, window_bounds = array<i64: 128, 256>}, {pipeline_mode = #tpu.pipeline_mode<synchronous>, transform_indices = @transform_10, window_bounds = array<i64: 1, 256>}, {pipeline_mode = #tpu.pipeline_mode<synchronous>, transform_indices = @transform_11, window_bounds = array<i64: 256, 128>}, {pipeline_mode = #tpu.pipeline_mode<synchronous>, transform_indices = @transform_12, window_bounds = array<i64: 1, 128>}, {pipeline_mode = #tpu.pipeline_mode<synchronous>, transform_indices = @transform_13, window_bounds = array<i64: 1, 128>}, {pipeline_mode = #tpu.pipeline_mode<synchronous>, transform_indices = @transform_14, window_bounds = array<i64: 1, 128>}, {pipeline_mode = #tpu.pipeline_mode<synchronous>, transform_indices = @transform_15, window_bounds = array<i64: 128, 384>}, {pipeline_mode = #tpu.pipeline_mode<synchronous>, transform_indices = @transform_16, window_bounds = array<i64: 1, 384>}, {pipeline_mode = #tpu.pipeline_mode<synchronous>, transform_indices = @transform_17, window_bounds = array<i64: 128, 128>}, {pipeline_mode = #tpu.pipeline_mode<synchronous>, transform_indices = @transform_18, window_bounds = array<i64: 1, 128>}, {pipeline_mode = #tpu.pipeline_mode<synchronous>, transform_indices = @transform_19, window_bounds = array<i64: 1, 128>}, {pipeline_mode = #tpu.pipeline_mode<synchronous>, transform_indices = @transform_20, window_bounds = array<i64: 1, 128>}, {pipeline_mode = #tpu.pipeline_mode<synchronous>, transform_indices = @transform_21, window_bounds = array<i64: 128, 256>}, {pipeline_mode = #tpu.pipeline_mode<synchronous>, transform_indices = @transform_22, window_bounds = array<i64: 1, 256>}, {pipeline_mode = #tpu.pipeline_mode<synchronous>, transform_indices = @transform_23, window_bounds = array<i64: 256, 128>}, {pipeline_mode = #tpu.pipeline_mode<synchronous>, transform_indices = @transform_24, window_bounds = array<i64: 1, 128>}, {pipeline_mode = #tpu.pipeline_mode<synchronous>, transform_indices = @transform_25, window_bounds = array<i64: 1, 128>}, {pipeline_mode = #tpu.pipeline_mode<synchronous>, transform_indices = @transform_26, window_bounds = array<i64: 1, 128>}, {pipeline_mode = #tpu.pipeline_mode<synchronous>, transform_indices = @transform_27, window_bounds = array<i64: 16, 128>}]} {
    %0 = tpu.iota {dimensions = array<i32: 0>} : vector<16x16xi32>
    %1 = tpu.iota {dimensions = array<i32: 1>} : vector<16x16xi32>
    %c3_i32 = arith.constant 3 : i32
    %2 = vector.broadcast %c3_i32 : i32 to vector<16x16xi32>
    %3 = arith.shrsi %0, %2 : vector<16x16xi32>
    %c3_i32_0 = arith.constant 3 : i32
    %4 = vector.broadcast %c3_i32_0 : i32 to vector<16x16xi32>
    %5 = arith.shrsi %1, %4 : vector<16x16xi32>
    %c7_i32 = arith.constant 7 : i32
    %6 = vector.broadcast %c7_i32 : i32 to vector<16x16xi32>
    %7 = arith.andi %1, %6 : vector<16x16xi32>
    %8 = arith.cmpi eq, %3, %5 : vector<16x16xi32>
    %c5_i32 = arith.constant 5 : i32
    %9 = vector.broadcast %c5_i32 : i32 to vector<16x16xi32>
    %10 = arith.cmpi slt, %7, %9 : vector<16x16xi32>
    %11 = arith.andi %8, %10 : vector<16x16xi1>
    %cst = arith.constant 0.000000e+00 : f32
    %cst_1 = arith.constant -1.000000e+09 : f32
    %12 = vector.broadcast %cst : f32 to vector<16x16xf32>
    %13 = vector.broadcast %cst_1 : f32 to vector<16x16xf32>
    %14 = arith.select %11, %12, %13 : vector<16x16xi1>, vector<16x16xf32>
    %c0 = arith.constant 0 : index
    %c0_2 = arith.constant 0 : index
    %15 = vector.load %arg1[%c0, %c0_2] : memref<16x128xf32, #tpu.memory_space<vmem>>, vector<16x128xf32>
    %cst_3 = arith.constant dense<0.000000e+00> : vector<16xf32>
    %16 = vector.multi_reduction <add>, %15, %cst_3 [1] : vector<16x128xf32> to vector<16xf32>
    %17 = vector.shape_cast %16 : vector<16xf32> to vector<16x1xf32>
    %cst_4 = arith.constant 1.280000e+02 : f32
    %18 = vector.broadcast %cst_4 : f32 to vector<16x1xf32>
    %19 = arith.divf %17, %18 : vector<16x1xf32>
    %20 = vector.broadcast %19 : vector<16x1xf32> to vector<16x128xf32>
    %21 = arith.subf %15, %20 : vector<16x128xf32>
    %22 = arith.mulf %21, %21 : vector<16x128xf32>
    %cst_5 = arith.constant dense<0.000000e+00> : vector<16xf32>
    %23 = vector.multi_reduction <add>, %22, %cst_5 [1] : vector<16x128xf32> to vector<16xf32>
    %24 = vector.shape_cast %23 : vector<16xf32> to vector<16x1xf32>
    %cst_6 = arith.constant 1.280000e+02 : f32
    %25 = vector.broadcast %cst_6 : f32 to vector<16x1xf32>
    %26 = arith.divf %24, %25 : vector<16x1xf32>
    %27 = vector.broadcast %19 : vector<16x1xf32> to vector<16x128xf32>
    %28 = arith.subf %15, %27 : vector<16x128xf32>
    %cst_7 = arith.constant 9.99999974E-6 : f32
    %29 = vector.broadcast %cst_7 : f32 to vector<16x1xf32>
    %30 = arith.addf %26, %29 : vector<16x1xf32>
    %31 = math.rsqrt %30 : vector<16x1xf32>
    %32 = vector.broadcast %31 : vector<16x1xf32> to vector<16x128xf32>
    %33 = arith.mulf %28, %32 : vector<16x128xf32>
    %c0_8 = arith.constant 0 : index
    %c0_9 = arith.constant 0 : index
    %34 = vector.load %arg2[%c0_8, %c0_9] : memref<1x128xf32, #tpu.memory_space<vmem>>, vector<1x128xf32>
    %35 = vector.broadcast %34 : vector<1x128xf32> to vector<16x128xf32>
    %36 = arith.mulf %33, %35 : vector<16x128xf32>
    %c0_10 = arith.constant 0 : index
    %c0_11 = arith.constant 0 : index
    %37 = vector.load %arg3[%c0_10, %c0_11] : memref<1x128xf32, #tpu.memory_space<vmem>>, vector<1x128xf32>
    %38 = vector.broadcast %37 : vector<1x128xf32> to vector<16x128xf32>
    %39 = arith.addf %36, %38 : vector<16x128xf32>
    %c0_12 = arith.constant 0 : index
    %c0_13 = arith.constant 0 : index
    %40 = vector.load %arg4[%c0_12, %c0_13] : memref<128x384xf32, #tpu.memory_space<vmem>>, vector<128x384xf32>
    %cst_14 = arith.constant dense<0.000000e+00> : vector<16x384xf32>
    %41 = tpu.matmul %39, %40, %cst_14 {dimension_numbers = #tpu.dot_dimension_numbers<[1], [0], [0], [1], [0, 0, 1, 1], [], []>} : vector<16x128xf32>, vector<128x384xf32>, vector<16x384xf32> -> vector<16x384xf32>
    %c0_15 = arith.constant 0 : index
    %c0_16 = arith.constant 0 : index
    %42 = vector.load %arg5[%c0_15, %c0_16] : memref<1x384xf32, #tpu.memory_space<vmem>>, vector<1x384xf32>
    %43 = vector.broadcast %42 : vector<1x384xf32> to vector<16x384xf32>
    %44 = arith.addf %41, %43 : vector<16x384xf32>
    %45 = vector.extract_strided_slice %44 {offsets = [0, 0], sizes = [16, 32], strides = [1, 1]} : vector<16x384xf32> to vector<16x32xf32>
    %46 = vector.extract_strided_slice %44 {offsets = [0, 128], sizes = [16, 32], strides = [1, 1]} : vector<16x384xf32> to vector<16x32xf32>
    %47 = vector.extract_strided_slice %44 {offsets = [0, 256], sizes = [16, 32], strides = [1, 1]} : vector<16x384xf32> to vector<16x32xf32>
    %cst_17 = arith.constant dense<0.000000e+00> : vector<16x16xf32>
    %48 = tpu.matmul %45, %46, %cst_17 {dimension_numbers = #tpu.dot_dimension_numbers<[1], [1], [0], [0], [0, 0, 1, 0], [], []>} : vector<16x32xf32>, vector<16x32xf32>, vector<16x16xf32> -> vector<16x16xf32>
    %cst_18 = arith.constant 0.176776692 : f32
    %49 = vector.broadcast %cst_18 : f32 to vector<16x16xf32>
    %50 = arith.mulf %48, %49 : vector<16x16xf32>
    %51 = arith.addf %50, %14 : vector<16x16xf32>
    %cst_19 = arith.constant dense<0xFF800000> : vector<16xf32>
    %52 = vector.multi_reduction <maximumf>, %51, %cst_19 [1] : vector<16x16xf32> to vector<16xf32>
    %53 = vector.shape_cast %52 : vector<16xf32> to vector<16x1xf32>
    %54 = vector.broadcast %53 : vector<16x1xf32> to vector<16x16xf32>
    %55 = arith.subf %51, %54 : vector<16x16xf32>
    %56 = math.exp %55 : vector<16x16xf32>
    %cst_20 = arith.constant dense<0.000000e+00> : vector<16xf32>
    %57 = vector.multi_reduction <add>, %56, %cst_20 [1] : vector<16x16xf32> to vector<16xf32>
    %58 = vector.shape_cast %57 : vector<16xf32> to vector<16x1xf32>
    %59 = tpu.reciprocal %58 {approx = true} : vector<16x1xf32> -> vector<16x1xf32>
    %60 = vector.broadcast %59 : vector<16x1xf32> to vector<16x16xf32>
    %61 = arith.mulf %56, %60 : vector<16x16xf32>
    %cst_21 = arith.constant dense<0.000000e+00> : vector<16x32xf32>
    %62 = tpu.matmul %61, %47, %cst_21 {dimension_numbers = #tpu.dot_dimension_numbers<[1], [0], [0], [1], [0, 0, 1, 1], [], []>} : vector<16x16xf32>, vector<16x32xf32>, vector<16x32xf32> -> vector<16x32xf32>
    %c0_22 = arith.constant 0 : index
    %c0_23 = arith.constant 0 : index
    %63 = vector.load %arg29[%c0_22, %c0_23] : memref<16x128xf32, #tpu.memory_space<vmem>>, vector<16x32xf32>
    tpu.vector_store %arg29[%c0_22, %c0_23], %62 {strides = array<i32>} : memref<16x128xf32, #tpu.memory_space<vmem>>, vector<16x32xf32>,
    %64 = vector.extract_strided_slice %44 {offsets = [0, 32], sizes = [16, 32], strides = [1, 1]} : vector<16x384xf32> to vector<16x32xf32>
    %65 = vector.extract_strided_slice %44 {offsets = [0, 160], sizes = [16, 32], strides = [1, 1]} : vector<16x384xf32> to vector<16x32xf32>
    %66 = vector.extract_strided_slice %44 {offsets = [0, 288], sizes = [16, 32], strides = [1, 1]} : vector<16x384xf32> to vector<16x32xf32>
    %cst_24 = arith.constant dense<0.000000e+00> : vector<16x16xf32>
    %67 = tpu.matmul %64, %65, %cst_24 {dimension_numbers = #tpu.dot_dimension_numbers<[1], [1], [0], [0], [0, 0, 1, 0], [], []>} : vector<16x32xf32>, vector<16x32xf32>, vector<16x16xf32> -> vector<16x16xf32>
    %cst_25 = arith.constant 0.176776692 : f32
    %68 = vector.broadcast %cst_25 : f32 to vector<16x16xf32>
    %69 = arith.mulf %67, %68 : vector<16x16xf32>
    %70 = arith.addf %69, %14 : vector<16x16xf32>
    %cst_26 = arith.constant dense<0xFF800000> : vector<16xf32>
    %71 = vector.multi_reduction <maximumf>, %70, %cst_26 [1] : vector<16x16xf32> to vector<16xf32>
    %72 = vector.shape_cast %71 : vector<16xf32> to vector<16x1xf32>
    %73 = vector.broadcast %72 : vector<16x1xf32> to vector<16x16xf32>
    %74 = arith.subf %70, %73 : vector<16x16xf32>
    %75 = math.exp %74 : vector<16x16xf32>
    %cst_27 = arith.constant dense<0.000000e+00> : vector<16xf32>
    %76 = vector.multi_reduction <add>, %75, %cst_27 [1] : vector<16x16xf32> to vector<16xf32>
    %77 = vector.shape_cast %76 : vector<16xf32> to vector<16x1xf32>
    %78 = tpu.reciprocal %77 {approx = true} : vector<16x1xf32> -> vector<16x1xf32>
    %79 = vector.broadcast %78 : vector<16x1xf32> to vector<16x16xf32>
    %80 = arith.mulf %75, %79 : vector<16x16xf32>
    %cst_28 = arith.constant dense<0.000000e+00> : vector<16x32xf32>
    %81 = tpu.matmul %80, %66, %cst_28 {dimension_numbers = #tpu.dot_dimension_numbers<[1], [0], [0], [1], [0, 0, 1, 1], [], []>} : vector<16x16xf32>, vector<16x32xf32>, vector<16x32xf32> -> vector<16x32xf32>
    %c0_29 = arith.constant 0 : index
    %c32 = arith.constant 32 : index
    %82 = vector.load %arg29[%c0_29, %c32] : memref<16x128xf32, #tpu.memory_space<vmem>>, vector<16x32xf32>
    tpu.vector_store %arg29[%c0_29, %c32], %81 {strides = array<i32>} : memref<16x128xf32, #tpu.memory_space<vmem>>, vector<16x32xf32>,
    %83 = vector.extract_strided_slice %44 {offsets = [0, 64], sizes = [16, 32], strides = [1, 1]} : vector<16x384xf32> to vector<16x32xf32>
    %84 = vector.extract_strided_slice %44 {offsets = [0, 192], sizes = [16, 32], strides = [1, 1]} : vector<16x384xf32> to vector<16x32xf32>
    %85 = vector.extract_strided_slice %44 {offsets = [0, 320], sizes = [16, 32], strides = [1, 1]} : vector<16x384xf32> to vector<16x32xf32>
    %cst_30 = arith.constant dense<0.000000e+00> : vector<16x16xf32>
    %86 = tpu.matmul %83, %84, %cst_30 {dimension_numbers = #tpu.dot_dimension_numbers<[1], [1], [0], [0], [0, 0, 1, 0], [], []>} : vector<16x32xf32>, vector<16x32xf32>, vector<16x16xf32> -> vector<16x16xf32>
    %cst_31 = arith.constant 0.176776692 : f32
    %87 = vector.broadcast %cst_31 : f32 to vector<16x16xf32>
    %88 = arith.mulf %86, %87 : vector<16x16xf32>
    %89 = arith.addf %88, %14 : vector<16x16xf32>
    %cst_32 = arith.constant dense<0xFF800000> : vector<16xf32>
    %90 = vector.multi_reduction <maximumf>, %89, %cst_32 [1] : vector<16x16xf32> to vector<16xf32>
    %91 = vector.shape_cast %90 : vector<16xf32> to vector<16x1xf32>
    %92 = vector.broadcast %91 : vector<16x1xf32> to vector<16x16xf32>
    %93 = arith.subf %89, %92 : vector<16x16xf32>
    %94 = math.exp %93 : vector<16x16xf32>
    %cst_33 = arith.constant dense<0.000000e+00> : vector<16xf32>
    %95 = vector.multi_reduction <add>, %94, %cst_33 [1] : vector<16x16xf32> to vector<16xf32>
    %96 = vector.shape_cast %95 : vector<16xf32> to vector<16x1xf32>
    %97 = tpu.reciprocal %96 {approx = true} : vector<16x1xf32> -> vector<16x1xf32>
    %98 = vector.broadcast %97 : vector<16x1xf32> to vector<16x16xf32>
    %99 = arith.mulf %94, %98 : vector<16x16xf32>
    %cst_34 = arith.constant dense<0.000000e+00> : vector<16x32xf32>
    %100 = tpu.matmul %99, %85, %cst_34 {dimension_numbers = #tpu.dot_dimension_numbers<[1], [0], [0], [1], [0, 0, 1, 1], [], []>} : vector<16x16xf32>, vector<16x32xf32>, vector<16x32xf32> -> vector<16x32xf32>
    %c0_35 = arith.constant 0 : index
    %c64 = arith.constant 64 : index
    %101 = vector.load %arg29[%c0_35, %c64] : memref<16x128xf32, #tpu.memory_space<vmem>>, vector<16x32xf32>
    tpu.vector_store %arg29[%c0_35, %c64], %100 {strides = array<i32>} : memref<16x128xf32, #tpu.memory_space<vmem>>, vector<16x32xf32>,
    %102 = vector.extract_strided_slice %44 {offsets = [0, 96], sizes = [16, 32], strides = [1, 1]} : vector<16x384xf32> to vector<16x32xf32>
    %103 = vector.extract_strided_slice %44 {offsets = [0, 224], sizes = [16, 32], strides = [1, 1]} : vector<16x384xf32> to vector<16x32xf32>
    %104 = vector.extract_strided_slice %44 {offsets = [0, 352], sizes = [16, 32], strides = [1, 1]} : vector<16x384xf32> to vector<16x32xf32>
    %cst_36 = arith.constant dense<0.000000e+00> : vector<16x16xf32>
    %105 = tpu.matmul %102, %103, %cst_36 {dimension_numbers = #tpu.dot_dimension_numbers<[1], [1], [0], [0], [0, 0, 1, 0], [], []>} : vector<16x32xf32>, vector<16x32xf32>, vector<16x16xf32> -> vector<16x16xf32>
    %cst_37 = arith.constant 0.176776692 : f32
    %106 = vector.broadcast %cst_37 : f32 to vector<16x16xf32>
    %107 = arith.mulf %105, %106 : vector<16x16xf32>
    %108 = arith.addf %107, %14 : vector<16x16xf32>
    %cst_38 = arith.constant dense<0xFF800000> : vector<16xf32>
    %109 = vector.multi_reduction <maximumf>, %108, %cst_38 [1] : vector<16x16xf32> to vector<16xf32>
    %110 = vector.shape_cast %109 : vector<16xf32> to vector<16x1xf32>
    %111 = vector.broadcast %110 : vector<16x1xf32> to vector<16x16xf32>
    %112 = arith.subf %108, %111 : vector<16x16xf32>
    %113 = math.exp %112 : vector<16x16xf32>
    %cst_39 = arith.constant dense<0.000000e+00> : vector<16xf32>
    %114 = vector.multi_reduction <add>, %113, %cst_39 [1] : vector<16x16xf32> to vector<16xf32>
    %115 = vector.shape_cast %114 : vector<16xf32> to vector<16x1xf32>
    %116 = tpu.reciprocal %115 {approx = true} : vector<16x1xf32> -> vector<16x1xf32>
    %117 = vector.broadcast %116 : vector<16x1xf32> to vector<16x16xf32>
    %118 = arith.mulf %113, %117 : vector<16x16xf32>
    %cst_40 = arith.constant dense<0.000000e+00> : vector<16x32xf32>
    %119 = tpu.matmul %118, %104, %cst_40 {dimension_numbers = #tpu.dot_dimension_numbers<[1], [0], [0], [1], [0, 0, 1, 1], [], []>} : vector<16x16xf32>, vector<16x32xf32>, vector<16x32xf32> -> vector<16x32xf32>
    %c0_41 = arith.constant 0 : index
    %c96 = arith.constant 96 : index
    %120 = vector.load %arg29[%c0_41, %c96] : memref<16x128xf32, #tpu.memory_space<vmem>>, vector<16x32xf32>
    tpu.vector_store %arg29[%c0_41, %c96], %119 {strides = array<i32>} : memref<16x128xf32, #tpu.memory_space<vmem>>, vector<16x32xf32>,
    %c0_42 = arith.constant 0 : index
    %c0_43 = arith.constant 0 : index
    %121 = vector.load %arg29[%c0_42, %c0_43] : memref<16x128xf32, #tpu.memory_space<vmem>>, vector<16x128xf32>
    %c0_44 = arith.constant 0 : index
    %c0_45 = arith.constant 0 : index
    %122 = vector.load %arg6[%c0_44, %c0_45] : memref<128x128xf32, #tpu.memory_space<vmem>>, vector<128x128xf32>
    %cst_46 = arith.constant dense<0.000000e+00> : vector<16x128xf32>
    %123 = tpu.matmul %121, %122, %cst_46 {dimension_numbers = #tpu.dot_dimension_numbers<[1], [0], [0], [1], [0, 0, 1, 1], [], []>} : vector<16x128xf32>, vector<128x128xf32>, vector<16x128xf32> -> vector<16x128xf32>
    %c0_47 = arith.constant 0 : index
    %c0_48 = arith.constant 0 : index
    %124 = vector.load %arg7[%c0_47, %c0_48] : memref<1x128xf32, #tpu.memory_space<vmem>>, vector<1x128xf32>
    %125 = vector.broadcast %124 : vector<1x128xf32> to vector<16x128xf32>
    %126 = arith.addf %123, %125 : vector<16x128xf32>
    %127 = arith.addf %15, %126 : vector<16x128xf32>
    %cst_49 = arith.constant dense<0.000000e+00> : vector<16xf32>
    %128 = vector.multi_reduction <add>, %127, %cst_49 [1] : vector<16x128xf32> to vector<16xf32>
    %129 = vector.shape_cast %128 : vector<16xf32> to vector<16x1xf32>
    %cst_50 = arith.constant 1.280000e+02 : f32
    %130 = vector.broadcast %cst_50 : f32 to vector<16x1xf32>
    %131 = arith.divf %129, %130 : vector<16x1xf32>
    %132 = vector.broadcast %131 : vector<16x1xf32> to vector<16x128xf32>
    %133 = arith.subf %127, %132 : vector<16x128xf32>
    %134 = arith.mulf %133, %133 : vector<16x128xf32>
    %cst_51 = arith.constant dense<0.000000e+00> : vector<16xf32>
    %135 = vector.multi_reduction <add>, %134, %cst_51 [1] : vector<16x128xf32> to vector<16xf32>
    %136 = vector.shape_cast %135 : vector<16xf32> to vector<16x1xf32>
    %cst_52 = arith.constant 1.280000e+02 : f32
    %137 = vector.broadcast %cst_52 : f32 to vector<16x1xf32>
    %138 = arith.divf %136, %137 : vector<16x1xf32>
    %139 = vector.broadcast %131 : vector<16x1xf32> to vector<16x128xf32>
    %140 = arith.subf %127, %139 : vector<16x128xf32>
    %cst_53 = arith.constant 9.99999974E-6 : f32
    %141 = vector.broadcast %cst_53 : f32 to vector<16x1xf32>
    %142 = arith.addf %138, %141 : vector<16x1xf32>
    %143 = math.rsqrt %142 : vector<16x1xf32>
    %144 = vector.broadcast %143 : vector<16x1xf32> to vector<16x128xf32>
    %145 = arith.mulf %140, %144 : vector<16x128xf32>
    %c0_54 = arith.constant 0 : index
    %c0_55 = arith.constant 0 : index
    %146 = vector.load %arg8[%c0_54, %c0_55] : memref<1x128xf32, #tpu.memory_space<vmem>>, vector<1x128xf32>
    %147 = vector.broadcast %146 : vector<1x128xf32> to vector<16x128xf32>
    %148 = arith.mulf %145, %147 : vector<16x128xf32>
    %c0_56 = arith.constant 0 : index
    %c0_57 = arith.constant 0 : index
    %149 = vector.load %arg9[%c0_56, %c0_57] : memref<1x128xf32, #tpu.memory_space<vmem>>, vector<1x128xf32>
    %150 = vector.broadcast %149 : vector<1x128xf32> to vector<16x128xf32>
    %151 = arith.addf %148, %150 : vector<16x128xf32>
    %c0_58 = arith.constant 0 : index
    %c0_59 = arith.constant 0 : index
    %152 = vector.load %arg10[%c0_58, %c0_59] : memref<128x256xf32, #tpu.memory_space<vmem>>, vector<128x256xf32>
    %cst_60 = arith.constant dense<0.000000e+00> : vector<16x256xf32>
    %153 = tpu.matmul %151, %152, %cst_60 {dimension_numbers = #tpu.dot_dimension_numbers<[1], [0], [0], [1], [0, 0, 1, 1], [], []>} : vector<16x128xf32>, vector<128x256xf32>, vector<16x256xf32> -> vector<16x256xf32>
    %c0_61 = arith.constant 0 : index
    %c0_62 = arith.constant 0 : index
    %154 = vector.load %arg11[%c0_61, %c0_62] : memref<1x256xf32, #tpu.memory_space<vmem>>, vector<1x256xf32>
    %155 = vector.broadcast %154 : vector<1x256xf32> to vector<16x256xf32>
    %156 = arith.addf %153, %155 : vector<16x256xf32>
    %cst_63 = arith.constant 5.000000e-01 : f32
    %157 = vector.broadcast %cst_63 : f32 to vector<16x256xf32>
    %158 = arith.mulf %157, %156 : vector<16x256xf32>
    %cst_64 = arith.constant 0.707106769 : f32
    %159 = vector.broadcast %cst_64 : f32 to vector<16x256xf32>
    %160 = arith.mulf %156, %159 : vector<16x256xf32>
    %161 = math.erf %160 : vector<16x256xf32>
    %cst_65 = arith.constant 1.000000e+00 : f32
    %162 = vector.broadcast %cst_65 : f32 to vector<16x256xf32>
    %163 = arith.addf %162, %161 : vector<16x256xf32>
    %164 = arith.mulf %158, %163 : vector<16x256xf32>
    %c0_66 = arith.constant 0 : index
    %c0_67 = arith.constant 0 : index
    %165 = vector.load %arg12[%c0_66, %c0_67] : memref<256x128xf32, #tpu.memory_space<vmem>>, vector<256x128xf32>
    %cst_68 = arith.constant dense<0.000000e+00> : vector<16x128xf32>
    %166 = tpu.matmul %164, %165, %cst_68 {dimension_numbers = #tpu.dot_dimension_numbers<[1], [0], [0], [1], [0, 0, 1, 1], [], []>} : vector<16x256xf32>, vector<256x128xf32>, vector<16x128xf32> -> vector<16x128xf32>
    %c0_69 = arith.constant 0 : index
    %c0_70 = arith.constant 0 : index
    %167 = vector.load %arg13[%c0_69, %c0_70] : memref<1x128xf32, #tpu.memory_space<vmem>>, vector<1x128xf32>
    %168 = vector.broadcast %167 : vector<1x128xf32> to vector<16x128xf32>
    %169 = arith.addf %166, %168 : vector<16x128xf32>
    %170 = arith.addf %127, %169 : vector<16x128xf32>
    %cst_71 = arith.constant dense<0.000000e+00> : vector<16xf32>
    %171 = vector.multi_reduction <add>, %170, %cst_71 [1] : vector<16x128xf32> to vector<16xf32>
    %172 = vector.shape_cast %171 : vector<16xf32> to vector<16x1xf32>
    %cst_72 = arith.constant 1.280000e+02 : f32
    %173 = vector.broadcast %cst_72 : f32 to vector<16x1xf32>
    %174 = arith.divf %172, %173 : vector<16x1xf32>
    %175 = vector.broadcast %174 : vector<16x1xf32> to vector<16x128xf32>
    %176 = arith.subf %170, %175 : vector<16x128xf32>
    %177 = arith.mulf %176, %176 : vector<16x128xf32>
    %cst_73 = arith.constant dense<0.000000e+00> : vector<16xf32>
    %178 = vector.multi_reduction <add>, %177, %cst_73 [1] : vector<16x128xf32> to vector<16xf32>
    %179 = vector.shape_cast %178 : vector<16xf32> to vector<16x1xf32>
    %cst_74 = arith.constant 1.280000e+02 : f32
    %180 = vector.broadcast %cst_74 : f32 to vector<16x1xf32>
    %181 = arith.divf %179, %180 : vector<16x1xf32>
    %182 = vector.broadcast %174 : vector<16x1xf32> to vector<16x128xf32>
    %183 = arith.subf %170, %182 : vector<16x128xf32>
    %cst_75 = arith.constant 9.99999974E-6 : f32
    %184 = vector.broadcast %cst_75 : f32 to vector<16x1xf32>
    %185 = arith.addf %181, %184 : vector<16x1xf32>
    %186 = math.rsqrt %185 : vector<16x1xf32>
    %187 = vector.broadcast %186 : vector<16x1xf32> to vector<16x128xf32>
    %188 = arith.mulf %183, %187 : vector<16x128xf32>
    %c0_76 = arith.constant 0 : index
    %c0_77 = arith.constant 0 : index
    %189 = vector.load %arg14[%c0_76, %c0_77] : memref<1x128xf32, #tpu.memory_space<vmem>>, vector<1x128xf32>
    %190 = vector.broadcast %189 : vector<1x128xf32> to vector<16x128xf32>
    %191 = arith.mulf %188, %190 : vector<16x128xf32>
    %c0_78 = arith.constant 0 : index
    %c0_79 = arith.constant 0 : index
    %192 = vector.load %arg15[%c0_78, %c0_79] : memref<1x128xf32, #tpu.memory_space<vmem>>, vector<1x128xf32>
    %193 = vector.broadcast %192 : vector<1x128xf32> to vector<16x128xf32>
    %194 = arith.addf %191, %193 : vector<16x128xf32>
    %c0_80 = arith.constant 0 : index
    %c0_81 = arith.constant 0 : index
    %195 = vector.load %arg16[%c0_80, %c0_81] : memref<128x384xf32, #tpu.memory_space<vmem>>, vector<128x384xf32>
    %cst_82 = arith.constant dense<0.000000e+00> : vector<16x384xf32>
    %196 = tpu.matmul %194, %195, %cst_82 {dimension_numbers = #tpu.dot_dimension_numbers<[1], [0], [0], [1], [0, 0, 1, 1], [], []>} : vector<16x128xf32>, vector<128x384xf32>, vector<16x384xf32> -> vector<16x384xf32>
    %c0_83 = arith.constant 0 : index
    %c0_84 = arith.constant 0 : index
    %197 = vector.load %arg17[%c0_83, %c0_84] : memref<1x384xf32, #tpu.memory_space<vmem>>, vector<1x384xf32>
    %198 = vector.broadcast %197 : vector<1x384xf32> to vector<16x384xf32>
    %199 = arith.addf %196, %198 : vector<16x384xf32>
    %200 = vector.extract_strided_slice %199 {offsets = [0, 0], sizes = [16, 32], strides = [1, 1]} : vector<16x384xf32> to vector<16x32xf32>
    %201 = vector.extract_strided_slice %199 {offsets = [0, 128], sizes = [16, 32], strides = [1, 1]} : vector<16x384xf32> to vector<16x32xf32>
    %202 = vector.extract_strided_slice %199 {offsets = [0, 256], sizes = [16, 32], strides = [1, 1]} : vector<16x384xf32> to vector<16x32xf32>
    %cst_85 = arith.constant dense<0.000000e+00> : vector<16x16xf32>
    %203 = tpu.matmul %200, %201, %cst_85 {dimension_numbers = #tpu.dot_dimension_numbers<[1], [1], [0], [0], [0, 0, 1, 0], [], []>} : vector<16x32xf32>, vector<16x32xf32>, vector<16x16xf32> -> vector<16x16xf32>
    %cst_86 = arith.constant 0.176776692 : f32
    %204 = vector.broadcast %cst_86 : f32 to vector<16x16xf32>
    %205 = arith.mulf %203, %204 : vector<16x16xf32>
    %206 = arith.addf %205, %14 : vector<16x16xf32>
    %cst_87 = arith.constant dense<0xFF800000> : vector<16xf32>
    %207 = vector.multi_reduction <maximumf>, %206, %cst_87 [1] : vector<16x16xf32> to vector<16xf32>
    %208 = vector.shape_cast %207 : vector<16xf32> to vector<16x1xf32>
    %209 = vector.broadcast %208 : vector<16x1xf32> to vector<16x16xf32>
    %210 = arith.subf %206, %209 : vector<16x16xf32>
    %211 = math.exp %210 : vector<16x16xf32>
    %cst_88 = arith.constant dense<0.000000e+00> : vector<16xf32>
    %212 = vector.multi_reduction <add>, %211, %cst_88 [1] : vector<16x16xf32> to vector<16xf32>
    %213 = vector.shape_cast %212 : vector<16xf32> to vector<16x1xf32>
    %214 = tpu.reciprocal %213 {approx = true} : vector<16x1xf32> -> vector<16x1xf32>
    %215 = vector.broadcast %214 : vector<16x1xf32> to vector<16x16xf32>
    %216 = arith.mulf %211, %215 : vector<16x16xf32>
    %cst_89 = arith.constant dense<0.000000e+00> : vector<16x32xf32>
    %217 = tpu.matmul %216, %202, %cst_89 {dimension_numbers = #tpu.dot_dimension_numbers<[1], [0], [0], [1], [0, 0, 1, 1], [], []>} : vector<16x16xf32>, vector<16x32xf32>, vector<16x32xf32> -> vector<16x32xf32>
    %c0_90 = arith.constant 0 : index
    %c0_91 = arith.constant 0 : index
    %218 = vector.load %arg29[%c0_90, %c0_91] : memref<16x128xf32, #tpu.memory_space<vmem>>, vector<16x32xf32>
    tpu.vector_store %arg29[%c0_90, %c0_91], %217 {strides = array<i32>} : memref<16x128xf32, #tpu.memory_space<vmem>>, vector<16x32xf32>,
    %219 = vector.extract_strided_slice %199 {offsets = [0, 32], sizes = [16, 32], strides = [1, 1]} : vector<16x384xf32> to vector<16x32xf32>
    %220 = vector.extract_strided_slice %199 {offsets = [0, 160], sizes = [16, 32], strides = [1, 1]} : vector<16x384xf32> to vector<16x32xf32>
    %221 = vector.extract_strided_slice %199 {offsets = [0, 288], sizes = [16, 32], strides = [1, 1]} : vector<16x384xf32> to vector<16x32xf32>
    %cst_92 = arith.constant dense<0.000000e+00> : vector<16x16xf32>
    %222 = tpu.matmul %219, %220, %cst_92 {dimension_numbers = #tpu.dot_dimension_numbers<[1], [1], [0], [0], [0, 0, 1, 0], [], []>} : vector<16x32xf32>, vector<16x32xf32>, vector<16x16xf32> -> vector<16x16xf32>
    %cst_93 = arith.constant 0.176776692 : f32
    %223 = vector.broadcast %cst_93 : f32 to vector<16x16xf32>
    %224 = arith.mulf %222, %223 : vector<16x16xf32>
    %225 = arith.addf %224, %14 : vector<16x16xf32>
    %cst_94 = arith.constant dense<0xFF800000> : vector<16xf32>
    %226 = vector.multi_reduction <maximumf>, %225, %cst_94 [1] : vector<16x16xf32> to vector<16xf32>
    %227 = vector.shape_cast %226 : vector<16xf32> to vector<16x1xf32>
    %228 = vector.broadcast %227 : vector<16x1xf32> to vector<16x16xf32>
    %229 = arith.subf %225, %228 : vector<16x16xf32>
    %230 = math.exp %229 : vector<16x16xf32>
    %cst_95 = arith.constant dense<0.000000e+00> : vector<16xf32>
    %231 = vector.multi_reduction <add>, %230, %cst_95 [1] : vector<16x16xf32> to vector<16xf32>
    %232 = vector.shape_cast %231 : vector<16xf32> to vector<16x1xf32>
    %233 = tpu.reciprocal %232 {approx = true} : vector<16x1xf32> -> vector<16x1xf32>
    %234 = vector.broadcast %233 : vector<16x1xf32> to vector<16x16xf32>
    %235 = arith.mulf %230, %234 : vector<16x16xf32>
    %cst_96 = arith.constant dense<0.000000e+00> : vector<16x32xf32>
    %236 = tpu.matmul %235, %221, %cst_96 {dimension_numbers = #tpu.dot_dimension_numbers<[1], [0], [0], [1], [0, 0, 1, 1], [], []>} : vector<16x16xf32>, vector<16x32xf32>, vector<16x32xf32> -> vector<16x32xf32>
    %c0_97 = arith.constant 0 : index
    %c32_98 = arith.constant 32 : index
    %237 = vector.load %arg29[%c0_97, %c32_98] : memref<16x128xf32, #tpu.memory_space<vmem>>, vector<16x32xf32>
    tpu.vector_store %arg29[%c0_97, %c32_98], %236 {strides = array<i32>} : memref<16x128xf32, #tpu.memory_space<vmem>>, vector<16x32xf32>,
    %238 = vector.extract_strided_slice %199 {offsets = [0, 64], sizes = [16, 32], strides = [1, 1]} : vector<16x384xf32> to vector<16x32xf32>
    %239 = vector.extract_strided_slice %199 {offsets = [0, 192], sizes = [16, 32], strides = [1, 1]} : vector<16x384xf32> to vector<16x32xf32>
    %240 = vector.extract_strided_slice %199 {offsets = [0, 320], sizes = [16, 32], strides = [1, 1]} : vector<16x384xf32> to vector<16x32xf32>
    %cst_99 = arith.constant dense<0.000000e+00> : vector<16x16xf32>
    %241 = tpu.matmul %238, %239, %cst_99 {dimension_numbers = #tpu.dot_dimension_numbers<[1], [1], [0], [0], [0, 0, 1, 0], [], []>} : vector<16x32xf32>, vector<16x32xf32>, vector<16x16xf32> -> vector<16x16xf32>
    %cst_100 = arith.constant 0.176776692 : f32
    %242 = vector.broadcast %cst_100 : f32 to vector<16x16xf32>
    %243 = arith.mulf %241, %242 : vector<16x16xf32>
    %244 = arith.addf %243, %14 : vector<16x16xf32>
    %cst_101 = arith.constant dense<0xFF800000> : vector<16xf32>
    %245 = vector.multi_reduction <maximumf>, %244, %cst_101 [1] : vector<16x16xf32> to vector<16xf32>
    %246 = vector.shape_cast %245 : vector<16xf32> to vector<16x1xf32>
    %247 = vector.broadcast %246 : vector<16x1xf32> to vector<16x16xf32>
    %248 = arith.subf %244, %247 : vector<16x16xf32>
    %249 = math.exp %248 : vector<16x16xf32>
    %cst_102 = arith.constant dense<0.000000e+00> : vector<16xf32>
    %250 = vector.multi_reduction <add>, %249, %cst_102 [1] : vector<16x16xf32> to vector<16xf32>
    %251 = vector.shape_cast %250 : vector<16xf32> to vector<16x1xf32>
    %252 = tpu.reciprocal %251 {approx = true} : vector<16x1xf32> -> vector<16x1xf32>
    %253 = vector.broadcast %252 : vector<16x1xf32> to vector<16x16xf32>
    %254 = arith.mulf %249, %253 : vector<16x16xf32>
    %cst_103 = arith.constant dense<0.000000e+00> : vector<16x32xf32>
    %255 = tpu.matmul %254, %240, %cst_103 {dimension_numbers = #tpu.dot_dimension_numbers<[1], [0], [0], [1], [0, 0, 1, 1], [], []>} : vector<16x16xf32>, vector<16x32xf32>, vector<16x32xf32> -> vector<16x32xf32>
    %c0_104 = arith.constant 0 : index
    %c64_105 = arith.constant 64 : index
    %256 = vector.load %arg29[%c0_104, %c64_105] : memref<16x128xf32, #tpu.memory_space<vmem>>, vector<16x32xf32>
    tpu.vector_store %arg29[%c0_104, %c64_105], %255 {strides = array<i32>} : memref<16x128xf32, #tpu.memory_space<vmem>>, vector<16x32xf32>,
    %257 = vector.extract_strided_slice %199 {offsets = [0, 96], sizes = [16, 32], strides = [1, 1]} : vector<16x384xf32> to vector<16x32xf32>
    %258 = vector.extract_strided_slice %199 {offsets = [0, 224], sizes = [16, 32], strides = [1, 1]} : vector<16x384xf32> to vector<16x32xf32>
    %259 = vector.extract_strided_slice %199 {offsets = [0, 352], sizes = [16, 32], strides = [1, 1]} : vector<16x384xf32> to vector<16x32xf32>
    %cst_106 = arith.constant dense<0.000000e+00> : vector<16x16xf32>
    %260 = tpu.matmul %257, %258, %cst_106 {dimension_numbers = #tpu.dot_dimension_numbers<[1], [1], [0], [0], [0, 0, 1, 0], [], []>} : vector<16x32xf32>, vector<16x32xf32>, vector<16x16xf32> -> vector<16x16xf32>
    %cst_107 = arith.constant 0.176776692 : f32
    %261 = vector.broadcast %cst_107 : f32 to vector<16x16xf32>
    %262 = arith.mulf %260, %261 : vector<16x16xf32>
    %263 = arith.addf %262, %14 : vector<16x16xf32>
    %cst_108 = arith.constant dense<0xFF800000> : vector<16xf32>
    %264 = vector.multi_reduction <maximumf>, %263, %cst_108 [1] : vector<16x16xf32> to vector<16xf32>
    %265 = vector.shape_cast %264 : vector<16xf32> to vector<16x1xf32>
    %266 = vector.broadcast %265 : vector<16x1xf32> to vector<16x16xf32>
    %267 = arith.subf %263, %266 : vector<16x16xf32>
    %268 = math.exp %267 : vector<16x16xf32>
    %cst_109 = arith.constant dense<0.000000e+00> : vector<16xf32>
    %269 = vector.multi_reduction <add>, %268, %cst_109 [1] : vector<16x16xf32> to vector<16xf32>
    %270 = vector.shape_cast %269 : vector<16xf32> to vector<16x1xf32>
    %271 = tpu.reciprocal %270 {approx = true} : vector<16x1xf32> -> vector<16x1xf32>
    %272 = vector.broadcast %271 : vector<16x1xf32> to vector<16x16xf32>
    %273 = arith.mulf %268, %272 : vector<16x16xf32>
    %cst_110 = arith.constant dense<0.000000e+00> : vector<16x32xf32>
    %274 = tpu.matmul %273, %259, %cst_110 {dimension_numbers = #tpu.dot_dimension_numbers<[1], [0], [0], [1], [0, 0, 1, 1], [], []>} : vector<16x16xf32>, vector<16x32xf32>, vector<16x32xf32> -> vector<16x32xf32>
    %c0_111 = arith.constant 0 : index
    %c96_112 = arith.constant 96 : index
    %275 = vector.load %arg29[%c0_111, %c96_112] : memref<16x128xf32, #tpu.memory_space<vmem>>, vector<16x32xf32>
    tpu.vector_store %arg29[%c0_111, %c96_112], %274 {strides = array<i32>} : memref<16x128xf32, #tpu.memory_space<vmem>>, vector<16x32xf32>,
    %c0_113 = arith.constant 0 : index
    %c0_114 = arith.constant 0 : index
    %276 = vector.load %arg29[%c0_113, %c0_114] : memref<16x128xf32, #tpu.memory_space<vmem>>, vector<16x128xf32>
    %c0_115 = arith.constant 0 : index
    %c0_116 = arith.constant 0 : index
    %277 = vector.load %arg18[%c0_115, %c0_116] : memref<128x128xf32, #tpu.memory_space<vmem>>, vector<128x128xf32>
    %cst_117 = arith.constant dense<0.000000e+00> : vector<16x128xf32>
    %278 = tpu.matmul %276, %277, %cst_117 {dimension_numbers = #tpu.dot_dimension_numbers<[1], [0], [0], [1], [0, 0, 1, 1], [], []>} : vector<16x128xf32>, vector<128x128xf32>, vector<16x128xf32> -> vector<16x128xf32>
    %c0_118 = arith.constant 0 : index
    %c0_119 = arith.constant 0 : index
    %279 = vector.load %arg19[%c0_118, %c0_119] : memref<1x128xf32, #tpu.memory_space<vmem>>, vector<1x128xf32>
    %280 = vector.broadcast %279 : vector<1x128xf32> to vector<16x128xf32>
    %281 = arith.addf %278, %280 : vector<16x128xf32>
    %282 = arith.addf %170, %281 : vector<16x128xf32>
    %cst_120 = arith.constant dense<0.000000e+00> : vector<16xf32>
    %283 = vector.multi_reduction <add>, %282, %cst_120 [1] : vector<16x128xf32> to vector<16xf32>
    %284 = vector.shape_cast %283 : vector<16xf32> to vector<16x1xf32>
    %cst_121 = arith.constant 1.280000e+02 : f32
    %285 = vector.broadcast %cst_121 : f32 to vector<16x1xf32>
    %286 = arith.divf %284, %285 : vector<16x1xf32>
    %287 = vector.broadcast %286 : vector<16x1xf32> to vector<16x128xf32>
    %288 = arith.subf %282, %287 : vector<16x128xf32>
    %289 = arith.mulf %288, %288 : vector<16x128xf32>
    %cst_122 = arith.constant dense<0.000000e+00> : vector<16xf32>
    %290 = vector.multi_reduction <add>, %289, %cst_122 [1] : vector<16x128xf32> to vector<16xf32>
    %291 = vector.shape_cast %290 : vector<16xf32> to vector<16x1xf32>
    %cst_123 = arith.constant 1.280000e+02 : f32
    %292 = vector.broadcast %cst_123 : f32 to vector<16x1xf32>
    %293 = arith.divf %291, %292 : vector<16x1xf32>
    %294 = vector.broadcast %286 : vector<16x1xf32> to vector<16x128xf32>
    %295 = arith.subf %282, %294 : vector<16x128xf32>
    %cst_124 = arith.constant 9.99999974E-6 : f32
    %296 = vector.broadcast %cst_124 : f32 to vector<16x1xf32>
    %297 = arith.addf %293, %296 : vector<16x1xf32>
    %298 = math.rsqrt %297 : vector<16x1xf32>
    %299 = vector.broadcast %298 : vector<16x1xf32> to vector<16x128xf32>
    %300 = arith.mulf %295, %299 : vector<16x128xf32>
    %c0_125 = arith.constant 0 : index
    %c0_126 = arith.constant 0 : index
    %301 = vector.load %arg20[%c0_125, %c0_126] : memref<1x128xf32, #tpu.memory_space<vmem>>, vector<1x128xf32>
    %302 = vector.broadcast %301 : vector<1x128xf32> to vector<16x128xf32>
    %303 = arith.mulf %300, %302 : vector<16x128xf32>
    %c0_127 = arith.constant 0 : index
    %c0_128 = arith.constant 0 : index
    %304 = vector.load %arg21[%c0_127, %c0_128] : memref<1x128xf32, #tpu.memory_space<vmem>>, vector<1x128xf32>
    %305 = vector.broadcast %304 : vector<1x128xf32> to vector<16x128xf32>
    %306 = arith.addf %303, %305 : vector<16x128xf32>
    %c0_129 = arith.constant 0 : index
    %c0_130 = arith.constant 0 : index
    %307 = vector.load %arg22[%c0_129, %c0_130] : memref<128x256xf32, #tpu.memory_space<vmem>>, vector<128x256xf32>
    %cst_131 = arith.constant dense<0.000000e+00> : vector<16x256xf32>
    %308 = tpu.matmul %306, %307, %cst_131 {dimension_numbers = #tpu.dot_dimension_numbers<[1], [0], [0], [1], [0, 0, 1, 1], [], []>} : vector<16x128xf32>, vector<128x256xf32>, vector<16x256xf32> -> vector<16x256xf32>
    %c0_132 = arith.constant 0 : index
    %c0_133 = arith.constant 0 : index
    %309 = vector.load %arg23[%c0_132, %c0_133] : memref<1x256xf32, #tpu.memory_space<vmem>>, vector<1x256xf32>
    %310 = vector.broadcast %309 : vector<1x256xf32> to vector<16x256xf32>
    %311 = arith.addf %308, %310 : vector<16x256xf32>
    %cst_134 = arith.constant 5.000000e-01 : f32
    %312 = vector.broadcast %cst_134 : f32 to vector<16x256xf32>
    %313 = arith.mulf %312, %311 : vector<16x256xf32>
    %cst_135 = arith.constant 0.707106769 : f32
    %314 = vector.broadcast %cst_135 : f32 to vector<16x256xf32>
    %315 = arith.mulf %311, %314 : vector<16x256xf32>
    %316 = math.erf %315 : vector<16x256xf32>
    %cst_136 = arith.constant 1.000000e+00 : f32
    %317 = vector.broadcast %cst_136 : f32 to vector<16x256xf32>
    %318 = arith.addf %317, %316 : vector<16x256xf32>
    %319 = arith.mulf %313, %318 : vector<16x256xf32>
    %c0_137 = arith.constant 0 : index
    %c0_138 = arith.constant 0 : index
    %320 = vector.load %arg24[%c0_137, %c0_138] : memref<256x128xf32, #tpu.memory_space<vmem>>, vector<256x128xf32>
    %cst_139 = arith.constant dense<0.000000e+00> : vector<16x128xf32>
    %321 = tpu.matmul %319, %320, %cst_139 {dimension_numbers = #tpu.dot_dimension_numbers<[1], [0], [0], [1], [0, 0, 1, 1], [], []>} : vector<16x256xf32>, vector<256x128xf32>, vector<16x128xf32> -> vector<16x128xf32>
    %c0_140 = arith.constant 0 : index
    %c0_141 = arith.constant 0 : index
    %322 = vector.load %arg25[%c0_140, %c0_141] : memref<1x128xf32, #tpu.memory_space<vmem>>, vector<1x128xf32>
    %323 = vector.broadcast %322 : vector<1x128xf32> to vector<16x128xf32>
    %324 = arith.addf %321, %323 : vector<16x128xf32>
    %325 = arith.addf %282, %324 : vector<16x128xf32>
    %cst_142 = arith.constant dense<0.000000e+00> : vector<16xf32>
    %326 = vector.multi_reduction <add>, %325, %cst_142 [1] : vector<16x128xf32> to vector<16xf32>
    %327 = vector.shape_cast %326 : vector<16xf32> to vector<16x1xf32>
    %cst_143 = arith.constant 1.280000e+02 : f32
    %328 = vector.broadcast %cst_143 : f32 to vector<16x1xf32>
    %329 = arith.divf %327, %328 : vector<16x1xf32>
    %330 = vector.broadcast %329 : vector<16x1xf32> to vector<16x128xf32>
    %331 = arith.subf %325, %330 : vector<16x128xf32>
    %332 = arith.mulf %331, %331 : vector<16x128xf32>
    %cst_144 = arith.constant dense<0.000000e+00> : vector<16xf32>
    %333 = vector.multi_reduction <add>, %332, %cst_144 [1] : vector<16x128xf32> to vector<16xf32>
    %334 = vector.shape_cast %333 : vector<16xf32> to vector<16x1xf32>
    %cst_145 = arith.constant 1.280000e+02 : f32
    %335 = vector.broadcast %cst_145 : f32 to vector<16x1xf32>
    %336 = arith.divf %334, %335 : vector<16x1xf32>
    %337 = vector.broadcast %329 : vector<16x1xf32> to vector<16x128xf32>
    %338 = arith.subf %325, %337 : vector<16x128xf32>
    %cst_146 = arith.constant 9.99999974E-6 : f32
    %339 = vector.broadcast %cst_146 : f32 to vector<16x1xf32>
    %340 = arith.addf %336, %339 : vector<16x1xf32>
    %341 = math.rsqrt %340 : vector<16x1xf32>
    %342 = vector.broadcast %341 : vector<16x1xf32> to vector<16x128xf32>
    %343 = arith.mulf %338, %342 : vector<16x128xf32>
    %c0_147 = arith.constant 0 : index
    %c0_148 = arith.constant 0 : index
    %344 = vector.load %arg26[%c0_147, %c0_148] : memref<1x128xf32, #tpu.memory_space<vmem>>, vector<1x128xf32>
    %345 = vector.broadcast %344 : vector<1x128xf32> to vector<16x128xf32>
    %346 = arith.mulf %343, %345 : vector<16x128xf32>
    %c0_149 = arith.constant 0 : index
    %c0_150 = arith.constant 0 : index
    %347 = vector.load %arg27[%c0_149, %c0_150] : memref<1x128xf32, #tpu.memory_space<vmem>>, vector<1x128xf32>
    %348 = vector.broadcast %347 : vector<1x128xf32> to vector<16x128xf32>
    %349 = arith.addf %346, %348 : vector<16x128xf32>
    %c0_151 = arith.constant 0 : index
    %c0_152 = arith.constant 0 : index
    %350 = vector.load %arg28[%c0_151, %c0_152] : memref<16x128xf32, #tpu.memory_space<vmem>>, vector<16x128xf32>
    tpu.vector_store %arg28[%c0_151, %c0_152], %349 {strides = array<i32>} : memref<16x128xf32, #tpu.memory_space<vmem>>, vector<16x128xf32>,
    return
  }
  func.func @transform_0(%arg0: i32) -> (i32, i32) {
    %c0_i32 = arith.constant 0 : i32
    %c0_i32_0 = arith.constant 0 : i32
    %c0_i32_1 = arith.constant 0 : i32
    return %c0_i32, %c0_i32_0 : i32, i32
  }
  func.func @transform_1(%arg0: i32) -> (i32, i32) {
    %c0_i32 = arith.constant 0 : i32
    %c0_i32_0 = arith.constant 0 : i32
    %c0_i32_1 = arith.constant 0 : i32
    return %c0_i32, %c0_i32_0 : i32, i32
  }
  func.func @transform_2(%arg0: i32) -> (i32, i32) {
    %c0_i32 = arith.constant 0 : i32
    %c0_i32_0 = arith.constant 0 : i32
    %c0_i32_1 = arith.constant 0 : i32
    return %c0_i32, %c0_i32_0 : i32, i32
  }
  func.func @transform_3(%arg0: i32) -> (i32, i32) {
    %c0_i32 = arith.constant 0 : i32
    %c0_i32_0 = arith.constant 0 : i32
    %c0_i32_1 = arith.constant 0 : i32
    return %c0_i32, %c0_i32_0 : i32, i32
  }
  func.func @transform_4(%arg0: i32) -> (i32, i32) {
    %c0_i32 = arith.constant 0 : i32
    %c0_i32_0 = arith.constant 0 : i32
    %c0_i32_1 = arith.constant 0 : i32
    return %c0_i32, %c0_i32_0 : i32, i32
  }
  func.func @transform_5(%arg0: i32) -> (i32, i32) {
    %c0_i32 = arith.constant 0 : i32
    %c0_i32_0 = arith.constant 0 : i32
    %c0_i32_1 = arith.constant 0 : i32
    return %c0_i32, %c0_i32_0 : i32, i32
  }
  func.func @transform_6(%arg0: i32) -> (i32, i32) {
    %c0_i32 = arith.constant 0 : i32
    %c0_i32_0 = arith.constant 0 : i32
    %c0_i32_1 = arith.constant 0 : i32
    return %c0_i32, %c0_i32_0 : i32, i32
  }
  func.func @transform_7(%arg0: i32) -> (i32, i32) {
    %c0_i32 = arith.constant 0 : i32
    %c0_i32_0 = arith.constant 0 : i32
    %c0_i32_1 = arith.constant 0 : i32
    return %c0_i32, %c0_i32_0 : i32, i32
  }
  func.func @transform_8(%arg0: i32) -> (i32, i32) {
    %c0_i32 = arith.constant 0 : i32
    %c0_i32_0 = arith.constant 0 : i32
    %c0_i32_1 = arith.constant 0 : i32
    return %c0_i32, %c0_i32_0 : i32, i32
  }
  func.func @transform_9(%arg0: i32) -> (i32, i32) {
    %c0_i32 = arith.constant 0 : i32
    %c0_i32_0 = arith.constant 0 : i32
    %c0_i32_1 = arith.constant 0 : i32
    return %c0_i32, %c0_i32_0 : i32, i32
  }
  func.func @transform_10(%arg0: i32) -> (i32, i32) {
    %c0_i32 = arith.constant 0 : i32
    %c0_i32_0 = arith.constant 0 : i32
    %c0_i32_1 = arith.constant 0 : i32
    return %c0_i32, %c0_i32_0 : i32, i32
  }
  func.func @transform_11(%arg0: i32) -> (i32, i32) {
    %c0_i32 = arith.constant 0 : i32
    %c0_i32_0 = arith.constant 0 : i32
    %c0_i32_1 = arith.constant 0 : i32
    return %c0_i32, %c0_i32_0 : i32, i32
  }
  func.func @transform_12(%arg0: i32) -> (i32, i32) {
    %c0_i32 = arith.constant 0 : i32
    %c0_i32_0 = arith.constant 0 : i32
    %c0_i32_1 = arith.constant 0 : i32
    return %c0_i32, %c0_i32_0 : i32, i32
  }
  func.func @transform_13(%arg0: i32) -> (i32, i32) {
    %c0_i32 = arith.constant 0 : i32
    %c0_i32_0 = arith.constant 0 : i32
    %c0_i32_1 = arith.constant 0 : i32
    return %c0_i32, %c0_i32_0 : i32, i32
  }
  func.func @transform_14(%arg0: i32) -> (i32, i32) {
    %c0_i32 = arith.constant 0 : i32
    %c0_i32_0 = arith.constant 0 : i32
    %c0_i32_1 = arith.constant 0 : i32
    return %c0_i32, %c0_i32_0 : i32, i32
  }
  func.func @transform_15(%arg0: i32) -> (i32, i32) {
    %c0_i32 = arith.constant 0 : i32
    %c0_i32_0 = arith.constant 0 : i32
    %c0_i32_1 = arith.constant 0 : i32
    return %c0_i32, %c0_i32_0 : i32, i32
  }
  func.func @transform_16(%arg0: i32) -> (i32, i32) {
    %c0_i32 = arith.constant 0 : i32
    %c0_i32_0 = arith.constant 0 : i32
    %c0_i32_1 = arith.constant 0 : i32
    return %c0_i32, %c0_i32_0 : i32, i32
  }
  func.func @transform_17(%arg0: i32) -> (i32, i32) {
    %c0_i32 = arith.constant 0 : i32
    %c0_i32_0 = arith.constant 0 : i32
    %c0_i32_1 = arith.constant 0 : i32
    return %c0_i32, %c0_i32_0 : i32, i32
  }
  func.func @transform_18(%arg0: i32) -> (i32, i32) {
    %c0_i32 = arith.constant 0 : i32
    %c0_i32_0 = arith.constant 0 : i32
    %c0_i32_1 = arith.constant 0 : i32
    return %c0_i32, %c0_i32_0 : i32, i32
  }
  func.func @transform_19(%arg0: i32) -> (i32, i32) {
    %c0_i32 = arith.constant 0 : i32
    %c0_i32_0 = arith.constant 0 : i32
    %c0_i32_1 = arith.constant 0 : i32
    return %c0_i32, %c0_i32_0 : i32, i32
  }
  func.func @transform_20(%arg0: i32) -> (i32, i32) {
    %c0_i32 = arith.constant 0 : i32
    %c0_i32_0 = arith.constant 0 : i32
    %c0_i32_1 = arith.constant 0 : i32
    return %c0_i32, %c0_i32_0 : i32, i32
  }
  func.func @transform_21(%arg0: i32) -> (i32, i32) {
    %c0_i32 = arith.constant 0 : i32
    %c0_i32_0 = arith.constant 0 : i32
    %c0_i32_1 = arith.constant 0 : i32
    return %c0_i32, %c0_i32_0 : i32, i32
  }
  func.func @transform_22(%arg0: i32) -> (i32, i32) {
    %c0_i32 = arith.constant 0 : i32
    %c0_i32_0 = arith.constant 0 : i32
    %c0_i32_1 = arith.constant 0 : i32
    return %c0_i32, %c0_i32_0 : i32, i32
  }
  func.func @transform_23(%arg0: i32) -> (i32, i32) {
    %c0_i32 = arith.constant 0 : i32
    %c0_i32_0 = arith.constant 0 : i32
    %c0_i32_1 = arith.constant 0 : i32
    return %c0_i32, %c0_i32_0 : i32, i32
  }
  func.func @transform_24(%arg0: i32) -> (i32, i32) {
    %c0_i32 = arith.constant 0 : i32
    %c0_i32_0 = arith.constant 0 : i32
    %c0_i32_1 = arith.constant 0 : i32
    return %c0_i32, %c0_i32_0 : i32, i32
  }
  func.func @transform_25(%arg0: i32) -> (i32, i32) {
    %c0_i32 = arith.constant 0 : i32
    %c0_i32_0 = arith.constant 0 : i32
    %c0_i32_1 = arith.constant 0 : i32
    return %c0_i32, %c0_i32_0 : i32, i32
  }
  func.func @transform_26(%arg0: i32) -> (i32, i32) {
    %c0_i32 = arith.constant 0 : i32
    %c0_i32_0 = arith.constant 0 : i32
    %c0_i32_1 = arith.constant 0 : i32
    return %c0_i32, %c0_i32_0 : i32, i32
  }
  func.func @transform_27(%arg0: i32) -> (i32, i32) {
    %c0_i32 = arith.constant 0 : i32
    %c0_i32_0 = arith.constant 0 : i32
    %c0_i32_1 = arith.constant 0 : i32
    return %c0_i32, %c0_i32_0 : i32, i32
  }
}

</mosaic_0001>

<llo_original>
// kernel: localizer_vit_forward.3
$region0: #{localizer_vit_forward.3}
  #allocation0 [shape = 'u32[]', space=smem, size = 0x4, offset = 0x4, fixed_abs, tag = 'smem constant byte address 0x4 - core index']
  #allocation1 [shape = 'u32[144,128]{1,0:T(1,128)}', space=vmem, size = 0x12000, scoped, tag = 'internal scratch']
  #allocation2 [shape = 'f32[16,128]{1,0:T(8,128)}', space=vmem, size = 0x2000, scoped, tag = 'scratch operand']
  %s0 = inlined_call_operand.vmem [shape: f32[16,128], index: 0, kind: input, shape index: {}]
  %s1 = inlined_call_operand.vmem [shape: f32[1,128], index: 1, kind: input, shape index: {}]
  %s2 = inlined_call_operand.vmem [shape: f32[1,128], index: 2, kind: input, shape index: {}]
  %s3 = inlined_call_operand.vmem [shape: f32[128,384], index: 3, kind: input, shape index: {}]
  %s4 = inlined_call_operand.vmem [shape: f32[1,384], index: 4, kind: input, shape index: {}]
  %s5 = inlined_call_operand.vmem [shape: f32[128,128], index: 5, kind: input, shape index: {}]
  %s6 = inlined_call_operand.vmem [shape: f32[1,128], index: 6, kind: input, shape index: {}]
  %s7 = inlined_call_operand.vmem [shape: f32[1,128], index: 7, kind: input, shape index: {}]
  %s8 = inlined_call_operand.vmem [shape: f32[1,128], index: 8, kind: input, shape index: {}]
  %s9 = inlined_call_operand.vmem [shape: f32[128,256], index: 9, kind: input, shape index: {}]
  %s10 = inlined_call_operand.vmem [shape: f32[1,256], index: 10, kind: input, shape index: {}]
  %s11 = inlined_call_operand.vmem [shape: f32[256,128], index: 11, kind: input, shape index: {}]
  %s12 = inlined_call_operand.vmem [shape: f32[1,128], index: 12, kind: input, shape index: {}]
  %s13 = inlined_call_operand.vmem [shape: f32[1,128], index: 13, kind: input, shape index: {}]
  %s14 = inlined_call_operand.vmem [shape: f32[1,128], index: 14, kind: input, shape index: {}]
  %s15 = inlined_call_operand.vmem [shape: f32[128,384], index: 15, kind: input, shape index: {}]
  %s16 = inlined_call_operand.vmem [shape: f32[1,384], index: 16, kind: input, shape index: {}]
  %s17 = inlined_call_operand.vmem [shape: f32[128,128], index: 17, kind: input, shape index: {}]
  %s18 = inlined_call_operand.vmem [shape: f32[1,128], index: 18, kind: input, shape index: {}]
  %s19 = inlined_call_operand.vmem [shape: f32[1,128], index: 19, kind: input, shape index: {}]
  %s20 = inlined_call_operand.vmem [shape: f32[1,128], index: 20, kind: input, shape index: {}]
  %s21 = inlined_call_operand.vmem [shape: f32[128,256], index: 21, kind: input, shape index: {}]
  %s22 = inlined_call_operand.vmem [shape: f32[1,256], index: 22, kind: input, shape index: {}]
  %s23 = inlined_call_operand.vmem [shape: f32[256,128], index: 23, kind: input, shape index: {}]
  %s24 = inlined_call_operand.vmem [shape: f32[1,128], index: 24, kind: input, shape index: {}]
  %s25 = inlined_call_operand.vmem [shape: f32[1,128], index: 25, kind: input, shape index: {}]
  %s26 = inlined_call_operand.vmem [shape: f32[1,128], index: 26, kind: input, shape index: {}]
  %s27 = inlined_call_operand.vmem [shape: f32[16,128], index: 27, kind: output, shape index: {}]
  %s28 = sld [smem:[#allocation0]]
  $region118: #{localizer_vit_forward.3} parent=0
    _
  %s30 = ssub.s32 1, %s28
  %s31 = scalar_select 0, %s30, %s28
  // Predicated region
  $region2: #{localizer_vit_forward.3} parent=0 // pred_check
    _
  $region3: #{localizer_vit_forward.3} parent=0 // pred_check_branch
    %33 = sbr.rel (0) target = $region5
  $region4: #{localizer_vit_forward.3} parent=0 // pred_region
    _
  $region5: #{localizer_vit_forward.3} parent=0 // pred_fallthru
    _
  // Predicated region
  $region6: #{localizer_vit_forward.3} parent=0 // pred_check
    _
  $region7: #{localizer_vit_forward.3} parent=0 // pred_check_branch
    %35 = sbr.rel (0) target = $region9
  $region8: #{localizer_vit_forward.3} parent=0 // pred_region
    _
  $region9: #{localizer_vit_forward.3} parent=0 // pred_fallthru
    _
  // Predicated region
  $region10: #{localizer_vit_forward.3} parent=0 // pred_check
    _
  $region11: #{localizer_vit_forward.3} parent=0 // pred_check_branch
    %37 = sbr.rel (0) target = $region13
  $region12: #{localizer_vit_forward.3} parent=0 // pred_region
    _
  $region13: #{localizer_vit_forward.3} parent=0 // pred_fallthru
    _
  // Predicated region
  $region14: #{localizer_vit_forward.3} parent=0 // pred_check
    _
  $region15: #{localizer_vit_forward.3} parent=0 // pred_check_branch
    %39 = sbr.rel (0) target = $region17
  $region16: #{localizer_vit_forward.3} parent=0 // pred_region
    _
  $region17: #{localizer_vit_forward.3} parent=0 // pred_fallthru
    _
  // Predicated region
  $region18: #{localizer_vit_forward.3} parent=0 // pred_check
    _
  $region19: #{localizer_vit_forward.3} parent=0 // pred_check_branch
    %41 = sbr.rel (0) target = $region21
  $region20: #{localizer_vit_forward.3} parent=0 // pred_region
    _
  $region21: #{localizer_vit_forward.3} parent=0 // pred_fallthru
    _
  // Predicated region
  $region22: #{localizer_vit_forward.3} parent=0 // pred_check
    _
  $region23: #{localizer_vit_forward.3} parent=0 // pred_check_branch
    %43 = sbr.rel (0) target = $region25
  $region24: #{localizer_vit_forward.3} parent=0 // pred_region
    _
  $region25: #{localizer_vit_forward.3} parent=0 // pred_fallthru
    _
  // Predicated region
  $region26: #{localizer_vit_forward.3} parent=0 // pred_check
    _
  $region27: #{localizer_vit_forward.3} parent=0 // pred_check_branch
    %45 = sbr.rel (0) target = $region29
  $region28: #{localizer_vit_forward.3} parent=0 // pred_region
    _
  $region29: #{localizer_vit_forward.3} parent=0 // pred_fallthru
    _
  // Predicated region
  $region30: #{localizer_vit_forward.3} parent=0 // pred_check
    _
  $region31: #{localizer_vit_forward.3} parent=0 // pred_check_branch
    %47 = sbr.rel (0) target = $region33
  $region32: #{localizer_vit_forward.3} parent=0 // pred_region
    _
  $region33: #{localizer_vit_forward.3} parent=0 // pred_fallthru
    _
  // Predicated region
  $region34: #{localizer_vit_forward.3} parent=0 // pred_check
    _
  $region35: #{localizer_vit_forward.3} parent=0 // pred_check_branch
    %49 = sbr.rel (0) target = $region37
  $region36: #{localizer_vit_forward.3} parent=0 // pred_region
    _
  $region37: #{localizer_vit_forward.3} parent=0 // pred_fallthru
    _
  // Predicated region
  $region38: #{localizer_vit_forward.3} parent=0 // pred_check
    _
  $region39: #{localizer_vit_forward.3} parent=0 // pred_check_branch
    %51 = sbr.rel (0) target = $region41
  $region40: #{localizer_vit_forward.3} parent=0 // pred_region
    _
  $region41: #{localizer_vit_forward.3} parent=0 // pred_fallthru
    _
  // Predicated region
  $region42: #{localizer_vit_forward.3} parent=0 // pred_check
    _
  $region43: #{localizer_vit_forward.3} parent=0 // pred_check_branch
    %53 = sbr.rel (0) target = $region45
  $region44: #{localizer_vit_forward.3} parent=0 // pred_region
    _
  $region45: #{localizer_vit_forward.3} parent=0 // pred_fallthru
    _
  // Predicated region
  $region46: #{localizer_vit_forward.3} parent=0 // pred_check
    _
  $region47: #{localizer_vit_forward.3} parent=0 // pred_check_branch
    %55 = sbr.rel (0) target = $region49
  $region48: #{localizer_vit_forward.3} parent=0 // pred_region
    _
  $region49: #{localizer_vit_forward.3} parent=0 // pred_fallthru
    _
  // Predicated region
  $region50: #{localizer_vit_forward.3} parent=0 // pred_check
    _
  $region51: #{localizer_vit_forward.3} parent=0 // pred_check_branch
    %57 = sbr.rel (0) target = $region53
  $region52: #{localizer_vit_forward.3} parent=0 // pred_region
    _
  $region53: #{localizer_vit_forward.3} parent=0 // pred_fallthru
    _
  // Predicated region
  $region54: #{localizer_vit_forward.3} parent=0 // pred_check
    _
  $region55: #{localizer_vit_forward.3} parent=0 // pred_check_branch
    %59 = sbr.rel (0) target = $region57
  $region56: #{localizer_vit_forward.3} parent=0 // pred_region
    _
  $region57: #{localizer_vit_forward.3} parent=0 // pred_fallthru
    _
  // Predicated region
  $region58: #{localizer_vit_forward.3} parent=0 // pred_check
    _
  $region59: #{localizer_vit_forward.3} parent=0 // pred_check_branch
    %61 = sbr.rel (0) target = $region61
  $region60: #{localizer_vit_forward.3} parent=0 // pred_region
    _
  $region61: #{localizer_vit_forward.3} parent=0 // pred_fallthru
    _
  // Predicated region
  $region62: #{localizer_vit_forward.3} parent=0 // pred_check
    _
  $region63: #{localizer_vit_forward.3} parent=0 // pred_check_branch
    %63 = sbr.rel (0) target = $region65
  $region64: #{localizer_vit_forward.3} parent=0 // pred_region
    _
  $region65: #{localizer_vit_forward.3} parent=0 // pred_fallthru
    _
  // Predicated region
  $region66: #{localizer_vit_forward.3} parent=0 // pred_check
    _
  $region67: #{localizer_vit_forward.3} parent=0 // pred_check_branch
    %65 = sbr.rel (0) target = $region69
  $region68: #{localizer_vit_forward.3} parent=0 // pred_region
    _
  $region69: #{localizer_vit_forward.3} parent=0 // pred_fallthru
    _
  // Predicated region
  $region70: #{localizer_vit_forward.3} parent=0 // pred_check
    _
  $region71: #{localizer_vit_forward.3} parent=0 // pred_check_branch
    %67 = sbr.rel (0) target = $region73
  $region72: #{localizer_vit_forward.3} parent=0 // pred_region
    _
  $region73: #{localizer_vit_forward.3} parent=0 // pred_fallthru
    _
  // Predicated region
  $region74: #{localizer_vit_forward.3} parent=0 // pred_check
    _
  $region75: #{localizer_vit_forward.3} parent=0 // pred_check_branch
    %69 = sbr.rel (0) target = $region77
  $region76: #{localizer_vit_forward.3} parent=0 // pred_region
    _
  $region77: #{localizer_vit_forward.3} parent=0 // pred_fallthru
    _
  // Predicated region
  $region78: #{localizer_vit_forward.3} parent=0 // pred_check
    _
  $region79: #{localizer_vit_forward.3} parent=0 // pred_check_branch
    %71 = sbr.rel (0) target = $region81
  $region80: #{localizer_vit_forward.3} parent=0 // pred_region
    _
  $region81: #{localizer_vit_forward.3} parent=0 // pred_fallthru
    _
  // Predicated region
  $region82: #{localizer_vit_forward.3} parent=0 // pred_check
    _
  $region83: #{localizer_vit_forward.3} parent=0 // pred_check_branch
    %73 = sbr.rel (0) target = $region85
  $region84: #{localizer_vit_forward.3} parent=0 // pred_region
    _
  $region85: #{localizer_vit_forward.3} parent=0 // pred_fallthru
    _
  // Predicated region
  $region86: #{localizer_vit_forward.3} parent=0 // pred_check
    _
  $region87: #{localizer_vit_forward.3} parent=0 // pred_check_branch
    %75 = sbr.rel (0) target = $region89
  $region88: #{localizer_vit_forward.3} parent=0 // pred_region
    _
  $region89: #{localizer_vit_forward.3} parent=0 // pred_fallthru
    _
  // Predicated region
  $region90: #{localizer_vit_forward.3} parent=0 // pred_check
    _
  $region91: #{localizer_vit_forward.3} parent=0 // pred_check_branch
    %77 = sbr.rel (0) target = $region93
  $region92: #{localizer_vit_forward.3} parent=0 // pred_region
    _
  $region93: #{localizer_vit_forward.3} parent=0 // pred_fallthru
    _
  // Predicated region
  $region94: #{localizer_vit_forward.3} parent=0 // pred_check
    _
  $region95: #{localizer_vit_forward.3} parent=0 // pred_check_branch
    %79 = sbr.rel (0) target = $region97
  $region96: #{localizer_vit_forward.3} parent=0 // pred_region
    _
  $region97: #{localizer_vit_forward.3} parent=0 // pred_fallthru
    _
  // Predicated region
  $region98: #{localizer_vit_forward.3} parent=0 // pred_check
    _
  $region99: #{localizer_vit_forward.3} parent=0 // pred_check_branch
    %81 = sbr.rel (0) target = $region101
  $region100: #{localizer_vit_forward.3} parent=0 // pred_region
    _
  $region101: #{localizer_vit_forward.3} parent=0 // pred_fallthru
    _
  // Predicated region
  $region102: #{localizer_vit_forward.3} parent=0 // pred_check
    _
  $region103: #{localizer_vit_forward.3} parent=0 // pred_check_branch
    %83 = sbr.rel (0) target = $region105
  $region104: #{localizer_vit_forward.3} parent=0 // pred_region
    _
  $region105: #{localizer_vit_forward.3} parent=0 // pred_fallthru
    _
  // Predicated region
  $region106: #{localizer_vit_forward.3} parent=0 // pred_check
    _
  $region107: #{localizer_vit_forward.3} parent=0 // pred_check_branch
    %85 = sbr.rel (0) target = $region109
  $region108: #{localizer_vit_forward.3} parent=0 // pred_region
    _
  $region109: #{localizer_vit_forward.3} parent=0 // pred_fallthru
    _
  %v86 = vlaneseq
  %v87 = vshrl.u32 %v86, 7
  %v88 = vadd.s32 %v87, 8
  %v89 = vlaneseq
  %v90 = vand.u32 %v89, 127
  %v91 = vshra.s32 %v87, 3
  %v92 = vshra.s32 %v88, 3
  %v93 = vshra.s32 %v90, 3
  %v94 = vand.u32 %v90, 7
  %vm95 = vcmp.eq.s32.totalorder %v91, %v93
  %vm96 = vcmp.eq.s32.totalorder %v92, %v93
  %vm97 = vcmp.lt.s32.totalorder %v94, 5
  %vm98 = vmand %vm95, %vm97
  %vm99 = vmand %vm96, %vm97
  %v100 = vsel %vm98, 0.0, -1e+09
  %v101 = vsel %vm99, 0.0, -1e+09
  %v102 = vld [vmem:[%s0] sm:$0xff]
  %v103 = vld [vmem:[%s0 + $0x8] sm:$0xff]
  %104 = vadd.xlane.f32.xlu0 %v102
  %v105 = vpop.xlane.xlu0 %104
  %106 = vadd.xlane.f32.xlu0 %v103
  %v107 = vpop.xlane.xlu0 %106
  %v108 = vrcp.pop 128.0
  %v109 = vmul.f32 %v105, %v108
  %v110 = vmul.f32 %v107, %v108
  %v111 = vsub.f32 %v102, %v109
  %v112 = vsub.f32 %v103, %v110
  %v113 = vmul.f32 %v111, %v111
  %v114 = vmul.f32 %v112, %v112
  %115 = vadd.xlane.f32.xlu0 %v113
  %v116 = vpop.xlane.xlu0 %115
  %117 = vadd.xlane.f32.xlu0 %v114
  %v118 = vpop.xlane.xlu0 %117
  %v119 = vmul.f32 %v116, %v108
  %v120 = vmul.f32 %v118, %v108
  %v121 = vadd.f32 %v119, 1e-05
  %v122 = vadd.f32 %v120, 1e-05
  %v123 = vrsqrt.pop %v121
  %v124 = vrsqrt.pop %v122
  %v125 = vmul.f32 %v111, %v123
  %v126 = vmul.f32 %v112, %v124
  %v127 = vld [vmem:[%s1] sm:$0x1]
  %v129 = vlaneseq
  %v130 = vshrl.u32 %v129, 7
  %v131 = vsub.s32 0, %v130
  %v132 = vrot.slane %v127, %v131
  %v134 = vmul.f32 %v125, %v132
  %v135 = vmul.f32 %v126, %v132
  %v136 = vld [vmem:[%s2] sm:$0x1]
  %v138 = vlaneseq
  %v139 = vshrl.u32 %v138, 7
  %v140 = vsub.s32 0, %v139
  %v141 = vrot.slane %v136, %v140
  %v143 = vadd.f32 %v134, %v141
  %v144 = vadd.f32 %v135, %v141
  %v145 = vld [vmem:[%s3] sm:$0xff]
  %v146 = vld [vmem:[%s3 + $0x8] sm:$0xff]
  %v147 = vld [vmem:[%s3 + $0x10] sm:$0xff]
  %v148 = vld [vmem:[%s3 + $0x18] sm:$0xff]
  %v149 = vld [vmem:[%s3 + $0x20] sm:$0xff]
  %v150 = vld [vmem:[%s3 + $0x28] sm:$0xff]
  %v151 = vld [vmem:[%s3 + $0x30] sm:$0xff]
  %v152 = vld [vmem:[%s3 + $0x38] sm:$0xff]
  %v153 = vld [vmem:[%s3 + $0x40] sm:$0xff]
  %v154 = vld [vmem:[%s3 + $0x48] sm:$0xff]
  %v155 = vld [vmem:[%s3 + $0x50] sm:$0xff]
  %v156 = vld [vmem:[%s3 + $0x58] sm:$0xff]
  %v157 = vld [vmem:[%s3 + $0x60] sm:$0xff]
  %v158 = vld [vmem:[%s3 + $0x68] sm:$0xff]
  %v159 = vld [vmem:[%s3 + $0x70] sm:$0xff]
  %v160 = vld [vmem:[%s3 + $0x78] sm:$0xff]
  %v161 = vld [vmem:[%s3 + $0x80] sm:$0xff]
  %v162 = vld [vmem:[%s3 + $0x88] sm:$0xff]
  %v163 = vld [vmem:[%s3 + $0x90] sm:$0xff]
  %v164 = vld [vmem:[%s3 + $0x98] sm:$0xff]
  %v165 = vld [vmem:[%s3 + $0xa0] sm:$0xff]
  %v166 = vld [vmem:[%s3 + $0xa8] sm:$0xff]
  %v167 = vld [vmem:[%s3 + $0xb0] sm:$0xff]
  %v168 = vld [vmem:[%s3 + $0xb8] sm:$0xff]
  %v169 = vld [vmem:[%s3 + $0xc0] sm:$0xff]
  %v170 = vld [vmem:[%s3 + $0xc8] sm:$0xff]
  %v171 = vld [vmem:[%s3 + $0xd0] sm:$0xff]
  %v172 = vld [vmem:[%s3 + $0xd8] sm:$0xff]
  %v173 = vld [vmem:[%s3 + $0xe0] sm:$0xff]
  %v174 = vld [vmem:[%s3 + $0xe8] sm:$0xff]
  %v175 = vld [vmem:[%s3 + $0xf0] sm:$0xff]
  %v176 = vld [vmem:[%s3 + $0xf8] sm:$0xff]
  %v177 = vld [vmem:[%s3 + $0x100] sm:$0xff]
  %v178 = vld [vmem:[%s3 + $0x108] sm:$0xff]
  %v179 = vld [vmem:[%s3 + $0x110] sm:$0xff]
  %v180 = vld [vmem:[%s3 + $0x118] sm:$0xff]
  %v181 = vld [vmem:[%s3 + $0x120] sm:$0xff]
  %v182 = vld [vmem:[%s3 + $0x128] sm:$0xff]
  %v183 = vld [vmem:[%s3 + $0x130] sm:$0xff]
  %v184 = vld [vmem:[%s3 + $0x138] sm:$0xff]
  %v185 = vld [vmem:[%s3 + $0x140] sm:$0xff]
  %v186 = vld [vmem:[%s3 + $0x148] sm:$0xff]
  %v187 = vld [vmem:[%s3 + $0x150] sm:$0xff]
  %v188 = vld [vmem:[%s3 + $0x158] sm:$0xff]
  %v189 = vld [vmem:[%s3 + $0x160] sm:$0xff]
  %v190 = vld [vmem:[%s3 + $0x168] sm:$0xff]
  %v191 = vld [vmem:[%s3 + $0x170] sm:$0xff]
  %v192 = vld [vmem:[%s3 + $0x178] sm:$0xff]
  %v193 = vld [vmem:[%s4] sm:$0x7]
  %v195 = vlaneseq
  %v196 = vshrl.u32 %v195, 7
  %v197 = vsub.s32 0, %v196
  %v198 = vrot.slane %v193, %v197
  %v199 = vlaneseq
  %v200 = vshrl.u32 %v199, 7
  %v201 = vsub.s32 1, %v200
  %v202 = vrot.slane %v193, %v201
  %v203 = vlaneseq
  %v204 = vshrl.u32 %v203, 7
  %v205 = vsub.s32 2, %v204
  %v206 = vrot.slane %v193, %v205
  %210 = vmatprep.subr.mxu0 %v191
  %211 = vmatpush1.msra.mxu0 %v190
  %212 = vmatprep.subr.mxu0 %v188
  %213 = vmatpush1.msra.mxu0 %v187
  %214 = vmatprep.subr.mxu0 %v185
  %215 = vmatpush1.msra.mxu0 %v184
  %216 = vmatprep.subr.mxu0 %v182
  %217 = vmatpush1.msra.mxu0 %v181
  %218 = vmatprep.subr.mxu0 %v179
  %219 = vmatpush1.msra.mxu0 %v178
  %220 = vmatprep.subr.mxu0 %v176
  %221 = vmatpush1.msra.mxu0 %v175
  %222 = vmatprep.subr.mxu0 %v173
  %223 = vmatpush1.msra.mxu0 %v172
  %224 = vmatprep.subr.mxu0 %v170
  %225 = vmatpush1.msra.mxu0 %v169
  %226 = vmatprep.subr.mxu0 %v167
  %227 = vmatpush1.msra.mxu0 %v166
  %228 = vmatprep.subr.mxu0 %v164
  %229 = vmatpush1.msra.mxu0 %v163
  %230 = vmatprep.subr.mxu0 %v161
  %231 = vmatpush1.msra.mxu0 %v160
  %232 = vmatprep.subr.mxu0 %v158
  %233 = vmatpush1.msra.mxu0 %v157
  %234 = vmatprep.subr.mxu0 %v155
  %235 = vmatpush1.msra.mxu0 %v154
  %236 = vmatprep.subr.mxu0 %v152
  %237 = vmatpush1.msra.mxu0 %v151
  %238 = vmatprep.subr.mxu0 %v149
  %239 = vmatpush1.msra.mxu0 %v148
  %240 = vmatprep.subr.mxu0 %v146
  %241 = vmatpush1.msra.mxu0 %v145
  %242 = vmatprep.subr.mxu0 0.0
  %243 = vmatpush2.msra.mxu0 0.0
  %244 = vmatprep.subr.mxu0 0.0
  %245 = vmatpush2.msra.mxu0 0.0
  %246 = vmatprep.subr.mxu0 0.0
  %247 = vmatpush2.msra.mxu0 0.0
  %248 = vmatprep.subr.mxu0 0.0
  %249 = vmatpush2.msra.mxu0 0.0
  %250 = vmatprep.subr.mxu0 0.0
  %251 = vmatpush2.msra.mxu0 0.0
  %252 = vmatprep.subr.mxu0 0.0
  %253 = vmatpush2.msra.mxu0 0.0
  %254 = vmatprep.subr.mxu0 0.0
  %255 = vmatpush2.msra.mxu0 0.0
  %256 = vmatprep.subr.mxu0 0.0
  %257 = vmatpush2.msra.mxu0 0.0
  %258 = vmatprep.subr.mxu0 0.0
  %259 = vmatpush2.msra.mxu0 0.0
  %260 = vmatprep.subr.mxu0 0.0
  %261 = vmatpush2.msra.mxu0 0.0
  %262 = vmatprep.subr.mxu0 0.0
  %263 = vmatpush2.msra.mxu0 0.0
  %264 = vmatprep.subr.mxu0 0.0
  %265 = vmatpush2.msra.mxu0 0.0
  %266 = vmatprep.subr.mxu0 0.0
  %267 = vmatpush2.msra.mxu0 0.0
  %268 = vmatprep.subr.mxu0 0.0
  %269 = vmatpush2.msra.mxu0 0.0
  %270 = vmatprep.subr.mxu0 0.0
  %271 = vmatpush2.msra.mxu0 0.0
  %272 = vmatprep.subr.mxu0 0.0
  %273 = vmatpush2.msra.mxu0 0.0
  %274 = vmatprep.mubr.f32.mxu0 0.0
  %275 = vmatmul.mubr.f32.gmra.mxu0 %v143
  %v276 = vpop.f32.mrf.mxu0
  %v277 = vadd.f32 %v198, %v276
  %v278 = vpop.f32.mrf.mxu0
  %v279 = vadd.f32 %v202, %v278
  %280 = vmatprep.mubr.f32.mxu0 0.0
  %281 = vmatmul.mubr.f32.gmra.mxu0 %v144
  %v282 = vpop.f32.mrf.mxu0
  %v283 = vadd.f32 %v198, %v282
  %v284 = vpop.f32.mrf.mxu0
  %v285 = vadd.f32 %v202, %v284
  %286 = vdwg.mxu0
  %287 = vmatprep.subr.mxu0 0.0
  %288 = vmatpush1.msra.mxu0 %v192
  %289 = vmatprep.subr.mxu0 0.0
  %290 = vmatpush1.msra.mxu0 %v189
  %291 = vmatprep.subr.mxu0 0.0
  %292 = vmatpush1.msra.mxu0 %v186
  %293 = vmatprep.subr.mxu0 0.0
  %294 = vmatpush1.msra.mxu0 %v183
  %295 = vmatprep.subr.mxu0 0.0
  %296 = vmatpush1.msra.mxu0 %v180
  %297 = vmatprep.subr.mxu0 0.0
  %298 = vmatpush1.msra.mxu0 %v177
  %299 = vmatprep.subr.mxu0 0.0
  %300 = vmatpush1.msra.mxu0 %v174
  %301 = vmatprep.subr.mxu0 0.0
  %302 = vmatpush1.msra.mxu0 %v171
  %303 = vmatprep.subr.mxu0 0.0
  %304 = vmatpush1.msra.mxu0 %v168
  %305 = vmatprep.subr.mxu0 0.0
  %306 = vmatpush1.msra.mxu0 %v165
  %307 = vmatprep.subr.mxu0 0.0
  %308 = vmatpush1.msra.mxu0 %v162
  %309 = vmatprep.subr.mxu0 0.0
  %310 = vmatpush1.msra.mxu0 %v159
  %311 = vmatprep.subr.mxu0 0.0
  %312 = vmatpush1.msra.mxu0 %v156
  %313 = vmatprep.subr.mxu0 0.0
  %314 = vmatpush1.msra.mxu0 %v153
  %315 = vmatprep.subr.mxu0 0.0
  %316 = vmatpush1.msra.mxu0 %v150
  %317 = vmatprep.subr.mxu0 0.0
  %318 = vmatpush1.msra.mxu0 %v147
  %319 = vmatprep.subr.mxu0 0.0
  %320 = vmatpush2.msra.mxu0 0.0
  %321 = vmatprep.subr.mxu0 0.0
  %322 = vmatpush2.msra.mxu0 0.0
  %323 = vmatprep.subr.mxu0 0.0
  %324 = vmatpush2.msra.mxu0 0.0
  %325 = vmatprep.subr.mxu0 0.0
  %326 = vmatpush2.msra.mxu0 0.0
  %327 = vmatprep.subr.mxu0 0.0
  %328 = vmatpush2.msra.mxu0 0.0
  %329 = vmatprep.subr.mxu0 0.0
  %330 = vmatpush2.msra.mxu0 0.0
  %331 = vmatprep.subr.mxu0 0.0
  %332 = vmatpush2.msra.mxu0 0.0
  %333 = vmatprep.subr.mxu0 0.0
  %334 = vmatpush2.msra.mxu0 0.0
  %335 = vmatprep.subr.mxu0 0.0
  %336 = vmatpush2.msra.mxu0 0.0
  %337 = vmatprep.subr.mxu0 0.0
  %338 = vmatpush2.msra.mxu0 0.0
  %339 = vmatprep.subr.mxu0 0.0
  %340 = vmatpush2.msra.mxu0 0.0
  %341 = vmatprep.subr.mxu0 0.0
  %342 = vmatpush2.msra.mxu0 0.0
  %343 = vmatprep.subr.mxu0 0.0
  %344 = vmatpush2.msra.mxu0 0.0
  %345 = vmatprep.subr.mxu0 0.0
  %346 = vmatpush2.msra.mxu0 0.0
  %347 = vmatprep.subr.mxu0 0.0
  %348 = vmatpush2.msra.mxu0 0.0
  %349 = vmatprep.subr.mxu0 0.0
  %350 = vmatpush2.msra.mxu0 0.0
  %351 = vmatprep.mubr.f32.mxu0 0.0
  %352 = vmatmul.mubr.f32.gmra.mxu0 %v143
  %v353 = vpop.f32.mrf.mxu0
  %v354 = vadd.f32 %v206, %v353
  %v355 = vpop.f32.mrf.mxu0
  %356 = vmatprep.mubr.f32.mxu0 0.0
  %357 = vmatmul.mubr.f32.gmra.mxu0 %v144
  %v358 = vpop.f32.mrf.mxu0
  %v359 = vadd.f32 %v206, %v358
  %v360 = vpop.f32.mrf.mxu0
  %361 = vdwg.mxu0
  %vm362 = vcmask 261120
  %v364 = vsel %vm362, %v277, 0
  %v367 = vsel %vm362, %v283, 0
  %v370 = vsel %vm362, %v279, 0
  %v373 = vsel %vm362, %v285, 0
  %375 = vmatprep.subr.mxu0 0.0
  %376 = vmatpush1.xpose.msra.mxu0 0.0
  %377 = vmatprep.subr.mxu0 0.0
  %378 = vmatpush1.xpose.msra.mxu0 0.0
  %379 = vmatprep.subr.mxu0 0.0
  %380 = vmatpush1.xpose.msra.mxu0 0.0
  %381 = vmatprep.subr.mxu0 0.0
  %382 = vmatpush1.xpose.msra.mxu0 0.0
  %383 = vmatprep.subr.mxu0 0.0
  %384 = vmatpush1.xpose.msra.mxu0 0.0
  %385 = vmatprep.subr.mxu0 0.0
  %386 = vmatpush1.xpose.msra.mxu0 0.0
  %387 = vmatprep.subr.mxu0 0.0
  %388 = vmatpush1.xpose.msra.mxu0 0.0
  %389 = vmatprep.subr.mxu0 0.0
  %390 = vmatpush1.xpose.msra.mxu0 0.0
  %391 = vmatprep.subr.mxu0 0.0
  %392 = vmatpush1.xpose.msra.mxu0 0.0
  %393 = vmatprep.subr.mxu0 0.0
  %394 = vmatpush1.xpose.msra.mxu0 0.0
  %395 = vmatprep.subr.mxu0 0.0
  %396 = vmatpush1.xpose.msra.mxu0 0.0
  %397 = vmatprep.subr.mxu0 0.0
  %398 = vmatpush1.xpose.msra.mxu0 0.0
  %399 = vmatprep.subr.mxu0 0.0
  %400 = vmatpush1.xpose.msra.mxu0 0.0
  %401 = vmatprep.subr.mxu0 0.0
  %402 = vmatpush1.xpose.msra.mxu0 0.0
  %403 = vmatprep.subr.mxu0 0.0
  %404 = vmatpush1.xpose.msra.mxu0 %v373
  %405 = vmatprep.subr.mxu0 0.0
  %406 = vmatpush1.xpose.msra.mxu0 %v370
  %407 = vmatprep.subr.mxu0 0.0
  %408 = vmatpush2.xpose.msra.mxu0 0.0
  %409 = vmatprep.subr.mxu0 0.0
  %410 = vmatpush2.xpose.msra.mxu0 0.0
  %411 = vmatprep.subr.mxu0 0.0
  %412 = vmatpush2.xpose.msra.mxu0 0.0
  %413 = vmatprep.subr.mxu0 0.0
  %414 = vmatpush2.xpose.msra.mxu0 0.0
  %415 = vmatprep.subr.mxu0 0.0
  %416 = vmatpush2.xpose.msra.mxu0 0.0
  %417 = vmatprep.subr.mxu0 0.0
  %418 = vmatpush2.xpose.msra.mxu0 0.0
  %419 = vmatprep.subr.mxu0 0.0
  %420 = vmatpush2.xpose.msra.mxu0 0.0
  %421 = vmatprep.subr.mxu0 0.0
  %422 = vmatpush2.xpose.msra.mxu0 0.0
  %423 = vmatprep.subr.mxu0 0.0
  %424 = vmatpush2.xpose.msra.mxu0 0.0
  %425 = vmatprep.subr.mxu0 0.0
  %426 = vmatpush2.xpose.msra.mxu0 0.0
  %427 = vmatprep.subr.mxu0 0.0
  %428 = vmatpush2.xpose.msra.mxu0 0.0
  %429 = vmatprep.subr.mxu0 0.0
  %430 = vmatpush2.xpose.msra.mxu0 0.0
  %431 = vmatprep.subr.mxu0 0.0
  %432 = vmatpush2.xpose.msra.mxu0 0.0
  %433 = vmatprep.subr.mxu0 0.0
  %434 = vmatpush2.xpose.msra.mxu0 0.0
  %435 = vmatprep.subr.mxu0 0.0
  %436 = vmatpush2.xpose.msra.mxu0 0.0
  %437 = vmatprep.subr.mxu0 0.0
  %438 = vmatpush2.xpose.msra.mxu0 0.0
  %439 = vmatprep.mubr.f32.mxu0 0.0
  %440 = vmatmul.mubr.f32.gmra.mxu0 %v364
  %v441 = vpop.f32.mrf.mxu0
  %v442 = vadd.f32 0.0, %v441
  %v443 = vpop.f32.mrf.mxu0
  %444 = vmatprep.mubr.f32.mxu0 0.0
  %445 = vmatmul.mubr.f32.gmra.mxu0 %v367
  %v446 = vpop.f32.mrf.mxu0
  %v447 = vadd.f32 0.0, %v446
  %v448 = vpop.f32.mrf.mxu0
  %449 = vdwg.mxu0
  %v450 = vmul.f32 %v442, 0.17677669
  %v451 = vmul.f32 %v447, 0.17677669
  %v452 = vadd.f32 %v450, %v100
  %v453 = vadd.f32 %v451, %v101
  %vm454 = vcmask 130048
  %v455 = vsel %vm454, %v452, -inf
  %456 = vmax.xlane.f32.xlu0 %v455
  %v457 = vpop.xlane.xlu0 %456
  %v458 = vsel %vm454, %v453, -inf
  %459 = vmax.xlane.f32.xlu0 %v458
  %v460 = vpop.xlane.xlu0 %459
  %v461 = vsub.f32 %v452, %v457
  %v462 = vsub.f32 %v453, %v460
  %v463 = vmul.f32 %v461, 1.442695
  %v464 = vpow.pop %v463
  %v465 = vmul.f32 %v462, 1.442695
  %v466 = vpow.pop %v465
  %v467 = vsel %vm454, %v464, 0.0
  %468 = vadd.xlane.f32.xlu0 %v467
  %v469 = vpop.xlane.xlu0 %468
  %v470 = vsel %vm454, %v466, 0.0
  %471 = vadd.xlane.f32.xlu0 %v470
  %v472 = vpop.xlane.xlu0 %471
  %v473 = vrcp.pop %v469
  %v474 = vrcp.pop %v472
  %v475 = vmul.f32 %v464, %v473
  %v476 = vmul.f32 %v466, %v474
  %v478 = vsel %vm454, %v475, 0
  %v481 = vsel %vm454, %v476, 0
  %483 = vmatprep.subr.mxu0 0.0
  %484 = vmatpush1.msra.mxu0 0.0
  %485 = vmatprep.subr.mxu0 0.0
  %486 = vmatpush1.msra.mxu0 0.0
  %487 = vmatprep.subr.mxu0 0.0
  %488 = vmatpush1.msra.mxu0 0.0
  %489 = vmatprep.subr.mxu0 0.0
  %490 = vmatpush1.msra.mxu0 0.0
  %491 = vmatprep.subr.mxu0 0.0
  %492 = vmatpush1.msra.mxu0 0.0
  %493 = vmatprep.subr.mxu0 0.0
  %494 = vmatpush1.msra.mxu0 0.0
  %495 = vmatprep.subr.mxu0 0.0
  %496 = vmatpush1.msra.mxu0 0.0
  %497 = vmatprep.subr.mxu0 0.0
  %498 = vmatpush1.msra.mxu0 0.0
  %499 = vmatprep.subr.mxu0 0.0
  %500 = vmatpush1.msra.mxu0 0.0
  %501 = vmatprep.subr.mxu0 0.0
  %502 = vmatpush1.msra.mxu0 0.0
  %503 = vmatprep.subr.mxu0 0.0
  %504 = vmatpush1.msra.mxu0 0.0
  %505 = vmatprep.subr.mxu0 0.0
  %506 = vmatpush1.msra.mxu0 0.0
  %507 = vmatprep.subr.mxu0 0.0
  %508 = vmatpush1.msra.mxu0 0.0
  %509 = vmatprep.subr.mxu0 0.0
  %510 = vmatpush1.msra.mxu0 0.0
  %511 = vmatprep.subr.mxu0 0.0
  %512 = vmatpush1.msra.mxu0 %v359
  %513 = vmatprep.subr.mxu0 0.0
  %514 = vmatpush1.msra.mxu0 %v354
  %515 = vmatprep.subr.mxu0 0.0
  %516 = vmatpush2.msra.mxu0 0.0
  %517 = vmatprep.subr.mxu0 0.0
  %518 = vmatpush2.msra.mxu0 0.0
  %519 = vmatprep.subr.mxu0 0.0
  %520 = vmatpush2.msra.mxu0 0.0
  %521 = vmatprep.subr.mxu0 0.0
  %522 = vmatpush2.msra.mxu0 0.0
  %523 = vmatprep.subr.mxu0 0.0
  %524 = vmatpush2.msra.mxu0 0.0
  %525 = vmatprep.subr.mxu0 0.0
  %526 = vmatpush2.msra.mxu0 0.0
  %527 = vmatprep.subr.mxu0 0.0
  %528 = vmatpush2.msra.mxu0 0.0
  %529 = vmatprep.subr.mxu0 0.0
  %530 = vmatpush2.msra.mxu0 0.0
  %531 = vmatprep.subr.mxu0 0.0
  %532 = vmatpush2.msra.mxu0 0.0
  %533 = vmatprep.subr.mxu0 0.0
  %534 = vmatpush2.msra.mxu0 0.0
  %535 = vmatprep.subr.mxu0 0.0
  %536 = vmatpush2.msra.mxu0 0.0
  %537 = vmatprep.subr.mxu0 0.0
  %538 = vmatpush2.msra.mxu0 0.0
  %539 = vmatprep.subr.mxu0 0.0
  %540 = vmatpush2.msra.mxu0 0.0
  %541 = vmatprep.subr.mxu0 0.0
  %542 = vmatpush2.msra.mxu0 0.0
  %543 = vmatprep.subr.mxu0 0.0
  %544 = vmatpush2.msra.mxu0 0.0
  %545 = vmatprep.subr.mxu0 0.0
  %546 = vmatpush2.msra.mxu0 0.0
  %547 = vmatprep.mubr.f32.mxu0 0.0
  %548 = vmatmul.mubr.f32.gmra.mxu0 %v478
  %v549 = vpop.f32.mrf.mxu0
  %v550 = vadd.f32 0.0, %v549
  %v551 = vpop.f32.mrf.mxu0
  %552 = vmatprep.mubr.f32.mxu0 0.0
  %553 = vmatmul.mubr.f32.gmra.mxu0 %v481
  %v554 = vpop.f32.mrf.mxu0
  %v555 = vadd.f32 0.0, %v554
  %v556 = vpop.f32.mrf.mxu0
  %557 = vdwg.mxu0
  %558 = vst.msk [vmem:[#allocation2] sm:$0xff] %vm362, %v550
  %559 = vst.msk [vmem:[#allocation2 + $0x8] sm:$0xff] %vm362, %v555
  %560 = vrot.lane.b32.xlu0 %v277, 96
  %v561 = vpop.permute.xlu0 %560
  %562 = vrot.lane.b32.xlu0 %v283, 96
  %v563 = vpop.permute.xlu0 %562
  %564 = vrot.lane.b32.xlu0 %v279, 96
  %v565 = vpop.permute.xlu0 %564
  %566 = vrot.lane.b32.xlu0 %v285, 96
  %v567 = vpop.permute.xlu0 %566
  %v568 = vsel %vm362, %v561, 0
  %v570 = vsel %vm362, %v563, 0
  %v572 = vsel %vm362, %v565, 0
  %v574 = vsel %vm362, %v567, 0
  %576 = vmatprep.subr.mxu0 0.0
  %577 = vmatpush1.xpose.msra.mxu0 0.0
  %578 = vmatprep.subr.mxu0 0.0
  %579 = vmatpush1.xpose.msra.mxu0 0.0
  %580 = vmatprep.subr.mxu0 0.0
  %581 = vmatpush1.xpose.msra.mxu0 0.0
  %582 = vmatprep.subr.mxu0 0.0
  %583 = vmatpush1.xpose.msra.mxu0 0.0
  %584 = vmatprep.subr.mxu0 0.0
  %585 = vmatpush1.xpose.msra.mxu0 0.0
  %586 = vmatprep.subr.mxu0 0.0
  %587 = vmatpush1.xpose.msra.mxu0 0.0
  %588 = vmatprep.subr.mxu0 0.0
  %589 = vmatpush1.xpose.msra.mxu0 0.0
  %590 = vmatprep.subr.mxu0 0.0
  %591 = vmatpush1.xpose.msra.mxu0 0.0
  %592 = vmatprep.subr.mxu0 0.0
  %593 = vmatpush1.xpose.msra.mxu0 0.0
  %594 = vmatprep.subr.mxu0 0.0
  %595 = vmatpush1.xpose.msra.mxu0 0.0
  %596 = vmatprep.subr.mxu0 0.0
  %597 = vmatpush1.xpose.msra.mxu0 0.0
  %598 = vmatprep.subr.mxu0 0.0
  %599 = vmatpush1.xpose.msra.mxu0 0.0
  %600 = vmatprep.subr.mxu0 0.0
  %601 = vmatpush1.xpose.msra.mxu0 0.0
  %602 = vmatprep.subr.mxu0 0.0
  %603 = vmatpush1.xpose.msra.mxu0 0.0
  %604 = vmatprep.subr.mxu0 0.0
  %605 = vmatpush1.xpose.msra.mxu0 %v574
  %606 = vmatprep.subr.mxu0 0.0
  %607 = vmatpush1.xpose.msra.mxu0 %v572
  %608 = vmatprep.subr.mxu0 0.0
  %609 = vmatpush2.xpose.msra.mxu0 0.0
  %610 = vmatprep.subr.mxu0 0.0
  %611 = vmatpush2.xpose.msra.mxu0 0.0
  %612 = vmatprep.subr.mxu0 0.0
  %613 = vmatpush2.xpose.msra.mxu0 0.0
  %614 = vmatprep.subr.mxu0 0.0
  %615 = vmatpush2.xpose.msra.mxu0 0.0
  %616 = vmatprep.subr.mxu0 0.0
  %617 = vmatpush2.xpose.msra.mxu0 0.0
  %618 = vmatprep.subr.mxu0 0.0
  %619 = vmatpush2.xpose.msra.mxu0 0.0
  %620 = vmatprep.subr.mxu0 0.0
  %621 = vmatpush2.xpose.msra.mxu0 0.0
  %622 = vmatprep.subr.mxu0 0.0
  %623 = vmatpush2.xpose.msra.mxu0 0.0
  %624 = vmatprep.subr.mxu0 0.0
  %625 = vmatpush2.xpose.msra.mxu0 0.0
  %626 = vmatprep.subr.mxu0 0.0
  %627 = vmatpush2.xpose.msra.mxu0 0.0
  %628 = vmatprep.subr.mxu0 0.0
  %629 = vmatpush2.xpose.msra.mxu0 0.0
  %630 = vmatprep.subr.mxu0 0.0
  %631 = vmatpush2.xpose.msra.mxu0 0.0
  %632 = vmatprep.subr.mxu0 0.0
  %633 = vmatpush2.xpose.msra.mxu0 0.0
  %634 = vmatprep.subr.mxu0 0.0
  %635 = vmatpush2.xpose.msra.mxu0 0.0
  %636 = vmatprep.subr.mxu0 0.0
  %637 = vmatpush2.xpose.msra.mxu0 0.0
  %638 = vmatprep.subr.mxu0 0.0
  %639 = vmatpush2.xpose.msra.mxu0 0.0
  %640 = vmatprep.mubr.f32.mxu0 0.0
  %641 = vmatmul.mubr.f32.gmra.mxu0 %v568
  %v642 = vpop.f32.mrf.mxu0
  %v643 = vadd.f32 0.0, %v642
  %v644 = vpop.f32.mrf.mxu0
  %645 = vmatprep.mubr.f32.mxu0 0.0
  %646 = vmatmul.mubr.f32.gmra.mxu0 %v570
  %v647 = vpop.f32.mrf.mxu0
  %v648 = vadd.f32 0.0, %v647
  %v649 = vpop.f32.mrf.mxu0
  %650 = vdwg.mxu0
  %v651 = vmul.f32 %v643, 0.17677669
  %v652 = vmul.f32 %v648, 0.17677669
  %v653 = vadd.f32 %v651, %v100
  %v654 = vadd.f32 %v652, %v101
  %v655 = vsel %vm454, %v653, -inf
  %656 = vmax.xlane.f32.xlu0 %v655
  %v657 = vpop.xlane.xlu0 %656
  %v658 = vsel %vm454, %v654, -inf
  %659 = vmax.xlane.f32.xlu0 %v658
  %v660 = vpop.xlane.xlu0 %659
  %v661 = vsub.f32 %v653, %v657
  %v662 = vsub.f32 %v654, %v660
  %v663 = vmul.f32 %v661, 1.442695
  %v664 = vpow.pop %v663
  %v665 = vmul.f32 %v662, 1.442695
  %v666 = vpow.pop %v665
  %v667 = vsel %vm454, %v664, 0.0
  %668 = vadd.xlane.f32.xlu0 %v667
  %v669 = vpop.xlane.xlu0 %668
  %v670 = vsel %vm454, %v666, 0.0
  %671 = vadd.xlane.f32.xlu0 %v670
  %v672 = vpop.xlane.xlu0 %671
  %v673 = vrcp.pop %v669
  %v674 = vrcp.pop %v672
  %v675 = vmul.f32 %v664, %v673
  %v676 = vmul.f32 %v666, %v674
  %679 = vrot.lane.b32.xlu0 %v354, 96
  %v680 = vpop.permute.xlu0 %679
  %681 = vrot.lane.b32.xlu0 %v359, 96
  %v682 = vpop.permute.xlu0 %681
  %v686 = vsel %vm454, %v675, 0
  %v689 = vsel %vm454, %v676, 0
  %691 = vmatprep.subr.mxu0 0.0
  %692 = vmatpush1.msra.mxu0 0.0
  %693 = vmatprep.subr.mxu0 0.0
  %694 = vmatpush1.msra.mxu0 0.0
  %695 = vmatprep.subr.mxu0 0.0
  %696 = vmatpush1.msra.mxu0 0.0
  %697 = vmatprep.subr.mxu0 0.0
  %698 = vmatpush1.msra.mxu0 0.0
  %699 = vmatprep.subr.mxu0 0.0
  %700 = vmatpush1.msra.mxu0 0.0
  %701 = vmatprep.subr.mxu0 0.0
  %702 = vmatpush1.msra.mxu0 0.0
  %703 = vmatprep.subr.mxu0 0.0
  %704 = vmatpush1.msra.mxu0 0.0
  %705 = vmatprep.subr.mxu0 0.0
  %706 = vmatpush1.msra.mxu0 0.0
  %707 = vmatprep.subr.mxu0 0.0
  %708 = vmatpush1.msra.mxu0 0.0
  %709 = vmatprep.subr.mxu0 0.0
  %710 = vmatpush1.msra.mxu0 0.0
  %711 = vmatprep.subr.mxu0 0.0
  %712 = vmatpush1.msra.mxu0 0.0
  %713 = vmatprep.subr.mxu0 0.0
  %714 = vmatpush1.msra.mxu0 0.0
  %715 = vmatprep.subr.mxu0 0.0
  %716 = vmatpush1.msra.mxu0 0.0
  %717 = vmatprep.subr.mxu0 0.0
  %718 = vmatpush1.msra.mxu0 0.0
  %719 = vmatprep.subr.mxu0 0.0
  %720 = vmatpush1.msra.mxu0 %v682
  %721 = vmatprep.subr.mxu0 0.0
  %722 = vmatpush1.msra.mxu0 %v680
  %723 = vmatprep.subr.mxu0 0.0
  %724 = vmatpush2.msra.mxu0 0.0
  %725 = vmatprep.subr.mxu0 0.0
  %726 = vmatpush2.msra.mxu0 0.0
  %727 = vmatprep.subr.mxu0 0.0
  %728 = vmatpush2.msra.mxu0 0.0
  %729 = vmatprep.subr.mxu0 0.0
  %730 = vmatpush2.msra.mxu0 0.0
  %731 = vmatprep.subr.mxu0 0.0
  %732 = vmatpush2.msra.mxu0 0.0
  %733 = vmatprep.subr.mxu0 0.0
  %734 = vmatpush2.msra.mxu0 0.0
  %735 = vmatprep.subr.mxu0 0.0
  %736 = vmatpush2.msra.mxu0 0.0
  %737 = vmatprep.subr.mxu0 0.0
  %738 = vmatpush2.msra.mxu0 0.0
  %739 = vmatprep.subr.mxu0 0.0
  %740 = vmatpush2.msra.mxu0 0.0
  %741 = vmatprep.subr.mxu0 0.0
  %742 = vmatpush2.msra.mxu0 0.0
  %743 = vmatprep.subr.mxu0 0.0
  %744 = vmatpush2.msra.mxu0 0.0
  %745 = vmatprep.subr.mxu0 0.0
  %746 = vmatpush2.msra.mxu0 0.0
  %747 = vmatprep.subr.mxu0 0.0
  %748 = vmatpush2.msra.mxu0 0.0
  %749 = vmatprep.subr.mxu0 0.0
  %750 = vmatpush2.msra.mxu0 0.0
  %751 = vmatprep.subr.mxu0 0.0
  %752 = vmatpush2.msra.mxu0 0.0
  %753 = vmatprep.subr.mxu0 0.0
  %754 = vmatpush2.msra.mxu0 0.0
  %755 = vmatprep.mubr.f32.mxu0 0.0
  %756 = vmatmul.mubr.f32.gmra.mxu0 %v686
  %v757 = vpop.f32.mrf.mxu0
  %v758 = vadd.f32 0.0, %v757
  %v759 = vpop.f32.mrf.mxu0
  %760 = vmatprep.mubr.f32.mxu0 0.0
  %761 = vmatmul.mubr.f32.gmra.mxu0 %v689
  %v762 = vpop.f32.mrf.mxu0
  %v763 = vadd.f32 0.0, %v762
  %v764 = vpop.f32.mrf.mxu0
  %765 = vdwg.mxu0
  %768 = vrot.lane.b32.xlu0 %v758, 32
  %v769 = vpop.permute.xlu0 %768
  %770 = vrot.lane.b32.xlu0 %v763, 32
  %v771 = vpop.permute.xlu0 %770
  %vm774 = vcmask 523520
  %775 = vst.msk [vmem:[#allocation2] sm:$0xff] %vm774, %v769
  %776 = vst.msk [vmem:[#allocation2 + $0x8] sm:$0xff] %vm774, %v771
  %777 = vrot.lane.b32.xlu0 %v277, 64
  %v778 = vpop.permute.xlu0 %777
  %779 = vrot.lane.b32.xlu0 %v283, 64
  %v780 = vpop.permute.xlu0 %779
  %781 = vrot.lane.b32.xlu0 %v279, 64
  %v782 = vpop.permute.xlu0 %781
  %783 = vrot.lane.b32.xlu0 %v285, 64
  %v784 = vpop.permute.xlu0 %783
  %v785 = vsel %vm362, %v778, 0
  %v787 = vsel %vm362, %v780, 0
  %v789 = vsel %vm362, %v782, 0
  %v791 = vsel %vm362, %v784, 0
  %793 = vmatprep.subr.mxu0 0.0
  %794 = vmatpush1.xpose.msra.mxu0 0.0
  %795 = vmatprep.subr.mxu0 0.0
  %796 = vmatpush1.xpose.msra.mxu0 0.0
  %797 = vmatprep.subr.mxu0 0.0
  %798 = vmatpush1.xpose.msra.mxu0 0.0
  %799 = vmatprep.subr.mxu0 0.0
  %800 = vmatpush1.xpose.msra.mxu0 0.0
  %801 = vmatprep.subr.mxu0 0.0
  %802 = vmatpush1.xpose.msra.mxu0 0.0
  %803 = vmatprep.subr.mxu0 0.0
  %804 = vmatpush1.xpose.msra.mxu0 0.0
  %805 = vmatprep.subr.mxu0 0.0
  %806 = vmatpush1.xpose.msra.mxu0 0.0
  %807 = vmatprep.subr.mxu0 0.0
  %808 = vmatpush1.xpose.msra.mxu0 0.0
  %809 = vmatprep.subr.mxu0 0.0
  %810 = vmatpush1.xpose.msra.mxu0 0.0
  %811 = vmatprep.subr.mxu0 0.0
  %812 = vmatpush1.xpose.msra.mxu0 0.0
  %813 = vmatprep.subr.mxu0 0.0
  %814 = vmatpush1.xpose.msra.mxu0 0.0
  %815 = vmatprep.subr.mxu0 0.0
  %816 = vmatpush1.xpose.msra.mxu0 0.0
  %817 = vmatprep.subr.mxu0 0.0
  %818 = vmatpush1.xpose.msra.mxu0 0.0
  %819 = vmatprep.subr.mxu0 0.0
  %820 = vmatpush1.xpose.msra.mxu0 0.0
  %821 = vmatprep.subr.mxu0 0.0
  %822 = vmatpush1.xpose.msra.mxu0 %v791
  %823 = vmatprep.subr.mxu0 0.0
  %824 = vmatpush1.xpose.msra.mxu0 %v789
  %825 = vmatprep.subr.mxu0 0.0
  %826 = vmatpush2.xpose.msra.mxu0 0.0
  %827 = vmatprep.subr.mxu0 0.0
  %828 = vmatpush2.xpose.msra.mxu0 0.0
  %829 = vmatprep.subr.mxu0 0.0
  %830 = vmatpush2.xpose.msra.mxu0 0.0
  %831 = vmatprep.subr.mxu0 0.0
  %832 = vmatpush2.xpose.msra.mxu0 0.0
  %833 = vmatprep.subr.mxu0 0.0
  %834 = vmatpush2.xpose.msra.mxu0 0.0
  %835 = vmatprep.subr.mxu0 0.0
  %836 = vmatpush2.xpose.msra.mxu0 0.0
  %837 = vmatprep.subr.mxu0 0.0
  %838 = vmatpush2.xpose.msra.mxu0 0.0
  %839 = vmatprep.subr.mxu0 0.0
  %840 = vmatpush2.xpose.msra.mxu0 0.0
  %841 = vmatprep.subr.mxu0 0.0
  %842 = vmatpush2.xpose.msra.mxu0 0.0
  %843 = vmatprep.subr.mxu0 0.0
  %844 = vmatpush2.xpose.msra.mxu0 0.0
  %845 = vmatprep.subr.mxu0 0.0
  %846 = vmatpush2.xpose.msra.mxu0 0.0
  %847 = vmatprep.subr.mxu0 0.0
  %848 = vmatpush2.xpose.msra.mxu0 0.0
  %849 = vmatprep.subr.mxu0 0.0
  %850 = vmatpush2.xpose.msra.mxu0 0.0
  %851 = vmatprep.subr.mxu0 0.0
  %852 = vmatpush2.xpose.msra.mxu0 0.0
  %853 = vmatprep.subr.mxu0 0.0
  %854 = vmatpush2.xpose.msra.mxu0 0.0
  %855 = vmatprep.subr.mxu0 0.0
  %856 = vmatpush2.xpose.msra.mxu0 0.0
  %857 = vmatprep.mubr.f32.mxu0 0.0
  %858 = vmatmul.mubr.f32.gmra.mxu0 %v785
  %v859 = vpop.f32.mrf.mxu0
  %v860 = vadd.f32 0.0, %v859
  %v861 = vpop.f32.mrf.mxu0
  %862 = vmatprep.mubr.f32.mxu0 0.0
  %863 = vmatmul.mubr.f32.gmra.mxu0 %v787
  %v864 = vpop.f32.mrf.mxu0
  %v865 = vadd.f32 0.0, %v864
  %v866 = vpop.f32.mrf.mxu0
  %867 = vdwg.mxu0
  %v868 = vmul.f32 %v860, 0.17677669
  %v869 = vmul.f32 %v865, 0.17677669
  %v870 = vadd.f32 %v868, %v100
  %v871 = vadd.f32 %v869, %v101
  %v872 = vsel %vm454, %v870, -inf
  %873 = vmax.xlane.f32.xlu0 %v872
  %v874 = vpop.xlane.xlu0 %873
  %v875 = vsel %vm454, %v871, -inf
  %876 = vmax.xlane.f32.xlu0 %v875
  %v877 = vpop.xlane.xlu0 %876
  %v878 = vsub.f32 %v870, %v874
  %v879 = vsub.f32 %v871, %v877
  %v880 = vmul.f32 %v878, 1.442695
  %v881 = vpow.pop %v880
  %v882 = vmul.f32 %v879, 1.442695
  %v883 = vpow.pop %v882
  %v884 = vsel %vm454, %v881, 0.0
  %885 = vadd.xlane.f32.xlu0 %v884
  %v886 = vpop.xlane.xlu0 %885
  %v887 = vsel %vm454, %v883, 0.0
  %888 = vadd.xlane.f32.xlu0 %v887
  %v889 = vpop.xlane.xlu0 %888
  %v890 = vrcp.pop %v886
  %v891 = vrcp.pop %v889
  %v892 = vmul.f32 %v881, %v890
  %v893 = vmul.f32 %v883, %v891
  %894 = vrot.lane.b32.xlu0 %v354, 64
  %v895 = vpop.permute.xlu0 %894
  %896 = vrot.lane.b32.xlu0 %v359, 64
  %v897 = vpop.permute.xlu0 %896
  %v901 = vsel %vm454, %v892, 0
  %v904 = vsel %vm454, %v893, 0
  %906 = vmatprep.subr.mxu0 0.0
  %907 = vmatpush1.msra.mxu0 0.0
  %908 = vmatprep.subr.mxu0 0.0
  %909 = vmatpush1.msra.mxu0 0.0
  %910 = vmatprep.subr.mxu0 0.0
  %911 = vmatpush1.msra.mxu0 0.0
  %912 = vmatprep.subr.mxu0 0.0
  %913 = vmatpush1.msra.mxu0 0.0
  %914 = vmatprep.subr.mxu0 0.0
  %915 = vmatpush1.msra.mxu0 0.0
  %916 = vmatprep.subr.mxu0 0.0
  %917 = vmatpush1.msra.mxu0 0.0
  %918 = vmatprep.subr.mxu0 0.0
  %919 = vmatpush1.msra.mxu0 0.0
  %920 = vmatprep.subr.mxu0 0.0
  %921 = vmatpush1.msra.mxu0 0.0
  %922 = vmatprep.subr.mxu0 0.0
  %923 = vmatpush1.msra.mxu0 0.0
  %924 = vmatprep.subr.mxu0 0.0
  %925 = vmatpush1.msra.mxu0 0.0
  %926 = vmatprep.subr.mxu0 0.0
  %927 = vmatpush1.msra.mxu0 0.0
  %928 = vmatprep.subr.mxu0 0.0
  %929 = vmatpush1.msra.mxu0 0.0
  %930 = vmatprep.subr.mxu0 0.0
  %931 = vmatpush1.msra.mxu0 0.0
  %932 = vmatprep.subr.mxu0 0.0
  %933 = vmatpush1.msra.mxu0 0.0
  %934 = vmatprep.subr.mxu0 0.0
  %935 = vmatpush1.msra.mxu0 %v897
  %936 = vmatprep.subr.mxu0 0.0
  %937 = vmatpush1.msra.mxu0 %v895
  %938 = vmatprep.subr.mxu0 0.0
  %939 = vmatpush2.msra.mxu0 0.0
  %940 = vmatprep.subr.mxu0 0.0
  %941 = vmatpush2.msra.mxu0 0.0
  %942 = vmatprep.subr.mxu0 0.0
  %943 = vmatpush2.msra.mxu0 0.0
  %944 = vmatprep.subr.mxu0 0.0
  %945 = vmatpush2.msra.mxu0 0.0
  %946 = vmatprep.subr.mxu0 0.0
  %947 = vmatpush2.msra.mxu0 0.0
  %948 = vmatprep.subr.mxu0 0.0
  %949 = vmatpush2.msra.mxu0 0.0
  %950 = vmatprep.subr.mxu0 0.0
  %951 = vmatpush2.msra.mxu0 0.0
  %952 = vmatprep.subr.mxu0 0.0
  %953 = vmatpush2.msra.mxu0 0.0
  %954 = vmatprep.subr.mxu0 0.0
  %955 = vmatpush2.msra.mxu0 0.0
  %956 = vmatprep.subr.mxu0 0.0
  %957 = vmatpush2.msra.mxu0 0.0
  %958 = vmatprep.subr.mxu0 0.0
  %959 = vmatpush2.msra.mxu0 0.0
  %960 = vmatprep.subr.mxu0 0.0
  %961 = vmatpush2.msra.mxu0 0.0
  %962 = vmatprep.subr.mxu0 0.0
  %963 = vmatpush2.msra.mxu0 0.0
  %964 = vmatprep.subr.mxu0 0.0
  %965 = vmatpush2.msra.mxu0 0.0
  %966 = vmatprep.subr.mxu0 0.0
  %967 = vmatpush2.msra.mxu0 0.0
  %968 = vmatprep.subr.mxu0 0.0
  %969 = vmatpush2.msra.mxu0 0.0
  %970 = vmatprep.mubr.f32.mxu0 0.0
  %971 = vmatmul.mubr.f32.gmra.mxu0 %v901
  %v972 = vpop.f32.mrf.mxu0
  %v973 = vadd.f32 0.0, %v972
  %v974 = vpop.f32.mrf.mxu0
  %975 = vmatprep.mubr.f32.mxu0 0.0
  %976 = vmatmul.mubr.f32.gmra.mxu0 %v904
  %v977 = vpop.f32.mrf.mxu0
  %v978 = vadd.f32 0.0, %v977
  %v979 = vpop.f32.mrf.mxu0
  %980 = vdwg.mxu0
  %983 = vrot.lane.b32.xlu0 %v973, 64
  %v984 = vpop.permute.xlu0 %983
  %985 = vrot.lane.b32.xlu0 %v978, 64
  %v986 = vpop.permute.xlu0 %985
  %vm989 = vcmask 785920
  %990 = vst.msk [vmem:[#allocation2] sm:$0xff] %vm989, %v984
  %991 = vst.msk [vmem:[#allocation2 + $0x8] sm:$0xff] %vm989, %v986
  %992 = vrot.lane.b32.xlu0 %v277, 32
  %v993 = vpop.permute.xlu0 %992
  %994 = vrot.lane.b32.xlu0 %v283, 32
  %v995 = vpop.permute.xlu0 %994
  %996 = vrot.lane.b32.xlu0 %v279, 32
  %v997 = vpop.permute.xlu0 %996
  %998 = vrot.lane.b32.xlu0 %v285, 32
  %v999 = vpop.permute.xlu0 %998
  %v1000 = vsel %vm362, %v993, 0
  %v1002 = vsel %vm362, %v995, 0
  %v1004 = vsel %vm362, %v997, 0
  %v1006 = vsel %vm362, %v999, 0
  %1008 = vmatprep.subr.mxu0 0.0
  %1009 = vmatpush1.xpose.msra.mxu0 0.0
  %1010 = vmatprep.subr.mxu0 0.0
  %1011 = vmatpush1.xpose.msra.mxu0 0.0
  %1012 = vmatprep.subr.mxu0 0.0
  %1013 = vmatpush1.xpose.msra.mxu0 0.0
  %1014 = vmatprep.subr.mxu0 0.0
  %1015 = vmatpush1.xpose.msra.mxu0 0.0
  %1016 = vmatprep.subr.mxu0 0.0
  %1017 = vmatpush1.xpose.msra.mxu0 0.0
  %1018 = vmatprep.subr.mxu0 0.0
  %1019 = vmatpush1.xpose.msra.mxu0 0.0
  %1020 = vmatprep.subr.mxu0 0.0
  %1021 = vmatpush1.xpose.msra.mxu0 0.0
  %1022 = vmatprep.subr.mxu0 0.0
  %1023 = vmatpush1.xpose.msra.mxu0 0.0
  %1024 = vmatprep.subr.mxu0 0.0
  %1025 = vmatpush1.xpose.msra.mxu0 0.0
  %1026 = vmatprep.subr.mxu0 0.0
  %1027 = vmatpush1.xpose.msra.mxu0 0.0
  %1028 = vmatprep.subr.mxu0 0.0
  %1029 = vmatpush1.xpose.msra.mxu0 0.0
  %1030 = vmatprep.subr.mxu0 0.0
  %1031 = vmatpush1.xpose.msra.mxu0 0.0
  %1032 = vmatprep.subr.mxu0 0.0
  %1033 = vmatpush1.xpose.msra.mxu0 0.0
  %1034 = vmatprep.subr.mxu0 0.0
  %1035 = vmatpush1.xpose.msra.mxu0 0.0
  %1036 = vmatprep.subr.mxu0 0.0
  %1037 = vmatpush1.xpose.msra.mxu0 %v1006
  %1038 = vmatprep.subr.mxu0 0.0
  %1039 = vmatpush1.xpose.msra.mxu0 %v1004
  %1040 = vmatprep.subr.mxu0 0.0
  %1041 = vmatpush2.xpose.msra.mxu0 0.0
  %1042 = vmatprep.subr.mxu0 0.0
  %1043 = vmatpush2.xpose.msra.mxu0 0.0
  %1044 = vmatprep.subr.mxu0 0.0
  %1045 = vmatpush2.xpose.msra.mxu0 0.0
  %1046 = vmatprep.subr.mxu0 0.0
  %1047 = vmatpush2.xpose.msra.mxu0 0.0
  %1048 = vmatprep.subr.mxu0 0.0
  %1049 = vmatpush2.xpose.msra.mxu0 0.0
  %1050 = vmatprep.subr.mxu0 0.0
  %1051 = vmatpush2.xpose.msra.mxu0 0.0
  %1052 = vmatprep.subr.mxu0 0.0
  %1053 = vmatpush2.xpose.msra.mxu0 0.0
  %1054 = vmatprep.subr.mxu0 0.0
  %1055 = vmatpush2.xpose.msra.mxu0 0.0
  %1056 = vmatprep.subr.mxu0 0.0
  %1057 = vmatpush2.xpose.msra.mxu0 0.0
  %1058 = vmatprep.subr.mxu0 0.0
  %1059 = vmatpush2.xpose.msra.mxu0 0.0
  %1060 = vmatprep.subr.mxu0 0.0
  %1061 = vmatpush2.xpose.msra.mxu0 0.0
  %1062 = vmatprep.subr.mxu0 0.0
  %1063 = vmatpush2.xpose.msra.mxu0 0.0
  %1064 = vmatprep.subr.mxu0 0.0
  %1065 = vmatpush2.xpose.msra.mxu0 0.0
  %1066 = vmatprep.subr.mxu0 0.0
  %1067 = vmatpush2.xpose.msra.mxu0 0.0
  %1068 = vmatprep.subr.mxu0 0.0
  %1069 = vmatpush2.xpose.msra.mxu0 0.0
  %1070 = vmatprep.subr.mxu0 0.0
  %1071 = vmatpush2.xpose.msra.mxu0 0.0
  %1072 = vmatprep.mubr.f32.mxu0 0.0
  %1073 = vmatmul.mubr.f32.gmra.mxu0 %v1000
  %v1074 = vpop.f32.mrf.mxu0
  %v1075 = vadd.f32 0.0, %v1074
  %v1076 = vpop.f32.mrf.mxu0
  %1077 = vmatprep.mubr.f32.mxu0 0.0
  %1078 = vmatmul.mubr.f32.gmra.mxu0 %v1002
  %v1079 = vpop.f32.mrf.mxu0
  %v1080 = vadd.f32 0.0, %v1079
  %v1081 = vpop.f32.mrf.mxu0
  %1082 = vdwg.mxu0
  %v1083 = vmul.f32 %v1075, 0.17677669
  %v1084 = vmul.f32 %v1080, 0.17677669
  %v1085 = vadd.f32 %v1083, %v100
  %v1086 = vadd.f32 %v1084, %v101
  %v1087 = vsel %vm454, %v1085, -inf
  %1088 = vmax.xlane.f32.xlu0 %v1087
  %v1089 = vpop.xlane.xlu0 %1088
  %v1090 = vsel %vm454, %v1086, -inf
  %1091 = vmax.xlane.f32.xlu0 %v1090
  %v1092 = vpop.xlane.xlu0 %1091
  %v1093 = vsub.f32 %v1085, %v1089
  %v1094 = vsub.f32 %v1086, %v1092
  %v1095 = vmul.f32 %v1093, 1.442695
  %v1096 = vpow.pop %v1095
  %v1097 = vmul.f32 %v1094, 1.442695
  %v1098 = vpow.pop %v1097
  %v1099 = vsel %vm454, %v1096, 0.0
  %1100 = vadd.xlane.f32.xlu0 %v1099
  %v1101 = vpop.xlane.xlu0 %1100
  %v1102 = vsel %vm454, %v1098, 0.0
  %1103 = vadd.xlane.f32.xlu0 %v1102
  %v1104 = vpop.xlane.xlu0 %1103
  %v1105 = vrcp.pop %v1101
  %v1106 = vrcp.pop %v1104
  %v1107 = vmul.f32 %v1096, %v1105
  %v1108 = vmul.f32 %v1098, %v1106
  %1109 = vrot.lane.b32.xlu0 %v354, 32
  %v1110 = vpop.permute.xlu0 %1109
  %1111 = vrot.lane.b32.xlu0 %v359, 32
  %v1112 = vpop.permute.xlu0 %1111
  %v1116 = vsel %vm454, %v1107, 0
  %v1119 = vsel %vm454, %v1108, 0
  %1121 = vmatprep.subr.mxu0 0.0
  %1122 = vmatpush1.msra.mxu0 0.0
  %1123 = vmatprep.subr.mxu0 0.0
  %1124 = vmatpush1.msra.mxu0 0.0
  %1125 = vmatprep.subr.mxu0 0.0
  %1126 = vmatpush1.msra.mxu0 0.0
  %1127 = vmatprep.subr.mxu0 0.0
  %1128 = vmatpush1.msra.mxu0 0.0
  %1129 = vmatprep.subr.mxu0 0.0
  %1130 = vmatpush1.msra.mxu0 0.0
  %1131 = vmatprep.subr.mxu0 0.0
  %1132 = vmatpush1.msra.mxu0 0.0
  %1133 = vmatprep.subr.mxu0 0.0
  %1134 = vmatpush1.msra.mxu0 0.0
  %1135 = vmatprep.subr.mxu0 0.0
  %1136 = vmatpush1.msra.mxu0 0.0
  %1137 = vmatprep.subr.mxu0 0.0
  %1138 = vmatpush1.msra.mxu0 0.0
  %1139 = vmatprep.subr.mxu0 0.0
  %1140 = vmatpush1.msra.mxu0 0.0
  %1141 = vmatprep.subr.mxu0 0.0
  %1142 = vmatpush1.msra.mxu0 0.0
  %1143 = vmatprep.subr.mxu0 0.0
  %1144 = vmatpush1.msra.mxu0 0.0
  %1145 = vmatprep.subr.mxu0 0.0
  %1146 = vmatpush1.msra.mxu0 0.0
  %1147 = vmatprep.subr.mxu0 0.0
  %1148 = vmatpush1.msra.mxu0 0.0
  %1149 = vmatprep.subr.mxu0 0.0
  %1150 = vmatpush1.msra.mxu0 %v1112
  %1151 = vmatprep.subr.mxu0 0.0
  %1152 = vmatpush1.msra.mxu0 %v1110
  %1153 = vmatprep.subr.mxu0 0.0
  %1154 = vmatpush2.msra.mxu0 0.0
  %1155 = vmatprep.subr.mxu0 0.0
  %1156 = vmatpush2.msra.mxu0 0.0
  %1157 = vmatprep.subr.mxu0 0.0
  %1158 = vmatpush2.msra.mxu0 0.0
  %1159 = vmatprep.subr.mxu0 0.0
  %1160 = vmatpush2.msra.mxu0 0.0
  %1161 = vmatprep.subr.mxu0 0.0
  %1162 = vmatpush2.msra.mxu0 0.0
  %1163 = vmatprep.subr.mxu0 0.0
  %1164 = vmatpush2.msra.mxu0 0.0
  %1165 = vmatprep.subr.mxu0 0.0
  %1166 = vmatpush2.msra.mxu0 0.0
  %1167 = vmatprep.subr.mxu0 0.0
  %1168 = vmatpush2.msra.mxu0 0.0
  %1169 = vmatprep.subr.mxu0 0.0
  %1170 = vmatpush2.msra.mxu0 0.0
  %1171 = vmatprep.subr.mxu0 0.0
  %1172 = vmatpush2.msra.mxu0 0.0
  %1173 = vmatprep.subr.mxu0 0.0
  %1174 = vmatpush2.msra.mxu0 0.0
  %1175 = vmatprep.subr.mxu0 0.0
  %1176 = vmatpush2.msra.mxu0 0.0
  %1177 = vmatprep.subr.mxu0 0.0
  %1178 = vmatpush2.msra.mxu0 0.0
  %1179 = vmatprep.subr.mxu0 0.0
  %1180 = vmatpush2.msra.mxu0 0.0
  %1181 = vmatprep.subr.mxu0 0.0
  %1182 = vmatpush2.msra.mxu0 0.0
  %1183 = vmatprep.subr.mxu0 0.0
  %1184 = vmatpush2.msra.mxu0 0.0
  %1185 = vmatprep.mubr.f32.mxu0 0.0
  %1186 = vmatmul.mubr.f32.gmra.mxu0 %v1116
  %v1187 = vpop.f32.mrf.mxu0
  %v1188 = vadd.f32 0.0, %v1187
  %v1189 = vpop.f32.mrf.mxu0
  %1190 = vmatprep.mubr.f32.mxu0 0.0
  %1191 = vmatmul.mubr.f32.gmra.mxu0 %v1119
  %v1192 = vpop.f32.mrf.mxu0
  %v1193 = vadd.f32 0.0, %v1192
  %v1194 = vpop.f32.mrf.mxu0
  %1195 = vdwg.mxu0
  %1198 = vrot.lane.b32.xlu0 %v1188, 96
  %v1199 = vpop.permute.xlu0 %1198
  %1200 = vrot.lane.b32.xlu0 %v1193, 96
  %v1201 = vpop.permute.xlu0 %1200
  %vm1204 = vcmask 1048320
  %1205 = vst.msk [vmem:[#allocation2] sm:$0xff] %vm1204, %v1199
  %1206 = vst.msk [vmem:[#allocation2 + $0x8] sm:$0xff] %vm1204, %v1201
  %v1207 = vld [vmem:[#allocation2] sm:$0xff]
  %v1208 = vld [vmem:[#allocation2 + $0x8] sm:$0xff]
  %v1209 = vld [vmem:[%s5] sm:$0xff]
  %v1210 = vld [vmem:[%s5 + $0x8] sm:$0xff]
  %v1211 = vld [vmem:[%s5 + $0x10] sm:$0xff]
  %v1212 = vld [vmem:[%s5 + $0x18] sm:$0xff]
  %v1213 = vld [vmem:[%s5 + $0x20] sm:$0xff]
  %v1214 = vld [vmem:[%s5 + $0x28] sm:$0xff]
  %v1215 = vld [vmem:[%s5 + $0x30] sm:$0xff]
  %v1216 = vld [vmem:[%s5 + $0x38] sm:$0xff]
  %v1217 = vld [vmem:[%s5 + $0x40] sm:$0xff]
  %v1218 = vld [vmem:[%s5 + $0x48] sm:$0xff]
  %v1219 = vld [vmem:[%s5 + $0x50] sm:$0xff]
  %v1220 = vld [vmem:[%s5 + $0x58] sm:$0xff]
  %v1221 = vld [vmem:[%s5 + $0x60] sm:$0xff]
  %v1222 = vld [vmem:[%s5 + $0x68] sm:$0xff]
  %v1223 = vld [vmem:[%s5 + $0x70] sm:$0xff]
  %v1224 = vld [vmem:[%s5 + $0x78] sm:$0xff]
  %v1225 = vld [vmem:[%s6] sm:$0x1]
  %v1227 = vlaneseq
  %v1228 = vshrl.u32 %v1227, 7
  %v1229 = vsub.s32 0, %v1228
  %v1230 = vrot.slane %v1225, %v1229
  %1232 = vmatprep.subr.mxu0 0.0
  %1233 = vmatpush1.msra.mxu0 %v1224
  %1234 = vmatprep.subr.mxu0 0.0
  %1235 = vmatpush1.msra.mxu0 %v1223
  %1236 = vmatprep.subr.mxu0 0.0
  %1237 = vmatpush1.msra.mxu0 %v1222
  %1238 = vmatprep.subr.mxu0 0.0
  %1239 = vmatpush1.msra.mxu0 %v1221
  %1240 = vmatprep.subr.mxu0 0.0
  %1241 = vmatpush1.msra.mxu0 %v1220
  %1242 = vmatprep.subr.mxu0 0.0
  %1243 = vmatpush1.msra.mxu0 %v1219
  %1244 = vmatprep.subr.mxu0 0.0
  %1245 = vmatpush1.msra.mxu0 %v1218
  %1246 = vmatprep.subr.mxu0 0.0
  %1247 = vmatpush1.msra.mxu0 %v1217
  %1248 = vmatprep.subr.mxu0 0.0
  %1249 = vmatpush1.msra.mxu0 %v1216
  %1250 = vmatprep.subr.mxu0 0.0
  %1251 = vmatpush1.msra.mxu0 %v1215
  %1252 = vmatprep.subr.mxu0 0.0
  %1253 = vmatpush1.msra.mxu0 %v1214
  %1254 = vmatprep.subr.mxu0 0.0
  %1255 = vmatpush1.msra.mxu0 %v1213
  %1256 = vmatprep.subr.mxu0 0.0
  %1257 = vmatpush1.msra.mxu0 %v1212
  %1258 = vmatprep.subr.mxu0 0.0
  %1259 = vmatpush1.msra.mxu0 %v1211
  %1260 = vmatprep.subr.mxu0 0.0
  %1261 = vmatpush1.msra.mxu0 %v1210
  %1262 = vmatprep.subr.mxu0 0.0
  %1263 = vmatpush1.msra.mxu0 %v1209
  %1264 = vmatprep.subr.mxu0 0.0
  %1265 = vmatpush2.msra.mxu0 0.0
  %1266 = vmatprep.subr.mxu0 0.0
  %1267 = vmatpush2.msra.mxu0 0.0
  %1268 = vmatprep.subr.mxu0 0.0
  %1269 = vmatpush2.msra.mxu0 0.0
  %1270 = vmatprep.subr.mxu0 0.0
  %1271 = vmatpush2.msra.mxu0 0.0
  %1272 = vmatprep.subr.mxu0 0.0
  %1273 = vmatpush2.msra.mxu0 0.0
  %1274 = vmatprep.subr.mxu0 0.0
  %1275 = vmatpush2.msra.mxu0 0.0
  %1276 = vmatprep.subr.mxu0 0.0
  %1277 = vmatpush2.msra.mxu0 0.0
  %1278 = vmatprep.subr.mxu0 0.0
  %1279 = vmatpush2.msra.mxu0 0.0
  %1280 = vmatprep.subr.mxu0 0.0
  %1281 = vmatpush2.msra.mxu0 0.0
  %1282 = vmatprep.subr.mxu0 0.0
  %1283 = vmatpush2.msra.mxu0 0.0
  %1284 = vmatprep.subr.mxu0 0.0
  %1285 = vmatpush2.msra.mxu0 0.0
  %1286 = vmatprep.subr.mxu0 0.0
  %1287 = vmatpush2.msra.mxu0 0.0
  %1288 = vmatprep.subr.mxu0 0.0
  %1289 = vmatpush2.msra.mxu0 0.0
  %1290 = vmatprep.subr.mxu0 0.0
  %1291 = vmatpush2.msra.mxu0 0.0
  %1292 = vmatprep.subr.mxu0 0.0
  %1293 = vmatpush2.msra.mxu0 0.0
  %1294 = vmatprep.subr.mxu0 0.0
  %1295 = vmatpush2.msra.mxu0 0.0
  %1296 = vmatprep.mubr.f32.mxu0 0.0
  %1297 = vmatmul.mubr.f32.gmra.mxu0 %v1207
  %v1298 = vpop.f32.mrf.mxu0
  %v1299 = vadd.f32 %v1230, %v1298
  %v1300 = vpop.f32.mrf.mxu0
  %1301 = vmatprep.mubr.f32.mxu0 0.0
  %1302 = vmatmul.mubr.f32.gmra.mxu0 %v1208
  %v1303 = vpop.f32.mrf.mxu0
  %v1304 = vadd.f32 %v1230, %v1303
  %v1305 = vpop.f32.mrf.mxu0
  %1306 = vdwg.mxu0
  %v1307 = vadd.f32 %v102, %v1299
  %v1308 = vadd.f32 %v103, %v1304
  %1309 = vadd.xlane.f32.xlu0 %v1307
  %v1310 = vpop.xlane.xlu0 %1309
  %1311 = vadd.xlane.f32.xlu0 %v1308
  %v1312 = vpop.xlane.xlu0 %1311
  %v1313 = vmul.f32 %v1310, %v108
  %v1314 = vmul.f32 %v1312, %v108
  %v1315 = vsub.f32 %v1307, %v1313
  %v1316 = vsub.f32 %v1308, %v1314
  %v1317 = vmul.f32 %v1315, %v1315
  %v1318 = vmul.f32 %v1316, %v1316
  %1319 = vadd.xlane.f32.xlu0 %v1317
  %v1320 = vpop.xlane.xlu0 %1319
  %1321 = vadd.xlane.f32.xlu0 %v1318
  %v1322 = vpop.xlane.xlu0 %1321
  %v1323 = vmul.f32 %v1320, %v108
  %v1324 = vmul.f32 %v1322, %v108
  %v1325 = vadd.f32 %v1323, 1e-05
  %v1326 = vadd.f32 %v1324, 1e-05
  %v1327 = vrsqrt.pop %v1325
  %v1328 = vrsqrt.pop %v1326
  %v1329 = vmul.f32 %v1315, %v1327
  %v1330 = vmul.f32 %v1316, %v1328
  %v1331 = vld [vmem:[%s7] sm:$0x1]
  %v1333 = vlaneseq
  %v1334 = vshrl.u32 %v1333, 7
  %v1335 = vsub.s32 0, %v1334
  %v1336 = vrot.slane %v1331, %v1335
  %v1338 = vmul.f32 %v1329, %v1336
  %v1339 = vmul.f32 %v1330, %v1336
  %v1340 = vld [vmem:[%s8] sm:$0x1]
  %v1342 = vlaneseq
  %v1343 = vshrl.u32 %v1342, 7
  %v1344 = vsub.s32 0, %v1343
  %v1345 = vrot.slane %v1340, %v1344
  %v1347 = vadd.f32 %v1338, %v1345
  %v1348 = vadd.f32 %v1339, %v1345
  %v1349 = vld [vmem:[%s9] sm:$0xff]
  %v1350 = vld [vmem:[%s9 + $0x8] sm:$0xff]
  %v1351 = vld [vmem:[%s9 + $0x10] sm:$0xff]
  %v1352 = vld [vmem:[%s9 + $0x18] sm:$0xff]
  %v1353 = vld [vmem:[%s9 + $0x20] sm:$0xff]
  %v1354 = vld [vmem:[%s9 + $0x28] sm:$0xff]
  %v1355 = vld [vmem:[%s9 + $0x30] sm:$0xff]
  %v1356 = vld [vmem:[%s9 + $0x38] sm:$0xff]
  %v1357 = vld [vmem:[%s9 + $0x40] sm:$0xff]
  %v1358 = vld [vmem:[%s9 + $0x48] sm:$0xff]
  %v1359 = vld [vmem:[%s9 + $0x50] sm:$0xff]
  %v1360 = vld [vmem:[%s9 + $0x58] sm:$0xff]
  %v1361 = vld [vmem:[%s9 + $0x60] sm:$0xff]
  %v1362 = vld [vmem:[%s9 + $0x68] sm:$0xff]
  %v1363 = vld [vmem:[%s9 + $0x70] sm:$0xff]
  %v1364 = vld [vmem:[%s9 + $0x78] sm:$0xff]
  %v1365 = vld [vmem:[%s9 + $0x80] sm:$0xff]
  %v1366 = vld [vmem:[%s9 + $0x88] sm:$0xff]
  %v1367 = vld [vmem:[%s9 + $0x90] sm:$0xff]
  %v1368 = vld [vmem:[%s9 + $0x98] sm:$0xff]
  %v1369 = vld [vmem:[%s9 + $0xa0] sm:$0xff]
  %v1370 = vld [vmem:[%s9 + $0xa8] sm:$0xff]
  %v1371 = vld [vmem:[%s9 + $0xb0] sm:$0xff]
  %v1372 = vld [vmem:[%s9 + $0xb8] sm:$0xff]
  %v1373 = vld [vmem:[%s9 + $0xc0] sm:$0xff]
  %v1374 = vld [vmem:[%s9 + $0xc8] sm:$0xff]
  %v1375 = vld [vmem:[%s9 + $0xd0] sm:$0xff]
  %v1376 = vld [vmem:[%s9 + $0xd8] sm:$0xff]
  %v1377 = vld [vmem:[%s9 + $0xe0] sm:$0xff]
  %v1378 = vld [vmem:[%s9 + $0xe8] sm:$0xff]
  %v1379 = vld [vmem:[%s9 + $0xf0] sm:$0xff]
  %v1380 = vld [vmem:[%s9 + $0xf8] sm:$0xff]
  %v1381 = vld [vmem:[%s10] sm:$0x3]
  %v1383 = vlaneseq
  %v1384 = vshrl.u32 %v1383, 7
  %v1385 = vsub.s32 0, %v1384
  %v1386 = vrot.slane %v1381, %v1385
  %v1387 = vlaneseq
  %v1388 = vshrl.u32 %v1387, 7
  %v1389 = vsub.s32 1, %v1388
  %v1390 = vrot.slane %v1381, %v1389
  %1393 = vmatprep.subr.mxu0 %v1380
  %1394 = vmatpush1.msra.mxu0 %v1379
  %1395 = vmatprep.subr.mxu0 %v1378
  %1396 = vmatpush1.msra.mxu0 %v1377
  %1397 = vmatprep.subr.mxu0 %v1376
  %1398 = vmatpush1.msra.mxu0 %v1375
  %1399 = vmatprep.subr.mxu0 %v1374
  %1400 = vmatpush1.msra.mxu0 %v1373
  %1401 = vmatprep.subr.mxu0 %v1372
  %1402 = vmatpush1.msra.mxu0 %v1371
  %1403 = vmatprep.subr.mxu0 %v1370
  %1404 = vmatpush1.msra.mxu0 %v1369
  %1405 = vmatprep.subr.mxu0 %v1368
  %1406 = vmatpush1.msra.mxu0 %v1367
  %1407 = vmatprep.subr.mxu0 %v1366
  %1408 = vmatpush1.msra.mxu0 %v1365
  %1409 = vmatprep.subr.mxu0 %v1364
  %1410 = vmatpush1.msra.mxu0 %v1363
  %1411 = vmatprep.subr.mxu0 %v1362
  %1412 = vmatpush1.msra.mxu0 %v1361
  %1413 = vmatprep.subr.mxu0 %v1360
  %1414 = vmatpush1.msra.mxu0 %v1359
  %1415 = vmatprep.subr.mxu0 %v1358
  %1416 = vmatpush1.msra.mxu0 %v1357
  %1417 = vmatprep.subr.mxu0 %v1356
  %1418 = vmatpush1.msra.mxu0 %v1355
  %1419 = vmatprep.subr.mxu0 %v1354
  %1420 = vmatpush1.msra.mxu0 %v1353
  %1421 = vmatprep.subr.mxu0 %v1352
  %1422 = vmatpush1.msra.mxu0 %v1351
  %1423 = vmatprep.subr.mxu0 %v1350
  %1424 = vmatpush1.msra.mxu0 %v1349
  %1425 = vmatprep.subr.mxu0 0.0
  %1426 = vmatpush2.msra.mxu0 0.0
  %1427 = vmatprep.subr.mxu0 0.0
  %1428 = vmatpush2.msra.mxu0 0.0
  %1429 = vmatprep.subr.mxu0 0.0
  %1430 = vmatpush2.msra.mxu0 0.0
  %1431 = vmatprep.subr.mxu0 0.0
  %1432 = vmatpush2.msra.mxu0 0.0
  %1433 = vmatprep.subr.mxu0 0.0
  %1434 = vmatpush2.msra.mxu0 0.0
  %1435 = vmatprep.subr.mxu0 0.0
  %1436 = vmatpush2.msra.mxu0 0.0
  %1437 = vmatprep.subr.mxu0 0.0
  %1438 = vmatpush2.msra.mxu0 0.0
  %1439 = vmatprep.subr.mxu0 0.0
  %1440 = vmatpush2.msra.mxu0 0.0
  %1441 = vmatprep.subr.mxu0 0.0
  %1442 = vmatpush2.msra.mxu0 0.0
  %1443 = vmatprep.subr.mxu0 0.0
  %1444 = vmatpush2.msra.mxu0 0.0
  %1445 = vmatprep.subr.mxu0 0.0
  %1446 = vmatpush2.msra.mxu0 0.0
  %1447 = vmatprep.subr.mxu0 0.0
  %1448 = vmatpush2.msra.mxu0 0.0
  %1449 = vmatprep.subr.mxu0 0.0
  %1450 = vmatpush2.msra.mxu0 0.0
  %1451 = vmatprep.subr.mxu0 0.0
  %1452 = vmatpush2.msra.mxu0 0.0
  %1453 = vmatprep.subr.mxu0 0.0
  %1454 = vmatpush2.msra.mxu0 0.0
  %1455 = vmatprep.subr.mxu0 0.0
  %1456 = vmatpush2.msra.mxu0 0.0
  %1457 = vmatprep.mubr.f32.mxu0 0.0
  %1458 = vmatmul.mubr.f32.gmra.mxu0 %v1347
  %v1459 = vpop.f32.mrf.mxu0
  %v1460 = vadd.f32 %v1386, %v1459
  %v1461 = vpop.f32.mrf.mxu0
  %v1462 = vadd.f32 %v1390, %v1461
  %1463 = vmatprep.mubr.f32.mxu0 0.0
  %1464 = vmatmul.mubr.f32.gmra.mxu0 %v1348
  %v1465 = vpop.f32.mrf.mxu0
  %v1466 = vadd.f32 %v1386, %v1465
  %v1467 = vpop.f32.mrf.mxu0
  %v1468 = vadd.f32 %v1390, %v1467
  %1469 = vdwg.mxu0
  %v1470 = vmul.f32 %v1460, 0.5
  %v1471 = vmul.f32 %v1462, 0.5
  %v1472 = vmul.f32 %v1466, 0.5
  %v1473 = vmul.f32 %v1468, 0.5
  %v1474 = vmul.f32 %v1460, 0.70710677
  %v1475 = vmul.f32 %v1462, 0.70710677
  %v1476 = vmul.f32 %v1466, 0.70710677
  %v1477 = vmul.f32 %v1468, 0.70710677
  %v1478 = verf.f32.pop %v1474
  %v1479 = verf.f32.pop %v1475
  %v1480 = verf.f32.pop %v1476
  %v1481 = verf.f32.pop %v1477
  %v1482 = vadd.f32 %v1478, 1.0
  %v1483 = vadd.f32 %v1479, 1.0
  %v1484 = vadd.f32 %v1480, 1.0
  %v1485 = vadd.f32 %v1481, 1.0
  %v1486 = vmul.f32 %v1470, %v1482
  %v1487 = vmul.f32 %v1471, %v1483
  %v1488 = vmul.f32 %v1472, %v1484
  %v1489 = vmul.f32 %v1473, %v1485
  %v1490 = vld [vmem:[%s11] sm:$0xff]
  %v1491 = vld [vmem:[%s11 + $0x8] sm:$0xff]
  %v1492 = vld [vmem:[%s11 + $0x10] sm:$0xff]
  %v1493 = vld [vmem:[%s11 + $0x18] sm:$0xff]
  %v1494 = vld [vmem:[%s11 + $0x20] sm:$0xff]
  %v1495 = vld [vmem:[%s11 + $0x28] sm:$0xff]
  %v1496 = vld [vmem:[%s11 + $0x30] sm:$0xff]
  %v1497 = vld [vmem:[%s11 + $0x38] sm:$0xff]
  %v1498 = vld [vmem:[%s11 + $0x40] sm:$0xff]
  %v1499 = vld [vmem:[%s11 + $0x48] sm:$0xff]
  %v1500 = vld [vmem:[%s11 + $0x50] sm:$0xff]
  %v1501 = vld [vmem:[%s11 + $0x58] sm:$0xff]
  %v1502 = vld [vmem:[%s11 + $0x60] sm:$0xff]
  %v1503 = vld [vmem:[%s11 + $0x68] sm:$0xff]
  %v1504 = vld [vmem:[%s11 + $0x70] sm:$0xff]
  %v1505 = vld [vmem:[%s11 + $0x78] sm:$0xff]
  %v1506 = vld [vmem:[%s11 + $0x80] sm:$0xff]
  %v1507 = vld [vmem:[%s11 + $0x88] sm:$0xff]
  %v1508 = vld [vmem:[%s11 + $0x90] sm:$0xff]
  %v1509 = vld [vmem:[%s11 + $0x98] sm:$0xff]
  %v1510 = vld [vmem:[%s11 + $0xa0] sm:$0xff]
  %v1511 = vld [vmem:[%s11 + $0xa8] sm:$0xff]
  %v1512 = vld [vmem:[%s11 + $0xb0] sm:$0xff]
  %v1513 = vld [vmem:[%s11 + $0xb8] sm:$0xff]
  %v1514 = vld [vmem:[%s11 + $0xc0] sm:$0xff]
  %v1515 = vld [vmem:[%s11 + $0xc8] sm:$0xff]
  %v1516 = vld [vmem:[%s11 + $0xd0] sm:$0xff]
  %v1517 = vld [vmem:[%s11 + $0xd8] sm:$0xff]
  %v1518 = vld [vmem:[%s11 + $0xe0] sm:$0xff]
  %v1519 = vld [vmem:[%s11 + $0xe8] sm:$0xff]
  %v1520 = vld [vmem:[%s11 + $0xf0] sm:$0xff]
  %v1521 = vld [vmem:[%s11 + $0xf8] sm:$0xff]
  %v1522 = vld [vmem:[%s12] sm:$0x1]
  %v1524 = vlaneseq
  %v1525 = vshrl.u32 %v1524, 7
  %v1526 = vsub.s32 0, %v1525
  %v1527 = vrot.slane %v1522, %v1526
  %1529 = vmatprep.subr.mxu0 0.0
  %1530 = vmatpush1.msra.mxu0 %v1505
  %1531 = vmatprep.subr.mxu0 0.0
  %1532 = vmatpush1.msra.mxu0 %v1504
  %1533 = vmatprep.subr.mxu0 0.0
  %1534 = vmatpush1.msra.mxu0 %v1503
  %1535 = vmatprep.subr.mxu0 0.0
  %1536 = vmatpush1.msra.mxu0 %v1502
  %1537 = vmatprep.subr.mxu0 0.0
  %1538 = vmatpush1.msra.mxu0 %v1501
  %1539 = vmatprep.subr.mxu0 0.0
  %1540 = vmatpush1.msra.mxu0 %v1500
  %1541 = vmatprep.subr.mxu0 0.0
  %1542 = vmatpush1.msra.mxu0 %v1499
  %1543 = vmatprep.subr.mxu0 0.0
  %1544 = vmatpush1.msra.mxu0 %v1498
  %1545 = vmatprep.subr.mxu0 0.0
  %1546 = vmatpush1.msra.mxu0 %v1497
  %1547 = vmatprep.subr.mxu0 0.0
  %1548 = vmatpush1.msra.mxu0 %v1496
  %1549 = vmatprep.subr.mxu0 0.0
  %1550 = vmatpush1.msra.mxu0 %v1495
  %1551 = vmatprep.subr.mxu0 0.0
  %1552 = vmatpush1.msra.mxu0 %v1494
  %1553 = vmatprep.subr.mxu0 0.0
  %1554 = vmatpush1.msra.mxu0 %v1493
  %1555 = vmatprep.subr.mxu0 0.0
  %1556 = vmatpush1.msra.mxu0 %v1492
  %1557 = vmatprep.subr.mxu0 0.0
  %1558 = vmatpush1.msra.mxu0 %v1491
  %1559 = vmatprep.subr.mxu0 0.0
  %1560 = vmatpush1.msra.mxu0 %v1490
  %1561 = vmatprep.subr.mxu0 0.0
  %1562 = vmatpush2.msra.mxu0 %v1521
  %1563 = vmatprep.subr.mxu0 0.0
  %1564 = vmatpush2.msra.mxu0 %v1520
  %1565 = vmatprep.subr.mxu0 0.0
  %1566 = vmatpush2.msra.mxu0 %v1519
  %1567 = vmatprep.subr.mxu0 0.0
  %1568 = vmatpush2.msra.mxu0 %v1518
  %1569 = vmatprep.subr.mxu0 0.0
  %1570 = vmatpush2.msra.mxu0 %v1517
  %1571 = vmatprep.subr.mxu0 0.0
  %1572 = vmatpush2.msra.mxu0 %v1516
  %1573 = vmatprep.subr.mxu0 0.0
  %1574 = vmatpush2.msra.mxu0 %v1515
  %1575 = vmatprep.subr.mxu0 0.0
  %1576 = vmatpush2.msra.mxu0 %v1514
  %1577 = vmatprep.subr.mxu0 0.0
  %1578 = vmatpush2.msra.mxu0 %v1513
  %1579 = vmatprep.subr.mxu0 0.0
  %1580 = vmatpush2.msra.mxu0 %v1512
  %1581 = vmatprep.subr.mxu0 0.0
  %1582 = vmatpush2.msra.mxu0 %v1511
  %1583 = vmatprep.subr.mxu0 0.0
  %1584 = vmatpush2.msra.mxu0 %v1510
  %1585 = vmatprep.subr.mxu0 0.0
  %1586 = vmatpush2.msra.mxu0 %v1509
  %1587 = vmatprep.subr.mxu0 0.0
  %1588 = vmatpush2.msra.mxu0 %v1508
  %1589 = vmatprep.subr.mxu0 0.0
  %1590 = vmatpush2.msra.mxu0 %v1507
  %1591 = vmatprep.subr.mxu0 0.0
  %1592 = vmatpush2.msra.mxu0 %v1506
  %1593 = vmatprep.mubr.f32.mxu0 %v1487
  %1594 = vmatmul.mubr.f32.gmra.mxu0 %v1486
  %v1595 = vpop.f32.mrf.mxu0
  %v1596 = vadd.f32 %v1527, %v1595
  %v1597 = vpop.f32.mrf.mxu0
  %1598 = vmatprep.mubr.f32.mxu0 %v1489
  %1599 = vmatmul.mubr.f32.gmra.mxu0 %v1488
  %v1600 = vpop.f32.mrf.mxu0
  %v1601 = vadd.f32 %v1527, %v1600
  %v1602 = vpop.f32.mrf.mxu0
  %1603 = vdwg.mxu0
  %v1604 = vadd.f32 %v1307, %v1596
  %v1605 = vadd.f32 %v1308, %v1601
  %1606 = vadd.xlane.f32.xlu0 %v1604
  %v1607 = vpop.xlane.xlu0 %1606
  %1608 = vadd.xlane.f32.xlu0 %v1605
  %v1609 = vpop.xlane.xlu0 %1608
  %v1610 = vmul.f32 %v1607, %v108
  %v1611 = vmul.f32 %v1609, %v108
  %v1612 = vsub.f32 %v1604, %v1610
  %v1613 = vsub.f32 %v1605, %v1611
  %v1614 = vmul.f32 %v1612, %v1612
  %v1615 = vmul.f32 %v1613, %v1613
  %1616 = vadd.xlane.f32.xlu0 %v1614
  %v1617 = vpop.xlane.xlu0 %1616
  %1618 = vadd.xlane.f32.xlu0 %v1615
  %v1619 = vpop.xlane.xlu0 %1618
  %v1620 = vmul.f32 %v1617, %v108
  %v1621 = vmul.f32 %v1619, %v108
  %v1622 = vadd.f32 %v1620, 1e-05
  %v1623 = vadd.f32 %v1621, 1e-05
  %v1624 = vrsqrt.pop %v1622
  %v1625 = vrsqrt.pop %v1623
  %v1626 = vmul.f32 %v1612, %v1624
  %v1627 = vmul.f32 %v1613, %v1625
  %v1628 = vld [vmem:[%s13] sm:$0x1]
  %v1630 = vlaneseq
  %v1631 = vshrl.u32 %v1630, 7
  %v1632 = vsub.s32 0, %v1631
  %v1633 = vrot.slane %v1628, %v1632
  %v1635 = vmul.f32 %v1626, %v1633
  %v1636 = vmul.f32 %v1627, %v1633
  %v1637 = vld [vmem:[%s14] sm:$0x1]
  %v1639 = vlaneseq
  %v1640 = vshrl.u32 %v1639, 7
  %v1641 = vsub.s32 0, %v1640
  %v1642 = vrot.slane %v1637, %v1641
  %v1644 = vadd.f32 %v1635, %v1642
  %v1645 = vadd.f32 %v1636, %v1642
  %v1646 = vld [vmem:[%s15] sm:$0xff]
  %v1647 = vld [vmem:[%s15 + $0x8] sm:$0xff]
  %v1648 = vld [vmem:[%s15 + $0x10] sm:$0xff]
  %v1649 = vld [vmem:[%s15 + $0x18] sm:$0xff]
  %v1650 = vld [vmem:[%s15 + $0x20] sm:$0xff]
  %v1651 = vld [vmem:[%s15 + $0x28] sm:$0xff]
  %v1652 = vld [vmem:[%s15 + $0x30] sm:$0xff]
  %v1653 = vld [vmem:[%s15 + $0x38] sm:$0xff]
  %v1654 = vld [vmem:[%s15 + $0x40] sm:$0xff]
  %v1655 = vld [vmem:[%s15 + $0x48] sm:$0xff]
  %v1656 = vld [vmem:[%s15 + $0x50] sm:$0xff]
  %v1657 = vld [vmem:[%s15 + $0x58] sm:$0xff]
  %v1658 = vld [vmem:[%s15 + $0x60] sm:$0xff]
  %v1659 = vld [vmem:[%s15 + $0x68] sm:$0xff]
  %v1660 = vld [vmem:[%s15 + $0x70] sm:$0xff]
  %v1661 = vld [vmem:[%s15 + $0x78] sm:$0xff]
  %v1662 = vld [vmem:[%s15 + $0x80] sm:$0xff]
  %v1663 = vld [vmem:[%s15 + $0x88] sm:$0xff]
  %v1664 = vld [vmem:[%s15 + $0x90] sm:$0xff]
  %v1665 = vld [vmem:[%s15 + $0x98] sm:$0xff]
  %v1666 = vld [vmem:[%s15 + $0xa0] sm:$0xff]
  %v1667 = vld [vmem:[%s15 + $0xa8] sm:$0xff]
  %v1668 = vld [vmem:[%s15 + $0xb0] sm:$0xff]
  %v1669 = vld [vmem:[%s15 + $0xb8] sm:$0xff]
  %v1670 = vld [vmem:[%s15 + $0xc0] sm:$0xff]
  %v1671 = vld [vmem:[%s15 + $0xc8] sm:$0xff]
  %v1672 = vld [vmem:[%s15 + $0xd0] sm:$0xff]
  %v1673 = vld [vmem:[%s15 + $0xd8] sm:$0xff]
  %v1674 = vld [vmem:[%s15 + $0xe0] sm:$0xff]
  %v1675 = vld [vmem:[%s15 + $0xe8] sm:$0xff]
  %v1676 = vld [vmem:[%s15 + $0xf0] sm:$0xff]
  %v1677 = vld [vmem:[%s15 + $0xf8] sm:$0xff]
  %v1678 = vld [vmem:[%s15 + $0x100] sm:$0xff]
  %v1679 = vld [vmem:[%s15 + $0x108] sm:$0xff]
  %v1680 = vld [vmem:[%s15 + $0x110] sm:$0xff]
  %v1681 = vld [vmem:[%s15 + $0x118] sm:$0xff]
  %v1682 = vld [vmem:[%s15 + $0x120] sm:$0xff]
  %v1683 = vld [vmem:[%s15 + $0x128] sm:$0xff]
  %v1684 = vld [vmem:[%s15 + $0x130] sm:$0xff]
  %v1685 = vld [vmem:[%s15 + $0x138] sm:$0xff]
  %v1686 = vld [vmem:[%s15 + $0x140] sm:$0xff]
  %v1687 = vld [vmem:[%s15 + $0x148] sm:$0xff]
  %v1688 = vld [vmem:[%s15 + $0x150] sm:$0xff]
  %v1689 = vld [vmem:[%s15 + $0x158] sm:$0xff]
  %v1690 = vld [vmem:[%s15 + $0x160] sm:$0xff]
  %v1691 = vld [vmem:[%s15 + $0x168] sm:$0xff]
  %v1692 = vld [vmem:[%s15 + $0x170] sm:$0xff]
  %v1693 = vld [vmem:[%s15 + $0x178] sm:$0xff]
  %v1694 = vld [vmem:[%s16] sm:$0x7]
  %v1696 = vlaneseq
  %v1697 = vshrl.u32 %v1696, 7
  %v1698 = vsub.s32 0, %v1697
  %v1699 = vrot.slane %v1694, %v1698
  %v1700 = vlaneseq
  %v1701 = vshrl.u32 %v1700, 7
  %v1702 = vsub.s32 1, %v1701
  %v1703 = vrot.slane %v1694, %v1702
  %v1704 = vlaneseq
  %v1705 = vshrl.u32 %v1704, 7
  %v1706 = vsub.s32 2, %v1705
  %v1707 = vrot.slane %v1694, %v1706
  %1711 = vmatprep.subr.mxu0 %v1692
  %1712 = vmatpush1.msra.mxu0 %v1691
  %1713 = vmatprep.subr.mxu0 %v1689
  %1714 = vmatpush1.msra.mxu0 %v1688
  %1715 = vmatprep.subr.mxu0 %v1686
  %1716 = vmatpush1.msra.mxu0 %v1685
  %1717 = vmatprep.subr.mxu0 %v1683
  %1718 = vmatpush1.msra.mxu0 %v1682
  %1719 = vmatprep.subr.mxu0 %v1680
  %1720 = vmatpush1.msra.mxu0 %v1679
  %1721 = vmatprep.subr.mxu0 %v1677
  %1722 = vmatpush1.msra.mxu0 %v1676
  %1723 = vmatprep.subr.mxu0 %v1674
  %1724 = vmatpush1.msra.mxu0 %v1673
  %1725 = vmatprep.subr.mxu0 %v1671
  %1726 = vmatpush1.msra.mxu0 %v1670
  %1727 = vmatprep.subr.mxu0 %v1668
  %1728 = vmatpush1.msra.mxu0 %v1667
  %1729 = vmatprep.subr.mxu0 %v1665
  %1730 = vmatpush1.msra.mxu0 %v1664
  %1731 = vmatprep.subr.mxu0 %v1662
  %1732 = vmatpush1.msra.mxu0 %v1661
  %1733 = vmatprep.subr.mxu0 %v1659
  %1734 = vmatpush1.msra.mxu0 %v1658
  %1735 = vmatprep.subr.mxu0 %v1656
  %1736 = vmatpush1.msra.mxu0 %v1655
  %1737 = vmatprep.subr.mxu0 %v1653
  %1738 = vmatpush1.msra.mxu0 %v1652
  %1739 = vmatprep.subr.mxu0 %v1650
  %1740 = vmatpush1.msra.mxu0 %v1649
  %1741 = vmatprep.subr.mxu0 %v1647
  %1742 = vmatpush1.msra.mxu0 %v1646
  %1743 = vmatprep.subr.mxu0 0.0
  %1744 = vmatpush2.msra.mxu0 0.0
  %1745 = vmatprep.subr.mxu0 0.0
  %1746 = vmatpush2.msra.mxu0 0.0
  %1747 = vmatprep.subr.mxu0 0.0
  %1748 = vmatpush2.msra.mxu0 0.0
  %1749 = vmatprep.subr.mxu0 0.0
  %1750 = vmatpush2.msra.mxu0 0.0
  %1751 = vmatprep.subr.mxu0 0.0
  %1752 = vmatpush2.msra.mxu0 0.0
  %1753 = vmatprep.subr.mxu0 0.0
  %1754 = vmatpush2.msra.mxu0 0.0
  %1755 = vmatprep.subr.mxu0 0.0
  %1756 = vmatpush2.msra.mxu0 0.0
  %1757 = vmatprep.subr.mxu0 0.0
  %1758 = vmatpush2.msra.mxu0 0.0
  %1759 = vmatprep.subr.mxu0 0.0
  %1760 = vmatpush2.msra.mxu0 0.0
  %1761 = vmatprep.subr.mxu0 0.0
  %1762 = vmatpush2.msra.mxu0 0.0
  %1763 = vmatprep.subr.mxu0 0.0
  %1764 = vmatpush2.msra.mxu0 0.0
  %1765 = vmatprep.subr.mxu0 0.0
  %1766 = vmatpush2.msra.mxu0 0.0
  %1767 = vmatprep.subr.mxu0 0.0
  %1768 = vmatpush2.msra.mxu0 0.0
  %1769 = vmatprep.subr.mxu0 0.0
  %1770 = vmatpush2.msra.mxu0 0.0
  %1771 = vmatprep.subr.mxu0 0.0
  %1772 = vmatpush2.msra.mxu0 0.0
  %1773 = vmatprep.subr.mxu0 0.0
  %1774 = vmatpush2.msra.mxu0 0.0
  %1775 = vmatprep.mubr.f32.mxu0 0.0
  %1776 = vmatmul.mubr.f32.gmra.mxu0 %v1644
  %v1777 = vpop.f32.mrf.mxu0
  %v1778 = vadd.f32 %v1699, %v1777
  %v1779 = vpop.f32.mrf.mxu0
  %v1780 = vadd.f32 %v1703, %v1779
  %1781 = vmatprep.mubr.f32.mxu0 0.0
  %1782 = vmatmul.mubr.f32.gmra.mxu0 %v1645
  %v1783 = vpop.f32.mrf.mxu0
  %v1784 = vadd.f32 %v1699, %v1783
  %v1785 = vpop.f32.mrf.mxu0
  %v1786 = vadd.f32 %v1703, %v1785
  %1787 = vdwg.mxu0
  %1788 = vmatprep.subr.mxu0 0.0
  %1789 = vmatpush1.msra.mxu0 %v1693
  %1790 = vmatprep.subr.mxu0 0.0
  %1791 = vmatpush1.msra.mxu0 %v1690
  %1792 = vmatprep.subr.mxu0 0.0
  %1793 = vmatpush1.msra.mxu0 %v1687
  %1794 = vmatprep.subr.mxu0 0.0
  %1795 = vmatpush1.msra.mxu0 %v1684
  %1796 = vmatprep.subr.mxu0 0.0
  %1797 = vmatpush1.msra.mxu0 %v1681
  %1798 = vmatprep.subr.mxu0 0.0
  %1799 = vmatpush1.msra.mxu0 %v1678
  %1800 = vmatprep.subr.mxu0 0.0
  %1801 = vmatpush1.msra.mxu0 %v1675
  %1802 = vmatprep.subr.mxu0 0.0
  %1803 = vmatpush1.msra.mxu0 %v1672
  %1804 = vmatprep.subr.mxu0 0.0
  %1805 = vmatpush1.msra.mxu0 %v1669
  %1806 = vmatprep.subr.mxu0 0.0
  %1807 = vmatpush1.msra.mxu0 %v1666
  %1808 = vmatprep.subr.mxu0 0.0
  %1809 = vmatpush1.msra.mxu0 %v1663
  %1810 = vmatprep.subr.mxu0 0.0
  %1811 = vmatpush1.msra.mxu0 %v1660
  %1812 = vmatprep.subr.mxu0 0.0
  %1813 = vmatpush1.msra.mxu0 %v1657
  %1814 = vmatprep.subr.mxu0 0.0
  %1815 = vmatpush1.msra.mxu0 %v1654
  %1816 = vmatprep.subr.mxu0 0.0
  %1817 = vmatpush1.msra.mxu0 %v1651
  %1818 = vmatprep.subr.mxu0 0.0
  %1819 = vmatpush1.msra.mxu0 %v1648
  %1820 = vmatprep.subr.mxu0 0.0
  %1821 = vmatpush2.msra.mxu0 0.0
  %1822 = vmatprep.subr.mxu0 0.0
  %1823 = vmatpush2.msra.mxu0 0.0
  %1824 = vmatprep.subr.mxu0 0.0
  %1825 = vmatpush2.msra.mxu0 0.0
  %1826 = vmatprep.subr.mxu0 0.0
  %1827 = vmatpush2.msra.mxu0 0.0
  %1828 = vmatprep.subr.mxu0 0.0
  %1829 = vmatpush2.msra.mxu0 0.0
  %1830 = vmatprep.subr.mxu0 0.0
  %1831 = vmatpush2.msra.mxu0 0.0
  %1832 = vmatprep.subr.mxu0 0.0
  %1833 = vmatpush2.msra.mxu0 0.0
  %1834 = vmatprep.subr.mxu0 0.0
  %1835 = vmatpush2.msra.mxu0 0.0
  %1836 = vmatprep.subr.mxu0 0.0
  %1837 = vmatpush2.msra.mxu0 0.0
  %1838 = vmatprep.subr.mxu0 0.0
  %1839 = vmatpush2.msra.mxu0 0.0
  %1840 = vmatprep.subr.mxu0 0.0
  %1841 = vmatpush2.msra.mxu0 0.0
  %1842 = vmatprep.subr.mxu0 0.0
  %1843 = vmatpush2.msra.mxu0 0.0
  %1844 = vmatprep.subr.mxu0 0.0
  %1845 = vmatpush2.msra.mxu0 0.0
  %1846 = vmatprep.subr.mxu0 0.0
  %1847 = vmatpush2.msra.mxu0 0.0
  %1848 = vmatprep.subr.mxu0 0.0
  %1849 = vmatpush2.msra.mxu0 0.0
  %1850 = vmatprep.subr.mxu0 0.0
  %1851 = vmatpush2.msra.mxu0 0.0
  %1852 = vmatprep.mubr.f32.mxu0 0.0
  %1853 = vmatmul.mubr.f32.gmra.mxu0 %v1644
  %v1854 = vpop.f32.mrf.mxu0
  %v1855 = vadd.f32 %v1707, %v1854
  %v1856 = vpop.f32.mrf.mxu0
  %1857 = vmatprep.mubr.f32.mxu0 0.0
  %1858 = vmatmul.mubr.f32.gmra.mxu0 %v1645
  %v1859 = vpop.f32.mrf.mxu0
  %v1860 = vadd.f32 %v1707, %v1859
  %v1861 = vpop.f32.mrf.mxu0
  %1862 = vdwg.mxu0
  %v1864 = vsel %vm362, %v1778, 0
  %v1867 = vsel %vm362, %v1784, 0
  %v1870 = vsel %vm362, %v1780, 0
  %v1873 = vsel %vm362, %v1786, 0
  %1875 = vmatprep.subr.mxu0 0.0
  %1876 = vmatpush1.xpose.msra.mxu0 0.0
  %1877 = vmatprep.subr.mxu0 0.0
  %1878 = vmatpush1.xpose.msra.mxu0 0.0
  %1879 = vmatprep.subr.mxu0 0.0
  %1880 = vmatpush1.xpose.msra.mxu0 0.0
  %1881 = vmatprep.subr.mxu0 0.0
  %1882 = vmatpush1.xpose.msra.mxu0 0.0
  %1883 = vmatprep.subr.mxu0 0.0
  %1884 = vmatpush1.xpose.msra.mxu0 0.0
  %1885 = vmatprep.subr.mxu0 0.0
  %1886 = vmatpush1.xpose.msra.mxu0 0.0
  %1887 = vmatprep.subr.mxu0 0.0
  %1888 = vmatpush1.xpose.msra.mxu0 0.0
  %1889 = vmatprep.subr.mxu0 0.0
  %1890 = vmatpush1.xpose.msra.mxu0 0.0
  %1891 = vmatprep.subr.mxu0 0.0
  %1892 = vmatpush1.xpose.msra.mxu0 0.0
  %1893 = vmatprep.subr.mxu0 0.0
  %1894 = vmatpush1.xpose.msra.mxu0 0.0
  %1895 = vmatprep.subr.mxu0 0.0
  %1896 = vmatpush1.xpose.msra.mxu0 0.0
  %1897 = vmatprep.subr.mxu0 0.0
  %1898 = vmatpush1.xpose.msra.mxu0 0.0
  %1899 = vmatprep.subr.mxu0 0.0
  %1900 = vmatpush1.xpose.msra.mxu0 0.0
  %1901 = vmatprep.subr.mxu0 0.0
  %1902 = vmatpush1.xpose.msra.mxu0 0.0
  %1903 = vmatprep.subr.mxu0 0.0
  %1904 = vmatpush1.xpose.msra.mxu0 %v1873
  %1905 = vmatprep.subr.mxu0 0.0
  %1906 = vmatpush1.xpose.msra.mxu0 %v1870
  %1907 = vmatprep.subr.mxu0 0.0
  %1908 = vmatpush2.xpose.msra.mxu0 0.0
  %1909 = vmatprep.subr.mxu0 0.0
  %1910 = vmatpush2.xpose.msra.mxu0 0.0
  %1911 = vmatprep.subr.mxu0 0.0
  %1912 = vmatpush2.xpose.msra.mxu0 0.0
  %1913 = vmatprep.subr.mxu0 0.0
  %1914 = vmatpush2.xpose.msra.mxu0 0.0
  %1915 = vmatprep.subr.mxu0 0.0
  %1916 = vmatpush2.xpose.msra.mxu0 0.0
  %1917 = vmatprep.subr.mxu0 0.0
  %1918 = vmatpush2.xpose.msra.mxu0 0.0
  %1919 = vmatprep.subr.mxu0 0.0
  %1920 = vmatpush2.xpose.msra.mxu0 0.0
  %1921 = vmatprep.subr.mxu0 0.0
  %1922 = vmatpush2.xpose.msra.mxu0 0.0
  %1923 = vmatprep.subr.mxu0 0.0
  %1924 = vmatpush2.xpose.msra.mxu0 0.0
  %1925 = vmatprep.subr.mxu0 0.0
  %1926 = vmatpush2.xpose.msra.mxu0 0.0
  %1927 = vmatprep.subr.mxu0 0.0
  %1928 = vmatpush2.xpose.msra.mxu0 0.0
  %1929 = vmatprep.subr.mxu0 0.0
  %1930 = vmatpush2.xpose.msra.mxu0 0.0
  %1931 = vmatprep.subr.mxu0 0.0
  %1932 = vmatpush2.xpose.msra.mxu0 0.0
  %1933 = vmatprep.subr.mxu0 0.0
  %1934 = vmatpush2.xpose.msra.mxu0 0.0
  %1935 = vmatprep.subr.mxu0 0.0
  %1936 = vmatpush2.xpose.msra.mxu0 0.0
  %1937 = vmatprep.subr.mxu0 0.0
  %1938 = vmatpush2.xpose.msra.mxu0 0.0
  %1939 = vmatprep.mubr.f32.mxu0 0.0
  %1940 = vmatmul.mubr.f32.gmra.mxu0 %v1864
  %v1941 = vpop.f32.mrf.mxu0
  %v1942 = vadd.f32 0.0, %v1941
  %v1943 = vpop.f32.mrf.mxu0
  %1944 = vmatprep.mubr.f32.mxu0 0.0
  %1945 = vmatmul.mubr.f32.gmra.mxu0 %v1867
  %v1946 = vpop.f32.mrf.mxu0
  %v1947 = vadd.f32 0.0, %v1946
  %v1948 = vpop.f32.mrf.mxu0
  %1949 = vdwg.mxu0
  %v1950 = vmul.f32 %v1942, 0.17677669
  %v1951 = vmul.f32 %v1947, 0.17677669
  %v1952 = vadd.f32 %v1950, %v100
  %v1953 = vadd.f32 %v1951, %v101
  %v1954 = vsel %vm454, %v1952, -inf
  %1955 = vmax.xlane.f32.xlu0 %v1954
  %v1956 = vpop.xlane.xlu0 %1955
  %v1957 = vsel %vm454, %v1953, -inf
  %1958 = vmax.xlane.f32.xlu0 %v1957
  %v1959 = vpop.xlane.xlu0 %1958
  %v1960 = vsub.f32 %v1952, %v1956
  %v1961 = vsub.f32 %v1953, %v1959
  %v1962 = vmul.f32 %v1960, 1.442695
  %v1963 = vpow.pop %v1962
  %v1964 = vmul.f32 %v1961, 1.442695
  %v1965 = vpow.pop %v1964
  %v1966 = vsel %vm454, %v1963, 0.0
  %1967 = vadd.xlane.f32.xlu0 %v1966
  %v1968 = vpop.xlane.xlu0 %1967
  %v1969 = vsel %vm454, %v1965, 0.0
  %1970 = vadd.xlane.f32.xlu0 %v1969
  %v1971 = vpop.xlane.xlu0 %1970
  %v1972 = vrcp.pop %v1968
  %v1973 = vrcp.pop %v1971
  %v1974 = vmul.f32 %v1963, %v1972
  %v1975 = vmul.f32 %v1965, %v1973
  %v1977 = vsel %vm454, %v1974, 0
  %v1980 = vsel %vm454, %v1975, 0
  %1982 = vmatprep.subr.mxu0 0.0
  %1983 = vmatpush1.msra.mxu0 0.0
  %1984 = vmatprep.subr.mxu0 0.0
  %1985 = vmatpush1.msra.mxu0 0.0
  %1986 = vmatprep.subr.mxu0 0.0
  %1987 = vmatpush1.msra.mxu0 0.0
  %1988 = vmatprep.subr.mxu0 0.0
  %1989 = vmatpush1.msra.mxu0 0.0
  %1990 = vmatprep.subr.mxu0 0.0
  %1991 = vmatpush1.msra.mxu0 0.0
  %1992 = vmatprep.subr.mxu0 0.0
  %1993 = vmatpush1.msra.mxu0 0.0
  %1994 = vmatprep.subr.mxu0 0.0
  %1995 = vmatpush1.msra.mxu0 0.0
  %1996 = vmatprep.subr.mxu0 0.0
  %1997 = vmatpush1.msra.mxu0 0.0
  %1998 = vmatprep.subr.mxu0 0.0
  %1999 = vmatpush1.msra.mxu0 0.0
  %2000 = vmatprep.subr.mxu0 0.0
  %2001 = vmatpush1.msra.mxu0 0.0
  %2002 = vmatprep.subr.mxu0 0.0
  %2003 = vmatpush1.msra.mxu0 0.0
  %2004 = vmatprep.subr.mxu0 0.0
  %2005 = vmatpush1.msra.mxu0 0.0
  %2006 = vmatprep.subr.mxu0 0.0
  %2007 = vmatpush1.msra.mxu0 0.0
  %2008 = vmatprep.subr.mxu0 0.0
  %2009 = vmatpush1.msra.mxu0 0.0
  %2010 = vmatprep.subr.mxu0 0.0
  %2011 = vmatpush1.msra.mxu0 %v1860
  %2012 = vmatprep.subr.mxu0 0.0
  %2013 = vmatpush1.msra.mxu0 %v1855
  %2014 = vmatprep.subr.mxu0 0.0
  %2015 = vmatpush2.msra.mxu0 0.0
  %2016 = vmatprep.subr.mxu0 0.0
  %2017 = vmatpush2.msra.mxu0 0.0
  %2018 = vmatprep.subr.mxu0 0.0
  %2019 = vmatpush2.msra.mxu0 0.0
  %2020 = vmatprep.subr.mxu0 0.0
  %2021 = vmatpush2.msra.mxu0 0.0
  %2022 = vmatprep.subr.mxu0 0.0
  %2023 = vmatpush2.msra.mxu0 0.0
  %2024 = vmatprep.subr.mxu0 0.0
  %2025 = vmatpush2.msra.mxu0 0.0
  %2026 = vmatprep.subr.mxu0 0.0
  %2027 = vmatpush2.msra.mxu0 0.0
  %2028 = vmatprep.subr.mxu0 0.0
  %2029 = vmatpush2.msra.mxu0 0.0
  %2030 = vmatprep.subr.mxu0 0.0
  %2031 = vmatpush2.msra.mxu0 0.0
  %2032 = vmatprep.subr.mxu0 0.0
  %2033 = vmatpush2.msra.mxu0 0.0
  %2034 = vmatprep.subr.mxu0 0.0
  %2035 = vmatpush2.msra.mxu0 0.0
  %2036 = vmatprep.subr.mxu0 0.0
  %2037 = vmatpush2.msra.mxu0 0.0
  %2038 = vmatprep.subr.mxu0 0.0
  %2039 = vmatpush2.msra.mxu0 0.0
  %2040 = vmatprep.subr.mxu0 0.0
  %2041 = vmatpush2.msra.mxu0 0.0
  %2042 = vmatprep.subr.mxu0 0.0
  %2043 = vmatpush2.msra.mxu0 0.0
  %2044 = vmatprep.subr.mxu0 0.0
  %2045 = vmatpush2.msra.mxu0 0.0
  %2046 = vmatprep.mubr.f32.mxu0 0.0
  %2047 = vmatmul.mubr.f32.gmra.mxu0 %v1977
  %v2048 = vpop.f32.mrf.mxu0
  %v2049 = vadd.f32 0.0, %v2048
  %v2050 = vpop.f32.mrf.mxu0
  %2051 = vmatprep.mubr.f32.mxu0 0.0
  %2052 = vmatmul.mubr.f32.gmra.mxu0 %v1980
  %v2053 = vpop.f32.mrf.mxu0
  %v2054 = vadd.f32 0.0, %v2053
  %v2055 = vpop.f32.mrf.mxu0
  %2056 = vdwg.mxu0
  %2057 = vst.msk [vmem:[#allocation2] sm:$0xff] %vm362, %v2049
  %2058 = vst.msk [vmem:[#allocation2 + $0x8] sm:$0xff] %vm362, %v2054
  %2059 = vrot.lane.b32.xlu0 %v1778, 96
  %v2060 = vpop.permute.xlu0 %2059
  %2061 = vrot.lane.b32.xlu0 %v1784, 96
  %v2062 = vpop.permute.xlu0 %2061
  %2063 = vrot.lane.b32.xlu0 %v1780, 96
  %v2064 = vpop.permute.xlu0 %2063
  %2065 = vrot.lane.b32.xlu0 %v1786, 96
  %v2066 = vpop.permute.xlu0 %2065
  %v2067 = vsel %vm362, %v2060, 0
  %v2069 = vsel %vm362, %v2062, 0
  %v2071 = vsel %vm362, %v2064, 0
  %v2073 = vsel %vm362, %v2066, 0
  %2075 = vmatprep.subr.mxu0 0.0
  %2076 = vmatpush1.xpose.msra.mxu0 0.0
  %2077 = vmatprep.subr.mxu0 0.0
  %2078 = vmatpush1.xpose.msra.mxu0 0.0
  %2079 = vmatprep.subr.mxu0 0.0
  %2080 = vmatpush1.xpose.msra.mxu0 0.0
  %2081 = vmatprep.subr.mxu0 0.0
  %2082 = vmatpush1.xpose.msra.mxu0 0.0
  %2083 = vmatprep.subr.mxu0 0.0
  %2084 = vmatpush1.xpose.msra.mxu0 0.0
  %2085 = vmatprep.subr.mxu0 0.0
  %2086 = vmatpush1.xpose.msra.mxu0 0.0
  %2087 = vmatprep.subr.mxu0 0.0
  %2088 = vmatpush1.xpose.msra.mxu0 0.0
  %2089 = vmatprep.subr.mxu0 0.0
  %2090 = vmatpush1.xpose.msra.mxu0 0.0
  %2091 = vmatprep.subr.mxu0 0.0
  %2092 = vmatpush1.xpose.msra.mxu0 0.0
  %2093 = vmatprep.subr.mxu0 0.0
  %2094 = vmatpush1.xpose.msra.mxu0 0.0
  %2095 = vmatprep.subr.mxu0 0.0
  %2096 = vmatpush1.xpose.msra.mxu0 0.0
  %2097 = vmatprep.subr.mxu0 0.0
  %2098 = vmatpush1.xpose.msra.mxu0 0.0
  %2099 = vmatprep.subr.mxu0 0.0
  %2100 = vmatpush1.xpose.msra.mxu0 0.0
  %2101 = vmatprep.subr.mxu0 0.0
  %2102 = vmatpush1.xpose.msra.mxu0 0.0
  %2103 = vmatprep.subr.mxu0 0.0
  %2104 = vmatpush1.xpose.msra.mxu0 %v2073
  %2105 = vmatprep.subr.mxu0 0.0
  %2106 = vmatpush1.xpose.msra.mxu0 %v2071
  %2107 = vmatprep.subr.mxu0 0.0
  %2108 = vmatpush2.xpose.msra.mxu0 0.0
  %2109 = vmatprep.subr.mxu0 0.0
  %2110 = vmatpush2.xpose.msra.mxu0 0.0
  %2111 = vmatprep.subr.mxu0 0.0
  %2112 = vmatpush2.xpose.msra.mxu0 0.0
  %2113 = vmatprep.subr.mxu0 0.0
  %2114 = vmatpush2.xpose.msra.mxu0 0.0
  %2115 = vmatprep.subr.mxu0 0.0
  %2116 = vmatpush2.xpose.msra.mxu0 0.0
  %2117 = vmatprep.subr.mxu0 0.0
  %2118 = vmatpush2.xpose.msra.mxu0 0.0
  %2119 = vmatprep.subr.mxu0 0.0
  %2120 = vmatpush2.xpose.msra.mxu0 0.0
  %2121 = vmatprep.subr.mxu0 0.0
  %2122 = vmatpush2.xpose.msra.mxu0 0.0
  %2123 = vmatprep.subr.mxu0 0.0
  %2124 = vmatpush2.xpose.msra.mxu0 0.0
  %2125 = vmatprep.subr.mxu0 0.0
  %2126 = vmatpush2.xpose.msra.mxu0 0.0
  %2127 = vmatprep.subr.mxu0 0.0
  %2128 = vmatpush2.xpose.msra.mxu0 0.0
  %2129 = vmatprep.subr.mxu0 0.0
  %2130 = vmatpush2.xpose.msra.mxu0 0.0
  %2131 = vmatprep.subr.mxu0 0.0
  %2132 = vmatpush2.xpose.msra.mxu0 0.0
  %2133 = vmatprep.subr.mxu0 0.0
  %2134 = vmatpush2.xpose.msra.mxu0 0.0
  %2135 = vmatprep.subr.mxu0 0.0
  %2136 = vmatpush2.xpose.msra.mxu0 0.0
  %2137 = vmatprep.subr.mxu0 0.0
  %2138 = vmatpush2.xpose.msra.mxu0 0.0
  %2139 = vmatprep.mubr.f32.mxu0 0.0
  %2140 = vmatmul.mubr.f32.gmra.mxu0 %v2067
  %v2141 = vpop.f32.mrf.mxu0
  %v2142 = vadd.f32 0.0, %v2141
  %v2143 = vpop.f32.mrf.mxu0
  %2144 = vmatprep.mubr.f32.mxu0 0.0
  %2145 = vmatmul.mubr.f32.gmra.mxu0 %v2069
  %v2146 = vpop.f32.mrf.mxu0
  %v2147 = vadd.f32 0.0, %v2146
  %v2148 = vpop.f32.mrf.mxu0
  %2149 = vdwg.mxu0
  %v2150 = vmul.f32 %v2142, 0.17677669
  %v2151 = vmul.f32 %v2147, 0.17677669
  %v2152 = vadd.f32 %v2150, %v100
  %v2153 = vadd.f32 %v2151, %v101
  %v2154 = vsel %vm454, %v2152, -inf
  %2155 = vmax.xlane.f32.xlu0 %v2154
  %v2156 = vpop.xlane.xlu0 %2155
  %v2157 = vsel %vm454, %v2153, -inf
  %2158 = vmax.xlane.f32.xlu0 %v2157
  %v2159 = vpop.xlane.xlu0 %2158
  %v2160 = vsub.f32 %v2152, %v2156
  %v2161 = vsub.f32 %v2153, %v2159
  %v2162 = vmul.f32 %v2160, 1.442695
  %v2163 = vpow.pop %v2162
  %v2164 = vmul.f32 %v2161, 1.442695
  %v2165 = vpow.pop %v2164
  %v2166 = vsel %vm454, %v2163, 0.0
  %2167 = vadd.xlane.f32.xlu0 %v2166
  %v2168 = vpop.xlane.xlu0 %2167
  %v2169 = vsel %vm454, %v2165, 0.0
  %2170 = vadd.xlane.f32.xlu0 %v2169
  %v2171 = vpop.xlane.xlu0 %2170
  %v2172 = vrcp.pop %v2168
  %v2173 = vrcp.pop %v2171
  %v2174 = vmul.f32 %v2163, %v2172
  %v2175 = vmul.f32 %v2165, %v2173
  %2178 = vrot.lane.b32.xlu0 %v1855, 96
  %v2179 = vpop.permute.xlu0 %2178
  %2180 = vrot.lane.b32.xlu0 %v1860, 96
  %v2181 = vpop.permute.xlu0 %2180
  %v2185 = vsel %vm454, %v2174, 0
  %v2188 = vsel %vm454, %v2175, 0
  %2190 = vmatprep.subr.mxu0 0.0
  %2191 = vmatpush1.msra.mxu0 0.0
  %2192 = vmatprep.subr.mxu0 0.0
  %2193 = vmatpush1.msra.mxu0 0.0
  %2194 = vmatprep.subr.mxu0 0.0
  %2195 = vmatpush1.msra.mxu0 0.0
  %2196 = vmatprep.subr.mxu0 0.0
  %2197 = vmatpush1.msra.mxu0 0.0
  %2198 = vmatprep.subr.mxu0 0.0
  %2199 = vmatpush1.msra.mxu0 0.0
  %2200 = vmatprep.subr.mxu0 0.0
  %2201 = vmatpush1.msra.mxu0 0.0
  %2202 = vmatprep.subr.mxu0 0.0
  %2203 = vmatpush1.msra.mxu0 0.0
  %2204 = vmatprep.subr.mxu0 0.0
  %2205 = vmatpush1.msra.mxu0 0.0
  %2206 = vmatprep.subr.mxu0 0.0
  %2207 = vmatpush1.msra.mxu0 0.0
  %2208 = vmatprep.subr.mxu0 0.0
  %2209 = vmatpush1.msra.mxu0 0.0
  %2210 = vmatprep.subr.mxu0 0.0
  %2211 = vmatpush1.msra.mxu0 0.0
  %2212 = vmatprep.subr.mxu0 0.0
  %2213 = vmatpush1.msra.mxu0 0.0
  %2214 = vmatprep.subr.mxu0 0.0
  %2215 = vmatpush1.msra.mxu0 0.0
  %2216 = vmatprep.subr.mxu0 0.0
  %2217 = vmatpush1.msra.mxu0 0.0
  %2218 = vmatprep.subr.mxu0 0.0
  %2219 = vmatpush1.msra.mxu0 %v2181
  %2220 = vmatprep.subr.mxu0 0.0
  %2221 = vmatpush1.msra.mxu0 %v2179
  %2222 = vmatprep.subr.mxu0 0.0
  %2223 = vmatpush2.msra.mxu0 0.0
  %2224 = vmatprep.subr.mxu0 0.0
  %2225 = vmatpush2.msra.mxu0 0.0
  %2226 = vmatprep.subr.mxu0 0.0
  %2227 = vmatpush2.msra.mxu0 0.0
  %2228 = vmatprep.subr.mxu0 0.0
  %2229 = vmatpush2.msra.mxu0 0.0
  %2230 = vmatprep.subr.mxu0 0.0
  %2231 = vmatpush2.msra.mxu0 0.0
  %2232 = vmatprep.subr.mxu0 0.0
  %2233 = vmatpush2.msra.mxu0 0.0
  %2234 = vmatprep.subr.mxu0 0.0
  %2235 = vmatpush2.msra.mxu0 0.0
  %2236 = vmatprep.subr.mxu0 0.0
  %2237 = vmatpush2.msra.mxu0 0.0
  %2238 = vmatprep.subr.mxu0 0.0
  %2239 = vmatpush2.msra.mxu0 0.0
  %2240 = vmatprep.subr.mxu0 0.0
  %2241 = vmatpush2.msra.mxu0 0.0
  %2242 = vmatprep.subr.mxu0 0.0
  %2243 = vmatpush2.msra.mxu0 0.0
  %2244 = vmatprep.subr.mxu0 0.0
  %2245 = vmatpush2.msra.mxu0 0.0
  %2246 = vmatprep.subr.mxu0 0.0
  %2247 = vmatpush2.msra.mxu0 0.0
  %2248 = vmatprep.subr.mxu0 0.0
  %2249 = vmatpush2.msra.mxu0 0.0
  %2250 = vmatprep.subr.mxu0 0.0
  %2251 = vmatpush2.msra.mxu0 0.0
  %2252 = vmatprep.subr.mxu0 0.0
  %2253 = vmatpush2.msra.mxu0 0.0
  %2254 = vmatprep.mubr.f32.mxu0 0.0
  %2255 = vmatmul.mubr.f32.gmra.mxu0 %v2185
  %v2256 = vpop.f32.mrf.mxu0
  %v2257 = vadd.f32 0.0, %v2256
  %v2258 = vpop.f32.mrf.mxu0
  %2259 = vmatprep.mubr.f32.mxu0 0.0
  %2260 = vmatmul.mubr.f32.gmra.mxu0 %v2188
  %v2261 = vpop.f32.mrf.mxu0
  %v2262 = vadd.f32 0.0, %v2261
  %v2263 = vpop.f32.mrf.mxu0
  %2264 = vdwg.mxu0
  %2267 = vrot.lane.b32.xlu0 %v2257, 32
  %v2268 = vpop.permute.xlu0 %2267
  %2269 = vrot.lane.b32.xlu0 %v2262, 32
  %v2270 = vpop.permute.xlu0 %2269
  %2273 = vst.msk [vmem:[#allocation2] sm:$0xff] %vm774, %v2268
  %2274 = vst.msk [vmem:[#allocation2 + $0x8] sm:$0xff] %vm774, %v2270
  %2275 = vrot.lane.b32.xlu0 %v1778, 64
  %v2276 = vpop.permute.xlu0 %2275
  %2277 = vrot.lane.b32.xlu0 %v1784, 64
  %v2278 = vpop.permute.xlu0 %2277
  %2279 = vrot.lane.b32.xlu0 %v1780, 64
  %v2280 = vpop.permute.xlu0 %2279
  %2281 = vrot.lane.b32.xlu0 %v1786, 64
  %v2282 = vpop.permute.xlu0 %2281
  %v2283 = vsel %vm362, %v2276, 0
  %v2285 = vsel %vm362, %v2278, 0
  %v2287 = vsel %vm362, %v2280, 0
  %v2289 = vsel %vm362, %v2282, 0
  %2291 = vmatprep.subr.mxu0 0.0
  %2292 = vmatpush1.xpose.msra.mxu0 0.0
  %2293 = vmatprep.subr.mxu0 0.0
  %2294 = vmatpush1.xpose.msra.mxu0 0.0
  %2295 = vmatprep.subr.mxu0 0.0
  %2296 = vmatpush1.xpose.msra.mxu0 0.0
  %2297 = vmatprep.subr.mxu0 0.0
  %2298 = vmatpush1.xpose.msra.mxu0 0.0
  %2299 = vmatprep.subr.mxu0 0.0
  %2300 = vmatpush1.xpose.msra.mxu0 0.0
  %2301 = vmatprep.subr.mxu0 0.0
  %2302 = vmatpush1.xpose.msra.mxu0 0.0
  %2303 = vmatprep.subr.mxu0 0.0
  %2304 = vmatpush1.xpose.msra.mxu0 0.0
  %2305 = vmatprep.subr.mxu0 0.0
  %2306 = vmatpush1.xpose.msra.mxu0 0.0
  %2307 = vmatprep.subr.mxu0 0.0
  %2308 = vmatpush1.xpose.msra.mxu0 0.0
  %2309 = vmatprep.subr.mxu0 0.0
  %2310 = vmatpush1.xpose.msra.mxu0 0.0
  %2311 = vmatprep.subr.mxu0 0.0
  %2312 = vmatpush1.xpose.msra.mxu0 0.0
  %2313 = vmatprep.subr.mxu0 0.0
  %2314 = vmatpush1.xpose.msra.mxu0 0.0
  %2315 = vmatprep.subr.mxu0 0.0
  %2316 = vmatpush1.xpose.msra.mxu0 0.0
  %2317 = vmatprep.subr.mxu0 0.0
  %2318 = vmatpush1.xpose.msra.mxu0 0.0
  %2319 = vmatprep.subr.mxu0 0.0
  %2320 = vmatpush1.xpose.msra.mxu0 %v2289
  %2321 = vmatprep.subr.mxu0 0.0
  %2322 = vmatpush1.xpose.msra.mxu0 %v2287
  %2323 = vmatprep.subr.mxu0 0.0
  %2324 = vmatpush2.xpose.msra.mxu0 0.0
  %2325 = vmatprep.subr.mxu0 0.0
  %2326 = vmatpush2.xpose.msra.mxu0 0.0
  %2327 = vmatprep.subr.mxu0 0.0
  %2328 = vmatpush2.xpose.msra.mxu0 0.0
  %2329 = vmatprep.subr.mxu0 0.0
  %2330 = vmatpush2.xpose.msra.mxu0 0.0
  %2331 = vmatprep.subr.mxu0 0.0
  %2332 = vmatpush2.xpose.msra.mxu0 0.0
  %2333 = vmatprep.subr.mxu0 0.0
  %2334 = vmatpush2.xpose.msra.mxu0 0.0
  %2335 = vmatprep.subr.mxu0 0.0
  %2336 = vmatpush2.xpose.msra.mxu0 0.0
  %2337 = vmatprep.subr.mxu0 0.0
  %2338 = vmatpush2.xpose.msra.mxu0 0.0
  %2339 = vmatprep.subr.mxu0 0.0
  %2340 = vmatpush2.xpose.msra.mxu0 0.0
  %2341 = vmatprep.subr.mxu0 0.0
  %2342 = vmatpush2.xpose.msra.mxu0 0.0
  %2343 = vmatprep.subr.mxu0 0.0
  %2344 = vmatpush2.xpose.msra.mxu0 0.0
  %2345 = vmatprep.subr.mxu0 0.0
  %2346 = vmatpush2.xpose.msra.mxu0 0.0
  %2347 = vmatprep.subr.mxu0 0.0
  %2348 = vmatpush2.xpose.msra.mxu0 0.0
  %2349 = vmatprep.subr.mxu0 0.0
  %2350 = vmatpush2.xpose.msra.mxu0 0.0
  %2351 = vmatprep.subr.mxu0 0.0
  %2352 = vmatpush2.xpose.msra.mxu0 0.0
  %2353 = vmatprep.subr.mxu0 0.0
  %2354 = vmatpush2.xpose.msra.mxu0 0.0
  %2355 = vmatprep.mubr.f32.mxu0 0.0
  %2356 = vmatmul.mubr.f32.gmra.mxu0 %v2283
  %v2357 = vpop.f32.mrf.mxu0
  %v2358 = vadd.f32 0.0, %v2357
  %v2359 = vpop.f32.mrf.mxu0
  %2360 = vmatprep.mubr.f32.mxu0 0.0
  %2361 = vmatmul.mubr.f32.gmra.mxu0 %v2285
  %v2362 = vpop.f32.mrf.mxu0
  %v2363 = vadd.f32 0.0, %v2362
  %v2364 = vpop.f32.mrf.mxu0
  %2365 = vdwg.mxu0
  %v2366 = vmul.f32 %v2358, 0.17677669
  %v2367 = vmul.f32 %v2363, 0.17677669
  %v2368 = vadd.f32 %v2366, %v100
  %v2369 = vadd.f32 %v2367, %v101
  %v2370 = vsel %vm454, %v2368, -inf
  %2371 = vmax.xlane.f32.xlu0 %v2370
  %v2372 = vpop.xlane.xlu0 %2371
  %v2373 = vsel %vm454, %v2369, -inf
  %2374 = vmax.xlane.f32.xlu0 %v2373
  %v2375 = vpop.xlane.xlu0 %2374
  %v2376 = vsub.f32 %v2368, %v2372
  %v2377 = vsub.f32 %v2369, %v2375
  %v2378 = vmul.f32 %v2376, 1.442695
  %v2379 = vpow.pop %v2378
  %v2380 = vmul.f32 %v2377, 1.442695
  %v2381 = vpow.pop %v2380
  %v2382 = vsel %vm454, %v2379, 0.0
  %2383 = vadd.xlane.f32.xlu0 %v2382
  %v2384 = vpop.xlane.xlu0 %2383
  %v2385 = vsel %vm454, %v2381, 0.0
  %2386 = vadd.xlane.f32.xlu0 %v2385
  %v2387 = vpop.xlane.xlu0 %2386
  %v2388 = vrcp.pop %v2384
  %v2389 = vrcp.pop %v2387
  %v2390 = vmul.f32 %v2379, %v2388
  %v2391 = vmul.f32 %v2381, %v2389
  %2392 = vrot.lane.b32.xlu0 %v1855, 64
  %v2393 = vpop.permute.xlu0 %2392
  %2394 = vrot.lane.b32.xlu0 %v1860, 64
  %v2395 = vpop.permute.xlu0 %2394
  %v2399 = vsel %vm454, %v2390, 0
  %v2402 = vsel %vm454, %v2391, 0
  %2404 = vmatprep.subr.mxu0 0.0
  %2405 = vmatpush1.msra.mxu0 0.0
  %2406 = vmatprep.subr.mxu0 0.0
  %2407 = vmatpush1.msra.mxu0 0.0
  %2408 = vmatprep.subr.mxu0 0.0
  %2409 = vmatpush1.msra.mxu0 0.0
  %2410 = vmatprep.subr.mxu0 0.0
  %2411 = vmatpush1.msra.mxu0 0.0
  %2412 = vmatprep.subr.mxu0 0.0
  %2413 = vmatpush1.msra.mxu0 0.0
  %2414 = vmatprep.subr.mxu0 0.0
  %2415 = vmatpush1.msra.mxu0 0.0
  %2416 = vmatprep.subr.mxu0 0.0
  %2417 = vmatpush1.msra.mxu0 0.0
  %2418 = vmatprep.subr.mxu0 0.0
  %2419 = vmatpush1.msra.mxu0 0.0
  %2420 = vmatprep.subr.mxu0 0.0
  %2421 = vmatpush1.msra.mxu0 0.0
  %2422 = vmatprep.subr.mxu0 0.0
  %2423 = vmatpush1.msra.mxu0 0.0
  %2424 = vmatprep.subr.mxu0 0.0
  %2425 = vmatpush1.msra.mxu0 0.0
  %2426 = vmatprep.subr.mxu0 0.0
  %2427 = vmatpush1.msra.mxu0 0.0
  %2428 = vmatprep.subr.mxu0 0.0
  %2429 = vmatpush1.msra.mxu0 0.0
  %2430 = vmatprep.subr.mxu0 0.0
  %2431 = vmatpush1.msra.mxu0 0.0
  %2432 = vmatprep.subr.mxu0 0.0
  %2433 = vmatpush1.msra.mxu0 %v2395
  %2434 = vmatprep.subr.mxu0 0.0
  %2435 = vmatpush1.msra.mxu0 %v2393
  %2436 = vmatprep.subr.mxu0 0.0
  %2437 = vmatpush2.msra.mxu0 0.0
  %2438 = vmatprep.subr.mxu0 0.0
  %2439 = vmatpush2.msra.mxu0 0.0
  %2440 = vmatprep.subr.mxu0 0.0
  %2441 = vmatpush2.msra.mxu0 0.0
  %2442 = vmatprep.subr.mxu0 0.0
  %2443 = vmatpush2.msra.mxu0 0.0
  %2444 = vmatprep.subr.mxu0 0.0
  %2445 = vmatpush2.msra.mxu0 0.0
  %2446 = vmatprep.subr.mxu0 0.0
  %2447 = vmatpush2.msra.mxu0 0.0
  %2448 = vmatprep.subr.mxu0 0.0
  %2449 = vmatpush2.msra.mxu0 0.0
  %2450 = vmatprep.subr.mxu0 0.0
  %2451 = vmatpush2.msra.mxu0 0.0
  %2452 = vmatprep.subr.mxu0 0.0
  %2453 = vmatpush2.msra.mxu0 0.0
  %2454 = vmatprep.subr.mxu0 0.0
  %2455 = vmatpush2.msra.mxu0 0.0
  %2456 = vmatprep.subr.mxu0 0.0
  %2457 = vmatpush2.msra.mxu0 0.0
  %2458 = vmatprep.subr.mxu0 0.0
  %2459 = vmatpush2.msra.mxu0 0.0
  %2460 = vmatprep.subr.mxu0 0.0
  %2461 = vmatpush2.msra.mxu0 0.0
  %2462 = vmatprep.subr.mxu0 0.0
  %2463 = vmatpush2.msra.mxu0 0.0
  %2464 = vmatprep.subr.mxu0 0.0
  %2465 = vmatpush2.msra.mxu0 0.0
  %2466 = vmatprep.subr.mxu0 0.0
  %2467 = vmatpush2.msra.mxu0 0.0
  %2468 = vmatprep.mubr.f32.mxu0 0.0
  %2469 = vmatmul.mubr.f32.gmra.mxu0 %v2399
  %v2470 = vpop.f32.mrf.mxu0
  %v2471 = vadd.f32 0.0, %v2470
  %v2472 = vpop.f32.mrf.mxu0
  %2473 = vmatprep.mubr.f32.mxu0 0.0
  %2474 = vmatmul.mubr.f32.gmra.mxu0 %v2402
  %v2475 = vpop.f32.mrf.mxu0
  %v2476 = vadd.f32 0.0, %v2475
  %v2477 = vpop.f32.mrf.mxu0
  %2478 = vdwg.mxu0
  %2481 = vrot.lane.b32.xlu0 %v2471, 64
  %v2482 = vpop.permute.xlu0 %2481
  %2483 = vrot.lane.b32.xlu0 %v2476, 64
  %v2484 = vpop.permute.xlu0 %2483
  %2487 = vst.msk [vmem:[#allocation2] sm:$0xff] %vm989, %v2482
  %2488 = vst.msk [vmem:[#allocation2 + $0x8] sm:$0xff] %vm989, %v2484
  %2489 = vrot.lane.b32.xlu0 %v1778, 32
  %v2490 = vpop.permute.xlu0 %2489
  %2491 = vrot.lane.b32.xlu0 %v1784, 32
  %v2492 = vpop.permute.xlu0 %2491
  %2493 = vrot.lane.b32.xlu0 %v1780, 32
  %v2494 = vpop.permute.xlu0 %2493
  %2495 = vrot.lane.b32.xlu0 %v1786, 32
  %v2496 = vpop.permute.xlu0 %2495
  %v2497 = vsel %vm362, %v2490, 0
  %v2499 = vsel %vm362, %v2492, 0
  %v2501 = vsel %vm362, %v2494, 0
  %v2503 = vsel %vm362, %v2496, 0
  %2505 = vmatprep.subr.mxu0 0.0
  %2506 = vmatpush1.xpose.msra.mxu0 0.0
  %2507 = vmatprep.subr.mxu0 0.0
  %2508 = vmatpush1.xpose.msra.mxu0 0.0
  %2509 = vmatprep.subr.mxu0 0.0
  %2510 = vmatpush1.xpose.msra.mxu0 0.0
  %2511 = vmatprep.subr.mxu0 0.0
  %2512 = vmatpush1.xpose.msra.mxu0 0.0
  %2513 = vmatprep.subr.mxu0 0.0
  %2514 = vmatpush1.xpose.msra.mxu0 0.0
  %2515 = vmatprep.subr.mxu0 0.0
  %2516 = vmatpush1.xpose.msra.mxu0 0.0
  %2517 = vmatprep.subr.mxu0 0.0
  %2518 = vmatpush1.xpose.msra.mxu0 0.0
  %2519 = vmatprep.subr.mxu0 0.0
  %2520 = vmatpush1.xpose.msra.mxu0 0.0
  %2521 = vmatprep.subr.mxu0 0.0
  %2522 = vmatpush1.xpose.msra.mxu0 0.0
  %2523 = vmatprep.subr.mxu0 0.0
  %2524 = vmatpush1.xpose.msra.mxu0 0.0
  %2525 = vmatprep.subr.mxu0 0.0
  %2526 = vmatpush1.xpose.msra.mxu0 0.0
  %2527 = vmatprep.subr.mxu0 0.0
  %2528 = vmatpush1.xpose.msra.mxu0 0.0
  %2529 = vmatprep.subr.mxu0 0.0
  %2530 = vmatpush1.xpose.msra.mxu0 0.0
  %2531 = vmatprep.subr.mxu0 0.0
  %2532 = vmatpush1.xpose.msra.mxu0 0.0
  %2533 = vmatprep.subr.mxu0 0.0
  %2534 = vmatpush1.xpose.msra.mxu0 %v2503
  %2535 = vmatprep.subr.mxu0 0.0
  %2536 = vmatpush1.xpose.msra.mxu0 %v2501
  %2537 = vmatprep.subr.mxu0 0.0
  %2538 = vmatpush2.xpose.msra.mxu0 0.0
  %2539 = vmatprep.subr.mxu0 0.0
  %2540 = vmatpush2.xpose.msra.mxu0 0.0
  %2541 = vmatprep.subr.mxu0 0.0
  %2542 = vmatpush2.xpose.msra.mxu0 0.0
  %2543 = vmatprep.subr.mxu0 0.0
  %2544 = vmatpush2.xpose.msra.mxu0 0.0
  %2545 = vmatprep.subr.mxu0 0.0
  %2546 = vmatpush2.xpose.msra.mxu0 0.0
  %2547 = vmatprep.subr.mxu0 0.0
  %2548 = vmatpush2.xpose.msra.mxu0 0.0
  %2549 = vmatprep.subr.mxu0 0.0
  %2550 = vmatpush2.xpose.msra.mxu0 0.0
  %2551 = vmatprep.subr.mxu0 0.0
  %2552 = vmatpush2.xpose.msra.mxu0 0.0
  %2553 = vmatprep.subr.mxu0 0.0
  %2554 = vmatpush2.xpose.msra.mxu0 0.0
  %2555 = vmatprep.subr.mxu0 0.0
  %2556 = vmatpush2.xpose.msra.mxu0 0.0
  %2557 = vmatprep.subr.mxu0 0.0
  %2558 = vmatpush2.xpose.msra.mxu0 0.0
  %2559 = vmatprep.subr.mxu0 0.0
  %2560 = vmatpush2.xpose.msra.mxu0 0.0
  %2561 = vmatprep.subr.mxu0 0.0
  %2562 = vmatpush2.xpose.msra.mxu0 0.0
  %2563 = vmatprep.subr.mxu0 0.0
  %2564 = vmatpush2.xpose.msra.mxu0 0.0
  %2565 = vmatprep.subr.mxu0 0.0
  %2566 = vmatpush2.xpose.msra.mxu0 0.0
  %2567 = vmatprep.subr.mxu0 0.0
  %2568 = vmatpush2.xpose.msra.mxu0 0.0
  %2569 = vmatprep.mubr.f32.mxu0 0.0
  %2570 = vmatmul.mubr.f32.gmra.mxu0 %v2497
  %v2571 = vpop.f32.mrf.mxu0
  %v2572 = vadd.f32 0.0, %v2571
  %v2573 = vpop.f32.mrf.mxu0
  %2574 = vmatprep.mubr.f32.mxu0 0.0
  %2575 = vmatmul.mubr.f32.gmra.mxu0 %v2499
  %v2576 = vpop.f32.mrf.mxu0
  %v2577 = vadd.f32 0.0, %v2576
  %v2578 = vpop.f32.mrf.mxu0
  %2579 = vdwg.mxu0
  %v2580 = vmul.f32 %v2572, 0.17677669
  %v2581 = vmul.f32 %v2577, 0.17677669
  %v2582 = vadd.f32 %v2580, %v100
  %v2583 = vadd.f32 %v2581, %v101
  %v2584 = vsel %vm454, %v2582, -inf
  %2585 = vmax.xlane.f32.xlu0 %v2584
  %v2586 = vpop.xlane.xlu0 %2585
  %v2587 = vsel %vm454, %v2583, -inf
  %2588 = vmax.xlane.f32.xlu0 %v2587
  %v2589 = vpop.xlane.xlu0 %2588
  %v2590 = vsub.f32 %v2582, %v2586
  %v2591 = vsub.f32 %v2583, %v2589
  %v2592 = vmul.f32 %v2590, 1.442695
  %v2593 = vpow.pop %v2592
  %v2594 = vmul.f32 %v2591, 1.442695
  %v2595 = vpow.pop %v2594
  %v2596 = vsel %vm454, %v2593, 0.0
  %2597 = vadd.xlane.f32.xlu0 %v2596
  %v2598 = vpop.xlane.xlu0 %2597
  %v2599 = vsel %vm454, %v2595, 0.0
  %2600 = vadd.xlane.f32.xlu0 %v2599
  %v2601 = vpop.xlane.xlu0 %2600
  %v2602 = vrcp.pop %v2598
  %v2603 = vrcp.pop %v2601
  %v2604 = vmul.f32 %v2593, %v2602
  %v2605 = vmul.f32 %v2595, %v2603
  %2606 = vrot.lane.b32.xlu0 %v1855, 32
  %v2607 = vpop.permute.xlu0 %2606
  %2608 = vrot.lane.b32.xlu0 %v1860, 32
  %v2609 = vpop.permute.xlu0 %2608
  %v2613 = vsel %vm454, %v2604, 0
  %v2616 = vsel %vm454, %v2605, 0
  %2618 = vmatprep.subr.mxu0 0.0
  %2619 = vmatpush1.msra.mxu0 0.0
  %2620 = vmatprep.subr.mxu0 0.0
  %2621 = vmatpush1.msra.mxu0 0.0
  %2622 = vmatprep.subr.mxu0 0.0
  %2623 = vmatpush1.msra.mxu0 0.0
  %2624 = vmatprep.subr.mxu0 0.0
  %2625 = vmatpush1.msra.mxu0 0.0
  %2626 = vmatprep.subr.mxu0 0.0
  %2627 = vmatpush1.msra.mxu0 0.0
  %2628 = vmatprep.subr.mxu0 0.0
  %2629 = vmatpush1.msra.mxu0 0.0
  %2630 = vmatprep.subr.mxu0 0.0
  %2631 = vmatpush1.msra.mxu0 0.0
  %2632 = vmatprep.subr.mxu0 0.0
  %2633 = vmatpush1.msra.mxu0 0.0
  %2634 = vmatprep.subr.mxu0 0.0
  %2635 = vmatpush1.msra.mxu0 0.0
  %2636 = vmatprep.subr.mxu0 0.0
  %2637 = vmatpush1.msra.mxu0 0.0
  %2638 = vmatprep.subr.mxu0 0.0
  %2639 = vmatpush1.msra.mxu0 0.0
  %2640 = vmatprep.subr.mxu0 0.0
  %2641 = vmatpush1.msra.mxu0 0.0
  %2642 = vmatprep.subr.mxu0 0.0
  %2643 = vmatpush1.msra.mxu0 0.0
  %2644 = vmatprep.subr.mxu0 0.0
  %2645 = vmatpush1.msra.mxu0 0.0
  %2646 = vmatprep.subr.mxu0 0.0
  %2647 = vmatpush1.msra.mxu0 %v2609
  %2648 = vmatprep.subr.mxu0 0.0
  %2649 = vmatpush1.msra.mxu0 %v2607
  %2650 = vmatprep.subr.mxu0 0.0
  %2651 = vmatpush2.msra.mxu0 0.0
  %2652 = vmatprep.subr.mxu0 0.0
  %2653 = vmatpush2.msra.mxu0 0.0
  %2654 = vmatprep.subr.mxu0 0.0
  %2655 = vmatpush2.msra.mxu0 0.0
  %2656 = vmatprep.subr.mxu0 0.0
  %2657 = vmatpush2.msra.mxu0 0.0
  %2658 = vmatprep.subr.mxu0 0.0
  %2659 = vmatpush2.msra.mxu0 0.0
  %2660 = vmatprep.subr.mxu0 0.0
  %2661 = vmatpush2.msra.mxu0 0.0
  %2662 = vmatprep.subr.mxu0 0.0
  %2663 = vmatpush2.msra.mxu0 0.0
  %2664 = vmatprep.subr.mxu0 0.0
  %2665 = vmatpush2.msra.mxu0 0.0
  %2666 = vmatprep.subr.mxu0 0.0
  %2667 = vmatpush2.msra.mxu0 0.0
  %2668 = vmatprep.subr.mxu0 0.0
  %2669 = vmatpush2.msra.mxu0 0.0
  %2670 = vmatprep.subr.mxu0 0.0
  %2671 = vmatpush2.msra.mxu0 0.0
  %2672 = vmatprep.subr.mxu0 0.0
  %2673 = vmatpush2.msra.mxu0 0.0
  %2674 = vmatprep.subr.mxu0 0.0
  %2675 = vmatpush2.msra.mxu0 0.0
  %2676 = vmatprep.subr.mxu0 0.0
  %2677 = vmatpush2.msra.mxu0 0.0
  %2678 = vmatprep.subr.mxu0 0.0
  %2679 = vmatpush2.msra.mxu0 0.0
  %2680 = vmatprep.subr.mxu0 0.0
  %2681 = vmatpush2.msra.mxu0 0.0
  %2682 = vmatprep.mubr.f32.mxu0 0.0
  %2683 = vmatmul.mubr.f32.gmra.mxu0 %v2613
  %v2684 = vpop.f32.mrf.mxu0
  %v2685 = vadd.f32 0.0, %v2684
  %v2686 = vpop.f32.mrf.mxu0
  %2687 = vmatprep.mubr.f32.mxu0 0.0
  %2688 = vmatmul.mubr.f32.gmra.mxu0 %v2616
  %v2689 = vpop.f32.mrf.mxu0
  %v2690 = vadd.f32 0.0, %v2689
  %v2691 = vpop.f32.mrf.mxu0
  %2692 = vdwg.mxu0
  %2695 = vrot.lane.b32.xlu0 %v2685, 96
  %v2696 = vpop.permute.xlu0 %2695
  %2697 = vrot.lane.b32.xlu0 %v2690, 96
  %v2698 = vpop.permute.xlu0 %2697
  %2701 = vst.msk [vmem:[#allocation2] sm:$0xff] %vm1204, %v2696
  %2702 = vst.msk [vmem:[#allocation2 + $0x8] sm:$0xff] %vm1204, %v2698
  %v2703 = vld [vmem:[#allocation2] sm:$0xff]
  %v2704 = vld [vmem:[#allocation2 + $0x8] sm:$0xff]
  %v2705 = vld [vmem:[%s17] sm:$0xff]
  %v2706 = vld [vmem:[%s17 + $0x8] sm:$0xff]
  %v2707 = vld [vmem:[%s17 + $0x10] sm:$0xff]
  %v2708 = vld [vmem:[%s17 + $0x18] sm:$0xff]
  %v2709 = vld [vmem:[%s17 + $0x20] sm:$0xff]
  %v2710 = vld [vmem:[%s17 + $0x28] sm:$0xff]
  %v2711 = vld [vmem:[%s17 + $0x30] sm:$0xff]
  %v2712 = vld [vmem:[%s17 + $0x38] sm:$0xff]
  %v2713 = vld [vmem:[%s17 + $0x40] sm:$0xff]
  %v2714 = vld [vmem:[%s17 + $0x48] sm:$0xff]
  %v2715 = vld [vmem:[%s17 + $0x50] sm:$0xff]
  %v2716 = vld [vmem:[%s17 + $0x58] sm:$0xff]
  %v2717 = vld [vmem:[%s17 + $0x60] sm:$0xff]
  %v2718 = vld [vmem:[%s17 + $0x68] sm:$0xff]
  %v2719 = vld [vmem:[%s17 + $0x70] sm:$0xff]
  %v2720 = vld [vmem:[%s17 + $0x78] sm:$0xff]
  %v2721 = vld [vmem:[%s18] sm:$0x1]
  %v2723 = vlaneseq
  %v2724 = vshrl.u32 %v2723, 7
  %v2725 = vsub.s32 0, %v2724
  %v2726 = vrot.slane %v2721, %v2725
  %2728 = vmatprep.subr.mxu0 0.0
  %2729 = vmatpush1.msra.mxu0 %v2720
  %2730 = vmatprep.subr.mxu0 0.0
  %2731 = vmatpush1.msra.mxu0 %v2719
  %2732 = vmatprep.subr.mxu0 0.0
  %2733 = vmatpush1.msra.mxu0 %v2718
  %2734 = vmatprep.subr.mxu0 0.0
  %2735 = vmatpush1.msra.mxu0 %v2717
  %2736 = vmatprep.subr.mxu0 0.0
  %2737 = vmatpush1.msra.mxu0 %v2716
  %2738 = vmatprep.subr.mxu0 0.0
  %2739 = vmatpush1.msra.mxu0 %v2715
  %2740 = vmatprep.subr.mxu0 0.0
  %2741 = vmatpush1.msra.mxu0 %v2714
  %2742 = vmatprep.subr.mxu0 0.0
  %2743 = vmatpush1.msra.mxu0 %v2713
  %2744 = vmatprep.subr.mxu0 0.0
  %2745 = vmatpush1.msra.mxu0 %v2712
  %2746 = vmatprep.subr.mxu0 0.0
  %2747 = vmatpush1.msra.mxu0 %v2711
  %2748 = vmatprep.subr.mxu0 0.0
  %2749 = vmatpush1.msra.mxu0 %v2710
  %2750 = vmatprep.subr.mxu0 0.0
  %2751 = vmatpush1.msra.mxu0 %v2709
  %2752 = vmatprep.subr.mxu0 0.0
  %2753 = vmatpush1.msra.mxu0 %v2708
  %2754 = vmatprep.subr.mxu0 0.0
  %2755 = vmatpush1.msra.mxu0 %v2707
  %2756 = vmatprep.subr.mxu0 0.0
  %2757 = vmatpush1.msra.mxu0 %v2706
  %2758 = vmatprep.subr.mxu0 0.0
  %2759 = vmatpush1.msra.mxu0 %v2705
  %2760 = vmatprep.subr.mxu0 0.0
  %2761 = vmatpush2.msra.mxu0 0.0
  %2762 = vmatprep.subr.mxu0 0.0
  %2763 = vmatpush2.msra.mxu0 0.0
  %2764 = vmatprep.subr.mxu0 0.0
  %2765 = vmatpush2.msra.mxu0 0.0
  %2766 = vmatprep.subr.mxu0 0.0
  %2767 = vmatpush2.msra.mxu0 0.0
  %2768 = vmatprep.subr.mxu0 0.0
  %2769 = vmatpush2.msra.mxu0 0.0
  %2770 = vmatprep.subr.mxu0 0.0
  %2771 = vmatpush2.msra.mxu0 0.0
  %2772 = vmatprep.subr.mxu0 0.0
  %2773 = vmatpush2.msra.mxu0 0.0
  %2774 = vmatprep.subr.mxu0 0.0
  %2775 = vmatpush2.msra.mxu0 0.0
  %2776 = vmatprep.subr.mxu0 0.0
  %2777 = vmatpush2.msra.mxu0 0.0
  %2778 = vmatprep.subr.mxu0 0.0
  %2779 = vmatpush2.msra.mxu0 0.0
  %2780 = vmatprep.subr.mxu0 0.0
  %2781 = vmatpush2.msra.mxu0 0.0
  %2782 = vmatprep.subr.mxu0 0.0
  %2783 = vmatpush2.msra.mxu0 0.0
  %2784 = vmatprep.subr.mxu0 0.0
  %2785 = vmatpush2.msra.mxu0 0.0
  %2786 = vmatprep.subr.mxu0 0.0
  %2787 = vmatpush2.msra.mxu0 0.0
  %2788 = vmatprep.subr.mxu0 0.0
  %2789 = vmatpush2.msra.mxu0 0.0
  %2790 = vmatprep.subr.mxu0 0.0
  %2791 = vmatpush2.msra.mxu0 0.0
  %2792 = vmatprep.mubr.f32.mxu0 0.0
  %2793 = vmatmul.mubr.f32.gmra.mxu0 %v2703
  %v2794 = vpop.f32.mrf.mxu0
  %v2795 = vadd.f32 %v2726, %v2794
  %v2796 = vpop.f32.mrf.mxu0
  %2797 = vmatprep.mubr.f32.mxu0 0.0
  %2798 = vmatmul.mubr.f32.gmra.mxu0 %v2704
  %v2799 = vpop.f32.mrf.mxu0
  %v2800 = vadd.f32 %v2726, %v2799
  %v2801 = vpop.f32.mrf.mxu0
  %2802 = vdwg.mxu0
  %v2803 = vadd.f32 %v1604, %v2795
  %v2804 = vadd.f32 %v1605, %v2800
  %2805 = vadd.xlane.f32.xlu0 %v2803
  %v2806 = vpop.xlane.xlu0 %2805
  %2807 = vadd.xlane.f32.xlu0 %v2804
  %v2808 = vpop.xlane.xlu0 %2807
  %v2809 = vmul.f32 %v2806, %v108
  %v2810 = vmul.f32 %v2808, %v108
  %v2811 = vsub.f32 %v2803, %v2809
  %v2812 = vsub.f32 %v2804, %v2810
  %v2813 = vmul.f32 %v2811, %v2811
  %v2814 = vmul.f32 %v2812, %v2812
  %2815 = vadd.xlane.f32.xlu0 %v2813
  %v2816 = vpop.xlane.xlu0 %2815
  %2817 = vadd.xlane.f32.xlu0 %v2814
  %v2818 = vpop.xlane.xlu0 %2817
  %v2819 = vmul.f32 %v2816, %v108
  %v2820 = vmul.f32 %v2818, %v108
  %v2821 = vadd.f32 %v2819, 1e-05
  %v2822 = vadd.f32 %v2820, 1e-05
  %v2823 = vrsqrt.pop %v2821
  %v2824 = vrsqrt.pop %v2822
  %v2825 = vmul.f32 %v2811, %v2823
  %v2826 = vmul.f32 %v2812, %v2824
  %v2827 = vld [vmem:[%s19] sm:$0x1]
  %v2829 = vlaneseq
  %v2830 = vshrl.u32 %v2829, 7
  %v2831 = vsub.s32 0, %v2830
  %v2832 = vrot.slane %v2827, %v2831
  %v2834 = vmul.f32 %v2825, %v2832
  %v2835 = vmul.f32 %v2826, %v2832
  %v2836 = vld [vmem:[%s20] sm:$0x1]
  %v2838 = vlaneseq
  %v2839 = vshrl.u32 %v2838, 7
  %v2840 = vsub.s32 0, %v2839
  %v2841 = vrot.slane %v2836, %v2840
  %v2843 = vadd.f32 %v2834, %v2841
  %v2844 = vadd.f32 %v2835, %v2841
  %v2845 = vld [vmem:[%s21] sm:$0xff]
  %v2846 = vld [vmem:[%s21 + $0x8] sm:$0xff]
  %v2847 = vld [vmem:[%s21 + $0x10] sm:$0xff]
  %v2848 = vld [vmem:[%s21 + $0x18] sm:$0xff]
  %v2849 = vld [vmem:[%s21 + $0x20] sm:$0xff]
  %v2850 = vld [vmem:[%s21 + $0x28] sm:$0xff]
  %v2851 = vld [vmem:[%s21 + $0x30] sm:$0xff]
  %v2852 = vld [vmem:[%s21 + $0x38] sm:$0xff]
  %v2853 = vld [vmem:[%s21 + $0x40] sm:$0xff]
  %v2854 = vld [vmem:[%s21 + $0x48] sm:$0xff]
  %v2855 = vld [vmem:[%s21 + $0x50] sm:$0xff]
  %v2856 = vld [vmem:[%s21 + $0x58] sm:$0xff]
  %v2857 = vld [vmem:[%s21 + $0x60] sm:$0xff]
  %v2858 = vld [vmem:[%s21 + $0x68] sm:$0xff]
  %v2859 = vld [vmem:[%s21 + $0x70] sm:$0xff]
  %v2860 = vld [vmem:[%s21 + $0x78] sm:$0xff]
  %v2861 = vld [vmem:[%s21 + $0x80] sm:$0xff]
  %v2862 = vld [vmem:[%s21 + $0x88] sm:$0xff]
  %v2863 = vld [vmem:[%s21 + $0x90] sm:$0xff]
  %v2864 = vld [vmem:[%s21 + $0x98] sm:$0xff]
  %v2865 = vld [vmem:[%s21 + $0xa0] sm:$0xff]
  %v2866 = vld [vmem:[%s21 + $0xa8] sm:$0xff]
  %v2867 = vld [vmem:[%s21 + $0xb0] sm:$0xff]
  %v2868 = vld [vmem:[%s21 + $0xb8] sm:$0xff]
  %v2869 = vld [vmem:[%s21 + $0xc0] sm:$0xff]
  %v2870 = vld [vmem:[%s21 + $0xc8] sm:$0xff]
  %v2871 = vld [vmem:[%s21 + $0xd0] sm:$0xff]
  %v2872 = vld [vmem:[%s21 + $0xd8] sm:$0xff]
  %v2873 = vld [vmem:[%s21 + $0xe0] sm:$0xff]
  %v2874 = vld [vmem:[%s21 + $0xe8] sm:$0xff]
  %v2875 = vld [vmem:[%s21 + $0xf0] sm:$0xff]
  %v2876 = vld [vmem:[%s21 + $0xf8] sm:$0xff]
  %v2877 = vld [vmem:[%s22] sm:$0x3]
  %v2879 = vlaneseq
  %v2880 = vshrl.u32 %v2879, 7
  %v2881 = vsub.s32 0, %v2880
  %v2882 = vrot.slane %v2877, %v2881
  %v2883 = vlaneseq
  %v2884 = vshrl.u32 %v2883, 7
  %v2885 = vsub.s32 1, %v2884
  %v2886 = vrot.slane %v2877, %v2885
  %2889 = vmatprep.subr.mxu0 %v2876
  %2890 = vmatpush1.msra.mxu0 %v2875
  %2891 = vmatprep.subr.mxu0 %v2874
  %2892 = vmatpush1.msra.mxu0 %v2873
  %2893 = vmatprep.subr.mxu0 %v2872
  %2894 = vmatpush1.msra.mxu0 %v2871
  %2895 = vmatprep.subr.mxu0 %v2870
  %2896 = vmatpush1.msra.mxu0 %v2869
  %2897 = vmatprep.subr.mxu0 %v2868
  %2898 = vmatpush1.msra.mxu0 %v2867
  %2899 = vmatprep.subr.mxu0 %v2866
  %2900 = vmatpush1.msra.mxu0 %v2865
  %2901 = vmatprep.subr.mxu0 %v2864
  %2902 = vmatpush1.msra.mxu0 %v2863
  %2903 = vmatprep.subr.mxu0 %v2862
  %2904 = vmatpush1.msra.mxu0 %v2861
  %2905 = vmatprep.subr.mxu0 %v2860
  %2906 = vmatpush1.msra.mxu0 %v2859
  %2907 = vmatprep.subr.mxu0 %v2858
  %2908 = vmatpush1.msra.mxu0 %v2857
  %2909 = vmatprep.subr.mxu0 %v2856
  %2910 = vmatpush1.msra.mxu0 %v2855
  %2911 = vmatprep.subr.mxu0 %v2854
  %2912 = vmatpush1.msra.mxu0 %v2853
  %2913 = vmatprep.subr.mxu0 %v2852
  %2914 = vmatpush1.msra.mxu0 %v2851
  %2915 = vmatprep.subr.mxu0 %v2850
  %2916 = vmatpush1.msra.mxu0 %v2849
  %2917 = vmatprep.subr.mxu0 %v2848
  %2918 = vmatpush1.msra.mxu0 %v2847
  %2919 = vmatprep.subr.mxu0 %v2846
  %2920 = vmatpush1.msra.mxu0 %v2845
  %2921 = vmatprep.subr.mxu0 0.0
  %2922 = vmatpush2.msra.mxu0 0.0
  %2923 = vmatprep.subr.mxu0 0.0
  %2924 = vmatpush2.msra.mxu0 0.0
  %2925 = vmatprep.subr.mxu0 0.0
  %2926 = vmatpush2.msra.mxu0 0.0
  %2927 = vmatprep.subr.mxu0 0.0
  %2928 = vmatpush2.msra.mxu0 0.0
  %2929 = vmatprep.subr.mxu0 0.0
  %2930 = vmatpush2.msra.mxu0 0.0
  %2931 = vmatprep.subr.mxu0 0.0
  %2932 = vmatpush2.msra.mxu0 0.0
  %2933 = vmatprep.subr.mxu0 0.0
  %2934 = vmatpush2.msra.mxu0 0.0
  %2935 = vmatprep.subr.mxu0 0.0
  %2936 = vmatpush2.msra.mxu0 0.0
  %2937 = vmatprep.subr.mxu0 0.0
  %2938 = vmatpush2.msra.mxu0 0.0
  %2939 = vmatprep.subr.mxu0 0.0
  %2940 = vmatpush2.msra.mxu0 0.0
  %2941 = vmatprep.subr.mxu0 0.0
  %2942 = vmatpush2.msra.mxu0 0.0
  %2943 = vmatprep.subr.mxu0 0.0
  %2944 = vmatpush2.msra.mxu0 0.0
  %2945 = vmatprep.subr.mxu0 0.0
  %2946 = vmatpush2.msra.mxu0 0.0
  %2947 = vmatprep.subr.mxu0 0.0
  %2948 = vmatpush2.msra.mxu0 0.0
  %2949 = vmatprep.subr.mxu0 0.0
  %2950 = vmatpush2.msra.mxu0 0.0
  %2951 = vmatprep.subr.mxu0 0.0
  %2952 = vmatpush2.msra.mxu0 0.0
  %2953 = vmatprep.mubr.f32.mxu0 0.0
  %2954 = vmatmul.mubr.f32.gmra.mxu0 %v2843
  %v2955 = vpop.f32.mrf.mxu0
  %v2956 = vadd.f32 %v2882, %v2955
  %v2957 = vpop.f32.mrf.mxu0
  %v2958 = vadd.f32 %v2886, %v2957
  %2959 = vmatprep.mubr.f32.mxu0 0.0
  %2960 = vmatmul.mubr.f32.gmra.mxu0 %v2844
  %v2961 = vpop.f32.mrf.mxu0
  %v2962 = vadd.f32 %v2882, %v2961
  %v2963 = vpop.f32.mrf.mxu0
  %v2964 = vadd.f32 %v2886, %v2963
  %2965 = vdwg.mxu0
  %v2966 = vmul.f32 %v2956, 0.5
  %v2967 = vmul.f32 %v2958, 0.5
  %v2968 = vmul.f32 %v2962, 0.5
  %v2969 = vmul.f32 %v2964, 0.5
  %v2970 = vmul.f32 %v2956, 0.70710677
  %v2971 = vmul.f32 %v2958, 0.70710677
  %v2972 = vmul.f32 %v2962, 0.70710677
  %v2973 = vmul.f32 %v2964, 0.70710677
  %v2974 = verf.f32.pop %v2970
  %v2975 = verf.f32.pop %v2971
  %v2976 = verf.f32.pop %v2972
  %v2977 = verf.f32.pop %v2973
  %v2978 = vadd.f32 %v2974, 1.0
  %v2979 = vadd.f32 %v2975, 1.0
  %v2980 = vadd.f32 %v2976, 1.0
  %v2981 = vadd.f32 %v2977, 1.0
  %v2982 = vmul.f32 %v2966, %v2978
  %v2983 = vmul.f32 %v2967, %v2979
  %v2984 = vmul.f32 %v2968, %v2980
  %v2985 = vmul.f32 %v2969, %v2981
  %v2986 = vld [vmem:[%s23] sm:$0xff]
  %v2987 = vld [vmem:[%s23 + $0x8] sm:$0xff]
  %v2988 = vld [vmem:[%s23 + $0x10] sm:$0xff]
  %v2989 = vld [vmem:[%s23 + $0x18] sm:$0xff]
  %v2990 = vld [vmem:[%s23 + $0x20] sm:$0xff]
  %v2991 = vld [vmem:[%s23 + $0x28] sm:$0xff]
  %v2992 = vld [vmem:[%s23 + $0x30] sm:$0xff]
  %v2993 = vld [vmem:[%s23 + $0x38] sm:$0xff]
  %v2994 = vld [vmem:[%s23 + $0x40] sm:$0xff]
  %v2995 = vld [vmem:[%s23 + $0x48] sm:$0xff]
  %v2996 = vld [vmem:[%s23 + $0x50] sm:$0xff]
  %v2997 = vld [vmem:[%s23 + $0x58] sm:$0xff]
  %v2998 = vld [vmem:[%s23 + $0x60] sm:$0xff]
  %v2999 = vld [vmem:[%s23 + $0x68] sm:$0xff]
  %v3000 = vld [vmem:[%s23 + $0x70] sm:$0xff]
  %v3001 = vld [vmem:[%s23 + $0x78] sm:$0xff]
  %v3002 = vld [vmem:[%s23 + $0x80] sm:$0xff]
  %v3003 = vld [vmem:[%s23 + $0x88] sm:$0xff]
  %v3004 = vld [vmem:[%s23 + $0x90] sm:$0xff]
  %v3005 = vld [vmem:[%s23 + $0x98] sm:$0xff]
  %v3006 = vld [vmem:[%s23 + $0xa0] sm:$0xff]
  %v3007 = vld [vmem:[%s23 + $0xa8] sm:$0xff]
  %v3008 = vld [vmem:[%s23 + $0xb0] sm:$0xff]
  %v3009 = vld [vmem:[%s23 + $0xb8] sm:$0xff]
  %v3010 = vld [vmem:[%s23 + $0xc0] sm:$0xff]
  %v3011 = vld [vmem:[%s23 + $0xc8] sm:$0xff]
  %v3012 = vld [vmem:[%s23 + $0xd0] sm:$0xff]
  %v3013 = vld [vmem:[%s23 + $0xd8] sm:$0xff]
  %v3014 = vld [vmem:[%s23 + $0xe0] sm:$0xff]
  %v3015 = vld [vmem:[%s23 + $0xe8] sm:$0xff]
  %v3016 = vld [vmem:[%s23 + $0xf0] sm:$0xff]
  %v3017 = vld [vmem:[%s23 + $0xf8] sm:$0xff]
  %v3018 = vld [vmem:[%s24] sm:$0x1]
  %v3020 = vlaneseq
  %v3021 = vshrl.u32 %v3020, 7
  %v3022 = vsub.s32 0, %v3021
  %v3023 = vrot.slane %v3018, %v3022
  %3025 = vmatprep.subr.mxu0 0.0
  %3026 = vmatpush1.msra.mxu0 %v3001
  %3027 = vmatprep.subr.mxu0 0.0
  %3028 = vmatpush1.msra.mxu0 %v3000
  %3029 = vmatprep.subr.mxu0 0.0
  %3030 = vmatpush1.msra.mxu0 %v2999
  %3031 = vmatprep.subr.mxu0 0.0
  %3032 = vmatpush1.msra.mxu0 %v2998
  %3033 = vmatprep.subr.mxu0 0.0
  %3034 = vmatpush1.msra.mxu0 %v2997
  %3035 = vmatprep.subr.mxu0 0.0
  %3036 = vmatpush1.msra.mxu0 %v2996
  %3037 = vmatprep.subr.mxu0 0.0
  %3038 = vmatpush1.msra.mxu0 %v2995
  %3039 = vmatprep.subr.mxu0 0.0
  %3040 = vmatpush1.msra.mxu0 %v2994
  %3041 = vmatprep.subr.mxu0 0.0
  %3042 = vmatpush1.msra.mxu0 %v2993
  %3043 = vmatprep.subr.mxu0 0.0
  %3044 = vmatpush1.msra.mxu0 %v2992
  %3045 = vmatprep.subr.mxu0 0.0
  %3046 = vmatpush1.msra.mxu0 %v2991
  %3047 = vmatprep.subr.mxu0 0.0
  %3048 = vmatpush1.msra.mxu0 %v2990
  %3049 = vmatprep.subr.mxu0 0.0
  %3050 = vmatpush1.msra.mxu0 %v2989
  %3051 = vmatprep.subr.mxu0 0.0
  %3052 = vmatpush1.msra.mxu0 %v2988
  %3053 = vmatprep.subr.mxu0 0.0
  %3054 = vmatpush1.msra.mxu0 %v2987
  %3055 = vmatprep.subr.mxu0 0.0
  %3056 = vmatpush1.msra.mxu0 %v2986
  %3057 = vmatprep.subr.mxu0 0.0
  %3058 = vmatpush2.msra.mxu0 %v3017
  %3059 = vmatprep.subr.mxu0 0.0
  %3060 = vmatpush2.msra.mxu0 %v3016
  %3061 = vmatprep.subr.mxu0 0.0
  %3062 = vmatpush2.msra.mxu0 %v3015
  %3063 = vmatprep.subr.mxu0 0.0
  %3064 = vmatpush2.msra.mxu0 %v3014
  %3065 = vmatprep.subr.mxu0 0.0
  %3066 = vmatpush2.msra.mxu0 %v3013
  %3067 = vmatprep.subr.mxu0 0.0
  %3068 = vmatpush2.msra.mxu0 %v3012
  %3069 = vmatprep.subr.mxu0 0.0
  %3070 = vmatpush2.msra.mxu0 %v3011
  %3071 = vmatprep.subr.mxu0 0.0
  %3072 = vmatpush2.msra.mxu0 %v3010
  %3073 = vmatprep.subr.mxu0 0.0
  %3074 = vmatpush2.msra.mxu0 %v3009
  %3075 = vmatprep.subr.mxu0 0.0
  %3076 = vmatpush2.msra.mxu0 %v3008
  %3077 = vmatprep.subr.mxu0 0.0
  %3078 = vmatpush2.msra.mxu0 %v3007
  %3079 = vmatprep.subr.mxu0 0.0
  %3080 = vmatpush2.msra.mxu0 %v3006
  %3081 = vmatprep.subr.mxu0 0.0
  %3082 = vmatpush2.msra.mxu0 %v3005
  %3083 = vmatprep.subr.mxu0 0.0
  %3084 = vmatpush2.msra.mxu0 %v3004
  %3085 = vmatprep.subr.mxu0 0.0
  %3086 = vmatpush2.msra.mxu0 %v3003
  %3087 = vmatprep.subr.mxu0 0.0
  %3088 = vmatpush2.msra.mxu0 %v3002
  %3089 = vmatprep.mubr.f32.mxu0 %v2983
  %3090 = vmatmul.mubr.f32.gmra.mxu0 %v2982
  %v3091 = vpop.f32.mrf.mxu0
  %v3092 = vadd.f32 %v3023, %v3091
  %v3093 = vpop.f32.mrf.mxu0
  %3094 = vmatprep.mubr.f32.mxu0 %v2985
  %3095 = vmatmul.mubr.f32.gmra.mxu0 %v2984
  %v3096 = vpop.f32.mrf.mxu0
  %v3097 = vadd.f32 %v3023, %v3096
  %v3098 = vpop.f32.mrf.mxu0
  %3099 = vdwg.mxu0
  %v3100 = vadd.f32 %v2803, %v3092
  %v3101 = vadd.f32 %v2804, %v3097
  %3102 = vadd.xlane.f32.xlu0 %v3100
  %v3103 = vpop.xlane.xlu0 %3102
  %3104 = vadd.xlane.f32.xlu0 %v3101
  %v3105 = vpop.xlane.xlu0 %3104
  %v3106 = vmul.f32 %v3103, %v108
  %v3107 = vmul.f32 %v3105, %v108
  %v3108 = vsub.f32 %v3100, %v3106
  %v3109 = vsub.f32 %v3101, %v3107
  %v3110 = vmul.f32 %v3108, %v3108
  %v3111 = vmul.f32 %v3109, %v3109
  %3112 = vadd.xlane.f32.xlu0 %v3110
  %v3113 = vpop.xlane.xlu0 %3112
  %3114 = vadd.xlane.f32.xlu0 %v3111
  %v3115 = vpop.xlane.xlu0 %3114
  %v3116 = vmul.f32 %v3113, %v108
  %v3117 = vmul.f32 %v3115, %v108
  %v3118 = vadd.f32 %v3116, 1e-05
  %v3119 = vadd.f32 %v3117, 1e-05
  %v3120 = vrsqrt.pop %v3118
  %v3121 = vrsqrt.pop %v3119
  %v3122 = vmul.f32 %v3108, %v3120
  %v3123 = vmul.f32 %v3109, %v3121
  %v3124 = vld [vmem:[%s25] sm:$0x1]
  %v3126 = vlaneseq
  %v3127 = vshrl.u32 %v3126, 7
  %v3128 = vsub.s32 0, %v3127
  %v3129 = vrot.slane %v3124, %v3128
  %v3131 = vmul.f32 %v3122, %v3129
  %v3132 = vmul.f32 %v3123, %v3129
  %v3133 = vld [vmem:[%s26] sm:$0x1]
  %v3135 = vlaneseq
  %v3136 = vshrl.u32 %v3135, 7
  %v3137 = vsub.s32 0, %v3136
  %v3138 = vrot.slane %v3133, %v3137
  %v3140 = vadd.f32 %v3131, %v3138
  %v3141 = vadd.f32 %v3132, %v3138
  %3142 = vst [vmem:[%s27] sm:$0xff] %v3140
  %3143 = vst [vmem:[%s27 + $0x8] sm:$0xff] %v3141
  // Predicated region
  $region110: #{localizer_vit_forward.3} parent=0 // pred_check
    _
  $region111: #{localizer_vit_forward.3} parent=0 // pred_check_branch
    %3145 = sbr.rel (0) target = $region113
  $region112: #{localizer_vit_forward.3} parent=0 // pred_region
    _
  $region113: #{localizer_vit_forward.3} parent=0 // pred_fallthru
    _
  // Predicated region
  $region114: #{localizer_vit_forward.3} parent=0 // pred_check
    _
  $region115: #{localizer_vit_forward.3} parent=0 // pred_check_branch
    %3147 = sbr.rel (0) target = $region117
  $region116: #{localizer_vit_forward.3} parent=0 // pred_region
    _
  $region117: #{localizer_vit_forward.3} parent=0 // pred_fallthru
    _

// kernel: localizer_vit_forward.2
$region0: #{localizer_vit_forward.2}
  #allocation0 [shape = 'u32[]', space=smem, size = 0x4, offset = 0x4, fixed_abs, tag = 'smem constant byte address 0x4 - core index']
  #allocation1 [shape = 'u32[144,128]{1,0:T(1,128)}', space=vmem, size = 0x12000, scoped, tag = 'internal scratch']
  #allocation2 [shape = 'f32[8,128]{1,0:T(8,128)}', space=vmem, size = 0x1000, scoped, tag = 'scratch operand']
  %s0 = inlined_call_operand.vmem [shape: bf16[8,16384], index: 0, kind: input, shape index: {}]
  %s1 = inlined_call_operand.hbm [shape: bf16[16384,128], index: 1, kind: input, shape index: {}]
  %s2 = inlined_call_operand.hbm [shape: f32[1,128], index: 2, kind: input, shape index: {}]
  %s3 = inlined_call_operand.vmem [shape: f32[8,128], index: 3, kind: output, shape index: {}]
  %s4 = sld [smem:[#allocation0]]
  $region61: #{localizer_vit_forward.2} parent=0
    _
  %s6 = ssub.s32 1, %s4
  %s7 = scalar_select 0, %s6, %s4
  $region1: #{localizer_vit_forward.2} parent=0
    #allocation3 [shape = 'u8[4194304]{0}', space=vmem, size = 0x400000, scoped, tag = 'input window, operand 1']
    #allocation4 [shape = 's32[2]{0}', space=sflag, size = 0x8, scoped, tag = 'scoped memory for localizer_vit_forward.2']
    #allocation5 [shape = 'u8[512]{0}', space=vmem, size = 0x400, scoped, tag = 'input window, operand 2, single buffered']
    #allocation6 [shape = 's32[1]{0}', space=sflag, size = 0x4, scoped, tag = 'scoped memory for localizer_vit_forward.2']
    %8 = vsyncpa [#allocation4], 0
    %s9 = scalar_lea.sflag [#allocation4], 1
    %10 = vsyncpa %s9, 0
    %11 = vsyncpa [#allocation6], 0
    loop: start=0, step=1, limit=4
    $region2: #{localizer_vit_forward.2} parent=1 // loop_pre_header
      _
    $region3: #{localizer_vit_forward.2} parent=1 // loop_header
      %s13 = sphi 0, %s17
      %p14 = scmp.ge.s32.totalorder %s13, 4
      %s23 = sphi 0, %s25
      %s26 = sphi 0, %s23
      %s27 = sphi 0, %s26
      %s43 = sphi 0, %s27
      %s49 = sphi 0, %s51
      %s52 = sphi 0, %s49
      %s53 = sphi 0, %s52
      %s69 = sphi 0, %s53
      %s73 = sphi 0, %s73
      %s75 = sphi 0, %s73
      %s76 = sphi 0, %s75
      %s90 = sphi 0, %s76
      %s94 = sphi 0, %s94
      %s96 = sphi 0, %s94
      %s97 = sphi 0, %s96
      %s111 = sphi 0, %s97
    $region4: #{localizer_vit_forward.2} parent=1 // loop_header_branch
      %16 = sbr.rel (%p14) target = $region8
    $region5: #{localizer_vit_forward.2} parent=1 // loop_body
      %s18 = ssub.s32 %s13, 1
      %s19 = ssub.s32 %s13, 2
      %s20 = sadd.s32 %s13, 1
      %s21 = ssub.s32 %s13, %s20
      %p22 = scmp.eq.s32.totalorder %s21, 0
      %s24 = sadd.s32 %s23, 1
      %s25 = scalar_select %p22, %s23, %s24
      %p28 = pneg %p22
      %p29 = scmp.eq.s32.totalorder %s13, 1
      %p30 = por %p28, %p29
      %p31 = scmp.ne.s32.totalorder %s23, %s26
      %p32 = scmp.eq.s32.totalorder %s13, 0
      %p33 = por %p31, %p32
      %p34 = scmp.ne.s32.totalorder %s23, %s26
      %p35 = scmp.eq.s32.totalorder %s18, 1
      %p36 = por %p34, %p35
      %p37 = scmp.ne.s32.totalorder %s26, %s27
      %p38 = scmp.eq.s32.totalorder %s18, 0
      %p39 = por %p37, %p38
      %p40 = scmp.ne.s32.totalorder %s26, %s27
      %p41 = scmp.eq.s32.totalorder %s19, 1
      %p42 = por %p40, %p41
      %p44 = scmp.ne.s32.totalorder %s27, %s43
      %p45 = scmp.eq.s32.totalorder %s19, 0
      %p46 = por %p44, %p45
      %s47 = ssub.s32 %s13, %s20
      %p48 = scmp.eq.s32.totalorder %s47, 0
      %s50 = sadd.s32 %s49, 1
      %s51 = scalar_select %p48, %s49, %s50
      %p54 = pneg %p48
      %p55 = scmp.eq.s32.totalorder %s13, 1
      %p56 = por %p54, %p55
      %p57 = scmp.ne.s32.totalorder %s49, %s52
      %p58 = scmp.eq.s32.totalorder %s13, 0
      %p59 = por %p57, %p58
      %p60 = scmp.ne.s32.totalorder %s49, %s52
      %p61 = scmp.eq.s32.totalorder %s18, 1
      %p62 = por %p60, %p61
      %p63 = scmp.ne.s32.totalorder %s52, %s53
      %p64 = scmp.eq.s32.totalorder %s18, 0
      %p65 = por %p63, %p64
      %p66 = scmp.ne.s32.totalorder %s52, %s53
      %p67 = scmp.eq.s32.totalorder %s19, 1
      %p68 = por %p66, %p67
      %p70 = scmp.ne.s32.totalorder %s53, %s69
      %p71 = scmp.eq.s32.totalorder %s19, 0
      %p72 = por %p70, %p71
      %s74 = sadd.s32 %s73, 1
      %p77 = scmp.eq.s32.totalorder %s13, 1
      %p78 = scmp.ne.s32.totalorder %s73, %s75
      %p79 = scmp.eq.s32.totalorder %s13, 0
      %p80 = por %p78, %p79
      %p81 = scmp.ne.s32.totalorder %s73, %s75
      %p82 = scmp.eq.s32.totalorder %s18, 1
      %p83 = por %p81, %p82
      %p84 = scmp.ne.s32.totalorder %s75, %s76
      %p85 = scmp.eq.s32.totalorder %s18, 0
      %p86 = por %p84, %p85
      %p87 = scmp.ne.s32.totalorder %s75, %s76
      %p88 = scmp.eq.s32.totalorder %s19, 1
      %p89 = por %p87, %p88
      %p91 = scmp.ne.s32.totalorder %s76, %s90
      %p92 = scmp.eq.s32.totalorder %s19, 0
      %p93 = por %p91, %p92
      %s95 = sadd.s32 %s94, 1
      %p98 = scmp.eq.s32.totalorder %s13, 1
      %p99 = scmp.ne.s32.totalorder %s94, %s96
      %p100 = scmp.eq.s32.totalorder %s13, 0
      %p101 = por %p99, %p100
      %p102 = scmp.ne.s32.totalorder %s94, %s96
      %p103 = scmp.eq.s32.totalorder %s18, 1
      %p104 = por %p102, %p103
      %p105 = scmp.ne.s32.totalorder %s96, %s97
      %p106 = scmp.eq.s32.totalorder %s18, 0
      %p107 = por %p105, %p106
      %p108 = scmp.ne.s32.totalorder %s96, %s97
      %p109 = scmp.eq.s32.totalorder %s19, 1
      %p110 = por %p108, %p109
      %p112 = scmp.ne.s32.totalorder %s97, %s111
      %p113 = scmp.eq.s32.totalorder %s19, 0
      %p114 = por %p112, %p113
      %p115 = scmp.le.s32.totalorder 1, %s13
      %p116 = scmp.lt.s32.totalorder %s13, 3
      %p117 = pnand %p115, %p116
      %p118 = pneg %p117
      // Predicated region
      $region9: #{localizer_vit_forward.2} parent=5 // pred_check
        _
      $region10: #{localizer_vit_forward.2} parent=5 // pred_check_branch
        %120 = sbr.rel (%p117) target = $region12
      $region11: #{localizer_vit_forward.2} parent=5 // pred_region
        %s121 = ssub.s32 %s13, 1
        // Predicated region
        $region13: #{localizer_vit_forward.2} parent=11 // pred_check
          %p122 = pneg %p86
        $region14: #{localizer_vit_forward.2} parent=11 // pred_check_branch
          %124 = sbr.rel (%p122) target = $region16
        $region15: #{localizer_vit_forward.2} parent=11 // pred_region
          %s126 = ssub.s32 16, 16
          %127 = vsyncadd [#allocation6], %s126
          %s129 = sshll.u32 [#allocation5], 4
          %s130 = int_to_ptr.vmem [resolvable:$true] %s129
          %132 = dma.hbm_to_vmem [thread:$0]  %s2, 16, %s130, [#allocation6]
        $region16: #{localizer_vit_forward.2} parent=11 // pred_fallthru
          _
      $region12: #{localizer_vit_forward.2} parent=5 // pred_fallthru
        _
      %p133 = scmp.lt.s32.totalorder %s13, 2
      // Predicated region
      $region17: #{localizer_vit_forward.2} parent=5 // pred_check
        %p134 = pneg %p133
      $region18: #{localizer_vit_forward.2} parent=5 // pred_check_branch
        %136 = sbr.rel (%p134) target = $region20
      $region19: #{localizer_vit_forward.2} parent=5 // pred_region
        // Predicated region
        $region21: #{localizer_vit_forward.2} parent=19 // pred_check
          %p137 = pneg %p33
        $region22: #{localizer_vit_forward.2} parent=19 // pred_check_branch
          %139 = sbr.rel (%p137) target = $region24
        $region23: #{localizer_vit_forward.2} parent=19 // pred_region
          %s140 = smul.u32 64, %s13
          %p141 = scmp.lt.s32.totalorder %s140, 127
          %s142 = scalar_select %p141, %s140, 127
          %s143 = smul.addr %s142, 4
          %s144 = scalar_lea.vmem %s0, %s143
          %s145 = smul.u32 64, %s13
        $region24: #{localizer_vit_forward.2} parent=19 // pred_fallthru
          _
        // Predicated region
        $region25: #{localizer_vit_forward.2} parent=19 // pred_check
          %p146 = pneg %p59
        $region26: #{localizer_vit_forward.2} parent=19 // pred_check_branch
          %148 = sbr.rel (%p146) target = $region28
        $region27: #{localizer_vit_forward.2} parent=19 // pred_region
          %s149 = sand.u32 %s49, 1
          %s150 = scalar_lea.sflag [#allocation4], %s149
          %s151 = sand.u32 %s49, 1
          %s152 = smul.addr %s151, 4096
          %s153 = scalar_lea.vmem [#allocation3], %s152
          %s154 = smul.u32 1024, %s13
          %s156 = ssub.s32 65536, 65536
          %157 = vsyncadd %s150, %s156
          %s158 = smul.addr %s154, 64
          %s159 = scalar_lea.hbm %s1, %s158
          %s160 = sshll.u32 %s153, 4
          %s161 = int_to_ptr.vmem [resolvable:$true] %s160
          %166 = dma.hbm_to_vmem [thread:$0]  %s159, 65536, %s161, %s150, 64, 64, 4
        $region28: #{localizer_vit_forward.2} parent=19 // pred_fallthru
          _
      $region20: #{localizer_vit_forward.2} parent=5 // pred_fallthru
        _
      %p167 = scmp.le.s32.totalorder 1, %s13
      %p168 = scmp.lt.s32.totalorder %s13, 3
      %p169 = pnand %p167, %p168
      %p170 = pneg %p169
      // Predicated region
      $region29: #{localizer_vit_forward.2} parent=5 // pred_check
        _
      $region30: #{localizer_vit_forward.2} parent=5 // pred_check_branch
        %172 = sbr.rel (%p169) target = $region32
      $region31: #{localizer_vit_forward.2} parent=5 // pred_region
        %s173 = ssub.s32 %s13, 1
        %s174 = sand.u32 %s52, 1
        %s175 = scalar_lea.sflag [#allocation4], %s174
        %s176 = sand.u32 %s52, 1
        %s177 = smul.addr %s176, 4096
        %s178 = scalar_lea.vmem [#allocation3], %s177
        // Predicated region
        $region33: #{localizer_vit_forward.2} parent=31 // pred_check
          %p179 = pneg %p65
        $region34: #{localizer_vit_forward.2} parent=31 // pred_check_branch
          %181 = sbr.rel (%p179) target = $region36
        $region35: #{localizer_vit_forward.2} parent=31 // pred_region
          %182 = dma.done %s175, 65536
        $region36: #{localizer_vit_forward.2} parent=31 // pred_fallthru
          _
        // Predicated region
        $region37: #{localizer_vit_forward.2} parent=31 // pred_check
          %p183 = pneg %p86
        $region38: #{localizer_vit_forward.2} parent=31 // pred_check_branch
          %185 = sbr.rel (%p183) target = $region40
        $region39: #{localizer_vit_forward.2} parent=31 // pred_region
          %186 = dma.done [#allocation6], 16
        $region40: #{localizer_vit_forward.2} parent=31 // pred_fallthru
          _
        %s187 = smul.u32 64, %s18
        %p188 = scmp.lt.s32.totalorder %s187, 127
        %s189 = scalar_select %p188, %s187, 127
        %s190 = smul.addr %s189, 4
        %s191 = scalar_lea.vmem %s0, %s190
        %p192 = pneg %p39
        %p193 = pneg %p36
        %s194 = sand.u32 %s52, 1
        %s195 = scalar_lea.sflag [#allocation4], %s194
        %s196 = sand.u32 %s52, 1
        %s197 = smul.addr %s196, 4096
        %s198 = scalar_lea.vmem [#allocation3], %s197
        %p199 = pneg %p65
        %p200 = pneg %p62
        %p201 = pneg %p86
        %p202 = pneg %p83
        %p203 = pneg %p107
        %p204 = pneg %p104
        %s205 = smul.u32 64, %s18
        %p206 = scmp.lt.s32.totalorder %s205, 127
        %s207 = scalar_select %p206, %s205, 127
        %s208 = smul.addr %s207, 4
        %s209 = scalar_lea.vmem %s0, %s208
        %s210 = smul.u32 64, %s18
        %s211 = smul.u32 1024, %s18
        %p213 = scmp.eq.s32.totalorder %s18, 0
        // Predicated region
        $region41: #{localizer_vit_forward.2} parent=31 // pred_check
          %p214 = pneg %p213
        $region42: #{localizer_vit_forward.2} parent=31 // pred_check_branch
          %216 = sbr.rel (%p214) target = $region44
        $region43: #{localizer_vit_forward.2} parent=31 // pred_region
          %217 = vst [vmem:[#allocation2] sm:$0xff] 0.0
        $region44: #{localizer_vit_forward.2} parent=31 // pred_fallthru
          _
        %v218 = vld [vmem:[#allocation2] sm:$0xff]
        %v219 = vld [vmem:[%s209] sm:$0xff]
        %v220 = vld [vmem:[%s209 + $0x8] sm:$0xff]
        %v221 = vld [vmem:[%s209 + $0x10] sm:$0xff]
        %v222 = vld [vmem:[%s209 + $0x18] sm:$0xff]
        %v223 = vld [vmem:[%s209 + $0x20] sm:$0xff]
        %v224 = vld [vmem:[%s209 + $0x28] sm:$0xff]
        %v225 = vld [vmem:[%s209 + $0x30] sm:$0xff]
        %v226 = vld [vmem:[%s209 + $0x38] sm:$0xff]
        %v227 = vld [vmem:[%s209 + $0x40] sm:$0xff]
        %v228 = vld [vmem:[%s209 + $0x48] sm:$0xff]
        %v229 = vld [vmem:[%s209 + $0x50] sm:$0xff]
        %v230 = vld [vmem:[%s209 + $0x58] sm:$0xff]
        %v231 = vld [vmem:[%s209 + $0x60] sm:$0xff]
        %v232 = vld [vmem:[%s209 + $0x68] sm:$0xff]
        %v233 = vld [vmem:[%s209 + $0x70] sm:$0xff]
        %v234 = vld [vmem:[%s209 + $0x78] sm:$0xff]
        %v235 = vld [vmem:[%s209 + $0x80] sm:$0xff]
        %v236 = vld [vmem:[%s209 + $0x88] sm:$0xff]
        %v237 = vld [vmem:[%s209 + $0x90] sm:$0xff]
        %v238 = vld [vmem:[%s209 + $0x98] sm:$0xff]
        %v239 = vld [vmem:[%s209 + $0xa0] sm:$0xff]
        %v240 = vld [vmem:[%s209 + $0xa8] sm:$0xff]
        %v241 = vld [vmem:[%s209 + $0xb0] sm:$0xff]
        %v242 = vld [vmem:[%s209 + $0xb8] sm:$0xff]
        %v243 = vld [vmem:[%s209 + $0xc0] sm:$0xff]
        %v244 = vld [vmem:[%s209 + $0xc8] sm:$0xff]
        %v245 = vld [vmem:[%s209 + $0xd0] sm:$0xff]
        %v246 = vld [vmem:[%s209 + $0xd8] sm:$0xff]
        %v247 = vld [vmem:[%s209 + $0xe0] sm:$0xff]
        %v248 = vld [vmem:[%s209 + $0xe8] sm:$0xff]
        %v249 = vld [vmem:[%s209 + $0xf0] sm:$0xff]
        %v250 = vld [vmem:[%s209 + $0xf8] sm:$0xff]
        %v251 = vld [vmem:[%s178] sm:$0xf]
        %v252 = vld [vmem:[%s178 + $0x4] sm:$0xf]
        %v253 = vld [vmem:[%s178 + $0x8] sm:$0xf]
        %v254 = vld [vmem:[%s178 + $0xc] sm:$0xf]
        %v255 = vld [vmem:[%s178 + $0x10] sm:$0xf]
        %v256 = vld [vmem:[%s178 + $0x14] sm:$0xf]
        %v257 = vld [vmem:[%s178 + $0x18] sm:$0xf]
        %v258 = vld [vmem:[%s178 + $0x1c] sm:$0xf]
        %v259 = vld [vmem:[%s178 + $0x20] sm:$0xf]
        %v260 = vld [vmem:[%s178 + $0x24] sm:$0xf]
        %v261 = vld [vmem:[%s178 + $0x28] sm:$0xf]
        %v262 = vld [vmem:[%s178 + $0x2c] sm:$0xf]
        %v263 = vld [vmem:[%s178 + $0x30] sm:$0xf]
        %v264 = vld [vmem:[%s178 + $0x34] sm:$0xf]
        %v265 = vld [vmem:[%s178 + $0x38] sm:$0xf]
        %v266 = vld [vmem:[%s178 + $0x3c] sm:$0xf]
        %v267 = vld [vmem:[%s178 + $0x40] sm:$0xf]
        %v268 = vld [vmem:[%s178 + $0x44] sm:$0xf]
        %v269 = vld [vmem:[%s178 + $0x48] sm:$0xf]
        %v270 = vld [vmem:[%s178 + $0x4c] sm:$0xf]
        %v271 = vld [vmem:[%s178 + $0x50] sm:$0xf]
        %v272 = vld [vmem:[%s178 + $0x54] sm:$0xf]
        %v273 = vld [vmem:[%s178 + $0x58] sm:$0xf]
        %v274 = vld [vmem:[%s178 + $0x5c] sm:$0xf]
        %v275 = vld [vmem:[%s178 + $0x60] sm:$0xf]
        %v276 = vld [vmem:[%s178 + $0x64] sm:$0xf]
        %v277 = vld [vmem:[%s178 + $0x68] sm:$0xf]
        %v278 = vld [vmem:[%s178 + $0x6c] sm:$0xf]
        %v279 = vld [vmem:[%s178 + $0x70] sm:$0xf]
        %v280 = vld [vmem:[%s178 + $0x74] sm:$0xf]
        %v281 = vld [vmem:[%s178 + $0x78] sm:$0xf]
        %v282 = vld [vmem:[%s178 + $0x7c] sm:$0xf]
        %v283 = vld [vmem:[%s178 + $0x80] sm:$0xf]
        %v284 = vld [vmem:[%s178 + $0x84] sm:$0xf]
        %v285 = vld [vmem:[%s178 + $0x88] sm:$0xf]
        %v286 = vld [vmem:[%s178 + $0x8c] sm:$0xf]
        %v287 = vld [vmem:[%s178 + $0x90] sm:$0xf]
        %v288 = vld [vmem:[%s178 + $0x94] sm:$0xf]
        %v289 = vld [vmem:[%s178 + $0x98] sm:$0xf]
        %v290 = vld [vmem:[%s178 + $0x9c] sm:$0xf]
        %v291 = vld [vmem:[%s178 + $0xa0] sm:$0xf]
        %v292 = vld [vmem:[%s178 + $0xa4] sm:$0xf]
        %v293 = vld [vmem:[%s178 + $0xa8] sm:$0xf]
        %v294 = vld [vmem:[%s178 + $0xac] sm:$0xf]
        %v295 = vld [vmem:[%s178 + $0xb0] sm:$0xf]
        %v296 = vld [vmem:[%s178 + $0xb4] sm:$0xf]
        %v297 = vld [vmem:[%s178 + $0xb8] sm:$0xf]
        %v298 = vld [vmem:[%s178 + $0xbc] sm:$0xf]
        %v299 = vld [vmem:[%s178 + $0xc0] sm:$0xf]
        %v300 = vld [vmem:[%s178 + $0xc4] sm:$0xf]
        %v301 = vld [vmem:[%s178 + $0xc8] sm:$0xf]
        %v302 = vld [vmem:[%s178 + $0xcc] sm:$0xf]
        %v303 = vld [vmem:[%s178 + $0xd0] sm:$0xf]
        %v304 = vld [vmem:[%s178 + $0xd4] sm:$0xf]
        %v305 = vld [vmem:[%s178 + $0xd8] sm:$0xf]
        %v306 = vld [vmem:[%s178 + $0xdc] sm:$0xf]
        %v307 = vld [vmem:[%s178 + $0xe0] sm:$0xf]
        %v308 = vld [vmem:[%s178 + $0xe4] sm:$0xf]
        %v309 = vld [vmem:[%s178 + $0xe8] sm:$0xf]
        %v310 = vld [vmem:[%s178 + $0xec] sm:$0xf]
        %v311 = vld [vmem:[%s178 + $0xf0] sm:$0xf]
        %v312 = vld [vmem:[%s178 + $0xf4] sm:$0xf]
        %v313 = vld [vmem:[%s178 + $0xf8] sm:$0xf]
        %v314 = vld [vmem:[%s178 + $0xfc] sm:$0xf]
        %v315 = vld [vmem:[%s178 + $0x100] sm:$0xf]
        %v316 = vld [vmem:[%s178 + $0x104] sm:$0xf]
        %v317 = vld [vmem:[%s178 + $0x108] sm:$0xf]
        %v318 = vld [vmem:[%s178 + $0x10c] sm:$0xf]
        %v319 = vld [vmem:[%s178 + $0x110] sm:$0xf]
        %v320 = vld [vmem:[%s178 + $0x114] sm:$0xf]
        %v321 = vld [vmem:[%s178 + $0x118] sm:$0xf]
        %v322 = vld [vmem:[%s178 + $0x11c] sm:$0xf]
        %v323 = vld [vmem:[%s178 + $0x120] sm:$0xf]
        %v324 = vld [vmem:[%s178 + $0x124] sm:$0xf]
        %v325 = vld [vmem:[%s178 + $0x128] sm:$0xf]
        %v326 = vld [vmem:[%s178 + $0x12c] sm:$0xf]
        %v327 = vld [vmem:[%s178 + $0x130] sm:$0xf]
        %v328 = vld [vmem:[%s178 + $0x134] sm:$0xf]
        %v329 = vld [vmem:[%s178 + $0x138] sm:$0xf]
        %v330 = vld [vmem:[%s178 + $0x13c] sm:$0xf]
        %v331 = vld [vmem:[%s178 + $0x140] sm:$0xf]
        %v332 = vld [vmem:[%s178 + $0x144] sm:$0xf]
        %v333 = vld [vmem:[%s178 + $0x148] sm:$0xf]
        %v334 = vld [vmem:[%s178 + $0x14c] sm:$0xf]
        %v335 = vld [vmem:[%s178 + $0x150] sm:$0xf]
        %v336 = vld [vmem:[%s178 + $0x154] sm:$0xf]
        %v337 = vld [vmem:[%s178 + $0x158] sm:$0xf]
        %v338 = vld [vmem:[%s178 + $0x15c] sm:$0xf]
        %v339 = vld [vmem:[%s178 + $0x160] sm:$0xf]
        %v340 = vld [vmem:[%s178 + $0x164] sm:$0xf]
        %v341 = vld [vmem:[%s178 + $0x168] sm:$0xf]
        %v342 = vld [vmem:[%s178 + $0x16c] sm:$0xf]
        %v343 = vld [vmem:[%s178 + $0x170] sm:$0xf]
        %v344 = vld [vmem:[%s178 + $0x174] sm:$0xf]
        %v345 = vld [vmem:[%s178 + $0x178] sm:$0xf]
        %v346 = vld [vmem:[%s178 + $0x17c] sm:$0xf]
        %v347 = vld [vmem:[%s178 + $0x180] sm:$0xf]
        %v348 = vld [vmem:[%s178 + $0x184] sm:$0xf]
        %v349 = vld [vmem:[%s178 + $0x188] sm:$0xf]
        %v350 = vld [vmem:[%s178 + $0x18c] sm:$0xf]
        %v351 = vld [vmem:[%s178 + $0x190] sm:$0xf]
        %v352 = vld [vmem:[%s178 + $0x194] sm:$0xf]
        %v353 = vld [vmem:[%s178 + $0x198] sm:$0xf]
        %v354 = vld [vmem:[%s178 + $0x19c] sm:$0xf]
        %v355 = vld [vmem:[%s178 + $0x1a0] sm:$0xf]
        %v356 = vld [vmem:[%s178 + $0x1a4] sm:$0xf]
        %v357 = vld [vmem:[%s178 + $0x1a8] sm:$0xf]
        %v358 = vld [vmem:[%s178 + $0x1ac] sm:$0xf]
        %v359 = vld [vmem:[%s178 + $0x1b0] sm:$0xf]
        %v360 = vld [vmem:[%s178 + $0x1b4] sm:$0xf]
        %v361 = vld [vmem:[%s178 + $0x1b8] sm:$0xf]
        %v362 = vld [vmem:[%s178 + $0x1bc] sm:$0xf]
        %v363 = vld [vmem:[%s178 + $0x1c0] sm:$0xf]
        %v364 = vld [vmem:[%s178 + $0x1c4] sm:$0xf]
        %v365 = vld [vmem:[%s178 + $0x1c8] sm:$0xf]
        %v366 = vld [vmem:[%s178 + $0x1cc] sm:$0xf]
        %v367 = vld [vmem:[%s178 + $0x1d0] sm:$0xf]
        %v368 = vld [vmem:[%s178 + $0x1d4] sm:$0xf]
        %v369 = vld [vmem:[%s178 + $0x1d8] sm:$0xf]
        %v370 = vld [vmem:[%s178 + $0x1dc] sm:$0xf]
        %v371 = vld [vmem:[%s178 + $0x1e0] sm:$0xf]
        %v372 = vld [vmem:[%s178 + $0x1e4] sm:$0xf]
        %v373 = vld [vmem:[%s178 + $0x1e8] sm:$0xf]
        %v374 = vld [vmem:[%s178 + $0x1ec] sm:$0xf]
        %v375 = vld [vmem:[%s178 + $0x1f0] sm:$0xf]
        %v376 = vld [vmem:[%s178 + $0x1f4] sm:$0xf]
        %v377 = vld [vmem:[%s178 + $0x1f8] sm:$0xf]
        %v378 = vld [vmem:[%s178 + $0x1fc] sm:$0xf]
        %v379 = vld [vmem:[%s178 + $0x200] sm:$0xf]
        %v380 = vld [vmem:[%s178 + $0x204] sm:$0xf]
        %v381 = vld [vmem:[%s178 + $0x208] sm:$0xf]
        %v382 = vld [vmem:[%s178 + $0x20c] sm:$0xf]
        %v383 = vld [vmem:[%s178 + $0x210] sm:$0xf]
        %v384 = vld [vmem:[%s178 + $0x214] sm:$0xf]
        %v385 = vld [vmem:[%s178 + $0x218] sm:$0xf]
        %v386 = vld [vmem:[%s178 + $0x21c] sm:$0xf]
        %v387 = vld [vmem:[%s178 + $0x220] sm:$0xf]
        %v388 = vld [vmem:[%s178 + $0x224] sm:$0xf]
        %v389 = vld [vmem:[%s178 + $0x228] sm:$0xf]
        %v390 = vld [vmem:[%s178 + $0x22c] sm:$0xf]
        %v391 = vld [vmem:[%s178 + $0x230] sm:$0xf]
        %v392 = vld [vmem:[%s178 + $0x234] sm:$0xf]
        %v393 = vld [vmem:[%s178 + $0x238] sm:$0xf]
        %v394 = vld [vmem:[%s178 + $0x23c] sm:$0xf]
        %v395 = vld [vmem:[%s178 + $0x240] sm:$0xf]
        %v396 = vld [vmem:[%s178 + $0x244] sm:$0xf]
        %v397 = vld [vmem:[%s178 + $0x248] sm:$0xf]
        %v398 = vld [vmem:[%s178 + $0x24c] sm:$0xf]
        %v399 = vld [vmem:[%s178 + $0x250] sm:$0xf]
        %v400 = vld [vmem:[%s178 + $0x254] sm:$0xf]
        %v401 = vld [vmem:[%s178 + $0x258] sm:$0xf]
        %v402 = vld [vmem:[%s178 + $0x25c] sm:$0xf]
        %v403 = vld [vmem:[%s178 + $0x260] sm:$0xf]
        %v404 = vld [vmem:[%s178 + $0x264] sm:$0xf]
        %v405 = vld [vmem:[%s178 + $0x268] sm:$0xf]
        %v406 = vld [vmem:[%s178 + $0x26c] sm:$0xf]
        %v407 = vld [vmem:[%s178 + $0x270] sm:$0xf]
        %v408 = vld [vmem:[%s178 + $0x274] sm:$0xf]
        %v409 = vld [vmem:[%s178 + $0x278] sm:$0xf]
        %v410 = vld [vmem:[%s178 + $0x27c] sm:$0xf]
        %v411 = vld [vmem:[%s178 + $0x280] sm:$0xf]
        %v412 = vld [vmem:[%s178 + $0x284] sm:$0xf]
        %v413 = vld [vmem:[%s178 + $0x288] sm:$0xf]
        %v414 = vld [vmem:[%s178 + $0x28c] sm:$0xf]
        %v415 = vld [vmem:[%s178 + $0x290] sm:$0xf]
        %v416 = vld [vmem:[%s178 + $0x294] sm:$0xf]
        %v417 = vld [vmem:[%s178 + $0x298] sm:$0xf]
        %v418 = vld [vmem:[%s178 + $0x29c] sm:$0xf]
        %v419 = vld [vmem:[%s178 + $0x2a0] sm:$0xf]
        %v420 = vld [vmem:[%s178 + $0x2a4] sm:$0xf]
        %v421 = vld [vmem:[%s178 + $0x2a8] sm:$0xf]
        %v422 = vld [vmem:[%s178 + $0x2ac] sm:$0xf]
        %v423 = vld [vmem:[%s178 + $0x2b0] sm:$0xf]
        %v424 = vld [vmem:[%s178 + $0x2b4] sm:$0xf]
        %v425 = vld [vmem:[%s178 + $0x2b8] sm:$0xf]
        %v426 = vld [vmem:[%s178 + $0x2bc] sm:$0xf]
        %v427 = vld [vmem:[%s178 + $0x2c0] sm:$0xf]
        %v428 = vld [vmem:[%s178 + $0x2c4] sm:$0xf]
        %v429 = vld [vmem:[%s178 + $0x2c8] sm:$0xf]
        %v430 = vld [vmem:[%s178 + $0x2cc] sm:$0xf]
        %v431 = vld [vmem:[%s178 + $0x2d0] sm:$0xf]
        %v432 = vld [vmem:[%s178 + $0x2d4] sm:$0xf]
        %v433 = vld [vmem:[%s178 + $0x2d8] sm:$0xf]
        %v434 = vld [vmem:[%s178 + $0x2dc] sm:$0xf]
        %v435 = vld [vmem:[%s178 + $0x2e0] sm:$0xf]
        %v436 = vld [vmem:[%s178 + $0x2e4] sm:$0xf]
        %v437 = vld [vmem:[%s178 + $0x2e8] sm:$0xf]
        %v438 = vld [vmem:[%s178 + $0x2ec] sm:$0xf]
        %v439 = vld [vmem:[%s178 + $0x2f0] sm:$0xf]
        %v440 = vld [vmem:[%s178 + $0x2f4] sm:$0xf]
        %v441 = vld [vmem:[%s178 + $0x2f8] sm:$0xf]
        %v442 = vld [vmem:[%s178 + $0x2fc] sm:$0xf]
        %v443 = vld [vmem:[%s178 + $0x300] sm:$0xf]
        %v444 = vld [vmem:[%s178 + $0x304] sm:$0xf]
        %v445 = vld [vmem:[%s178 + $0x308] sm:$0xf]
        %v446 = vld [vmem:[%s178 + $0x30c] sm:$0xf]
        %v447 = vld [vmem:[%s178 + $0x310] sm:$0xf]
        %v448 = vld [vmem:[%s178 + $0x314] sm:$0xf]
        %v449 = vld [vmem:[%s178 + $0x318] sm:$0xf]
        %v450 = vld [vmem:[%s178 + $0x31c] sm:$0xf]
        %v451 = vld [vmem:[%s178 + $0x320] sm:$0xf]
        %v452 = vld [vmem:[%s178 + $0x324] sm:$0xf]
        %v453 = vld [vmem:[%s178 + $0x328] sm:$0xf]
        %v454 = vld [vmem:[%s178 + $0x32c] sm:$0xf]
        %v455 = vld [vmem:[%s178 + $0x330] sm:$0xf]
        %v456 = vld [vmem:[%s178 + $0x334] sm:$0xf]
        %v457 = vld [vmem:[%s178 + $0x338] sm:$0xf]
        %v458 = vld [vmem:[%s178 + $0x33c] sm:$0xf]
        %v459 = vld [vmem:[%s178 + $0x340] sm:$0xf]
        %v460 = vld [vmem:[%s178 + $0x344] sm:$0xf]
        %v461 = vld [vmem:[%s178 + $0x348] sm:$0xf]
        %v462 = vld [vmem:[%s178 + $0x34c] sm:$0xf]
        %v463 = vld [vmem:[%s178 + $0x350] sm:$0xf]
        %v464 = vld [vmem:[%s178 + $0x354] sm:$0xf]
        %v465 = vld [vmem:[%s178 + $0x358] sm:$0xf]
        %v466 = vld [vmem:[%s178 + $0x35c] sm:$0xf]
        %v467 = vld [vmem:[%s178 + $0x360] sm:$0xf]
        %v468 = vld [vmem:[%s178 + $0x364] sm:$0xf]
        %v469 = vld [vmem:[%s178 + $0x368] sm:$0xf]
        %v470 = vld [vmem:[%s178 + $0x36c] sm:$0xf]
        %v471 = vld [vmem:[%s178 + $0x370] sm:$0xf]
        %v472 = vld [vmem:[%s178 + $0x374] sm:$0xf]
        %v473 = vld [vmem:[%s178 + $0x378] sm:$0xf]
        %v474 = vld [vmem:[%s178 + $0x37c] sm:$0xf]
        %v475 = vld [vmem:[%s178 + $0x380] sm:$0xf]
        %v476 = vld [vmem:[%s178 + $0x384] sm:$0xf]
        %v477 = vld [vmem:[%s178 + $0x388] sm:$0xf]
        %v478 = vld [vmem:[%s178 + $0x38c] sm:$0xf]
        %v479 = vld [vmem:[%s178 + $0x390] sm:$0xf]
        %v480 = vld [vmem:[%s178 + $0x394] sm:$0xf]
        %v481 = vld [vmem:[%s178 + $0x398] sm:$0xf]
        %v482 = vld [vmem:[%s178 + $0x39c] sm:$0xf]
        %v483 = vld [vmem:[%s178 + $0x3a0] sm:$0xf]
        %v484 = vld [vmem:[%s178 + $0x3a4] sm:$0xf]
        %v485 = vld [vmem:[%s178 + $0x3a8] sm:$0xf]
        %v486 = vld [vmem:[%s178 + $0x3ac] sm:$0xf]
        %v487 = vld [vmem:[%s178 + $0x3b0] sm:$0xf]
        %v488 = vld [vmem:[%s178 + $0x3b4] sm:$0xf]
        %v489 = vld [vmem:[%s178 + $0x3b8] sm:$0xf]
        %v490 = vld [vmem:[%s178 + $0x3bc] sm:$0xf]
        %v491 = vld [vmem:[%s178 + $0x3c0] sm:$0xf]
        %v492 = vld [vmem:[%s178 + $0x3c4] sm:$0xf]
        %v493 = vld [vmem:[%s178 + $0x3c8] sm:$0xf]
        %v494 = vld [vmem:[%s178 + $0x3cc] sm:$0xf]
        %v495 = vld [vmem:[%s178 + $0x3d0] sm:$0xf]
        %v496 = vld [vmem:[%s178 + $0x3d4] sm:$0xf]
        %v497 = vld [vmem:[%s178 + $0x3d8] sm:$0xf]
        %v498 = vld [vmem:[%s178 + $0x3dc] sm:$0xf]
        %v499 = vld [vmem:[%s178 + $0x3e0] sm:$0xf]
        %v500 = vld [vmem:[%s178 + $0x3e4] sm:$0xf]
        %v501 = vld [vmem:[%s178 + $0x3e8] sm:$0xf]
        %v502 = vld [vmem:[%s178 + $0x3ec] sm:$0xf]
        %v503 = vld [vmem:[%s178 + $0x3f0] sm:$0xf]
        %v504 = vld [vmem:[%s178 + $0x3f4] sm:$0xf]
        %v505 = vld [vmem:[%s178 + $0x3f8] sm:$0xf]
        %v506 = vld [vmem:[%s178 + $0x3fc] sm:$0xf]
        %v507 = vld [vmem:[%s178 + $0x400] sm:$0xf]
        %v508 = vld [vmem:[%s178 + $0x404] sm:$0xf]
        %v509 = vld [vmem:[%s178 + $0x408] sm:$0xf]
        %v510 = vld [vmem:[%s178 + $0x40c] sm:$0xf]
        %v511 = vld [vmem:[%s178 + $0x410] sm:$0xf]
        %v512 = vld [vmem:[%s178 + $0x414] sm:$0xf]
        %v513 = vld [vmem:[%s178 + $0x418] sm:$0xf]
        %v514 = vld [vmem:[%s178 + $0x41c] sm:$0xf]
        %v515 = vld [vmem:[%s178 + $0x420] sm:$0xf]
        %v516 = vld [vmem:[%s178 + $0x424] sm:$0xf]
        %v517 = vld [vmem:[%s178 + $0x428] sm:$0xf]
        %v518 = vld [vmem:[%s178 + $0x42c] sm:$0xf]
        %v519 = vld [vmem:[%s178 + $0x430] sm:$0xf]
        %v520 = vld [vmem:[%s178 + $0x434] sm:$0xf]
        %v521 = vld [vmem:[%s178 + $0x438] sm:$0xf]
        %v522 = vld [vmem:[%s178 + $0x43c] sm:$0xf]
        %v523 = vld [vmem:[%s178 + $0x440] sm:$0xf]
        %v524 = vld [vmem:[%s178 + $0x444] sm:$0xf]
        %v525 = vld [vmem:[%s178 + $0x448] sm:$0xf]
        %v526 = vld [vmem:[%s178 + $0x44c] sm:$0xf]
        %v527 = vld [vmem:[%s178 + $0x450] sm:$0xf]
        %v528 = vld [vmem:[%s178 + $0x454] sm:$0xf]
        %v529 = vld [vmem:[%s178 + $0x458] sm:$0xf]
        %v530 = vld [vmem:[%s178 + $0x45c] sm:$0xf]
        %v531 = vld [vmem:[%s178 + $0x460] sm:$0xf]
        %v532 = vld [vmem:[%s178 + $0x464] sm:$0xf]
        %v533 = vld [vmem:[%s178 + $0x468] sm:$0xf]
        %v534 = vld [vmem:[%s178 + $0x46c] sm:$0xf]
        %v535 = vld [vmem:[%s178 + $0x470] sm:$0xf]
        %v536 = vld [vmem:[%s178 + $0x474] sm:$0xf]
        %v537 = vld [vmem:[%s178 + $0x478] sm:$0xf]
        %v538 = vld [vmem:[%s178 + $0x47c] sm:$0xf]
        %v539 = vld [vmem:[%s178 + $0x480] sm:$0xf]
        %v540 = vld [vmem:[%s178 + $0x484] sm:$0xf]
        %v541 = vld [vmem:[%s178 + $0x488] sm:$0xf]
        %v542 = vld [vmem:[%s178 + $0x48c] sm:$0xf]
        %v543 = vld [vmem:[%s178 + $0x490] sm:$0xf]
        %v544 = vld [vmem:[%s178 + $0x494] sm:$0xf]
        %v545 = vld [vmem:[%s178 + $0x498] sm:$0xf]
        %v546 = vld [vmem:[%s178 + $0x49c] sm:$0xf]
        %v547 = vld [vmem:[%s178 + $0x4a0] sm:$0xf]
        %v548 = vld [vmem:[%s178 + $0x4a4] sm:$0xf]
        %v549 = vld [vmem:[%s178 + $0x4a8] sm:$0xf]
        %v550 = vld [vmem:[%s178 + $0x4ac] sm:$0xf]
        %v551 = vld [vmem:[%s178 + $0x4b0] sm:$0xf]
        %v552 = vld [vmem:[%s178 + $0x4b4] sm:$0xf]
        %v553 = vld [vmem:[%s178 + $0x4b8] sm:$0xf]
        %v554 = vld [vmem:[%s178 + $0x4bc] sm:$0xf]
        %v555 = vld [vmem:[%s178 + $0x4c0] sm:$0xf]
        %v556 = vld [vmem:[%s178 + $0x4c4] sm:$0xf]
        %v557 = vld [vmem:[%s178 + $0x4c8] sm:$0xf]
        %v558 = vld [vmem:[%s178 + $0x4cc] sm:$0xf]
        %v559 = vld [vmem:[%s178 + $0x4d0] sm:$0xf]
        %v560 = vld [vmem:[%s178 + $0x4d4] sm:$0xf]
        %v561 = vld [vmem:[%s178 + $0x4d8] sm:$0xf]
        %v562 = vld [vmem:[%s178 + $0x4dc] sm:$0xf]
        %v563 = vld [vmem:[%s178 + $0x4e0] sm:$0xf]
        %v564 = vld [vmem:[%s178 + $0x4e4] sm:$0xf]
        %v565 = vld [vmem:[%s178 + $0x4e8] sm:$0xf]
        %v566 = vld [vmem:[%s178 + $0x4ec] sm:$0xf]
        %v567 = vld [vmem:[%s178 + $0x4f0] sm:$0xf]
        %v568 = vld [vmem:[%s178 + $0x4f4] sm:$0xf]
        %v569 = vld [vmem:[%s178 + $0x4f8] sm:$0xf]
        %v570 = vld [vmem:[%s178 + $0x4fc] sm:$0xf]
        %v571 = vld [vmem:[%s178 + $0x500] sm:$0xf]
        %v572 = vld [vmem:[%s178 + $0x504] sm:$0xf]
        %v573 = vld [vmem:[%s178 + $0x508] sm:$0xf]
        %v574 = vld [vmem:[%s178 + $0x50c] sm:$0xf]
        %v575 = vld [vmem:[%s178 + $0x510] sm:$0xf]
        %v576 = vld [vmem:[%s178 + $0x514] sm:$0xf]
        %v577 = vld [vmem:[%s178 + $0x518] sm:$0xf]
        %v578 = vld [vmem:[%s178 + $0x51c] sm:$0xf]
        %v579 = vld [vmem:[%s178 + $0x520] sm:$0xf]
        %v580 = vld [vmem:[%s178 + $0x524] sm:$0xf]
        %v581 = vld [vmem:[%s178 + $0x528] sm:$0xf]
        %v582 = vld [vmem:[%s178 + $0x52c] sm:$0xf]
        %v583 = vld [vmem:[%s178 + $0x530] sm:$0xf]
        %v584 = vld [vmem:[%s178 + $0x534] sm:$0xf]
        %v585 = vld [vmem:[%s178 + $0x538] sm:$0xf]
        %v586 = vld [vmem:[%s178 + $0x53c] sm:$0xf]
        %v587 = vld [vmem:[%s178 + $0x540] sm:$0xf]
        %v588 = vld [vmem:[%s178 + $0x544] sm:$0xf]
        %v589 = vld [vmem:[%s178 + $0x548] sm:$0xf]
        %v590 = vld [vmem:[%s178 + $0x54c] sm:$0xf]
        %v591 = vld [vmem:[%s178 + $0x550] sm:$0xf]
        %v592 = vld [vmem:[%s178 + $0x554] sm:$0xf]
        %v593 = vld [vmem:[%s178 + $0x558] sm:$0xf]
        %v594 = vld [vmem:[%s178 + $0x55c] sm:$0xf]
        %v595 = vld [vmem:[%s178 + $0x560] sm:$0xf]
        %v596 = vld [vmem:[%s178 + $0x564] sm:$0xf]
        %v597 = vld [vmem:[%s178 + $0x568] sm:$0xf]
        %v598 = vld [vmem:[%s178 + $0x56c] sm:$0xf]
        %v599 = vld [vmem:[%s178 + $0x570] sm:$0xf]
        %v600 = vld [vmem:[%s178 + $0x574] sm:$0xf]
        %v601 = vld [vmem:[%s178 + $0x578] sm:$0xf]
        %v602 = vld [vmem:[%s178 + $0x57c] sm:$0xf]
        %v603 = vld [vmem:[%s178 + $0x580] sm:$0xf]
        %v604 = vld [vmem:[%s178 + $0x584] sm:$0xf]
        %v605 = vld [vmem:[%s178 + $0x588] sm:$0xf]
        %v606 = vld [vmem:[%s178 + $0x58c] sm:$0xf]
        %v607 = vld [vmem:[%s178 + $0x590] sm:$0xf]
        %v608 = vld [vmem:[%s178 + $0x594] sm:$0xf]
        %v609 = vld [vmem:[%s178 + $0x598] sm:$0xf]
        %v610 = vld [vmem:[%s178 + $0x59c] sm:$0xf]
        %v611 = vld [vmem:[%s178 + $0x5a0] sm:$0xf]
        %v612 = vld [vmem:[%s178 + $0x5a4] sm:$0xf]
        %v613 = vld [vmem:[%s178 + $0x5a8] sm:$0xf]
        %v614 = vld [vmem:[%s178 + $0x5ac] sm:$0xf]
        %v615 = vld [vmem:[%s178 + $0x5b0] sm:$0xf]
        %v616 = vld [vmem:[%s178 + $0x5b4] sm:$0xf]
        %v617 = vld [vmem:[%s178 + $0x5b8] sm:$0xf]
        %v618 = vld [vmem:[%s178 + $0x5bc] sm:$0xf]
        %v619 = vld [vmem:[%s178 + $0x5c0] sm:$0xf]
        %v620 = vld [vmem:[%s178 + $0x5c4] sm:$0xf]
        %v621 = vld [vmem:[%s178 + $0x5c8] sm:$0xf]
        %v622 = vld [vmem:[%s178 + $0x5cc] sm:$0xf]
        %v623 = vld [vmem:[%s178 + $0x5d0] sm:$0xf]
        %v624 = vld [vmem:[%s178 + $0x5d4] sm:$0xf]
        %v625 = vld [vmem:[%s178 + $0x5d8] sm:$0xf]
        %v626 = vld [vmem:[%s178 + $0x5dc] sm:$0xf]
        %v627 = vld [vmem:[%s178 + $0x5e0] sm:$0xf]
        %v628 = vld [vmem:[%s178 + $0x5e4] sm:$0xf]
        %v629 = vld [vmem:[%s178 + $0x5e8] sm:$0xf]
        %v630 = vld [vmem:[%s178 + $0x5ec] sm:$0xf]
        %v631 = vld [vmem:[%s178 + $0x5f0] sm:$0xf]
        %v632 = vld [vmem:[%s178 + $0x5f4] sm:$0xf]
        %v633 = vld [vmem:[%s178 + $0x5f8] sm:$0xf]
        %v634 = vld [vmem:[%s178 + $0x5fc] sm:$0xf]
        %v635 = vld [vmem:[%s178 + $0x600] sm:$0xf]
        %v636 = vld [vmem:[%s178 + $0x604] sm:$0xf]
        %v637 = vld [vmem:[%s178 + $0x608] sm:$0xf]
        %v638 = vld [vmem:[%s178 + $0x60c] sm:$0xf]
        %v639 = vld [vmem:[%s178 + $0x610] sm:$0xf]
        %v640 = vld [vmem:[%s178 + $0x614] sm:$0xf]
        %v641 = vld [vmem:[%s178 + $0x618] sm:$0xf]
        %v642 = vld [vmem:[%s178 + $0x61c] sm:$0xf]
        %v643 = vld [vmem:[%s178 + $0x620] sm:$0xf]
        %v644 = vld [vmem:[%s178 + $0x624] sm:$0xf]
        %v645 = vld [vmem:[%s178 + $0x628] sm:$0xf]
        %v646 = vld [vmem:[%s178 + $0x62c] sm:$0xf]
        %v647 = vld [vmem:[%s178 + $0x630] sm:$0xf]
        %v648 = vld [vmem:[%s178 + $0x634] sm:$0xf]
        %v649 = vld [vmem:[%s178 + $0x638] sm:$0xf]
        %v650 = vld [vmem:[%s178 + $0x63c] sm:$0xf]
        %v651 = vld [vmem:[%s178 + $0x640] sm:$0xf]
        %v652 = vld [vmem:[%s178 + $0x644] sm:$0xf]
        %v653 = vld [vmem:[%s178 + $0x648] sm:$0xf]
        %v654 = vld [vmem:[%s178 + $0x64c] sm:$0xf]
        %v655 = vld [vmem:[%s178 + $0x650] sm:$0xf]
        %v656 = vld [vmem:[%s178 + $0x654] sm:$0xf]
        %v657 = vld [vmem:[%s178 + $0x658] sm:$0xf]
        %v658 = vld [vmem:[%s178 + $0x65c] sm:$0xf]
        %v659 = vld [vmem:[%s178 + $0x660] sm:$0xf]
        %v660 = vld [vmem:[%s178 + $0x664] sm:$0xf]
        %v661 = vld [vmem:[%s178 + $0x668] sm:$0xf]
        %v662 = vld [vmem:[%s178 + $0x66c] sm:$0xf]
        %v663 = vld [vmem:[%s178 + $0x670] sm:$0xf]
        %v664 = vld [vmem:[%s178 + $0x674] sm:$0xf]
        %v665 = vld [vmem:[%s178 + $0x678] sm:$0xf]
        %v666 = vld [vmem:[%s178 + $0x67c] sm:$0xf]
        %v667 = vld [vmem:[%s178 + $0x680] sm:$0xf]
        %v668 = vld [vmem:[%s178 + $0x684] sm:$0xf]
        %v669 = vld [vmem:[%s178 + $0x688] sm:$0xf]
        %v670 = vld [vmem:[%s178 + $0x68c] sm:$0xf]
        %v671 = vld [vmem:[%s178 + $0x690] sm:$0xf]
        %v672 = vld [vmem:[%s178 + $0x694] sm:$0xf]
        %v673 = vld [vmem:[%s178 + $0x698] sm:$0xf]
        %v674 = vld [vmem:[%s178 + $0x69c] sm:$0xf]
        %v675 = vld [vmem:[%s178 + $0x6a0] sm:$0xf]
        %v676 = vld [vmem:[%s178 + $0x6a4] sm:$0xf]
        %v677 = vld [vmem:[%s178 + $0x6a8] sm:$0xf]
        %v678 = vld [vmem:[%s178 + $0x6ac] sm:$0xf]
        %v679 = vld [vmem:[%s178 + $0x6b0] sm:$0xf]
        %v680 = vld [vmem:[%s178 + $0x6b4] sm:$0xf]
        %v681 = vld [vmem:[%s178 + $0x6b8] sm:$0xf]
        %v682 = vld [vmem:[%s178 + $0x6bc] sm:$0xf]
        %v683 = vld [vmem:[%s178 + $0x6c0] sm:$0xf]
        %v684 = vld [vmem:[%s178 + $0x6c4] sm:$0xf]
        %v685 = vld [vmem:[%s178 + $0x6c8] sm:$0xf]
        %v686 = vld [vmem:[%s178 + $0x6cc] sm:$0xf]
        %v687 = vld [vmem:[%s178 + $0x6d0] sm:$0xf]
        %v688 = vld [vmem:[%s178 + $0x6d4] sm:$0xf]
        %v689 = vld [vmem:[%s178 + $0x6d8] sm:$0xf]
        %v690 = vld [vmem:[%s178 + $0x6dc] sm:$0xf]
        %v691 = vld [vmem:[%s178 + $0x6e0] sm:$0xf]
        %v692 = vld [vmem:[%s178 + $0x6e4] sm:$0xf]
        %v693 = vld [vmem:[%s178 + $0x6e8] sm:$0xf]
        %v694 = vld [vmem:[%s178 + $0x6ec] sm:$0xf]
        %v695 = vld [vmem:[%s178 + $0x6f0] sm:$0xf]
        %v696 = vld [vmem:[%s178 + $0x6f4] sm:$0xf]
        %v697 = vld [vmem:[%s178 + $0x6f8] sm:$0xf]
        %v698 = vld [vmem:[%s178 + $0x6fc] sm:$0xf]
        %v699 = vld [vmem:[%s178 + $0x700] sm:$0xf]
        %v700 = vld [vmem:[%s178 + $0x704] sm:$0xf]
        %v701 = vld [vmem:[%s178 + $0x708] sm:$0xf]
        %v702 = vld [vmem:[%s178 + $0x70c] sm:$0xf]
        %v703 = vld [vmem:[%s178 + $0x710] sm:$0xf]
        %v704 = vld [vmem:[%s178 + $0x714] sm:$0xf]
        %v705 = vld [vmem:[%s178 + $0x718] sm:$0xf]
        %v706 = vld [vmem:[%s178 + $0x71c] sm:$0xf]
        %v707 = vld [vmem:[%s178 + $0x720] sm:$0xf]
        %v708 = vld [vmem:[%s178 + $0x724] sm:$0xf]
        %v709 = vld [vmem:[%s178 + $0x728] sm:$0xf]
        %v710 = vld [vmem:[%s178 + $0x72c] sm:$0xf]
        %v711 = vld [vmem:[%s178 + $0x730] sm:$0xf]
        %v712 = vld [vmem:[%s178 + $0x734] sm:$0xf]
        %v713 = vld [vmem:[%s178 + $0x738] sm:$0xf]
        %v714 = vld [vmem:[%s178 + $0x73c] sm:$0xf]
        %v715 = vld [vmem:[%s178 + $0x740] sm:$0xf]
        %v716 = vld [vmem:[%s178 + $0x744] sm:$0xf]
        %v717 = vld [vmem:[%s178 + $0x748] sm:$0xf]
        %v718 = vld [vmem:[%s178 + $0x74c] sm:$0xf]
        %v719 = vld [vmem:[%s178 + $0x750] sm:$0xf]
        %v720 = vld [vmem:[%s178 + $0x754] sm:$0xf]
        %v721 = vld [vmem:[%s178 + $0x758] sm:$0xf]
        %v722 = vld [vmem:[%s178 + $0x75c] sm:$0xf]
        %v723 = vld [vmem:[%s178 + $0x760] sm:$0xf]
        %v724 = vld [vmem:[%s178 + $0x764] sm:$0xf]
        %v725 = vld [vmem:[%s178 + $0x768] sm:$0xf]
        %v726 = vld [vmem:[%s178 + $0x76c] sm:$0xf]
        %v727 = vld [vmem:[%s178 + $0x770] sm:$0xf]
        %v728 = vld [vmem:[%s178 + $0x774] sm:$0xf]
        %v729 = vld [vmem:[%s178 + $0x778] sm:$0xf]
        %v730 = vld [vmem:[%s178 + $0x77c] sm:$0xf]
        %v731 = vld [vmem:[%s178 + $0x780] sm:$0xf]
        %v732 = vld [vmem:[%s178 + $0x784] sm:$0xf]
        %v733 = vld [vmem:[%s178 + $0x788] sm:$0xf]
        %v734 = vld [vmem:[%s178 + $0x78c] sm:$0xf]
        %v735 = vld [vmem:[%s178 + $0x790] sm:$0xf]
        %v736 = vld [vmem:[%s178 + $0x794] sm:$0xf]
        %v737 = vld [vmem:[%s178 + $0x798] sm:$0xf]
        %v738 = vld [vmem:[%s178 + $0x79c] sm:$0xf]
        %v739 = vld [vmem:[%s178 + $0x7a0] sm:$0xf]
        %v740 = vld [vmem:[%s178 + $0x7a4] sm:$0xf]
        %v741 = vld [vmem:[%s178 + $0x7a8] sm:$0xf]
        %v742 = vld [vmem:[%s178 + $0x7ac] sm:$0xf]
        %v743 = vld [vmem:[%s178 + $0x7b0] sm:$0xf]
        %v744 = vld [vmem:[%s178 + $0x7b4] sm:$0xf]
        %v745 = vld [vmem:[%s178 + $0x7b8] sm:$0xf]
        %v746 = vld [vmem:[%s178 + $0x7bc] sm:$0xf]
        %v747 = vld [vmem:[%s178 + $0x7c0] sm:$0xf]
        %v748 = vld [vmem:[%s178 + $0x7c4] sm:$0xf]
        %v749 = vld [vmem:[%s178 + $0x7c8] sm:$0xf]
        %v750 = vld [vmem:[%s178 + $0x7cc] sm:$0xf]
        %v751 = vld [vmem:[%s178 + $0x7d0] sm:$0xf]
        %v752 = vld [vmem:[%s178 + $0x7d4] sm:$0xf]
        %v753 = vld [vmem:[%s178 + $0x7d8] sm:$0xf]
        %v754 = vld [vmem:[%s178 + $0x7dc] sm:$0xf]
        %v755 = vld [vmem:[%s178 + $0x7e0] sm:$0xf]
        %v756 = vld [vmem:[%s178 + $0x7e4] sm:$0xf]
        %v757 = vld [vmem:[%s178 + $0x7e8] sm:$0xf]
        %v758 = vld [vmem:[%s178 + $0x7ec] sm:$0xf]
        %v759 = vld [vmem:[%s178 + $0x7f0] sm:$0xf]
        %v760 = vld [vmem:[%s178 + $0x7f4] sm:$0xf]
        %v761 = vld [vmem:[%s178 + $0x7f8] sm:$0xf]
        %v762 = vld [vmem:[%s178 + $0x7fc] sm:$0xf]
        %v763 = vld [vmem:[%s178 + $0x800] sm:$0xf]
        %v764 = vld [vmem:[%s178 + $0x804] sm:$0xf]
        %v765 = vld [vmem:[%s178 + $0x808] sm:$0xf]
        %v766 = vld [vmem:[%s178 + $0x80c] sm:$0xf]
        %v767 = vld [vmem:[%s178 + $0x810] sm:$0xf]
        %v768 = vld [vmem:[%s178 + $0x814] sm:$0xf]
        %v769 = vld [vmem:[%s178 + $0x818] sm:$0xf]
        %v770 = vld [vmem:[%s178 + $0x81c] sm:$0xf]
        %v771 = vld [vmem:[%s178 + $0x820] sm:$0xf]
        %v772 = vld [vmem:[%s178 + $0x824] sm:$0xf]
        %v773 = vld [vmem:[%s178 + $0x828] sm:$0xf]
        %v774 = vld [vmem:[%s178 + $0x82c] sm:$0xf]
        %v775 = vld [vmem:[%s178 + $0x830] sm:$0xf]
        %v776 = vld [vmem:[%s178 + $0x834] sm:$0xf]
        %v777 = vld [vmem:[%s178 + $0x838] sm:$0xf]
        %v778 = vld [vmem:[%s178 + $0x83c] sm:$0xf]
        %v779 = vld [vmem:[%s178 + $0x840] sm:$0xf]
        %v780 = vld [vmem:[%s178 + $0x844] sm:$0xf]
        %v781 = vld [vmem:[%s178 + $0x848] sm:$0xf]
        %v782 = vld [vmem:[%s178 + $0x84c] sm:$0xf]
        %v783 = vld [vmem:[%s178 + $0x850] sm:$0xf]
        %v784 = vld [vmem:[%s178 + $0x854] sm:$0xf]
        %v785 = vld [vmem:[%s178 + $0x858] sm:$0xf]
        %v786 = vld [vmem:[%s178 + $0x85c] sm:$0xf]
        %v787 = vld [vmem:[%s178 + $0x860] sm:$0xf]
        %v788 = vld [vmem:[%s178 + $0x864] sm:$0xf]
        %v789 = vld [vmem:[%s178 + $0x868] sm:$0xf]
        %v790 = vld [vmem:[%s178 + $0x86c] sm:$0xf]
        %v791 = vld [vmem:[%s178 + $0x870] sm:$0xf]
        %v792 = vld [vmem:[%s178 + $0x874] sm:$0xf]
        %v793 = vld [vmem:[%s178 + $0x878] sm:$0xf]
        %v794 = vld [vmem:[%s178 + $0x87c] sm:$0xf]
        %v795 = vld [vmem:[%s178 + $0x880] sm:$0xf]
        %v796 = vld [vmem:[%s178 + $0x884] sm:$0xf]
        %v797 = vld [vmem:[%s178 + $0x888] sm:$0xf]
        %v798 = vld [vmem:[%s178 + $0x88c] sm:$0xf]
        %v799 = vld [vmem:[%s178 + $0x890] sm:$0xf]
        %v800 = vld [vmem:[%s178 + $0x894] sm:$0xf]
        %v801 = vld [vmem:[%s178 + $0x898] sm:$0xf]
        %v802 = vld [vmem:[%s178 + $0x89c] sm:$0xf]
        %v803 = vld [vmem:[%s178 + $0x8a0] sm:$0xf]
        %v804 = vld [vmem:[%s178 + $0x8a4] sm:$0xf]
        %v805 = vld [vmem:[%s178 + $0x8a8] sm:$0xf]
        %v806 = vld [vmem:[%s178 + $0x8ac] sm:$0xf]
        %v807 = vld [vmem:[%s178 + $0x8b0] sm:$0xf]
        %v808 = vld [vmem:[%s178 + $0x8b4] sm:$0xf]
        %v809 = vld [vmem:[%s178 + $0x8b8] sm:$0xf]
        %v810 = vld [vmem:[%s178 + $0x8bc] sm:$0xf]
        %v811 = vld [vmem:[%s178 + $0x8c0] sm:$0xf]
        %v812 = vld [vmem:[%s178 + $0x8c4] sm:$0xf]
        %v813 = vld [vmem:[%s178 + $0x8c8] sm:$0xf]
        %v814 = vld [vmem:[%s178 + $0x8cc] sm:$0xf]
        %v815 = vld [vmem:[%s178 + $0x8d0] sm:$0xf]
        %v816 = vld [vmem:[%s178 + $0x8d4] sm:$0xf]
        %v817 = vld [vmem:[%s178 + $0x8d8] sm:$0xf]
        %v818 = vld [vmem:[%s178 + $0x8dc] sm:$0xf]
        %v819 = vld [vmem:[%s178 + $0x8e0] sm:$0xf]
        %v820 = vld [vmem:[%s178 + $0x8e4] sm:$0xf]
        %v821 = vld [vmem:[%s178 + $0x8e8] sm:$0xf]
        %v822 = vld [vmem:[%s178 + $0x8ec] sm:$0xf]
        %v823 = vld [vmem:[%s178 + $0x8f0] sm:$0xf]
        %v824 = vld [vmem:[%s178 + $0x8f4] sm:$0xf]
        %v825 = vld [vmem:[%s178 + $0x8f8] sm:$0xf]
        %v826 = vld [vmem:[%s178 + $0x8fc] sm:$0xf]
        %v827 = vld [vmem:[%s178 + $0x900] sm:$0xf]
        %v828 = vld [vmem:[%s178 + $0x904] sm:$0xf]
        %v829 = vld [vmem:[%s178 + $0x908] sm:$0xf]
        %v830 = vld [vmem:[%s178 + $0x90c] sm:$0xf]
        %v831 = vld [vmem:[%s178 + $0x910] sm:$0xf]
        %v832 = vld [vmem:[%s178 + $0x914] sm:$0xf]
        %v833 = vld [vmem:[%s178 + $0x918] sm:$0xf]
        %v834 = vld [vmem:[%s178 + $0x91c] sm:$0xf]
        %v835 = vld [vmem:[%s178 + $0x920] sm:$0xf]
        %v836 = vld [vmem:[%s178 + $0x924] sm:$0xf]
        %v837 = vld [vmem:[%s178 + $0x928] sm:$0xf]
        %v838 = vld [vmem:[%s178 + $0x92c] sm:$0xf]
        %v839 = vld [vmem:[%s178 + $0x930] sm:$0xf]
        %v840 = vld [vmem:[%s178 + $0x934] sm:$0xf]
        %v841 = vld [vmem:[%s178 + $0x938] sm:$0xf]
        %v842 = vld [vmem:[%s178 + $0x93c] sm:$0xf]
        %v843 = vld [vmem:[%s178 + $0x940] sm:$0xf]
        %v844 = vld [vmem:[%s178 + $0x944] sm:$0xf]
        %v845 = vld [vmem:[%s178 + $0x948] sm:$0xf]
        %v846 = vld [vmem:[%s178 + $0x94c] sm:$0xf]
        %v847 = vld [vmem:[%s178 + $0x950] sm:$0xf]
        %v848 = vld [vmem:[%s178 + $0x954] sm:$0xf]
        %v849 = vld [vmem:[%s178 + $0x958] sm:$0xf]
        %v850 = vld [vmem:[%s178 + $0x95c] sm:$0xf]
        %v851 = vld [vmem:[%s178 + $0x960] sm:$0xf]
        %v852 = vld [vmem:[%s178 + $0x964] sm:$0xf]
        %v853 = vld [vmem:[%s178 + $0x968] sm:$0xf]
        %v854 = vld [vmem:[%s178 + $0x96c] sm:$0xf]
        %v855 = vld [vmem:[%s178 + $0x970] sm:$0xf]
        %v856 = vld [vmem:[%s178 + $0x974] sm:$0xf]
        %v857 = vld [vmem:[%s178 + $0x978] sm:$0xf]
        %v858 = vld [vmem:[%s178 + $0x97c] sm:$0xf]
        %v859 = vld [vmem:[%s178 + $0x980] sm:$0xf]
        %v860 = vld [vmem:[%s178 + $0x984] sm:$0xf]
        %v861 = vld [vmem:[%s178 + $0x988] sm:$0xf]
        %v862 = vld [vmem:[%s178 + $0x98c] sm:$0xf]
        %v863 = vld [vmem:[%s178 + $0x990] sm:$0xf]
        %v864 = vld [vmem:[%s178 + $0x994] sm:$0xf]
        %v865 = vld [vmem:[%s178 + $0x998] sm:$0xf]
        %v866 = vld [vmem:[%s178 + $0x99c] sm:$0xf]
        %v867 = vld [vmem:[%s178 + $0x9a0] sm:$0xf]
        %v868 = vld [vmem:[%s178 + $0x9a4] sm:$0xf]
        %v869 = vld [vmem:[%s178 + $0x9a8] sm:$0xf]
        %v870 = vld [vmem:[%s178 + $0x9ac] sm:$0xf]
        %v871 = vld [vmem:[%s178 + $0x9b0] sm:$0xf]
        %v872 = vld [vmem:[%s178 + $0x9b4] sm:$0xf]
        %v873 = vld [vmem:[%s178 + $0x9b8] sm:$0xf]
        %v874 = vld [vmem:[%s178 + $0x9bc] sm:$0xf]
        %v875 = vld [vmem:[%s178 + $0x9c0] sm:$0xf]
        %v876 = vld [vmem:[%s178 + $0x9c4] sm:$0xf]
        %v877 = vld [vmem:[%s178 + $0x9c8] sm:$0xf]
        %v878 = vld [vmem:[%s178 + $0x9cc] sm:$0xf]
        %v879 = vld [vmem:[%s178 + $0x9d0] sm:$0xf]
        %v880 = vld [vmem:[%s178 + $0x9d4] sm:$0xf]
        %v881 = vld [vmem:[%s178 + $0x9d8] sm:$0xf]
        %v882 = vld [vmem:[%s178 + $0x9dc] sm:$0xf]
        %v883 = vld [vmem:[%s178 + $0x9e0] sm:$0xf]
        %v884 = vld [vmem:[%s178 + $0x9e4] sm:$0xf]
        %v885 = vld [vmem:[%s178 + $0x9e8] sm:$0xf]
        %v886 = vld [vmem:[%s178 + $0x9ec] sm:$0xf]
        %v887 = vld [vmem:[%s178 + $0x9f0] sm:$0xf]
        %v888 = vld [vmem:[%s178 + $0x9f4] sm:$0xf]
        %v889 = vld [vmem:[%s178 + $0x9f8] sm:$0xf]
        %v890 = vld [vmem:[%s178 + $0x9fc] sm:$0xf]
        %v891 = vld [vmem:[%s178 + $0xa00] sm:$0xf]
        %v892 = vld [vmem:[%s178 + $0xa04] sm:$0xf]
        %v893 = vld [vmem:[%s178 + $0xa08] sm:$0xf]
        %v894 = vld [vmem:[%s178 + $0xa0c] sm:$0xf]
        %v895 = vld [vmem:[%s178 + $0xa10] sm:$0xf]
        %v896 = vld [vmem:[%s178 + $0xa14] sm:$0xf]
        %v897 = vld [vmem:[%s178 + $0xa18] sm:$0xf]
        %v898 = vld [vmem:[%s178 + $0xa1c] sm:$0xf]
        %v899 = vld [vmem:[%s178 + $0xa20] sm:$0xf]
        %v900 = vld [vmem:[%s178 + $0xa24] sm:$0xf]
        %v901 = vld [vmem:[%s178 + $0xa28] sm:$0xf]
        %v902 = vld [vmem:[%s178 + $0xa2c] sm:$0xf]
        %v903 = vld [vmem:[%s178 + $0xa30] sm:$0xf]
        %v904 = vld [vmem:[%s178 + $0xa34] sm:$0xf]
        %v905 = vld [vmem:[%s178 + $0xa38] sm:$0xf]
        %v906 = vld [vmem:[%s178 + $0xa3c] sm:$0xf]
        %v907 = vld [vmem:[%s178 + $0xa40] sm:$0xf]
        %v908 = vld [vmem:[%s178 + $0xa44] sm:$0xf]
        %v909 = vld [vmem:[%s178 + $0xa48] sm:$0xf]
        %v910 = vld [vmem:[%s178 + $0xa4c] sm:$0xf]
        %v911 = vld [vmem:[%s178 + $0xa50] sm:$0xf]
        %v912 = vld [vmem:[%s178 + $0xa54] sm:$0xf]
        %v913 = vld [vmem:[%s178 + $0xa58] sm:$0xf]
        %v914 = vld [vmem:[%s178 + $0xa5c] sm:$0xf]
        %v915 = vld [vmem:[%s178 + $0xa60] sm:$0xf]
        %v916 = vld [vmem:[%s178 + $0xa64] sm:$0xf]
        %v917 = vld [vmem:[%s178 + $0xa68] sm:$0xf]
        %v918 = vld [vmem:[%s178 + $0xa6c] sm:$0xf]
        %v919 = vld [vmem:[%s178 + $0xa70] sm:$0xf]
        %v920 = vld [vmem:[%s178 + $0xa74] sm:$0xf]
        %v921 = vld [vmem:[%s178 + $0xa78] sm:$0xf]
        %v922 = vld [vmem:[%s178 + $0xa7c] sm:$0xf]
        %v923 = vld [vmem:[%s178 + $0xa80] sm:$0xf]
        %v924 = vld [vmem:[%s178 + $0xa84] sm:$0xf]
        %v925 = vld [vmem:[%s178 + $0xa88] sm:$0xf]
        %v926 = vld [vmem:[%s178 + $0xa8c] sm:$0xf]
        %v927 = vld [vmem:[%s178 + $0xa90] sm:$0xf]
        %v928 = vld [vmem:[%s178 + $0xa94] sm:$0xf]
        %v929 = vld [vmem:[%s178 + $0xa98] sm:$0xf]
        %v930 = vld [vmem:[%s178 + $0xa9c] sm:$0xf]
        %v931 = vld [vmem:[%s178 + $0xaa0] sm:$0xf]
        %v932 = vld [vmem:[%s178 + $0xaa4] sm:$0xf]
        %v933 = vld [vmem:[%s178 + $0xaa8] sm:$0xf]
        %v934 = vld [vmem:[%s178 + $0xaac] sm:$0xf]
        %v935 = vld [vmem:[%s178 + $0xab0] sm:$0xf]
        %v936 = vld [vmem:[%s178 + $0xab4] sm:$0xf]
        %v937 = vld [vmem:[%s178 + $0xab8] sm:$0xf]
        %v938 = vld [vmem:[%s178 + $0xabc] sm:$0xf]
        %v939 = vld [vmem:[%s178 + $0xac0] sm:$0xf]
        %v940 = vld [vmem:[%s178 + $0xac4] sm:$0xf]
        %v941 = vld [vmem:[%s178 + $0xac8] sm:$0xf]
        %v942 = vld [vmem:[%s178 + $0xacc] sm:$0xf]
        %v943 = vld [vmem:[%s178 + $0xad0] sm:$0xf]
        %v944 = vld [vmem:[%s178 + $0xad4] sm:$0xf]
        %v945 = vld [vmem:[%s178 + $0xad8] sm:$0xf]
        %v946 = vld [vmem:[%s178 + $0xadc] sm:$0xf]
        %v947 = vld [vmem:[%s178 + $0xae0] sm:$0xf]
        %v948 = vld [vmem:[%s178 + $0xae4] sm:$0xf]
        %v949 = vld [vmem:[%s178 + $0xae8] sm:$0xf]
        %v950 = vld [vmem:[%s178 + $0xaec] sm:$0xf]
        %v951 = vld [vmem:[%s178 + $0xaf0] sm:$0xf]
        %v952 = vld [vmem:[%s178 + $0xaf4] sm:$0xf]
        %v953 = vld [vmem:[%s178 + $0xaf8] sm:$0xf]
        %v954 = vld [vmem:[%s178 + $0xafc] sm:$0xf]
        %v955 = vld [vmem:[%s178 + $0xb00] sm:$0xf]
        %v956 = vld [vmem:[%s178 + $0xb04] sm:$0xf]
        %v957 = vld [vmem:[%s178 + $0xb08] sm:$0xf]
        %v958 = vld [vmem:[%s178 + $0xb0c] sm:$0xf]
        %v959 = vld [vmem:[%s178 + $0xb10] sm:$0xf]
        %v960 = vld [vmem:[%s178 + $0xb14] sm:$0xf]
        %v961 = vld [vmem:[%s178 + $0xb18] sm:$0xf]
        %v962 = vld [vmem:[%s178 + $0xb1c] sm:$0xf]
        %v963 = vld [vmem:[%s178 + $0xb20] sm:$0xf]
        %v964 = vld [vmem:[%s178 + $0xb24] sm:$0xf]
        %v965 = vld [vmem:[%s178 + $0xb28] sm:$0xf]
        %v966 = vld [vmem:[%s178 + $0xb2c] sm:$0xf]
        %v967 = vld [vmem:[%s178 + $0xb30] sm:$0xf]
        %v968 = vld [vmem:[%s178 + $0xb34] sm:$0xf]
        %v969 = vld [vmem:[%s178 + $0xb38] sm:$0xf]
        %v970 = vld [vmem:[%s178 + $0xb3c] sm:$0xf]
        %v971 = vld [vmem:[%s178 + $0xb40] sm:$0xf]
        %v972 = vld [vmem:[%s178 + $0xb44] sm:$0xf]
        %v973 = vld [vmem:[%s178 + $0xb48] sm:$0xf]
        %v974 = vld [vmem:[%s178 + $0xb4c] sm:$0xf]
        %v975 = vld [vmem:[%s178 + $0xb50] sm:$0xf]
        %v976 = vld [vmem:[%s178 + $0xb54] sm:$0xf]
        %v977 = vld [vmem:[%s178 + $0xb58] sm:$0xf]
        %v978 = vld [vmem:[%s178 + $0xb5c] sm:$0xf]
        %v979 = vld [vmem:[%s178 + $0xb60] sm:$0xf]
        %v980 = vld [vmem:[%s178 + $0xb64] sm:$0xf]
        %v981 = vld [vmem:[%s178 + $0xb68] sm:$0xf]
        %v982 = vld [vmem:[%s178 + $0xb6c] sm:$0xf]
        %v983 = vld [vmem:[%s178 + $0xb70] sm:$0xf]
        %v984 = vld [vmem:[%s178 + $0xb74] sm:$0xf]
        %v985 = vld [vmem:[%s178 + $0xb78] sm:$0xf]
        %v986 = vld [vmem:[%s178 + $0xb7c] sm:$0xf]
        %v987 = vld [vmem:[%s178 + $0xb80] sm:$0xf]
        %v988 = vld [vmem:[%s178 + $0xb84] sm:$0xf]
        %v989 = vld [vmem:[%s178 + $0xb88] sm:$0xf]
        %v990 = vld [vmem:[%s178 + $0xb8c] sm:$0xf]
        %v991 = vld [vmem:[%s178 + $0xb90] sm:$0xf]
        %v992 = vld [vmem:[%s178 + $0xb94] sm:$0xf]
        %v993 = vld [vmem:[%s178 + $0xb98] sm:$0xf]
        %v994 = vld [vmem:[%s178 + $0xb9c] sm:$0xf]
        %v995 = vld [vmem:[%s178 + $0xba0] sm:$0xf]
        %v996 = vld [vmem:[%s178 + $0xba4] sm:$0xf]
        %v997 = vld [vmem:[%s178 + $0xba8] sm:$0xf]
        %v998 = vld [vmem:[%s178 + $0xbac] sm:$0xf]
        %v999 = vld [vmem:[%s178 + $0xbb0] sm:$0xf]
        %v1000 = vld [vmem:[%s178 + $0xbb4] sm:$0xf]
        %v1001 = vld [vmem:[%s178 + $0xbb8] sm:$0xf]
        %v1002 = vld [vmem:[%s178 + $0xbbc] sm:$0xf]
        %v1003 = vld [vmem:[%s178 + $0xbc0] sm:$0xf]
        %v1004 = vld [vmem:[%s178 + $0xbc4] sm:$0xf]
        %v1005 = vld [vmem:[%s178 + $0xbc8] sm:$0xf]
        %v1006 = vld [vmem:[%s178 + $0xbcc] sm:$0xf]
        %v1007 = vld [vmem:[%s178 + $0xbd0] sm:$0xf]
        %v1008 = vld [vmem:[%s178 + $0xbd4] sm:$0xf]
        %v1009 = vld [vmem:[%s178 + $0xbd8] sm:$0xf]
        %v1010 = vld [vmem:[%s178 + $0xbdc] sm:$0xf]
        %v1011 = vld [vmem:[%s178 + $0xbe0] sm:$0xf]
        %v1012 = vld [vmem:[%s178 + $0xbe4] sm:$0xf]
        %v1013 = vld [vmem:[%s178 + $0xbe8] sm:$0xf]
        %v1014 = vld [vmem:[%s178 + $0xbec] sm:$0xf]
        %v1015 = vld [vmem:[%s178 + $0xbf0] sm:$0xf]
        %v1016 = vld [vmem:[%s178 + $0xbf4] sm:$0xf]
        %v1017 = vld [vmem:[%s178 + $0xbf8] sm:$0xf]
        %v1018 = vld [vmem:[%s178 + $0xbfc] sm:$0xf]
        %v1019 = vld [vmem:[%s178 + $0xc00] sm:$0xf]
        %v1020 = vld [vmem:[%s178 + $0xc04] sm:$0xf]
        %v1021 = vld [vmem:[%s178 + $0xc08] sm:$0xf]
        %v1022 = vld [vmem:[%s178 + $0xc0c] sm:$0xf]
        %v1023 = vld [vmem:[%s178 + $0xc10] sm:$0xf]
        %v1024 = vld [vmem:[%s178 + $0xc14] sm:$0xf]
        %v1025 = vld [vmem:[%s178 + $0xc18] sm:$0xf]
        %v1026 = vld [vmem:[%s178 + $0xc1c] sm:$0xf]
        %v1027 = vld [vmem:[%s178 + $0xc20] sm:$0xf]
        %v1028 = vld [vmem:[%s178 + $0xc24] sm:$0xf]
        %v1029 = vld [vmem:[%s178 + $0xc28] sm:$0xf]
        %v1030 = vld [vmem:[%s178 + $0xc2c] sm:$0xf]
        %v1031 = vld [vmem:[%s178 + $0xc30] sm:$0xf]
        %v1032 = vld [vmem:[%s178 + $0xc34] sm:$0xf]
        %v1033 = vld [vmem:[%s178 + $0xc38] sm:$0xf]
        %v1034 = vld [vmem:[%s178 + $0xc3c] sm:$0xf]
        %v1035 = vld [vmem:[%s178 + $0xc40] sm:$0xf]
        %v1036 = vld [vmem:[%s178 + $0xc44] sm:$0xf]
        %v1037 = vld [vmem:[%s178 + $0xc48] sm:$0xf]
        %v1038 = vld [vmem:[%s178 + $0xc4c] sm:$0xf]
        %v1039 = vld [vmem:[%s178 + $0xc50] sm:$0xf]
        %v1040 = vld [vmem:[%s178 + $0xc54] sm:$0xf]
        %v1041 = vld [vmem:[%s178 + $0xc58] sm:$0xf]
        %v1042 = vld [vmem:[%s178 + $0xc5c] sm:$0xf]
        %v1043 = vld [vmem:[%s178 + $0xc60] sm:$0xf]
        %v1044 = vld [vmem:[%s178 + $0xc64] sm:$0xf]
        %v1045 = vld [vmem:[%s178 + $0xc68] sm:$0xf]
        %v1046 = vld [vmem:[%s178 + $0xc6c] sm:$0xf]
        %v1047 = vld [vmem:[%s178 + $0xc70] sm:$0xf]
        %v1048 = vld [vmem:[%s178 + $0xc74] sm:$0xf]
        %v1049 = vld [vmem:[%s178 + $0xc78] sm:$0xf]
        %v1050 = vld [vmem:[%s178 + $0xc7c] sm:$0xf]
        %v1051 = vld [vmem:[%s178 + $0xc80] sm:$0xf]
        %v1052 = vld [vmem:[%s178 + $0xc84] sm:$0xf]
        %v1053 = vld [vmem:[%s178 + $0xc88] sm:$0xf]
        %v1054 = vld [vmem:[%s178 + $0xc8c] sm:$0xf]
        %v1055 = vld [vmem:[%s178 + $0xc90] sm:$0xf]
        %v1056 = vld [vmem:[%s178 + $0xc94] sm:$0xf]
        %v1057 = vld [vmem:[%s178 + $0xc98] sm:$0xf]
        %v1058 = vld [vmem:[%s178 + $0xc9c] sm:$0xf]
        %v1059 = vld [vmem:[%s178 + $0xca0] sm:$0xf]
        %v1060 = vld [vmem:[%s178 + $0xca4] sm:$0xf]
        %v1061 = vld [vmem:[%s178 + $0xca8] sm:$0xf]
        %v1062 = vld [vmem:[%s178 + $0xcac] sm:$0xf]
        %v1063 = vld [vmem:[%s178 + $0xcb0] sm:$0xf]
        %v1064 = vld [vmem:[%s178 + $0xcb4] sm:$0xf]
        %v1065 = vld [vmem:[%s178 + $0xcb8] sm:$0xf]
        %v1066 = vld [vmem:[%s178 + $0xcbc] sm:$0xf]
        %v1067 = vld [vmem:[%s178 + $0xcc0] sm:$0xf]
        %v1068 = vld [vmem:[%s178 + $0xcc4] sm:$0xf]
        %v1069 = vld [vmem:[%s178 + $0xcc8] sm:$0xf]
        %v1070 = vld [vmem:[%s178 + $0xccc] sm:$0xf]
        %v1071 = vld [vmem:[%s178 + $0xcd0] sm:$0xf]
        %v1072 = vld [vmem:[%s178 + $0xcd4] sm:$0xf]
        %v1073 = vld [vmem:[%s178 + $0xcd8] sm:$0xf]
        %v1074 = vld [vmem:[%s178 + $0xcdc] sm:$0xf]
        %v1075 = vld [vmem:[%s178 + $0xce0] sm:$0xf]
        %v1076 = vld [vmem:[%s178 + $0xce4] sm:$0xf]
        %v1077 = vld [vmem:[%s178 + $0xce8] sm:$0xf]
        %v1078 = vld [vmem:[%s178 + $0xcec] sm:$0xf]
        %v1079 = vld [vmem:[%s178 + $0xcf0] sm:$0xf]
        %v1080 = vld [vmem:[%s178 + $0xcf4] sm:$0xf]
        %v1081 = vld [vmem:[%s178 + $0xcf8] sm:$0xf]
        %v1082 = vld [vmem:[%s178 + $0xcfc] sm:$0xf]
        %v1083 = vld [vmem:[%s178 + $0xd00] sm:$0xf]
        %v1084 = vld [vmem:[%s178 + $0xd04] sm:$0xf]
        %v1085 = vld [vmem:[%s178 + $0xd08] sm:$0xf]
        %v1086 = vld [vmem:[%s178 + $0xd0c] sm:$0xf]
        %v1087 = vld [vmem:[%s178 + $0xd10] sm:$0xf]
        %v1088 = vld [vmem:[%s178 + $0xd14] sm:$0xf]
        %v1089 = vld [vmem:[%s178 + $0xd18] sm:$0xf]
        %v1090 = vld [vmem:[%s178 + $0xd1c] sm:$0xf]
        %v1091 = vld [vmem:[%s178 + $0xd20] sm:$0xf]
        %v1092 = vld [vmem:[%s178 + $0xd24] sm:$0xf]
        %v1093 = vld [vmem:[%s178 + $0xd28] sm:$0xf]
        %v1094 = vld [vmem:[%s178 + $0xd2c] sm:$0xf]
        %v1095 = vld [vmem:[%s178 + $0xd30] sm:$0xf]
        %v1096 = vld [vmem:[%s178 + $0xd34] sm:$0xf]
        %v1097 = vld [vmem:[%s178 + $0xd38] sm:$0xf]
        %v1098 = vld [vmem:[%s178 + $0xd3c] sm:$0xf]
        %v1099 = vld [vmem:[%s178 + $0xd40] sm:$0xf]
        %v1100 = vld [vmem:[%s178 + $0xd44] sm:$0xf]
        %v1101 = vld [vmem:[%s178 + $0xd48] sm:$0xf]
        %v1102 = vld [vmem:[%s178 + $0xd4c] sm:$0xf]
        %v1103 = vld [vmem:[%s178 + $0xd50] sm:$0xf]
        %v1104 = vld [vmem:[%s178 + $0xd54] sm:$0xf]
        %v1105 = vld [vmem:[%s178 + $0xd58] sm:$0xf]
        %v1106 = vld [vmem:[%s178 + $0xd5c] sm:$0xf]
        %v1107 = vld [vmem:[%s178 + $0xd60] sm:$0xf]
        %v1108 = vld [vmem:[%s178 + $0xd64] sm:$0xf]
        %v1109 = vld [vmem:[%s178 + $0xd68] sm:$0xf]
        %v1110 = vld [vmem:[%s178 + $0xd6c] sm:$0xf]
        %v1111 = vld [vmem:[%s178 + $0xd70] sm:$0xf]
        %v1112 = vld [vmem:[%s178 + $0xd74] sm:$0xf]
        %v1113 = vld [vmem:[%s178 + $0xd78] sm:$0xf]
        %v1114 = vld [vmem:[%s178 + $0xd7c] sm:$0xf]
        %v1115 = vld [vmem:[%s178 + $0xd80] sm:$0xf]
        %v1116 = vld [vmem:[%s178 + $0xd84] sm:$0xf]
        %v1117 = vld [vmem:[%s178 + $0xd88] sm:$0xf]
        %v1118 = vld [vmem:[%s178 + $0xd8c] sm:$0xf]
        %v1119 = vld [vmem:[%s178 + $0xd90] sm:$0xf]
        %v1120 = vld [vmem:[%s178 + $0xd94] sm:$0xf]
        %v1121 = vld [vmem:[%s178 + $0xd98] sm:$0xf]
        %v1122 = vld [vmem:[%s178 + $0xd9c] sm:$0xf]
        %v1123 = vld [vmem:[%s178 + $0xda0] sm:$0xf]
        %v1124 = vld [vmem:[%s178 + $0xda4] sm:$0xf]
        %v1125 = vld [vmem:[%s178 + $0xda8] sm:$0xf]
        %v1126 = vld [vmem:[%s178 + $0xdac] sm:$0xf]
        %v1127 = vld [vmem:[%s178 + $0xdb0] sm:$0xf]
        %v1128 = vld [vmem:[%s178 + $0xdb4] sm:$0xf]
        %v1129 = vld [vmem:[%s178 + $0xdb8] sm:$0xf]
        %v1130 = vld [vmem:[%s178 + $0xdbc] sm:$0xf]
        %v1131 = vld [vmem:[%s178 + $0xdc0] sm:$0xf]
        %v1132 = vld [vmem:[%s178 + $0xdc4] sm:$0xf]
        %v1133 = vld [vmem:[%s178 + $0xdc8] sm:$0xf]
        %v1134 = vld [vmem:[%s178 + $0xdcc] sm:$0xf]
        %v1135 = vld [vmem:[%s178 + $0xdd0] sm:$0xf]
        %v1136 = vld [vmem:[%s178 + $0xdd4] sm:$0xf]
        %v1137 = vld [vmem:[%s178 + $0xdd8] sm:$0xf]
        %v1138 = vld [vmem:[%s178 + $0xddc] sm:$0xf]
        %v1139 = vld [vmem:[%s178 + $0xde0] sm:$0xf]
        %v1140 = vld [vmem:[%s178 + $0xde4] sm:$0xf]
        %v1141 = vld [vmem:[%s178 + $0xde8] sm:$0xf]
        %v1142 = vld [vmem:[%s178 + $0xdec] sm:$0xf]
        %v1143 = vld [vmem:[%s178 + $0xdf0] sm:$0xf]
        %v1144 = vld [vmem:[%s178 + $0xdf4] sm:$0xf]
        %v1145 = vld [vmem:[%s178 + $0xdf8] sm:$0xf]
        %v1146 = vld [vmem:[%s178 + $0xdfc] sm:$0xf]
        %v1147 = vld [vmem:[%s178 + $0xe00] sm:$0xf]
        %v1148 = vld [vmem:[%s178 + $0xe04] sm:$0xf]
        %v1149 = vld [vmem:[%s178 + $0xe08] sm:$0xf]
        %v1150 = vld [vmem:[%s178 + $0xe0c] sm:$0xf]
        %v1151 = vld [vmem:[%s178 + $0xe10] sm:$0xf]
        %v1152 = vld [vmem:[%s178 + $0xe14] sm:$0xf]
        %v1153 = vld [vmem:[%s178 + $0xe18] sm:$0xf]
        %v1154 = vld [vmem:[%s178 + $0xe1c] sm:$0xf]
        %v1155 = vld [vmem:[%s178 + $0xe20] sm:$0xf]
        %v1156 = vld [vmem:[%s178 + $0xe24] sm:$0xf]
        %v1157 = vld [vmem:[%s178 + $0xe28] sm:$0xf]
        %v1158 = vld [vmem:[%s178 + $0xe2c] sm:$0xf]
        %v1159 = vld [vmem:[%s178 + $0xe30] sm:$0xf]
        %v1160 = vld [vmem:[%s178 + $0xe34] sm:$0xf]
        %v1161 = vld [vmem:[%s178 + $0xe38] sm:$0xf]
        %v1162 = vld [vmem:[%s178 + $0xe3c] sm:$0xf]
        %v1163 = vld [vmem:[%s178 + $0xe40] sm:$0xf]
        %v1164 = vld [vmem:[%s178 + $0xe44] sm:$0xf]
        %v1165 = vld [vmem:[%s178 + $0xe48] sm:$0xf]
        %v1166 = vld [vmem:[%s178 + $0xe4c] sm:$0xf]
        %v1167 = vld [vmem:[%s178 + $0xe50] sm:$0xf]
        %v1168 = vld [vmem:[%s178 + $0xe54] sm:$0xf]
        %v1169 = vld [vmem:[%s178 + $0xe58] sm:$0xf]
        %v1170 = vld [vmem:[%s178 + $0xe5c] sm:$0xf]
        %v1171 = vld [vmem:[%s178 + $0xe60] sm:$0xf]
        %v1172 = vld [vmem:[%s178 + $0xe64] sm:$0xf]
        %v1173 = vld [vmem:[%s178 + $0xe68] sm:$0xf]
        %v1174 = vld [vmem:[%s178 + $0xe6c] sm:$0xf]
        %v1175 = vld [vmem:[%s178 + $0xe70] sm:$0xf]
        %v1176 = vld [vmem:[%s178 + $0xe74] sm:$0xf]
        %v1177 = vld [vmem:[%s178 + $0xe78] sm:$0xf]
        %v1178 = vld [vmem:[%s178 + $0xe7c] sm:$0xf]
        %v1179 = vld [vmem:[%s178 + $0xe80] sm:$0xf]
        %v1180 = vld [vmem:[%s178 + $0xe84] sm:$0xf]
        %v1181 = vld [vmem:[%s178 + $0xe88] sm:$0xf]
        %v1182 = vld [vmem:[%s178 + $0xe8c] sm:$0xf]
        %v1183 = vld [vmem:[%s178 + $0xe90] sm:$0xf]
        %v1184 = vld [vmem:[%s178 + $0xe94] sm:$0xf]
        %v1185 = vld [vmem:[%s178 + $0xe98] sm:$0xf]
        %v1186 = vld [vmem:[%s178 + $0xe9c] sm:$0xf]
        %v1187 = vld [vmem:[%s178 + $0xea0] sm:$0xf]
        %v1188 = vld [vmem:[%s178 + $0xea4] sm:$0xf]
        %v1189 = vld [vmem:[%s178 + $0xea8] sm:$0xf]
        %v1190 = vld [vmem:[%s178 + $0xeac] sm:$0xf]
        %v1191 = vld [vmem:[%s178 + $0xeb0] sm:$0xf]
        %v1192 = vld [vmem:[%s178 + $0xeb4] sm:$0xf]
        %v1193 = vld [vmem:[%s178 + $0xeb8] sm:$0xf]
        %v1194 = vld [vmem:[%s178 + $0xebc] sm:$0xf]
        %v1195 = vld [vmem:[%s178 + $0xec0] sm:$0xf]
        %v1196 = vld [vmem:[%s178 + $0xec4] sm:$0xf]
        %v1197 = vld [vmem:[%s178 + $0xec8] sm:$0xf]
        %v1198 = vld [vmem:[%s178 + $0xecc] sm:$0xf]
        %v1199 = vld [vmem:[%s178 + $0xed0] sm:$0xf]
        %v1200 = vld [vmem:[%s178 + $0xed4] sm:$0xf]
        %v1201 = vld [vmem:[%s178 + $0xed8] sm:$0xf]
        %v1202 = vld [vmem:[%s178 + $0xedc] sm:$0xf]
        %v1203 = vld [vmem:[%s178 + $0xee0] sm:$0xf]
        %v1204 = vld [vmem:[%s178 + $0xee4] sm:$0xf]
        %v1205 = vld [vmem:[%s178 + $0xee8] sm:$0xf]
        %v1206 = vld [vmem:[%s178 + $0xeec] sm:$0xf]
        %v1207 = vld [vmem:[%s178 + $0xef0] sm:$0xf]
        %v1208 = vld [vmem:[%s178 + $0xef4] sm:$0xf]
        %v1209 = vld [vmem:[%s178 + $0xef8] sm:$0xf]
        %v1210 = vld [vmem:[%s178 + $0xefc] sm:$0xf]
        %v1211 = vld [vmem:[%s178 + $0xf00] sm:$0xf]
        %v1212 = vld [vmem:[%s178 + $0xf04] sm:$0xf]
        %v1213 = vld [vmem:[%s178 + $0xf08] sm:$0xf]
        %v1214 = vld [vmem:[%s178 + $0xf0c] sm:$0xf]
        %v1215 = vld [vmem:[%s178 + $0xf10] sm:$0xf]
        %v1216 = vld [vmem:[%s178 + $0xf14] sm:$0xf]
        %v1217 = vld [vmem:[%s178 + $0xf18] sm:$0xf]
        %v1218 = vld [vmem:[%s178 + $0xf1c] sm:$0xf]
        %v1219 = vld [vmem:[%s178 + $0xf20] sm:$0xf]
        %v1220 = vld [vmem:[%s178 + $0xf24] sm:$0xf]
        %v1221 = vld [vmem:[%s178 + $0xf28] sm:$0xf]
        %v1222 = vld [vmem:[%s178 + $0xf2c] sm:$0xf]
        %v1223 = vld [vmem:[%s178 + $0xf30] sm:$0xf]
        %v1224 = vld [vmem:[%s178 + $0xf34] sm:$0xf]
        %v1225 = vld [vmem:[%s178 + $0xf38] sm:$0xf]
        %v1226 = vld [vmem:[%s178 + $0xf3c] sm:$0xf]
        %v1227 = vld [vmem:[%s178 + $0xf40] sm:$0xf]
        %v1228 = vld [vmem:[%s178 + $0xf44] sm:$0xf]
        %v1229 = vld [vmem:[%s178 + $0xf48] sm:$0xf]
        %v1230 = vld [vmem:[%s178 + $0xf4c] sm:$0xf]
        %v1231 = vld [vmem:[%s178 + $0xf50] sm:$0xf]
        %v1232 = vld [vmem:[%s178 + $0xf54] sm:$0xf]
        %v1233 = vld [vmem:[%s178 + $0xf58] sm:$0xf]
        %v1234 = vld [vmem:[%s178 + $0xf5c] sm:$0xf]
        %v1235 = vld [vmem:[%s178 + $0xf60] sm:$0xf]
        %v1236 = vld [vmem:[%s178 + $0xf64] sm:$0xf]
        %v1237 = vld [vmem:[%s178 + $0xf68] sm:$0xf]
        %v1238 = vld [vmem:[%s178 + $0xf6c] sm:$0xf]
        %v1239 = vld [vmem:[%s178 + $0xf70] sm:$0xf]
        %v1240 = vld [vmem:[%s178 + $0xf74] sm:$0xf]
        %v1241 = vld [vmem:[%s178 + $0xf78] sm:$0xf]
        %v1242 = vld [vmem:[%s178 + $0xf7c] sm:$0xf]
        %v1243 = vld [vmem:[%s178 + $0xf80] sm:$0xf]
        %v1244 = vld [vmem:[%s178 + $0xf84] sm:$0xf]
        %v1245 = vld [vmem:[%s178 + $0xf88] sm:$0xf]
        %v1246 = vld [vmem:[%s178 + $0xf8c] sm:$0xf]
        %v1247 = vld [vmem:[%s178 + $0xf90] sm:$0xf]
        %v1248 = vld [vmem:[%s178 + $0xf94] sm:$0xf]
        %v1249 = vld [vmem:[%s178 + $0xf98] sm:$0xf]
        %v1250 = vld [vmem:[%s178 + $0xf9c] sm:$0xf]
        %v1251 = vld [vmem:[%s178 + $0xfa0] sm:$0xf]
        %v1252 = vld [vmem:[%s178 + $0xfa4] sm:$0xf]
        %v1253 = vld [vmem:[%s178 + $0xfa8] sm:$0xf]
        %v1254 = vld [vmem:[%s178 + $0xfac] sm:$0xf]
        %v1255 = vld [vmem:[%s178 + $0xfb0] sm:$0xf]
        %v1256 = vld [vmem:[%s178 + $0xfb4] sm:$0xf]
        %v1257 = vld [vmem:[%s178 + $0xfb8] sm:$0xf]
        %v1258 = vld [vmem:[%s178 + $0xfbc] sm:$0xf]
        %v1259 = vld [vmem:[%s178 + $0xfc0] sm:$0xf]
        %v1260 = vld [vmem:[%s178 + $0xfc4] sm:$0xf]
        %v1261 = vld [vmem:[%s178 + $0xfc8] sm:$0xf]
        %v1262 = vld [vmem:[%s178 + $0xfcc] sm:$0xf]
        %v1263 = vld [vmem:[%s178 + $0xfd0] sm:$0xf]
        %v1264 = vld [vmem:[%s178 + $0xfd4] sm:$0xf]
        %v1265 = vld [vmem:[%s178 + $0xfd8] sm:$0xf]
        %v1266 = vld [vmem:[%s178 + $0xfdc] sm:$0xf]
        %v1267 = vld [vmem:[%s178 + $0xfe0] sm:$0xf]
        %v1268 = vld [vmem:[%s178 + $0xfe4] sm:$0xf]
        %v1269 = vld [vmem:[%s178 + $0xfe8] sm:$0xf]
        %v1270 = vld [vmem:[%s178 + $0xfec] sm:$0xf]
        %v1271 = vld [vmem:[%s178 + $0xff0] sm:$0xf]
        %v1272 = vld [vmem:[%s178 + $0xff4] sm:$0xf]
        %v1273 = vld [vmem:[%s178 + $0xff8] sm:$0xf]
        %v1274 = vld [vmem:[%s178 + $0xffc] sm:$0xf]
        %v1307 = vunpack.c.l.b16 %v219
        %v1308 = vunpack.c.h.b16 %v219
        %v1309 = vunpack.c.l.b16 %v220
        %v1310 = vunpack.c.h.b16 %v220
        %v1311 = vunpack.c.l.b16 %v221
        %v1312 = vunpack.c.h.b16 %v221
        %v1313 = vunpack.c.l.b16 %v222
        %v1314 = vunpack.c.h.b16 %v222
        %v1315 = vunpack.c.l.b16 %v223
        %v1316 = vunpack.c.h.b16 %v223
        %v1317 = vunpack.c.l.b16 %v224
        %v1318 = vunpack.c.h.b16 %v224
        %v1319 = vunpack.c.l.b16 %v225
        %v1320 = vunpack.c.h.b16 %v225
        %v1321 = vunpack.c.l.b16 %v226
        %v1322 = vunpack.c.h.b16 %v226
        %v1323 = vunpack.c.l.b16 %v227
        %v1324 = vunpack.c.h.b16 %v227
        %v1325 = vunpack.c.l.b16 %v228
        %v1326 = vunpack.c.h.b16 %v228
        %v1327 = vunpack.c.l.b16 %v229
        %v1328 = vunpack.c.h.b16 %v229
        %v1329 = vunpack.c.l.b16 %v230
        %v1330 = vunpack.c.h.b16 %v230
        %v1331 = vunpack.c.l.b16 %v231
        %v1332 = vunpack.c.h.b16 %v231
        %v1333 = vunpack.c.l.b16 %v232
        %v1334 = vunpack.c.h.b16 %v232
        %v1335 = vunpack.c.l.b16 %v233
        %v1336 = vunpack.c.h.b16 %v233
        %v1337 = vunpack.c.l.b16 %v234
        %v1338 = vunpack.c.h.b16 %v234
        %v1339 = vunpack.c.l.b16 %v235
        %v1340 = vunpack.c.h.b16 %v235
        %v1341 = vunpack.c.l.b16 %v236
        %v1342 = vunpack.c.h.b16 %v236
        %v1343 = vunpack.c.l.b16 %v237
        %v1344 = vunpack.c.h.b16 %v237
        %v1345 = vunpack.c.l.b16 %v238
        %v1346 = vunpack.c.h.b16 %v238
        %v1347 = vunpack.c.l.b16 %v239
        %v1348 = vunpack.c.h.b16 %v239
        %v1349 = vunpack.c.l.b16 %v240
        %v1350 = vunpack.c.h.b16 %v240
        %v1351 = vunpack.c.l.b16 %v241
        %v1352 = vunpack.c.h.b16 %v241
        %v1353 = vunpack.c.l.b16 %v242
        %v1354 = vunpack.c.h.b16 %v242
        %v1355 = vunpack.c.l.b16 %v243
        %v1356 = vunpack.c.h.b16 %v243
        %v1357 = vunpack.c.l.b16 %v244
        %v1358 = vunpack.c.h.b16 %v244
        %v1359 = vunpack.c.l.b16 %v245
        %v1360 = vunpack.c.h.b16 %v245
        %v1361 = vunpack.c.l.b16 %v246
        %v1362 = vunpack.c.h.b16 %v246
        %v1363 = vunpack.c.l.b16 %v247
        %v1364 = vunpack.c.h.b16 %v247
        %v1365 = vunpack.c.l.b16 %v248
        %v1366 = vunpack.c.h.b16 %v248
        %v1367 = vunpack.c.l.b16 %v249
        %v1368 = vunpack.c.h.b16 %v249
        %v1369 = vunpack.c.l.b16 %v250
        %v1370 = vunpack.c.h.b16 %v250
        %v1371 = vpack.c.b16 %v1307, %v1307
        %v1372 = vpack.c.b16 %v1308, %v1308
        %v1373 = vpack.c.b16 %v1309, %v1309
        %v1374 = vpack.c.b16 %v1310, %v1310
        %v1375 = vpack.c.b16 %v1311, %v1311
        %v1376 = vpack.c.b16 %v1312, %v1312
        %v1377 = vpack.c.b16 %v1313, %v1313
        %v1378 = vpack.c.b16 %v1314, %v1314
        %v1379 = vpack.c.b16 %v1315, %v1315
        %v1380 = vpack.c.b16 %v1316, %v1316
        %v1381 = vpack.c.b16 %v1317, %v1317
        %v1382 = vpack.c.b16 %v1318, %v1318
        %v1383 = vpack.c.b16 %v1319, %v1319
        %v1384 = vpack.c.b16 %v1320, %v1320
        %v1385 = vpack.c.b16 %v1321, %v1321
        %v1386 = vpack.c.b16 %v1322, %v1322
        %v1387 = vpack.c.b16 %v1323, %v1323
        %v1388 = vpack.c.b16 %v1324, %v1324
        %v1389 = vpack.c.b16 %v1325, %v1325
        %v1390 = vpack.c.b16 %v1326, %v1326
        %v1391 = vpack.c.b16 %v1327, %v1327
        %v1392 = vpack.c.b16 %v1328, %v1328
        %v1393 = vpack.c.b16 %v1329, %v1329
        %v1394 = vpack.c.b16 %v1330, %v1330
        %v1395 = vpack.c.b16 %v1331, %v1331
        %v1396 = vpack.c.b16 %v1332, %v1332
        %v1397 = vpack.c.b16 %v1333, %v1333
        %v1398 = vpack.c.b16 %v1334, %v1334
        %v1399 = vpack.c.b16 %v1335, %v1335
        %v1400 = vpack.c.b16 %v1336, %v1336
        %v1401 = vpack.c.b16 %v1337, %v1337
        %v1402 = vpack.c.b16 %v1338, %v1338
        %v1403 = vpack.c.b16 %v1339, %v1339
        %v1404 = vpack.c.b16 %v1340, %v1340
        %v1405 = vpack.c.b16 %v1341, %v1341
        %v1406 = vpack.c.b16 %v1342, %v1342
        %v1407 = vpack.c.b16 %v1343, %v1343
        %v1408 = vpack.c.b16 %v1344, %v1344
        %v1409 = vpack.c.b16 %v1345, %v1345
        %v1410 = vpack.c.b16 %v1346, %v1346
        %v1411 = vpack.c.b16 %v1347, %v1347
        %v1412 = vpack.c.b16 %v1348, %v1348
        %v1413 = vpack.c.b16 %v1349, %v1349
        %v1414 = vpack.c.b16 %v1350, %v1350
        %v1415 = vpack.c.b16 %v1351, %v1351
        %v1416 = vpack.c.b16 %v1352, %v1352
        %v1417 = vpack.c.b16 %v1353, %v1353
        %v1418 = vpack.c.b16 %v1354, %v1354
        %v1419 = vpack.c.b16 %v1355, %v1355
        %v1420 = vpack.c.b16 %v1356, %v1356
        %v1421 = vpack.c.b16 %v1357, %v1357
        %v1422 = vpack.c.b16 %v1358, %v1358
        %v1423 = vpack.c.b16 %v1359, %v1359
        %v1424 = vpack.c.b16 %v1360, %v1360
        %v1425 = vpack.c.b16 %v1361, %v1361
        %v1426 = vpack.c.b16 %v1362, %v1362
        %v1427 = vpack.c.b16 %v1363, %v1363
        %v1428 = vpack.c.b16 %v1364, %v1364
        %v1429 = vpack.c.b16 %v1365, %v1365
        %v1430 = vpack.c.b16 %v1366, %v1366
        %v1431 = vpack.c.b16 %v1367, %v1367
        %v1432 = vpack.c.b16 %v1368, %v1368
        %v1433 = vpack.c.b16 %v1369, %v1369
        %v1434 = vpack.c.b16 %v1370, %v1370
        %v2523 = vunpack.c.l.b16 %v251
        %v2524 = vunpack.c.l.b16 %v252
        %v2525 = vunpack.c.l.b16 %v253
        %v2526 = vunpack.c.l.b16 %v254
        %v2527 = vunpack.c.l.b16 %v255
        %v2528 = vunpack.c.l.b16 %v256
        %v2529 = vunpack.c.l.b16 %v257
        %v2530 = vunpack.c.l.b16 %v258
        %v2531 = vunpack.c.l.b16 %v259
        %v2532 = vunpack.c.l.b16 %v260
        %v2533 = vunpack.c.l.b16 %v261
        %v2534 = vunpack.c.l.b16 %v262
        %v2535 = vunpack.c.l.b16 %v263
        %v2536 = vunpack.c.l.b16 %v264
        %v2537 = vunpack.c.l.b16 %v265
        %v2538 = vunpack.c.l.b16 %v266
        %v2539 = vunpack.c.l.b16 %v267
        %v2540 = vunpack.c.l.b16 %v268
        %v2541 = vunpack.c.l.b16 %v269
        %v2542 = vunpack.c.l.b16 %v270
        %v2543 = vunpack.c.l.b16 %v271
        %v2544 = vunpack.c.l.b16 %v272
        %v2545 = vunpack.c.l.b16 %v273
        %v2546 = vunpack.c.l.b16 %v274
        %v2547 = vunpack.c.l.b16 %v275
        %v2548 = vunpack.c.l.b16 %v276
        %v2549 = vunpack.c.l.b16 %v277
        %v2550 = vunpack.c.l.b16 %v278
        %v2551 = vunpack.c.l.b16 %v279
        %v2552 = vunpack.c.l.b16 %v280
        %v2553 = vunpack.c.l.b16 %v281
        %v2554 = vunpack.c.l.b16 %v282
        %v2555 = vunpack.c.l.b16 %v283
        %v2556 = vunpack.c.l.b16 %v284
        %v2557 = vunpack.c.l.b16 %v285
        %v2558 = vunpack.c.l.b16 %v286
        %v2559 = vunpack.c.l.b16 %v287
        %v2560 = vunpack.c.l.b16 %v288
        %v2561 = vunpack.c.l.b16 %v289
        %v2562 = vunpack.c.l.b16 %v290
        %v2563 = vunpack.c.l.b16 %v291
        %v2564 = vunpack.c.l.b16 %v292
        %v2565 = vunpack.c.l.b16 %v293
        %v2566 = vunpack.c.l.b16 %v294
        %v2567 = vunpack.c.l.b16 %v295
        %v2568 = vunpack.c.l.b16 %v296
        %v2569 = vunpack.c.l.b16 %v297
        %v2570 = vunpack.c.l.b16 %v298
        %v2571 = vunpack.c.l.b16 %v299
        %v2572 = vunpack.c.l.b16 %v300
        %v2573 = vunpack.c.l.b16 %v301
        %v2574 = vunpack.c.l.b16 %v302
        %v2575 = vunpack.c.l.b16 %v303
        %v2576 = vunpack.c.l.b16 %v304
        %v2577 = vunpack.c.l.b16 %v305
        %v2578 = vunpack.c.l.b16 %v306
        %v2579 = vunpack.c.l.b16 %v307
        %v2580 = vunpack.c.l.b16 %v308
        %v2581 = vunpack.c.l.b16 %v309
        %v2582 = vunpack.c.l.b16 %v310
        %v2583 = vunpack.c.l.b16 %v311
        %v2584 = vunpack.c.l.b16 %v312
        %v2585 = vunpack.c.l.b16 %v313
        %v2586 = vunpack.c.l.b16 %v314
        %v2587 = vunpack.c.l.b16 %v315
        %v2588 = vunpack.c.l.b16 %v316
        %v2589 = vunpack.c.l.b16 %v317
        %v2590 = vunpack.c.l.b16 %v318
        %v2591 = vunpack.c.l.b16 %v319
        %v2592 = vunpack.c.l.b16 %v320
        %v2593 = vunpack.c.l.b16 %v321
        %v2594 = vunpack.c.l.b16 %v322
        %v2595 = vunpack.c.l.b16 %v323
        %v2596 = vunpack.c.l.b16 %v324
        %v2597 = vunpack.c.l.b16 %v325
        %v2598 = vunpack.c.l.b16 %v326
        %v2599 = vunpack.c.l.b16 %v327
        %v2600 = vunpack.c.l.b16 %v328
        %v2601 = vunpack.c.l.b16 %v329
        %v2602 = vunpack.c.l.b16 %v330
        %v2603 = vunpack.c.l.b16 %v331
        %v2604 = vunpack.c.l.b16 %v332
        %v2605 = vunpack.c.l.b16 %v333
        %v2606 = vunpack.c.l.b16 %v334
        %v2607 = vunpack.c.l.b16 %v335
        %v2608 = vunpack.c.l.b16 %v336
        %v2609 = vunpack.c.l.b16 %v337
        %v2610 = vunpack.c.l.b16 %v338
        %v2611 = vunpack.c.l.b16 %v339
        %v2612 = vunpack.c.l.b16 %v340
        %v2613 = vunpack.c.l.b16 %v341
        %v2614 = vunpack.c.l.b16 %v342
        %v2615 = vunpack.c.l.b16 %v343
        %v2616 = vunpack.c.l.b16 %v344
        %v2617 = vunpack.c.l.b16 %v345
        %v2618 = vunpack.c.l.b16 %v346
        %v2619 = vunpack.c.l.b16 %v347
        %v2620 = vunpack.c.l.b16 %v348
        %v2621 = vunpack.c.l.b16 %v349
        %v2622 = vunpack.c.l.b16 %v350
        %v2623 = vunpack.c.l.b16 %v351
        %v2624 = vunpack.c.l.b16 %v352
        %v2625 = vunpack.c.l.b16 %v353
        %v2626 = vunpack.c.l.b16 %v354
        %v2627 = vunpack.c.l.b16 %v355
        %v2628 = vunpack.c.l.b16 %v356
        %v2629 = vunpack.c.l.b16 %v357
        %v2630 = vunpack.c.l.b16 %v358
        %v2631 = vunpack.c.l.b16 %v359
        %v2632 = vunpack.c.l.b16 %v360
        %v2633 = vunpack.c.l.b16 %v361
        %v2634 = vunpack.c.l.b16 %v362
        %v2635 = vunpack.c.l.b16 %v363
        %v2636 = vunpack.c.l.b16 %v364
        %v2637 = vunpack.c.l.b16 %v365
        %v2638 = vunpack.c.l.b16 %v366
        %v2639 = vunpack.c.l.b16 %v367
        %v2640 = vunpack.c.l.b16 %v368
        %v2641 = vunpack.c.l.b16 %v369
        %v2642 = vunpack.c.l.b16 %v370
        %v2643 = vunpack.c.l.b16 %v371
        %v2644 = vunpack.c.l.b16 %v372
        %v2645 = vunpack.c.l.b16 %v373
        %v2646 = vunpack.c.l.b16 %v374
        %v2647 = vunpack.c.l.b16 %v375
        %v2648 = vunpack.c.l.b16 %v376
        %v2649 = vunpack.c.l.b16 %v377
        %v2650 = vunpack.c.l.b16 %v378
        %v2651 = vunpack.c.l.b16 %v379
        %v2652 = vunpack.c.l.b16 %v380
        %v2653 = vunpack.c.l.b16 %v381
        %v2654 = vunpack.c.l.b16 %v382
        %v2655 = vunpack.c.l.b16 %v383
        %v2656 = vunpack.c.l.b16 %v384
        %v2657 = vunpack.c.l.b16 %v385
        %v2658 = vunpack.c.l.b16 %v386
        %v2659 = vunpack.c.l.b16 %v387
        %v2660 = vunpack.c.l.b16 %v388
        %v2661 = vunpack.c.l.b16 %v389
        %v2662 = vunpack.c.l.b16 %v390
        %v2663 = vunpack.c.l.b16 %v391
        %v2664 = vunpack.c.l.b16 %v392
        %v2665 = vunpack.c.l.b16 %v393
        %v2666 = vunpack.c.l.b16 %v394
        %v2667 = vunpack.c.l.b16 %v395
        %v2668 = vunpack.c.l.b16 %v396
        %v2669 = vunpack.c.l.b16 %v397
        %v2670 = vunpack.c.l.b16 %v398
        %v2671 = vunpack.c.l.b16 %v399
        %v2672 = vunpack.c.l.b16 %v400
        %v2673 = vunpack.c.l.b16 %v401
        %v2674 = vunpack.c.l.b16 %v402
        %v2675 = vunpack.c.l.b16 %v403
        %v2676 = vunpack.c.l.b16 %v404
        %v2677 = vunpack.c.l.b16 %v405
        %v2678 = vunpack.c.l.b16 %v406
        %v2679 = vunpack.c.l.b16 %v407
        %v2680 = vunpack.c.l.b16 %v408
        %v2681 = vunpack.c.l.b16 %v409
        %v2682 = vunpack.c.l.b16 %v410
        %v2683 = vunpack.c.l.b16 %v411
        %v2684 = vunpack.c.l.b16 %v412
        %v2685 = vunpack.c.l.b16 %v413
        %v2686 = vunpack.c.l.b16 %v414
        %v2687 = vunpack.c.l.b16 %v415
        %v2688 = vunpack.c.l.b16 %v416
        %v2689 = vunpack.c.l.b16 %v417
        %v2690 = vunpack.c.l.b16 %v418
        %v2691 = vunpack.c.l.b16 %v419
        %v2692 = vunpack.c.l.b16 %v420
        %v2693 = vunpack.c.l.b16 %v421
        %v2694 = vunpack.c.l.b16 %v422
        %v2695 = vunpack.c.l.b16 %v423
        %v2696 = vunpack.c.l.b16 %v424
        %v2697 = vunpack.c.l.b16 %v425
        %v2698 = vunpack.c.l.b16 %v426
        %v2699 = vunpack.c.l.b16 %v427
        %v2700 = vunpack.c.l.b16 %v428
        %v2701 = vunpack.c.l.b16 %v429
        %v2702 = vunpack.c.l.b16 %v430
        %v2703 = vunpack.c.l.b16 %v431
        %v2704 = vunpack.c.l.b16 %v432
        %v2705 = vunpack.c.l.b16 %v433
        %v2706 = vunpack.c.l.b16 %v434
        %v2707 = vunpack.c.l.b16 %v435
        %v2708 = vunpack.c.l.b16 %v436
        %v2709 = vunpack.c.l.b16 %v437
        %v2710 = vunpack.c.l.b16 %v438
        %v2711 = vunpack.c.l.b16 %v439
        %v2712 = vunpack.c.l.b16 %v440
        %v2713 = vunpack.c.l.b16 %v441
        %v2714 = vunpack.c.l.b16 %v442
        %v2715 = vunpack.c.l.b16 %v443
        %v2716 = vunpack.c.l.b16 %v444
        %v2717 = vunpack.c.l.b16 %v445
        %v2718 = vunpack.c.l.b16 %v446
        %v2719 = vunpack.c.l.b16 %v447
        %v2720 = vunpack.c.l.b16 %v448
        %v2721 = vunpack.c.l.b16 %v449
        %v2722 = vunpack.c.l.b16 %v450
        %v2723 = vunpack.c.l.b16 %v451
        %v2724 = vunpack.c.l.b16 %v452
        %v2725 = vunpack.c.l.b16 %v453
        %v2726 = vunpack.c.l.b16 %v454
        %v2727 = vunpack.c.l.b16 %v455
        %v2728 = vunpack.c.l.b16 %v456
        %v2729 = vunpack.c.l.b16 %v457
        %v2730 = vunpack.c.l.b16 %v458
        %v2731 = vunpack.c.l.b16 %v459
        %v2732 = vunpack.c.l.b16 %v460
        %v2733 = vunpack.c.l.b16 %v461
        %v2734 = vunpack.c.l.b16 %v462
        %v2735 = vunpack.c.l.b16 %v463
        %v2736 = vunpack.c.l.b16 %v464
        %v2737 = vunpack.c.l.b16 %v465
        %v2738 = vunpack.c.l.b16 %v466
        %v2739 = vunpack.c.l.b16 %v467
        %v2740 = vunpack.c.l.b16 %v468
        %v2741 = vunpack.c.l.b16 %v469
        %v2742 = vunpack.c.l.b16 %v470
        %v2743 = vunpack.c.l.b16 %v471
        %v2744 = vunpack.c.l.b16 %v472
        %v2745 = vunpack.c.l.b16 %v473
        %v2746 = vunpack.c.l.b16 %v474
        %v2747 = vunpack.c.l.b16 %v475
        %v2748 = vunpack.c.l.b16 %v476
        %v2749 = vunpack.c.l.b16 %v477
        %v2750 = vunpack.c.l.b16 %v478
        %v2751 = vunpack.c.l.b16 %v479
        %v2752 = vunpack.c.l.b16 %v480
        %v2753 = vunpack.c.l.b16 %v481
        %v2754 = vunpack.c.l.b16 %v482
        %v2755 = vunpack.c.l.b16 %v483
        %v2756 = vunpack.c.l.b16 %v484
        %v2757 = vunpack.c.l.b16 %v485
        %v2758 = vunpack.c.l.b16 %v486
        %v2759 = vunpack.c.l.b16 %v487
        %v2760 = vunpack.c.l.b16 %v488
        %v2761 = vunpack.c.l.b16 %v489
        %v2762 = vunpack.c.l.b16 %v490
        %v2763 = vunpack.c.l.b16 %v491
        %v2764 = vunpack.c.l.b16 %v492
        %v2765 = vunpack.c.l.b16 %v493
        %v2766 = vunpack.c.l.b16 %v494
        %v2767 = vunpack.c.l.b16 %v495
        %v2768 = vunpack.c.l.b16 %v496
        %v2769 = vunpack.c.l.b16 %v497
        %v2770 = vunpack.c.l.b16 %v498
        %v2771 = vunpack.c.l.b16 %v499
        %v2772 = vunpack.c.l.b16 %v500
        %v2773 = vunpack.c.l.b16 %v501
        %v2774 = vunpack.c.l.b16 %v502
        %v2775 = vunpack.c.l.b16 %v503
        %v2776 = vunpack.c.l.b16 %v504
        %v2777 = vunpack.c.l.b16 %v505
        %v2778 = vunpack.c.l.b16 %v506
        %v2779 = vunpack.c.l.b16 %v507
        %v2780 = vunpack.c.l.b16 %v508
        %v2781 = vunpack.c.l.b16 %v509
        %v2782 = vunpack.c.l.b16 %v510
        %v2783 = vunpack.c.l.b16 %v511
        %v2784 = vunpack.c.l.b16 %v512
        %v2785 = vunpack.c.l.b16 %v513
        %v2786 = vunpack.c.l.b16 %v514
        %v2787 = vunpack.c.l.b16 %v515
        %v2788 = vunpack.c.l.b16 %v516
        %v2789 = vunpack.c.l.b16 %v517
        %v2790 = vunpack.c.l.b16 %v518
        %v2791 = vunpack.c.l.b16 %v519
        %v2792 = vunpack.c.l.b16 %v520
        %v2793 = vunpack.c.l.b16 %v521
        %v2794 = vunpack.c.l.b16 %v522
        %v2795 = vunpack.c.l.b16 %v523
        %v2796 = vunpack.c.l.b16 %v524
        %v2797 = vunpack.c.l.b16 %v525
        %v2798 = vunpack.c.l.b16 %v526
        %v2799 = vunpack.c.l.b16 %v527
        %v2800 = vunpack.c.l.b16 %v528
        %v2801 = vunpack.c.l.b16 %v529
        %v2802 = vunpack.c.l.b16 %v530
        %v2803 = vunpack.c.l.b16 %v531
        %v2804 = vunpack.c.l.b16 %v532
        %v2805 = vunpack.c.l.b16 %v533
        %v2806 = vunpack.c.l.b16 %v534
        %v2807 = vunpack.c.l.b16 %v535
        %v2808 = vunpack.c.l.b16 %v536
        %v2809 = vunpack.c.l.b16 %v537
        %v2810 = vunpack.c.l.b16 %v538
        %v2811 = vunpack.c.l.b16 %v539
        %v2812 = vunpack.c.l.b16 %v540
        %v2813 = vunpack.c.l.b16 %v541
        %v2814 = vunpack.c.l.b16 %v542
        %v2815 = vunpack.c.l.b16 %v543
        %v2816 = vunpack.c.l.b16 %v544
        %v2817 = vunpack.c.l.b16 %v545
        %v2818 = vunpack.c.l.b16 %v546
        %v2819 = vunpack.c.l.b16 %v547
        %v2820 = vunpack.c.l.b16 %v548
        %v2821 = vunpack.c.l.b16 %v549
        %v2822 = vunpack.c.l.b16 %v550
        %v2823 = vunpack.c.l.b16 %v551
        %v2824 = vunpack.c.l.b16 %v552
        %v2825 = vunpack.c.l.b16 %v553
        %v2826 = vunpack.c.l.b16 %v554
        %v2827 = vunpack.c.l.b16 %v555
        %v2828 = vunpack.c.l.b16 %v556
        %v2829 = vunpack.c.l.b16 %v557
        %v2830 = vunpack.c.l.b16 %v558
        %v2831 = vunpack.c.l.b16 %v559
        %v2832 = vunpack.c.l.b16 %v560
        %v2833 = vunpack.c.l.b16 %v561
        %v2834 = vunpack.c.l.b16 %v562
        %v2835 = vunpack.c.l.b16 %v563
        %v2836 = vunpack.c.l.b16 %v564
        %v2837 = vunpack.c.l.b16 %v565
        %v2838 = vunpack.c.l.b16 %v566
        %v2839 = vunpack.c.l.b16 %v567
        %v2840 = vunpack.c.l.b16 %v568
        %v2841 = vunpack.c.l.b16 %v569
        %v2842 = vunpack.c.l.b16 %v570
        %v2843 = vunpack.c.l.b16 %v571
        %v2844 = vunpack.c.l.b16 %v572
        %v2845 = vunpack.c.l.b16 %v573
        %v2846 = vunpack.c.l.b16 %v574
        %v2847 = vunpack.c.l.b16 %v575
        %v2848 = vunpack.c.l.b16 %v576
        %v2849 = vunpack.c.l.b16 %v577
        %v2850 = vunpack.c.l.b16 %v578
        %v2851 = vunpack.c.l.b16 %v579
        %v2852 = vunpack.c.l.b16 %v580
        %v2853 = vunpack.c.l.b16 %v581
        %v2854 = vunpack.c.l.b16 %v582
        %v2855 = vunpack.c.l.b16 %v583
        %v2856 = vunpack.c.l.b16 %v584
        %v2857 = vunpack.c.l.b16 %v585
        %v2858 = vunpack.c.l.b16 %v586
        %v2859 = vunpack.c.l.b16 %v587
        %v2860 = vunpack.c.l.b16 %v588
        %v2861 = vunpack.c.l.b16 %v589
        %v2862 = vunpack.c.l.b16 %v590
        %v2863 = vunpack.c.l.b16 %v591
        %v2864 = vunpack.c.l.b16 %v592
        %v2865 = vunpack.c.l.b16 %v593
        %v2866 = vunpack.c.l.b16 %v594
        %v2867 = vunpack.c.l.b16 %v595
        %v2868 = vunpack.c.l.b16 %v596
        %v2869 = vunpack.c.l.b16 %v597
        %v2870 = vunpack.c.l.b16 %v598
        %v2871 = vunpack.c.l.b16 %v599
        %v2872 = vunpack.c.l.b16 %v600
        %v2873 = vunpack.c.l.b16 %v601
        %v2874 = vunpack.c.l.b16 %v602
        %v2875 = vunpack.c.l.b16 %v603
        %v2876 = vunpack.c.l.b16 %v604
        %v2877 = vunpack.c.l.b16 %v605
        %v2878 = vunpack.c.l.b16 %v606
        %v2879 = vunpack.c.l.b16 %v607
        %v2880 = vunpack.c.l.b16 %v608
        %v2881 = vunpack.c.l.b16 %v609
        %v2882 = vunpack.c.l.b16 %v610
        %v2883 = vunpack.c.l.b16 %v611
        %v2884 = vunpack.c.l.b16 %v612
        %v2885 = vunpack.c.l.b16 %v613
        %v2886 = vunpack.c.l.b16 %v614
        %v2887 = vunpack.c.l.b16 %v615
        %v2888 = vunpack.c.l.b16 %v616
        %v2889 = vunpack.c.l.b16 %v617
        %v2890 = vunpack.c.l.b16 %v618
        %v2891 = vunpack.c.l.b16 %v619
        %v2892 = vunpack.c.l.b16 %v620
        %v2893 = vunpack.c.l.b16 %v621
        %v2894 = vunpack.c.l.b16 %v622
        %v2895 = vunpack.c.l.b16 %v623
        %v2896 = vunpack.c.l.b16 %v624
        %v2897 = vunpack.c.l.b16 %v625
        %v2898 = vunpack.c.l.b16 %v626
        %v2899 = vunpack.c.l.b16 %v627
        %v2900 = vunpack.c.l.b16 %v628
        %v2901 = vunpack.c.l.b16 %v629
        %v2902 = vunpack.c.l.b16 %v630
        %v2903 = vunpack.c.l.b16 %v631
        %v2904 = vunpack.c.l.b16 %v632
        %v2905 = vunpack.c.l.b16 %v633
        %v2906 = vunpack.c.l.b16 %v634
        %v2907 = vunpack.c.l.b16 %v635
        %v2908 = vunpack.c.l.b16 %v636
        %v2909 = vunpack.c.l.b16 %v637
        %v2910 = vunpack.c.l.b16 %v638
        %v2911 = vunpack.c.l.b16 %v639
        %v2912 = vunpack.c.l.b16 %v640
        %v2913 = vunpack.c.l.b16 %v641
        %v2914 = vunpack.c.l.b16 %v642
        %v2915 = vunpack.c.l.b16 %v643
        %v2916 = vunpack.c.l.b16 %v644
        %v2917 = vunpack.c.l.b16 %v645
        %v2918 = vunpack.c.l.b16 %v646
        %v2919 = vunpack.c.l.b16 %v647
        %v2920 = vunpack.c.l.b16 %v648
        %v2921 = vunpack.c.l.b16 %v649
        %v2922 = vunpack.c.l.b16 %v650
        %v2923 = vunpack.c.l.b16 %v651
        %v2924 = vunpack.c.l.b16 %v652
        %v2925 = vunpack.c.l.b16 %v653
        %v2926 = vunpack.c.l.b16 %v654
        %v2927 = vunpack.c.l.b16 %v655
        %v2928 = vunpack.c.l.b16 %v656
        %v2929 = vunpack.c.l.b16 %v657
        %v2930 = vunpack.c.l.b16 %v658
        %v2931 = vunpack.c.l.b16 %v659
        %v2932 = vunpack.c.l.b16 %v660
        %v2933 = vunpack.c.l.b16 %v661
        %v2934 = vunpack.c.l.b16 %v662
        %v2935 = vunpack.c.l.b16 %v663
        %v2936 = vunpack.c.l.b16 %v664
        %v2937 = vunpack.c.l.b16 %v665
        %v2938 = vunpack.c.l.b16 %v666
        %v2939 = vunpack.c.l.b16 %v667
        %v2940 = vunpack.c.l.b16 %v668
        %v2941 = vunpack.c.l.b16 %v669
        %v2942 = vunpack.c.l.b16 %v670
        %v2943 = vunpack.c.l.b16 %v671
        %v2944 = vunpack.c.l.b16 %v672
        %v2945 = vunpack.c.l.b16 %v673
        %v2946 = vunpack.c.l.b16 %v674
        %v2947 = vunpack.c.l.b16 %v675
        %v2948 = vunpack.c.l.b16 %v676
        %v2949 = vunpack.c.l.b16 %v677
        %v2950 = vunpack.c.l.b16 %v678
        %v2951 = vunpack.c.l.b16 %v679
        %v2952 = vunpack.c.l.b16 %v680
        %v2953 = vunpack.c.l.b16 %v681
        %v2954 = vunpack.c.l.b16 %v682
        %v2955 = vunpack.c.l.b16 %v683
        %v2956 = vunpack.c.l.b16 %v684
        %v2957 = vunpack.c.l.b16 %v685
        %v2958 = vunpack.c.l.b16 %v686
        %v2959 = vunpack.c.l.b16 %v687
        %v2960 = vunpack.c.l.b16 %v688
        %v2961 = vunpack.c.l.b16 %v689
        %v2962 = vunpack.c.l.b16 %v690
        %v2963 = vunpack.c.l.b16 %v691
        %v2964 = vunpack.c.l.b16 %v692
        %v2965 = vunpack.c.l.b16 %v693
        %v2966 = vunpack.c.l.b16 %v694
        %v2967 = vunpack.c.l.b16 %v695
        %v2968 = vunpack.c.l.b16 %v696
        %v2969 = vunpack.c.l.b16 %v697
        %v2970 = vunpack.c.l.b16 %v698
        %v2971 = vunpack.c.l.b16 %v699
        %v2972 = vunpack.c.l.b16 %v700
        %v2973 = vunpack.c.l.b16 %v701
        %v2974 = vunpack.c.l.b16 %v702
        %v2975 = vunpack.c.l.b16 %v703
        %v2976 = vunpack.c.l.b16 %v704
        %v2977 = vunpack.c.l.b16 %v705
        %v2978 = vunpack.c.l.b16 %v706
        %v2979 = vunpack.c.l.b16 %v707
        %v2980 = vunpack.c.l.b16 %v708
        %v2981 = vunpack.c.l.b16 %v709
        %v2982 = vunpack.c.l.b16 %v710
        %v2983 = vunpack.c.l.b16 %v711
        %v2984 = vunpack.c.l.b16 %v712
        %v2985 = vunpack.c.l.b16 %v713
        %v2986 = vunpack.c.l.b16 %v714
        %v2987 = vunpack.c.l.b16 %v715
        %v2988 = vunpack.c.l.b16 %v716
        %v2989 = vunpack.c.l.b16 %v717
        %v2990 = vunpack.c.l.b16 %v718
        %v2991 = vunpack.c.l.b16 %v719
        %v2992 = vunpack.c.l.b16 %v720
        %v2993 = vunpack.c.l.b16 %v721
        %v2994 = vunpack.c.l.b16 %v722
        %v2995 = vunpack.c.l.b16 %v723
        %v2996 = vunpack.c.l.b16 %v724
        %v2997 = vunpack.c.l.b16 %v725
        %v2998 = vunpack.c.l.b16 %v726
        %v2999 = vunpack.c.l.b16 %v727
        %v3000 = vunpack.c.l.b16 %v728
        %v3001 = vunpack.c.l.b16 %v729
        %v3002 = vunpack.c.l.b16 %v730
        %v3003 = vunpack.c.l.b16 %v731
        %v3004 = vunpack.c.l.b16 %v732
        %v3005 = vunpack.c.l.b16 %v733
        %v3006 = vunpack.c.l.b16 %v734
        %v3007 = vunpack.c.l.b16 %v735
        %v3008 = vunpack.c.l.b16 %v736
        %v3009 = vunpack.c.l.b16 %v737
        %v3010 = vunpack.c.l.b16 %v738
        %v3011 = vunpack.c.l.b16 %v739
        %v3012 = vunpack.c.l.b16 %v740
        %v3013 = vunpack.c.l.b16 %v741
        %v3014 = vunpack.c.l.b16 %v742
        %v3015 = vunpack.c.l.b16 %v743
        %v3016 = vunpack.c.l.b16 %v744
        %v3017 = vunpack.c.l.b16 %v745
        %v3018 = vunpack.c.l.b16 %v746
        %v3019 = vunpack.c.l.b16 %v747
        %v3020 = vunpack.c.l.b16 %v748
        %v3021 = vunpack.c.l.b16 %v749
        %v3022 = vunpack.c.l.b16 %v750
        %v3023 = vunpack.c.l.b16 %v751
        %v3024 = vunpack.c.l.b16 %v752
        %v3025 = vunpack.c.l.b16 %v753
        %v3026 = vunpack.c.l.b16 %v754
        %v3027 = vunpack.c.l.b16 %v755
        %v3028 = vunpack.c.l.b16 %v756
        %v3029 = vunpack.c.l.b16 %v757
        %v3030 = vunpack.c.l.b16 %v758
        %v3031 = vunpack.c.l.b16 %v759
        %v3032 = vunpack.c.l.b16 %v760
        %v3033 = vunpack.c.l.b16 %v761
        %v3034 = vunpack.c.l.b16 %v762
        %v3035 = vunpack.c.l.b16 %v763
        %v3036 = vunpack.c.l.b16 %v764
        %v3037 = vunpack.c.l.b16 %v765
        %v3038 = vunpack.c.l.b16 %v766
        %v3039 = vunpack.c.l.b16 %v767
        %v3040 = vunpack.c.l.b16 %v768
        %v3041 = vunpack.c.l.b16 %v769
        %v3042 = vunpack.c.l.b16 %v770
        %v3043 = vunpack.c.l.b16 %v771
        %v3044 = vunpack.c.l.b16 %v772
        %v3045 = vunpack.c.l.b16 %v773
        %v3046 = vunpack.c.l.b16 %v774
        %v3047 = vunpack.c.l.b16 %v775
        %v3048 = vunpack.c.l.b16 %v776
        %v3049 = vunpack.c.l.b16 %v777
        %v3050 = vunpack.c.l.b16 %v778
        %v3051 = vunpack.c.l.b16 %v779
        %v3052 = vunpack.c.l.b16 %v780
        %v3053 = vunpack.c.l.b16 %v781
        %v3054 = vunpack.c.l.b16 %v782
        %v3055 = vunpack.c.l.b16 %v783
        %v3056 = vunpack.c.l.b16 %v784
        %v3057 = vunpack.c.l.b16 %v785
        %v3058 = vunpack.c.l.b16 %v786
        %v3059 = vunpack.c.l.b16 %v787
        %v3060 = vunpack.c.l.b16 %v788
        %v3061 = vunpack.c.l.b16 %v789
        %v3062 = vunpack.c.l.b16 %v790
        %v3063 = vunpack.c.l.b16 %v791
        %v3064 = vunpack.c.l.b16 %v792
        %v3065 = vunpack.c.l.b16 %v793
        %v3066 = vunpack.c.l.b16 %v794
        %v3067 = vunpack.c.l.b16 %v795
        %v3068 = vunpack.c.l.b16 %v796
        %v3069 = vunpack.c.l.b16 %v797
        %v3070 = vunpack.c.l.b16 %v798
        %v3071 = vunpack.c.l.b16 %v799
        %v3072 = vunpack.c.l.b16 %v800
        %v3073 = vunpack.c.l.b16 %v801
        %v3074 = vunpack.c.l.b16 %v802
        %v3075 = vunpack.c.l.b16 %v803
        %v3076 = vunpack.c.l.b16 %v804
        %v3077 = vunpack.c.l.b16 %v805
        %v3078 = vunpack.c.l.b16 %v806
        %v3079 = vunpack.c.l.b16 %v807
        %v3080 = vunpack.c.l.b16 %v808
        %v3081 = vunpack.c.l.b16 %v809
        %v3082 = vunpack.c.l.b16 %v810
        %v3083 = vunpack.c.l.b16 %v811
        %v3084 = vunpack.c.l.b16 %v812
        %v3085 = vunpack.c.l.b16 %v813
        %v3086 = vunpack.c.l.b16 %v814
        %v3087 = vunpack.c.l.b16 %v815
        %v3088 = vunpack.c.l.b16 %v816
        %v3089 = vunpack.c.l.b16 %v817
        %v3090 = vunpack.c.l.b16 %v818
        %v3091 = vunpack.c.l.b16 %v819
        %v3092 = vunpack.c.l.b16 %v820
        %v3093 = vunpack.c.l.b16 %v821
        %v3094 = vunpack.c.l.b16 %v822
        %v3095 = vunpack.c.l.b16 %v823
        %v3096 = vunpack.c.l.b16 %v824
        %v3097 = vunpack.c.l.b16 %v825
        %v3098 = vunpack.c.l.b16 %v826
        %v3099 = vunpack.c.l.b16 %v827
        %v3100 = vunpack.c.l.b16 %v828
        %v3101 = vunpack.c.l.b16 %v829
        %v3102 = vunpack.c.l.b16 %v830
        %v3103 = vunpack.c.l.b16 %v831
        %v3104 = vunpack.c.l.b16 %v832
        %v3105 = vunpack.c.l.b16 %v833
        %v3106 = vunpack.c.l.b16 %v834
        %v3107 = vunpack.c.l.b16 %v835
        %v3108 = vunpack.c.l.b16 %v836
        %v3109 = vunpack.c.l.b16 %v837
        %v3110 = vunpack.c.l.b16 %v838
        %v3111 = vunpack.c.l.b16 %v839
        %v3112 = vunpack.c.l.b16 %v840
        %v3113 = vunpack.c.l.b16 %v841
        %v3114 = vunpack.c.l.b16 %v842
        %v3115 = vunpack.c.l.b16 %v843
        %v3116 = vunpack.c.l.b16 %v844
        %v3117 = vunpack.c.l.b16 %v845
        %v3118 = vunpack.c.l.b16 %v846
        %v3119 = vunpack.c.l.b16 %v847
        %v3120 = vunpack.c.l.b16 %v848
        %v3121 = vunpack.c.l.b16 %v849
        %v3122 = vunpack.c.l.b16 %v850
        %v3123 = vunpack.c.l.b16 %v851
        %v3124 = vunpack.c.l.b16 %v852
        %v3125 = vunpack.c.l.b16 %v853
        %v3126 = vunpack.c.l.b16 %v854
        %v3127 = vunpack.c.l.b16 %v855
        %v3128 = vunpack.c.l.b16 %v856
        %v3129 = vunpack.c.l.b16 %v857
        %v3130 = vunpack.c.l.b16 %v858
        %v3131 = vunpack.c.l.b16 %v859
        %v3132 = vunpack.c.l.b16 %v860
        %v3133 = vunpack.c.l.b16 %v861
        %v3134 = vunpack.c.l.b16 %v862
        %v3135 = vunpack.c.l.b16 %v863
        %v3136 = vunpack.c.l.b16 %v864
        %v3137 = vunpack.c.l.b16 %v865
        %v3138 = vunpack.c.l.b16 %v866
        %v3139 = vunpack.c.l.b16 %v867
        %v3140 = vunpack.c.l.b16 %v868
        %v3141 = vunpack.c.l.b16 %v869
        %v3142 = vunpack.c.l.b16 %v870
        %v3143 = vunpack.c.l.b16 %v871
        %v3144 = vunpack.c.l.b16 %v872
        %v3145 = vunpack.c.l.b16 %v873
        %v3146 = vunpack.c.l.b16 %v874
        %v3147 = vunpack.c.l.b16 %v875
        %v3148 = vunpack.c.l.b16 %v876
        %v3149 = vunpack.c.l.b16 %v877
        %v3150 = vunpack.c.l.b16 %v878
        %v3151 = vunpack.c.l.b16 %v879
        %v3152 = vunpack.c.l.b16 %v880
        %v3153 = vunpack.c.l.b16 %v881
        %v3154 = vunpack.c.l.b16 %v882
        %v3155 = vunpack.c.l.b16 %v883
        %v3156 = vunpack.c.l.b16 %v884
        %v3157 = vunpack.c.l.b16 %v885
        %v3158 = vunpack.c.l.b16 %v886
        %v3159 = vunpack.c.l.b16 %v887
        %v3160 = vunpack.c.l.b16 %v888
        %v3161 = vunpack.c.l.b16 %v889
        %v3162 = vunpack.c.l.b16 %v890
        %v3163 = vunpack.c.l.b16 %v891
        %v3164 = vunpack.c.l.b16 %v892
        %v3165 = vunpack.c.l.b16 %v893
        %v3166 = vunpack.c.l.b16 %v894
        %v3167 = vunpack.c.l.b16 %v895
        %v3168 = vunpack.c.l.b16 %v896
        %v3169 = vunpack.c.l.b16 %v897
        %v3170 = vunpack.c.l.b16 %v898
        %v3171 = vunpack.c.l.b16 %v899
        %v3172 = vunpack.c.l.b16 %v900
        %v3173 = vunpack.c.l.b16 %v901
        %v3174 = vunpack.c.l.b16 %v902
        %v3175 = vunpack.c.l.b16 %v903
        %v3176 = vunpack.c.l.b16 %v904
        %v3177 = vunpack.c.l.b16 %v905
        %v3178 = vunpack.c.l.b16 %v906
        %v3179 = vunpack.c.l.b16 %v907
        %v3180 = vunpack.c.l.b16 %v908
        %v3181 = vunpack.c.l.b16 %v909
        %v3182 = vunpack.c.l.b16 %v910
        %v3183 = vunpack.c.l.b16 %v911
        %v3184 = vunpack.c.l.b16 %v912
        %v3185 = vunpack.c.l.b16 %v913
        %v3186 = vunpack.c.l.b16 %v914
        %v3187 = vunpack.c.l.b16 %v915
        %v3188 = vunpack.c.l.b16 %v916
        %v3189 = vunpack.c.l.b16 %v917
        %v3190 = vunpack.c.l.b16 %v918
        %v3191 = vunpack.c.l.b16 %v919
        %v3192 = vunpack.c.l.b16 %v920
        %v3193 = vunpack.c.l.b16 %v921
        %v3194 = vunpack.c.l.b16 %v922
        %v3195 = vunpack.c.l.b16 %v923
        %v3196 = vunpack.c.l.b16 %v924
        %v3197 = vunpack.c.l.b16 %v925
        %v3198 = vunpack.c.l.b16 %v926
        %v3199 = vunpack.c.l.b16 %v927
        %v3200 = vunpack.c.l.b16 %v928
        %v3201 = vunpack.c.l.b16 %v929
        %v3202 = vunpack.c.l.b16 %v930
        %v3203 = vunpack.c.l.b16 %v931
        %v3204 = vunpack.c.l.b16 %v932
        %v3205 = vunpack.c.l.b16 %v933
        %v3206 = vunpack.c.l.b16 %v934
        %v3207 = vunpack.c.l.b16 %v935
        %v3208 = vunpack.c.l.b16 %v936
        %v3209 = vunpack.c.l.b16 %v937
        %v3210 = vunpack.c.l.b16 %v938
        %v3211 = vunpack.c.l.b16 %v939
        %v3212 = vunpack.c.l.b16 %v940
        %v3213 = vunpack.c.l.b16 %v941
        %v3214 = vunpack.c.l.b16 %v942
        %v3215 = vunpack.c.l.b16 %v943
        %v3216 = vunpack.c.l.b16 %v944
        %v3217 = vunpack.c.l.b16 %v945
        %v3218 = vunpack.c.l.b16 %v946
        %v3219 = vunpack.c.l.b16 %v947
        %v3220 = vunpack.c.l.b16 %v948
        %v3221 = vunpack.c.l.b16 %v949
        %v3222 = vunpack.c.l.b16 %v950
        %v3223 = vunpack.c.l.b16 %v951
        %v3224 = vunpack.c.l.b16 %v952
        %v3225 = vunpack.c.l.b16 %v953
        %v3226 = vunpack.c.l.b16 %v954
        %v3227 = vunpack.c.l.b16 %v955
        %v3228 = vunpack.c.l.b16 %v956
        %v3229 = vunpack.c.l.b16 %v957
        %v3230 = vunpack.c.l.b16 %v958
        %v3231 = vunpack.c.l.b16 %v959
        %v3232 = vunpack.c.l.b16 %v960
        %v3233 = vunpack.c.l.b16 %v961
        %v3234 = vunpack.c.l.b16 %v962
        %v3235 = vunpack.c.l.b16 %v963
        %v3236 = vunpack.c.l.b16 %v964
        %v3237 = vunpack.c.l.b16 %v965
        %v3238 = vunpack.c.l.b16 %v966
        %v3239 = vunpack.c.l.b16 %v967
        %v3240 = vunpack.c.l.b16 %v968
        %v3241 = vunpack.c.l.b16 %v969
        %v3242 = vunpack.c.l.b16 %v970
        %v3243 = vunpack.c.l.b16 %v971
        %v3244 = vunpack.c.l.b16 %v972
        %v3245 = vunpack.c.l.b16 %v973
        %v3246 = vunpack.c.l.b16 %v974
        %v3247 = vunpack.c.l.b16 %v975
        %v3248 = vunpack.c.l.b16 %v976
        %v3249 = vunpack.c.l.b16 %v977
        %v3250 = vunpack.c.l.b16 %v978
        %v3251 = vunpack.c.l.b16 %v979
        %v3252 = vunpack.c.l.b16 %v980
        %v3253 = vunpack.c.l.b16 %v981
        %v3254 = vunpack.c.l.b16 %v982
        %v3255 = vunpack.c.l.b16 %v983
        %v3256 = vunpack.c.l.b16 %v984
        %v3257 = vunpack.c.l.b16 %v985
        %v3258 = vunpack.c.l.b16 %v986
        %v3259 = vunpack.c.l.b16 %v987
        %v3260 = vunpack.c.l.b16 %v988
        %v3261 = vunpack.c.l.b16 %v989
        %v3262 = vunpack.c.l.b16 %v990
        %v3263 = vunpack.c.l.b16 %v991
        %v3264 = vunpack.c.l.b16 %v992
        %v3265 = vunpack.c.l.b16 %v993
        %v3266 = vunpack.c.l.b16 %v994
        %v3267 = vunpack.c.l.b16 %v995
        %v3268 = vunpack.c.l.b16 %v996
        %v3269 = vunpack.c.l.b16 %v997
        %v3270 = vunpack.c.l.b16 %v998
        %v3271 = vunpack.c.l.b16 %v999
        %v3272 = vunpack.c.l.b16 %v1000
        %v3273 = vunpack.c.l.b16 %v1001
        %v3274 = vunpack.c.l.b16 %v1002
        %v3275 = vunpack.c.l.b16 %v1003
        %v3276 = vunpack.c.l.b16 %v1004
        %v3277 = vunpack.c.l.b16 %v1005
        %v3278 = vunpack.c.l.b16 %v1006
        %v3279 = vunpack.c.l.b16 %v1007
        %v3280 = vunpack.c.l.b16 %v1008
        %v3281 = vunpack.c.l.b16 %v1009
        %v3282 = vunpack.c.l.b16 %v1010
        %v3283 = vunpack.c.l.b16 %v1011
        %v3284 = vunpack.c.l.b16 %v1012
        %v3285 = vunpack.c.l.b16 %v1013
        %v3286 = vunpack.c.l.b16 %v1014
        %v3287 = vunpack.c.l.b16 %v1015
        %v3288 = vunpack.c.l.b16 %v1016
        %v3289 = vunpack.c.l.b16 %v1017
        %v3290 = vunpack.c.l.b16 %v1018
        %v3291 = vunpack.c.l.b16 %v1019
        %v3292 = vunpack.c.l.b16 %v1020
        %v3293 = vunpack.c.l.b16 %v1021
        %v3294 = vunpack.c.l.b16 %v1022
        %v3295 = vunpack.c.l.b16 %v1023
        %v3296 = vunpack.c.l.b16 %v1024
        %v3297 = vunpack.c.l.b16 %v1025
        %v3298 = vunpack.c.l.b16 %v1026
        %v3299 = vunpack.c.l.b16 %v1027
        %v3300 = vunpack.c.l.b16 %v1028
        %v3301 = vunpack.c.l.b16 %v1029
        %v3302 = vunpack.c.l.b16 %v1030
        %v3303 = vunpack.c.l.b16 %v1031
        %v3304 = vunpack.c.l.b16 %v1032
        %v3305 = vunpack.c.l.b16 %v1033
        %v3306 = vunpack.c.l.b16 %v1034
        %v3307 = vunpack.c.l.b16 %v1035
        %v3308 = vunpack.c.l.b16 %v1036
        %v3309 = vunpack.c.l.b16 %v1037
        %v3310 = vunpack.c.l.b16 %v1038
        %v3311 = vunpack.c.l.b16 %v1039
        %v3312 = vunpack.c.l.b16 %v1040
        %v3313 = vunpack.c.l.b16 %v1041
        %v3314 = vunpack.c.l.b16 %v1042
        %v3315 = vunpack.c.l.b16 %v1043
        %v3316 = vunpack.c.l.b16 %v1044
        %v3317 = vunpack.c.l.b16 %v1045
        %v3318 = vunpack.c.l.b16 %v1046
        %v3319 = vunpack.c.l.b16 %v1047
        %v3320 = vunpack.c.l.b16 %v1048
        %v3321 = vunpack.c.l.b16 %v1049
        %v3322 = vunpack.c.l.b16 %v1050
        %v3323 = vunpack.c.l.b16 %v1051
        %v3324 = vunpack.c.l.b16 %v1052
        %v3325 = vunpack.c.l.b16 %v1053
        %v3326 = vunpack.c.l.b16 %v1054
        %v3327 = vunpack.c.l.b16 %v1055
        %v3328 = vunpack.c.l.b16 %v1056
        %v3329 = vunpack.c.l.b16 %v1057
        %v3330 = vunpack.c.l.b16 %v1058
        %v3331 = vunpack.c.l.b16 %v1059
        %v3332 = vunpack.c.l.b16 %v1060
        %v3333 = vunpack.c.l.b16 %v1061
        %v3334 = vunpack.c.l.b16 %v1062
        %v3335 = vunpack.c.l.b16 %v1063
        %v3336 = vunpack.c.l.b16 %v1064
        %v3337 = vunpack.c.l.b16 %v1065
        %v3338 = vunpack.c.l.b16 %v1066
        %v3339 = vunpack.c.l.b16 %v1067
        %v3340 = vunpack.c.l.b16 %v1068
        %v3341 = vunpack.c.l.b16 %v1069
        %v3342 = vunpack.c.l.b16 %v1070
        %v3343 = vunpack.c.l.b16 %v1071
        %v3344 = vunpack.c.l.b16 %v1072
        %v3345 = vunpack.c.l.b16 %v1073
        %v3346 = vunpack.c.l.b16 %v1074
        %v3347 = vunpack.c.l.b16 %v1075
        %v3348 = vunpack.c.l.b16 %v1076
        %v3349 = vunpack.c.l.b16 %v1077
        %v3350 = vunpack.c.l.b16 %v1078
        %v3351 = vunpack.c.l.b16 %v1079
        %v3352 = vunpack.c.l.b16 %v1080
        %v3353 = vunpack.c.l.b16 %v1081
        %v3354 = vunpack.c.l.b16 %v1082
        %v3355 = vunpack.c.l.b16 %v1083
        %v3356 = vunpack.c.l.b16 %v1084
        %v3357 = vunpack.c.l.b16 %v1085
        %v3358 = vunpack.c.l.b16 %v1086
        %v3359 = vunpack.c.l.b16 %v1087
        %v3360 = vunpack.c.l.b16 %v1088
        %v3361 = vunpack.c.l.b16 %v1089
        %v3362 = vunpack.c.l.b16 %v1090
        %v3363 = vunpack.c.l.b16 %v1091
        %v3364 = vunpack.c.l.b16 %v1092
        %v3365 = vunpack.c.l.b16 %v1093
        %v3366 = vunpack.c.l.b16 %v1094
        %v3367 = vunpack.c.l.b16 %v1095
        %v3368 = vunpack.c.l.b16 %v1096
        %v3369 = vunpack.c.l.b16 %v1097
        %v3370 = vunpack.c.l.b16 %v1098
        %v3371 = vunpack.c.l.b16 %v1099
        %v3372 = vunpack.c.l.b16 %v1100
        %v3373 = vunpack.c.l.b16 %v1101
        %v3374 = vunpack.c.l.b16 %v1102
        %v3375 = vunpack.c.l.b16 %v1103
        %v3376 = vunpack.c.l.b16 %v1104
        %v3377 = vunpack.c.l.b16 %v1105
        %v3378 = vunpack.c.l.b16 %v1106
        %v3379 = vunpack.c.l.b16 %v1107
        %v3380 = vunpack.c.l.b16 %v1108
        %v3381 = vunpack.c.l.b16 %v1109
        %v3382 = vunpack.c.l.b16 %v1110
        %v3383 = vunpack.c.l.b16 %v1111
        %v3384 = vunpack.c.l.b16 %v1112
        %v3385 = vunpack.c.l.b16 %v1113
        %v3386 = vunpack.c.l.b16 %v1114
        %v3387 = vunpack.c.l.b16 %v1115
        %v3388 = vunpack.c.l.b16 %v1116
        %v3389 = vunpack.c.l.b16 %v1117
        %v3390 = vunpack.c.l.b16 %v1118
        %v3391 = vunpack.c.l.b16 %v1119
        %v3392 = vunpack.c.l.b16 %v1120
        %v3393 = vunpack.c.l.b16 %v1121
        %v3394 = vunpack.c.l.b16 %v1122
        %v3395 = vunpack.c.l.b16 %v1123
        %v3396 = vunpack.c.l.b16 %v1124
        %v3397 = vunpack.c.l.b16 %v1125
        %v3398 = vunpack.c.l.b16 %v1126
        %v3399 = vunpack.c.l.b16 %v1127
        %v3400 = vunpack.c.l.b16 %v1128
        %v3401 = vunpack.c.l.b16 %v1129
        %v3402 = vunpack.c.l.b16 %v1130
        %v3403 = vunpack.c.l.b16 %v1131
        %v3404 = vunpack.c.l.b16 %v1132
        %v3405 = vunpack.c.l.b16 %v1133
        %v3406 = vunpack.c.l.b16 %v1134
        %v3407 = vunpack.c.l.b16 %v1135
        %v3408 = vunpack.c.l.b16 %v1136
        %v3409 = vunpack.c.l.b16 %v1137
        %v3410 = vunpack.c.l.b16 %v1138
        %v3411 = vunpack.c.l.b16 %v1139
        %v3412 = vunpack.c.l.b16 %v1140
        %v3413 = vunpack.c.l.b16 %v1141
        %v3414 = vunpack.c.l.b16 %v1142
        %v3415 = vunpack.c.l.b16 %v1143
        %v3416 = vunpack.c.l.b16 %v1144
        %v3417 = vunpack.c.l.b16 %v1145
        %v3418 = vunpack.c.l.b16 %v1146
        %v3419 = vunpack.c.l.b16 %v1147
        %v3420 = vunpack.c.l.b16 %v1148
        %v3421 = vunpack.c.l.b16 %v1149
        %v3422 = vunpack.c.l.b16 %v1150
        %v3423 = vunpack.c.l.b16 %v1151
        %v3424 = vunpack.c.l.b16 %v1152
        %v3425 = vunpack.c.l.b16 %v1153
        %v3426 = vunpack.c.l.b16 %v1154
        %v3427 = vunpack.c.l.b16 %v1155
        %v3428 = vunpack.c.l.b16 %v1156
        %v3429 = vunpack.c.l.b16 %v1157
        %v3430 = vunpack.c.l.b16 %v1158
        %v3431 = vunpack.c.l.b16 %v1159
        %v3432 = vunpack.c.l.b16 %v1160
        %v3433 = vunpack.c.l.b16 %v1161
        %v3434 = vunpack.c.l.b16 %v1162
        %v3435 = vunpack.c.l.b16 %v1163
        %v3436 = vunpack.c.l.b16 %v1164
        %v3437 = vunpack.c.l.b16 %v1165
        %v3438 = vunpack.c.l.b16 %v1166
        %v3439 = vunpack.c.l.b16 %v1167
        %v3440 = vunpack.c.l.b16 %v1168
        %v3441 = vunpack.c.l.b16 %v1169
        %v3442 = vunpack.c.l.b16 %v1170
        %v3443 = vunpack.c.l.b16 %v1171
        %v3444 = vunpack.c.l.b16 %v1172
        %v3445 = vunpack.c.l.b16 %v1173
        %v3446 = vunpack.c.l.b16 %v1174
        %v3447 = vunpack.c.l.b16 %v1175
        %v3448 = vunpack.c.l.b16 %v1176
        %v3449 = vunpack.c.l.b16 %v1177
        %v3450 = vunpack.c.l.b16 %v1178
        %v3451 = vunpack.c.l.b16 %v1179
        %v3452 = vunpack.c.l.b16 %v1180
        %v3453 = vunpack.c.l.b16 %v1181
        %v3454 = vunpack.c.l.b16 %v1182
        %v3455 = vunpack.c.l.b16 %v1183
        %v3456 = vunpack.c.l.b16 %v1184
        %v3457 = vunpack.c.l.b16 %v1185
        %v3458 = vunpack.c.l.b16 %v1186
        %v3459 = vunpack.c.l.b16 %v1187
        %v3460 = vunpack.c.l.b16 %v1188
        %v3461 = vunpack.c.l.b16 %v1189
        %v3462 = vunpack.c.l.b16 %v1190
        %v3463 = vunpack.c.l.b16 %v1191
        %v3464 = vunpack.c.l.b16 %v1192
        %v3465 = vunpack.c.l.b16 %v1193
        %v3466 = vunpack.c.l.b16 %v1194
        %v3467 = vunpack.c.l.b16 %v1195
        %v3468 = vunpack.c.l.b16 %v1196
        %v3469 = vunpack.c.l.b16 %v1197
        %v3470 = vunpack.c.l.b16 %v1198
        %v3471 = vunpack.c.l.b16 %v1199
        %v3472 = vunpack.c.l.b16 %v1200
        %v3473 = vunpack.c.l.b16 %v1201
        %v3474 = vunpack.c.l.b16 %v1202
        %v3475 = vunpack.c.l.b16 %v1203
        %v3476 = vunpack.c.l.b16 %v1204
        %v3477 = vunpack.c.l.b16 %v1205
        %v3478 = vunpack.c.l.b16 %v1206
        %v3479 = vunpack.c.l.b16 %v1207
        %v3480 = vunpack.c.l.b16 %v1208
        %v3481 = vunpack.c.l.b16 %v1209
        %v3482 = vunpack.c.l.b16 %v1210
        %v3483 = vunpack.c.l.b16 %v1211
        %v3484 = vunpack.c.l.b16 %v1212
        %v3485 = vunpack.c.l.b16 %v1213
        %v3486 = vunpack.c.l.b16 %v1214
        %v3487 = vunpack.c.l.b16 %v1215
        %v3488 = vunpack.c.l.b16 %v1216
        %v3489 = vunpack.c.l.b16 %v1217
        %v3490 = vunpack.c.l.b16 %v1218
        %v3491 = vunpack.c.l.b16 %v1219
        %v3492 = vunpack.c.l.b16 %v1220
        %v3493 = vunpack.c.l.b16 %v1221
        %v3494 = vunpack.c.l.b16 %v1222
        %v3495 = vunpack.c.l.b16 %v1223
        %v3496 = vunpack.c.l.b16 %v1224
        %v3497 = vunpack.c.l.b16 %v1225
        %v3498 = vunpack.c.l.b16 %v1226
        %v3499 = vunpack.c.l.b16 %v1227
        %v3500 = vunpack.c.l.b16 %v1228
        %v3501 = vunpack.c.l.b16 %v1229
        %v3502 = vunpack.c.l.b16 %v1230
        %v3503 = vunpack.c.l.b16 %v1231
        %v3504 = vunpack.c.l.b16 %v1232
        %v3505 = vunpack.c.l.b16 %v1233
        %v3506 = vunpack.c.l.b16 %v1234
        %v3507 = vunpack.c.l.b16 %v1235
        %v3508 = vunpack.c.l.b16 %v1236
        %v3509 = vunpack.c.l.b16 %v1237
        %v3510 = vunpack.c.l.b16 %v1238
        %v3511 = vunpack.c.l.b16 %v1239
        %v3512 = vunpack.c.l.b16 %v1240
        %v3513 = vunpack.c.l.b16 %v1241
        %v3514 = vunpack.c.l.b16 %v1242
        %v3515 = vunpack.c.l.b16 %v1243
        %v3516 = vunpack.c.l.b16 %v1244
        %v3517 = vunpack.c.l.b16 %v1245
        %v3518 = vunpack.c.l.b16 %v1246
        %v3519 = vunpack.c.l.b16 %v1247
        %v3520 = vunpack.c.l.b16 %v1248
        %v3521 = vunpack.c.l.b16 %v1249
        %v3522 = vunpack.c.l.b16 %v1250
        %v3523 = vunpack.c.l.b16 %v1251
        %v3524 = vunpack.c.l.b16 %v1252
        %v3525 = vunpack.c.l.b16 %v1253
        %v3526 = vunpack.c.l.b16 %v1254
        %v3527 = vunpack.c.l.b16 %v1255
        %v3528 = vunpack.c.l.b16 %v1256
        %v3529 = vunpack.c.l.b16 %v1257
        %v3530 = vunpack.c.l.b16 %v1258
        %v3531 = vunpack.c.l.b16 %v1259
        %v3532 = vunpack.c.l.b16 %v1260
        %v3533 = vunpack.c.l.b16 %v1261
        %v3534 = vunpack.c.l.b16 %v1262
        %v3535 = vunpack.c.l.b16 %v1263
        %v3536 = vunpack.c.l.b16 %v1264
        %v3537 = vunpack.c.l.b16 %v1265
        %v3538 = vunpack.c.l.b16 %v1266
        %v3539 = vunpack.c.l.b16 %v1267
        %v3540 = vunpack.c.l.b16 %v1268
        %v3541 = vunpack.c.l.b16 %v1269
        %v3542 = vunpack.c.l.b16 %v1270
        %v3543 = vunpack.c.l.b16 %v1271
        %v3544 = vunpack.c.l.b16 %v1272
        %v3545 = vunpack.c.l.b16 %v1273
        %v3546 = vunpack.c.l.b16 %v1274
        %v3547 = vpack.c.b16 %v2524, %v2523
        %v3548 = vpack.c.b16 %v2526, %v2525
        %v3549 = vpack.c.b16 %v2528, %v2527
        %v3550 = vpack.c.b16 %v2530, %v2529
        %v3551 = vpack.c.b16 %v2532, %v2531
        %v3552 = vpack.c.b16 %v2534, %v2533
        %v3553 = vpack.c.b16 %v2536, %v2535
        %v3554 = vpack.c.b16 %v2538, %v2537
        %v3555 = vpack.c.b16 %v2540, %v2539
        %v3556 = vpack.c.b16 %v2542, %v2541
        %v3557 = vpack.c.b16 %v2544, %v2543
        %v3558 = vpack.c.b16 %v2546, %v2545
        %v3559 = vpack.c.b16 %v2548, %v2547
        %v3560 = vpack.c.b16 %v2550, %v2549
        %v3561 = vpack.c.b16 %v2552, %v2551
        %v3562 = vpack.c.b16 %v2554, %v2553
        %v3563 = vpack.c.b16 %v2556, %v2555
        %v3564 = vpack.c.b16 %v2558, %v2557
        %v3565 = vpack.c.b16 %v2560, %v2559
        %v3566 = vpack.c.b16 %v2562, %v2561
        %v3567 = vpack.c.b16 %v2564, %v2563
        %v3568 = vpack.c.b16 %v2566, %v2565
        %v3569 = vpack.c.b16 %v2568, %v2567
        %v3570 = vpack.c.b16 %v2570, %v2569
        %v3571 = vpack.c.b16 %v2572, %v2571
        %v3572 = vpack.c.b16 %v2574, %v2573
        %v3573 = vpack.c.b16 %v2576, %v2575
        %v3574 = vpack.c.b16 %v2578, %v2577
        %v3575 = vpack.c.b16 %v2580, %v2579
        %v3576 = vpack.c.b16 %v2582, %v2581
        %v3577 = vpack.c.b16 %v2584, %v2583
        %v3578 = vpack.c.b16 %v2586, %v2585
        %v3579 = vpack.c.b16 %v2588, %v2587
        %v3580 = vpack.c.b16 %v2590, %v2589
        %v3581 = vpack.c.b16 %v2592, %v2591
        %v3582 = vpack.c.b16 %v2594, %v2593
        %v3583 = vpack.c.b16 %v2596, %v2595
        %v3584 = vpack.c.b16 %v2598, %v2597
        %v3585 = vpack.c.b16 %v2600, %v2599
        %v3586 = vpack.c.b16 %v2602, %v2601
        %v3587 = vpack.c.b16 %v2604, %v2603
        %v3588 = vpack.c.b16 %v2606, %v2605
        %v3589 = vpack.c.b16 %v2608, %v2607
        %v3590 = vpack.c.b16 %v2610, %v2609
        %v3591 = vpack.c.b16 %v2612, %v2611
        %v3592 = vpack.c.b16 %v2614, %v2613
        %v3593 = vpack.c.b16 %v2616, %v2615
        %v3594 = vpack.c.b16 %v2618, %v2617
        %v3595 = vpack.c.b16 %v2620, %v2619
        %v3596 = vpack.c.b16 %v2622, %v2621
        %v3597 = vpack.c.b16 %v2624, %v2623
        %v3598 = vpack.c.b16 %v2626, %v2625
        %v3599 = vpack.c.b16 %v2628, %v2627
        %v3600 = vpack.c.b16 %v2630, %v2629
        %v3601 = vpack.c.b16 %v2632, %v2631
        %v3602 = vpack.c.b16 %v2634, %v2633
        %v3603 = vpack.c.b16 %v2636, %v2635
        %v3604 = vpack.c.b16 %v2638, %v2637
        %v3605 = vpack.c.b16 %v2640, %v2639
        %v3606 = vpack.c.b16 %v2642, %v2641
        %v3607 = vpack.c.b16 %v2644, %v2643
        %v3608 = vpack.c.b16 %v2646, %v2645
        %v3609 = vpack.c.b16 %v2648, %v2647
        %v3610 = vpack.c.b16 %v2650, %v2649
        %v3611 = vpack.c.b16 %v2652, %v2651
        %v3612 = vpack.c.b16 %v2654, %v2653
        %v3613 = vpack.c.b16 %v2656, %v2655
        %v3614 = vpack.c.b16 %v2658, %v2657
        %v3615 = vpack.c.b16 %v2660, %v2659
        %v3616 = vpack.c.b16 %v2662, %v2661
        %v3617 = vpack.c.b16 %v2664, %v2663
        %v3618 = vpack.c.b16 %v2666, %v2665
        %v3619 = vpack.c.b16 %v2668, %v2667
        %v3620 = vpack.c.b16 %v2670, %v2669
        %v3621 = vpack.c.b16 %v2672, %v2671
        %v3622 = vpack.c.b16 %v2674, %v2673
        %v3623 = vpack.c.b16 %v2676, %v2675
        %v3624 = vpack.c.b16 %v2678, %v2677
        %v3625 = vpack.c.b16 %v2680, %v2679
        %v3626 = vpack.c.b16 %v2682, %v2681
        %v3627 = vpack.c.b16 %v2684, %v2683
        %v3628 = vpack.c.b16 %v2686, %v2685
        %v3629 = vpack.c.b16 %v2688, %v2687
        %v3630 = vpack.c.b16 %v2690, %v2689
        %v3631 = vpack.c.b16 %v2692, %v2691
        %v3632 = vpack.c.b16 %v2694, %v2693
        %v3633 = vpack.c.b16 %v2696, %v2695
        %v3634 = vpack.c.b16 %v2698, %v2697
        %v3635 = vpack.c.b16 %v2700, %v2699
        %v3636 = vpack.c.b16 %v2702, %v2701
        %v3637 = vpack.c.b16 %v2704, %v2703
        %v3638 = vpack.c.b16 %v2706, %v2705
        %v3639 = vpack.c.b16 %v2708, %v2707
        %v3640 = vpack.c.b16 %v2710, %v2709
        %v3641 = vpack.c.b16 %v2712, %v2711
        %v3642 = vpack.c.b16 %v2714, %v2713
        %v3643 = vpack.c.b16 %v2716, %v2715
        %v3644 = vpack.c.b16 %v2718, %v2717
        %v3645 = vpack.c.b16 %v2720, %v2719
        %v3646 = vpack.c.b16 %v2722, %v2721
        %v3647 = vpack.c.b16 %v2724, %v2723
        %v3648 = vpack.c.b16 %v2726, %v2725
        %v3649 = vpack.c.b16 %v2728, %v2727
        %v3650 = vpack.c.b16 %v2730, %v2729
        %v3651 = vpack.c.b16 %v2732, %v2731
        %v3652 = vpack.c.b16 %v2734, %v2733
        %v3653 = vpack.c.b16 %v2736, %v2735
        %v3654 = vpack.c.b16 %v2738, %v2737
        %v3655 = vpack.c.b16 %v2740, %v2739
        %v3656 = vpack.c.b16 %v2742, %v2741
        %v3657 = vpack.c.b16 %v2744, %v2743
        %v3658 = vpack.c.b16 %v2746, %v2745
        %v3659 = vpack.c.b16 %v2748, %v2747
        %v3660 = vpack.c.b16 %v2750, %v2749
        %v3661 = vpack.c.b16 %v2752, %v2751
        %v3662 = vpack.c.b16 %v2754, %v2753
        %v3663 = vpack.c.b16 %v2756, %v2755
        %v3664 = vpack.c.b16 %v2758, %v2757
        %v3665 = vpack.c.b16 %v2760, %v2759
        %v3666 = vpack.c.b16 %v2762, %v2761
        %v3667 = vpack.c.b16 %v2764, %v2763
        %v3668 = vpack.c.b16 %v2766, %v2765
        %v3669 = vpack.c.b16 %v2768, %v2767
        %v3670 = vpack.c.b16 %v2770, %v2769
        %v3671 = vpack.c.b16 %v2772, %v2771
        %v3672 = vpack.c.b16 %v2774, %v2773
        %v3673 = vpack.c.b16 %v2776, %v2775
        %v3674 = vpack.c.b16 %v2778, %v2777
        %v3675 = vpack.c.b16 %v2780, %v2779
        %v3676 = vpack.c.b16 %v2782, %v2781
        %v3677 = vpack.c.b16 %v2784, %v2783
        %v3678 = vpack.c.b16 %v2786, %v2785
        %v3679 = vpack.c.b16 %v2788, %v2787
        %v3680 = vpack.c.b16 %v2790, %v2789
        %v3681 = vpack.c.b16 %v2792, %v2791
        %v3682 = vpack.c.b16 %v2794, %v2793
        %v3683 = vpack.c.b16 %v2796, %v2795
        %v3684 = vpack.c.b16 %v2798, %v2797
        %v3685 = vpack.c.b16 %v2800, %v2799
        %v3686 = vpack.c.b16 %v2802, %v2801
        %v3687 = vpack.c.b16 %v2804, %v2803
        %v3688 = vpack.c.b16 %v2806, %v2805
        %v3689 = vpack.c.b16 %v2808, %v2807
        %v3690 = vpack.c.b16 %v2810, %v2809
        %v3691 = vpack.c.b16 %v2812, %v2811
        %v3692 = vpack.c.b16 %v2814, %v2813
        %v3693 = vpack.c.b16 %v2816, %v2815
        %v3694 = vpack.c.b16 %v2818, %v2817
        %v3695 = vpack.c.b16 %v2820, %v2819
        %v3696 = vpack.c.b16 %v2822, %v2821
        %v3697 = vpack.c.b16 %v2824, %v2823
        %v3698 = vpack.c.b16 %v2826, %v2825
        %v3699 = vpack.c.b16 %v2828, %v2827
        %v3700 = vpack.c.b16 %v2830, %v2829
        %v3701 = vpack.c.b16 %v2832, %v2831
        %v3702 = vpack.c.b16 %v2834, %v2833
        %v3703 = vpack.c.b16 %v2836, %v2835
        %v3704 = vpack.c.b16 %v2838, %v2837
        %v3705 = vpack.c.b16 %v2840, %v2839
        %v3706 = vpack.c.b16 %v2842, %v2841
        %v3707 = vpack.c.b16 %v2844, %v2843
        %v3708 = vpack.c.b16 %v2846, %v2845
        %v3709 = vpack.c.b16 %v2848, %v2847
        %v3710 = vpack.c.b16 %v2850, %v2849
        %v3711 = vpack.c.b16 %v2852, %v2851
        %v3712 = vpack.c.b16 %v2854, %v2853
        %v3713 = vpack.c.b16 %v2856, %v2855
        %v3714 = vpack.c.b16 %v2858, %v2857
        %v3715 = vpack.c.b16 %v2860, %v2859
        %v3716 = vpack.c.b16 %v2862, %v2861
        %v3717 = vpack.c.b16 %v2864, %v2863
        %v3718 = vpack.c.b16 %v2866, %v2865
        %v3719 = vpack.c.b16 %v2868, %v2867
        %v3720 = vpack.c.b16 %v2870, %v2869
        %v3721 = vpack.c.b16 %v2872, %v2871
        %v3722 = vpack.c.b16 %v2874, %v2873
        %v3723 = vpack.c.b16 %v2876, %v2875
        %v3724 = vpack.c.b16 %v2878, %v2877
        %v3725 = vpack.c.b16 %v2880, %v2879
        %v3726 = vpack.c.b16 %v2882, %v2881
        %v3727 = vpack.c.b16 %v2884, %v2883
        %v3728 = vpack.c.b16 %v2886, %v2885
        %v3729 = vpack.c.b16 %v2888, %v2887
        %v3730 = vpack.c.b16 %v2890, %v2889
        %v3731 = vpack.c.b16 %v2892, %v2891
        %v3732 = vpack.c.b16 %v2894, %v2893
        %v3733 = vpack.c.b16 %v2896, %v2895
        %v3734 = vpack.c.b16 %v2898, %v2897
        %v3735 = vpack.c.b16 %v2900, %v2899
        %v3736 = vpack.c.b16 %v2902, %v2901
        %v3737 = vpack.c.b16 %v2904, %v2903
        %v3738 = vpack.c.b16 %v2906, %v2905
        %v3739 = vpack.c.b16 %v2908, %v2907
        %v3740 = vpack.c.b16 %v2910, %v2909
        %v3741 = vpack.c.b16 %v2912, %v2911
        %v3742 = vpack.c.b16 %v2914, %v2913
        %v3743 = vpack.c.b16 %v2916, %v2915
        %v3744 = vpack.c.b16 %v2918, %v2917
        %v3745 = vpack.c.b16 %v2920, %v2919
        %v3746 = vpack.c.b16 %v2922, %v2921
        %v3747 = vpack.c.b16 %v2924, %v2923
        %v3748 = vpack.c.b16 %v2926, %v2925
        %v3749 = vpack.c.b16 %v2928, %v2927
        %v3750 = vpack.c.b16 %v2930, %v2929
        %v3751 = vpack.c.b16 %v2932, %v2931
        %v3752 = vpack.c.b16 %v2934, %v2933
        %v3753 = vpack.c.b16 %v2936, %v2935
        %v3754 = vpack.c.b16 %v2938, %v2937
        %v3755 = vpack.c.b16 %v2940, %v2939
        %v3756 = vpack.c.b16 %v2942, %v2941
        %v3757 = vpack.c.b16 %v2944, %v2943
        %v3758 = vpack.c.b16 %v2946, %v2945
        %v3759 = vpack.c.b16 %v2948, %v2947
        %v3760 = vpack.c.b16 %v2950, %v2949
        %v3761 = vpack.c.b16 %v2952, %v2951
        %v3762 = vpack.c.b16 %v2954, %v2953
        %v3763 = vpack.c.b16 %v2956, %v2955
        %v3764 = vpack.c.b16 %v2958, %v2957
        %v3765 = vpack.c.b16 %v2960, %v2959
        %v3766 = vpack.c.b16 %v2962, %v2961
        %v3767 = vpack.c.b16 %v2964, %v2963
        %v3768 = vpack.c.b16 %v2966, %v2965
        %v3769 = vpack.c.b16 %v2968, %v2967
        %v3770 = vpack.c.b16 %v2970, %v2969
        %v3771 = vpack.c.b16 %v2972, %v2971
        %v3772 = vpack.c.b16 %v2974, %v2973
        %v3773 = vpack.c.b16 %v2976, %v2975
        %v3774 = vpack.c.b16 %v2978, %v2977
        %v3775 = vpack.c.b16 %v2980, %v2979
        %v3776 = vpack.c.b16 %v2982, %v2981
        %v3777 = vpack.c.b16 %v2984, %v2983
        %v3778 = vpack.c.b16 %v2986, %v2985
        %v3779 = vpack.c.b16 %v2988, %v2987
        %v3780 = vpack.c.b16 %v2990, %v2989
        %v3781 = vpack.c.b16 %v2992, %v2991
        %v3782 = vpack.c.b16 %v2994, %v2993
        %v3783 = vpack.c.b16 %v2996, %v2995
        %v3784 = vpack.c.b16 %v2998, %v2997
        %v3785 = vpack.c.b16 %v3000, %v2999
        %v3786 = vpack.c.b16 %v3002, %v3001
        %v3787 = vpack.c.b16 %v3004, %v3003
        %v3788 = vpack.c.b16 %v3006, %v3005
        %v3789 = vpack.c.b16 %v3008, %v3007
        %v3790 = vpack.c.b16 %v3010, %v3009
        %v3791 = vpack.c.b16 %v3012, %v3011
        %v3792 = vpack.c.b16 %v3014, %v3013
        %v3793 = vpack.c.b16 %v3016, %v3015
        %v3794 = vpack.c.b16 %v3018, %v3017
        %v3795 = vpack.c.b16 %v3020, %v3019
        %v3796 = vpack.c.b16 %v3022, %v3021
        %v3797 = vpack.c.b16 %v3024, %v3023
        %v3798 = vpack.c.b16 %v3026, %v3025
        %v3799 = vpack.c.b16 %v3028, %v3027
        %v3800 = vpack.c.b16 %v3030, %v3029
        %v3801 = vpack.c.b16 %v3032, %v3031
        %v3802 = vpack.c.b16 %v3034, %v3033
        %v3803 = vpack.c.b16 %v3036, %v3035
        %v3804 = vpack.c.b16 %v3038, %v3037
        %v3805 = vpack.c.b16 %v3040, %v3039
        %v3806 = vpack.c.b16 %v3042, %v3041
        %v3807 = vpack.c.b16 %v3044, %v3043
        %v3808 = vpack.c.b16 %v3046, %v3045
        %v3809 = vpack.c.b16 %v3048, %v3047
        %v3810 = vpack.c.b16 %v3050, %v3049
        %v3811 = vpack.c.b16 %v3052, %v3051
        %v3812 = vpack.c.b16 %v3054, %v3053
        %v3813 = vpack.c.b16 %v3056, %v3055
        %v3814 = vpack.c.b16 %v3058, %v3057
        %v3815 = vpack.c.b16 %v3060, %v3059
        %v3816 = vpack.c.b16 %v3062, %v3061
        %v3817 = vpack.c.b16 %v3064, %v3063
        %v3818 = vpack.c.b16 %v3066, %v3065
        %v3819 = vpack.c.b16 %v3068, %v3067
        %v3820 = vpack.c.b16 %v3070, %v3069
        %v3821 = vpack.c.b16 %v3072, %v3071
        %v3822 = vpack.c.b16 %v3074, %v3073
        %v3823 = vpack.c.b16 %v3076, %v3075
        %v3824 = vpack.c.b16 %v3078, %v3077
        %v3825 = vpack.c.b16 %v3080, %v3079
        %v3826 = vpack.c.b16 %v3082, %v3081
        %v3827 = vpack.c.b16 %v3084, %v3083
        %v3828 = vpack.c.b16 %v3086, %v3085
        %v3829 = vpack.c.b16 %v3088, %v3087
        %v3830 = vpack.c.b16 %v3090, %v3089
        %v3831 = vpack.c.b16 %v3092, %v3091
        %v3832 = vpack.c.b16 %v3094, %v3093
        %v3833 = vpack.c.b16 %v3096, %v3095
        %v3834 = vpack.c.b16 %v3098, %v3097
        %v3835 = vpack.c.b16 %v3100, %v3099
        %v3836 = vpack.c.b16 %v3102, %v3101
        %v3837 = vpack.c.b16 %v3104, %v3103
        %v3838 = vpack.c.b16 %v3106, %v3105
        %v3839 = vpack.c.b16 %v3108, %v3107
        %v3840 = vpack.c.b16 %v3110, %v3109
        %v3841 = vpack.c.b16 %v3112, %v3111
        %v3842 = vpack.c.b16 %v3114, %v3113
        %v3843 = vpack.c.b16 %v3116, %v3115
        %v3844 = vpack.c.b16 %v3118, %v3117
        %v3845 = vpack.c.b16 %v3120, %v3119
        %v3846 = vpack.c.b16 %v3122, %v3121
        %v3847 = vpack.c.b16 %v3124, %v3123
        %v3848 = vpack.c.b16 %v3126, %v3125
        %v3849 = vpack.c.b16 %v3128, %v3127
        %v3850 = vpack.c.b16 %v3130, %v3129
        %v3851 = vpack.c.b16 %v3132, %v3131
        %v3852 = vpack.c.b16 %v3134, %v3133
        %v3853 = vpack.c.b16 %v3136, %v3135
        %v3854 = vpack.c.b16 %v3138, %v3137
        %v3855 = vpack.c.b16 %v3140, %v3139
        %v3856 = vpack.c.b16 %v3142, %v3141
        %v3857 = vpack.c.b16 %v3144, %v3143
        %v3858 = vpack.c.b16 %v3146, %v3145
        %v3859 = vpack.c.b16 %v3148, %v3147
        %v3860 = vpack.c.b16 %v3150, %v3149
        %v3861 = vpack.c.b16 %v3152, %v3151
        %v3862 = vpack.c.b16 %v3154, %v3153
        %v3863 = vpack.c.b16 %v3156, %v3155
        %v3864 = vpack.c.b16 %v3158, %v3157
        %v3865 = vpack.c.b16 %v3160, %v3159
        %v3866 = vpack.c.b16 %v3162, %v3161
        %v3867 = vpack.c.b16 %v3164, %v3163
        %v3868 = vpack.c.b16 %v3166, %v3165
        %v3869 = vpack.c.b16 %v3168, %v3167
        %v3870 = vpack.c.b16 %v3170, %v3169
        %v3871 = vpack.c.b16 %v3172, %v3171
        %v3872 = vpack.c.b16 %v3174, %v3173
        %v3873 = vpack.c.b16 %v3176, %v3175
        %v3874 = vpack.c.b16 %v3178, %v3177
        %v3875 = vpack.c.b16 %v3180, %v3179
        %v3876 = vpack.c.b16 %v3182, %v3181
        %v3877 = vpack.c.b16 %v3184, %v3183
        %v3878 = vpack.c.b16 %v3186, %v3185
        %v3879 = vpack.c.b16 %v3188, %v3187
        %v3880 = vpack.c.b16 %v3190, %v3189
        %v3881 = vpack.c.b16 %v3192, %v3191
        %v3882 = vpack.c.b16 %v3194, %v3193
        %v3883 = vpack.c.b16 %v3196, %v3195
        %v3884 = vpack.c.b16 %v3198, %v3197
        %v3885 = vpack.c.b16 %v3200, %v3199
        %v3886 = vpack.c.b16 %v3202, %v3201
        %v3887 = vpack.c.b16 %v3204, %v3203
        %v3888 = vpack.c.b16 %v3206, %v3205
        %v3889 = vpack.c.b16 %v3208, %v3207
        %v3890 = vpack.c.b16 %v3210, %v3209
        %v3891 = vpack.c.b16 %v3212, %v3211
        %v3892 = vpack.c.b16 %v3214, %v3213
        %v3893 = vpack.c.b16 %v3216, %v3215
        %v3894 = vpack.c.b16 %v3218, %v3217
        %v3895 = vpack.c.b16 %v3220, %v3219
        %v3896 = vpack.c.b16 %v3222, %v3221
        %v3897 = vpack.c.b16 %v3224, %v3223
        %v3898 = vpack.c.b16 %v3226, %v3225
        %v3899 = vpack.c.b16 %v3228, %v3227
        %v3900 = vpack.c.b16 %v3230, %v3229
        %v3901 = vpack.c.b16 %v3232, %v3231
        %v3902 = vpack.c.b16 %v3234, %v3233
        %v3903 = vpack.c.b16 %v3236, %v3235
        %v3904 = vpack.c.b16 %v3238, %v3237
        %v3905 = vpack.c.b16 %v3240, %v3239
        %v3906 = vpack.c.b16 %v3242, %v3241
        %v3907 = vpack.c.b16 %v3244, %v3243
        %v3908 = vpack.c.b16 %v3246, %v3245
        %v3909 = vpack.c.b16 %v3248, %v3247
        %v3910 = vpack.c.b16 %v3250, %v3249
        %v3911 = vpack.c.b16 %v3252, %v3251
        %v3912 = vpack.c.b16 %v3254, %v3253
        %v3913 = vpack.c.b16 %v3256, %v3255
        %v3914 = vpack.c.b16 %v3258, %v3257
        %v3915 = vpack.c.b16 %v3260, %v3259
        %v3916 = vpack.c.b16 %v3262, %v3261
        %v3917 = vpack.c.b16 %v3264, %v3263
        %v3918 = vpack.c.b16 %v3266, %v3265
        %v3919 = vpack.c.b16 %v3268, %v3267
        %v3920 = vpack.c.b16 %v3270, %v3269
        %v3921 = vpack.c.b16 %v3272, %v3271
        %v3922 = vpack.c.b16 %v3274, %v3273
        %v3923 = vpack.c.b16 %v3276, %v3275
        %v3924 = vpack.c.b16 %v3278, %v3277
        %v3925 = vpack.c.b16 %v3280, %v3279
        %v3926 = vpack.c.b16 %v3282, %v3281
        %v3927 = vpack.c.b16 %v3284, %v3283
        %v3928 = vpack.c.b16 %v3286, %v3285
        %v3929 = vpack.c.b16 %v3288, %v3287
        %v3930 = vpack.c.b16 %v3290, %v3289
        %v3931 = vpack.c.b16 %v3292, %v3291
        %v3932 = vpack.c.b16 %v3294, %v3293
        %v3933 = vpack.c.b16 %v3296, %v3295
        %v3934 = vpack.c.b16 %v3298, %v3297
        %v3935 = vpack.c.b16 %v3300, %v3299
        %v3936 = vpack.c.b16 %v3302, %v3301
        %v3937 = vpack.c.b16 %v3304, %v3303
        %v3938 = vpack.c.b16 %v3306, %v3305
        %v3939 = vpack.c.b16 %v3308, %v3307
        %v3940 = vpack.c.b16 %v3310, %v3309
        %v3941 = vpack.c.b16 %v3312, %v3311
        %v3942 = vpack.c.b16 %v3314, %v3313
        %v3943 = vpack.c.b16 %v3316, %v3315
        %v3944 = vpack.c.b16 %v3318, %v3317
        %v3945 = vpack.c.b16 %v3320, %v3319
        %v3946 = vpack.c.b16 %v3322, %v3321
        %v3947 = vpack.c.b16 %v3324, %v3323
        %v3948 = vpack.c.b16 %v3326, %v3325
        %v3949 = vpack.c.b16 %v3328, %v3327
        %v3950 = vpack.c.b16 %v3330, %v3329
        %v3951 = vpack.c.b16 %v3332, %v3331
        %v3952 = vpack.c.b16 %v3334, %v3333
        %v3953 = vpack.c.b16 %v3336, %v3335
        %v3954 = vpack.c.b16 %v3338, %v3337
        %v3955 = vpack.c.b16 %v3340, %v3339
        %v3956 = vpack.c.b16 %v3342, %v3341
        %v3957 = vpack.c.b16 %v3344, %v3343
        %v3958 = vpack.c.b16 %v3346, %v3345
        %v3959 = vpack.c.b16 %v3348, %v3347
        %v3960 = vpack.c.b16 %v3350, %v3349
        %v3961 = vpack.c.b16 %v3352, %v3351
        %v3962 = vpack.c.b16 %v3354, %v3353
        %v3963 = vpack.c.b16 %v3356, %v3355
        %v3964 = vpack.c.b16 %v3358, %v3357
        %v3965 = vpack.c.b16 %v3360, %v3359
        %v3966 = vpack.c.b16 %v3362, %v3361
        %v3967 = vpack.c.b16 %v3364, %v3363
        %v3968 = vpack.c.b16 %v3366, %v3365
        %v3969 = vpack.c.b16 %v3368, %v3367
        %v3970 = vpack.c.b16 %v3370, %v3369
        %v3971 = vpack.c.b16 %v3372, %v3371
        %v3972 = vpack.c.b16 %v3374, %v3373
        %v3973 = vpack.c.b16 %v3376, %v3375
        %v3974 = vpack.c.b16 %v3378, %v3377
        %v3975 = vpack.c.b16 %v3380, %v3379
        %v3976 = vpack.c.b16 %v3382, %v3381
        %v3977 = vpack.c.b16 %v3384, %v3383
        %v3978 = vpack.c.b16 %v3386, %v3385
        %v3979 = vpack.c.b16 %v3388, %v3387
        %v3980 = vpack.c.b16 %v3390, %v3389
        %v3981 = vpack.c.b16 %v3392, %v3391
        %v3982 = vpack.c.b16 %v3394, %v3393
        %v3983 = vpack.c.b16 %v3396, %v3395
        %v3984 = vpack.c.b16 %v3398, %v3397
        %v3985 = vpack.c.b16 %v3400, %v3399
        %v3986 = vpack.c.b16 %v3402, %v3401
        %v3987 = vpack.c.b16 %v3404, %v3403
        %v3988 = vpack.c.b16 %v3406, %v3405
        %v3989 = vpack.c.b16 %v3408, %v3407
        %v3990 = vpack.c.b16 %v3410, %v3409
        %v3991 = vpack.c.b16 %v3412, %v3411
        %v3992 = vpack.c.b16 %v3414, %v3413
        %v3993 = vpack.c.b16 %v3416, %v3415
        %v3994 = vpack.c.b16 %v3418, %v3417
        %v3995 = vpack.c.b16 %v3420, %v3419
        %v3996 = vpack.c.b16 %v3422, %v3421
        %v3997 = vpack.c.b16 %v3424, %v3423
        %v3998 = vpack.c.b16 %v3426, %v3425
        %v3999 = vpack.c.b16 %v3428, %v3427
        %v4000 = vpack.c.b16 %v3430, %v3429
        %v4001 = vpack.c.b16 %v3432, %v3431
        %v4002 = vpack.c.b16 %v3434, %v3433
        %v4003 = vpack.c.b16 %v3436, %v3435
        %v4004 = vpack.c.b16 %v3438, %v3437
        %v4005 = vpack.c.b16 %v3440, %v3439
        %v4006 = vpack.c.b16 %v3442, %v3441
        %v4007 = vpack.c.b16 %v3444, %v3443
        %v4008 = vpack.c.b16 %v3446, %v3445
        %v4009 = vpack.c.b16 %v3448, %v3447
        %v4010 = vpack.c.b16 %v3450, %v3449
        %v4011 = vpack.c.b16 %v3452, %v3451
        %v4012 = vpack.c.b16 %v3454, %v3453
        %v4013 = vpack.c.b16 %v3456, %v3455
        %v4014 = vpack.c.b16 %v3458, %v3457
        %v4015 = vpack.c.b16 %v3460, %v3459
        %v4016 = vpack.c.b16 %v3462, %v3461
        %v4017 = vpack.c.b16 %v3464, %v3463
        %v4018 = vpack.c.b16 %v3466, %v3465
        %v4019 = vpack.c.b16 %v3468, %v3467
        %v4020 = vpack.c.b16 %v3470, %v3469
        %v4021 = vpack.c.b16 %v3472, %v3471
        %v4022 = vpack.c.b16 %v3474, %v3473
        %v4023 = vpack.c.b16 %v3476, %v3475
        %v4024 = vpack.c.b16 %v3478, %v3477
        %v4025 = vpack.c.b16 %v3480, %v3479
        %v4026 = vpack.c.b16 %v3482, %v3481
        %v4027 = vpack.c.b16 %v3484, %v3483
        %v4028 = vpack.c.b16 %v3486, %v3485
        %v4029 = vpack.c.b16 %v3488, %v3487
        %v4030 = vpack.c.b16 %v3490, %v3489
        %v4031 = vpack.c.b16 %v3492, %v3491
        %v4032 = vpack.c.b16 %v3494, %v3493
        %v4033 = vpack.c.b16 %v3496, %v3495
        %v4034 = vpack.c.b16 %v3498, %v3497
        %v4035 = vpack.c.b16 %v3500, %v3499
        %v4036 = vpack.c.b16 %v3502, %v3501
        %v4037 = vpack.c.b16 %v3504, %v3503
        %v4038 = vpack.c.b16 %v3506, %v3505
        %v4039 = vpack.c.b16 %v3508, %v3507
        %v4040 = vpack.c.b16 %v3510, %v3509
        %v4041 = vpack.c.b16 %v3512, %v3511
        %v4042 = vpack.c.b16 %v3514, %v3513
        %v4043 = vpack.c.b16 %v3516, %v3515
        %v4044 = vpack.c.b16 %v3518, %v3517
        %v4045 = vpack.c.b16 %v3520, %v3519
        %v4046 = vpack.c.b16 %v3522, %v3521
        %v4047 = vpack.c.b16 %v3524, %v3523
        %v4048 = vpack.c.b16 %v3526, %v3525
        %v4049 = vpack.c.b16 %v3528, %v3527
        %v4050 = vpack.c.b16 %v3530, %v3529
        %v4051 = vpack.c.b16 %v3532, %v3531
        %v4052 = vpack.c.b16 %v3534, %v3533
        %v4053 = vpack.c.b16 %v3536, %v3535
        %v4054 = vpack.c.b16 %v3538, %v3537
        %v4055 = vpack.c.b16 %v3540, %v3539
        %v4056 = vpack.c.b16 %v3542, %v3541
        %v4057 = vpack.c.b16 %v3544, %v3543
        %v4058 = vpack.c.b16 %v3546, %v3545
        %4571 = vmatprep.subr.bf16.mxu0 0
        %4572 = vmatpush1.bf16.msra.mxu0 %v3554
        %4573 = vmatprep.subr.bf16.mxu0 0
        %4574 = vmatpush1.bf16.msra.mxu0 %v3553
        %4575 = vmatprep.subr.bf16.mxu0 0
        %4576 = vmatpush1.bf16.msra.mxu0 %v3552
        %4577 = vmatprep.subr.bf16.mxu0 0
        %4578 = vmatpush1.bf16.msra.mxu0 %v3551
        %4579 = vmatprep.subr.bf16.mxu0 0
        %4580 = vmatpush1.bf16.msra.mxu0 %v3550
        %4581 = vmatprep.subr.bf16.mxu0 0
        %4582 = vmatpush1.bf16.msra.mxu0 %v3549
        %4583 = vmatprep.subr.bf16.mxu0 0
        %4584 = vmatpush1.bf16.msra.mxu0 %v3548
        %4585 = vmatprep.subr.bf16.mxu0 0
        %4586 = vmatpush1.bf16.msra.mxu0 %v3547
        %4587 = vmatprep.subr.bf16.mxu0 0
        %4588 = vmatpush2.bf16.msra.mxu0 %v3562
        %4589 = vmatprep.subr.bf16.mxu0 0
        %4590 = vmatpush2.bf16.msra.mxu0 %v3561
        %4591 = vmatprep.subr.bf16.mxu0 0
        %4592 = vmatpush2.bf16.msra.mxu0 %v3560
        %4593 = vmatprep.subr.bf16.mxu0 0
        %4594 = vmatpush2.bf16.msra.mxu0 %v3559
        %4595 = vmatprep.subr.bf16.mxu0 0
        %4596 = vmatpush2.bf16.msra.mxu0 %v3558
        %4597 = vmatprep.subr.bf16.mxu0 0
        %4598 = vmatpush2.bf16.msra.mxu0 %v3557
        %4599 = vmatprep.subr.bf16.mxu0 0
        %4600 = vmatpush2.bf16.msra.mxu0 %v3556
        %4601 = vmatprep.subr.bf16.mxu0 0
        %4602 = vmatpush2.bf16.msra.mxu0 %v3555
        %4603 = vmatprep.mubr.bf16.mxu0 %v1372
        %4604 = vmatmul.mubr.bf16.gmra.mxu0 %v1371
        %v4605 = vpop.f32.mrf.mxu0
        %v4606 = vadd.f32 0.0, %v4605
        %v4607 = vpop.f32.mrf.mxu0
        %v4608 = vpop.f32.mrf.mxu0
        %v4609 = vpop.f32.mrf.mxu0
        %4610 = vdwg.mxu0
        %4611 = vmatprep.subr.bf16.mxu0 0
        %4612 = vmatpush1.bf16.msra.mxu0 %v3570
        %4613 = vmatprep.subr.bf16.mxu0 0
        %4614 = vmatpush1.bf16.msra.mxu0 %v3569
        %4615 = vmatprep.subr.bf16.mxu0 0
        %4616 = vmatpush1.bf16.msra.mxu0 %v3568
        %4617 = vmatprep.subr.bf16.mxu0 0
        %4618 = vmatpush1.bf16.msra.mxu0 %v3567
        %4619 = vmatprep.subr.bf16.mxu0 0
        %4620 = vmatpush1.bf16.msra.mxu0 %v3566
        %4621 = vmatprep.subr.bf16.mxu0 0
        %4622 = vmatpush1.bf16.msra.mxu0 %v3565
        %4623 = vmatprep.subr.bf16.mxu0 0
        %4624 = vmatpush1.bf16.msra.mxu0 %v3564
        %4625 = vmatprep.subr.bf16.mxu0 0
        %4626 = vmatpush1.bf16.msra.mxu0 %v3563
        %4627 = vmatprep.subr.bf16.mxu0 0
        %4628 = vmatpush2.bf16.msra.mxu0 %v3578
        %4629 = vmatprep.subr.bf16.mxu0 0
        %4630 = vmatpush2.bf16.msra.mxu0 %v3577
        %4631 = vmatprep.subr.bf16.mxu0 0
        %4632 = vmatpush2.bf16.msra.mxu0 %v3576
        %4633 = vmatprep.subr.bf16.mxu0 0
        %4634 = vmatpush2.bf16.msra.mxu0 %v3575
        %4635 = vmatprep.subr.bf16.mxu0 0
        %4636 = vmatpush2.bf16.msra.mxu0 %v3574
        %4637 = vmatprep.subr.bf16.mxu0 0
        %4638 = vmatpush2.bf16.msra.mxu0 %v3573
        %4639 = vmatprep.subr.bf16.mxu0 0
        %4640 = vmatpush2.bf16.msra.mxu0 %v3572
        %4641 = vmatprep.subr.bf16.mxu0 0
        %4642 = vmatpush2.bf16.msra.mxu0 %v3571
        %4643 = vmatprep.mubr.bf16.mxu0 %v1374
        %4644 = vmatmul.mubr.bf16.gmra.mxu0 %v1373
        %v4645 = vpop.f32.mrf.mxu0
        %v4646 = vadd.f32 %v4606, %v4645
        %v4647 = vpop.f32.mrf.mxu0
        %v4648 = vpop.f32.mrf.mxu0
        %v4649 = vpop.f32.mrf.mxu0
        %4650 = vdwg.mxu0
        %4651 = vmatprep.subr.bf16.mxu0 0
        %4652 = vmatpush1.bf16.msra.mxu0 %v3586
        %4653 = vmatprep.subr.bf16.mxu0 0
        %4654 = vmatpush1.bf16.msra.mxu0 %v3585
        %4655 = vmatprep.subr.bf16.mxu0 0
        %4656 = vmatpush1.bf16.msra.mxu0 %v3584
        %4657 = vmatprep.subr.bf16.mxu0 0
        %4658 = vmatpush1.bf16.msra.mxu0 %v3583
        %4659 = vmatprep.subr.bf16.mxu0 0
        %4660 = vmatpush1.bf16.msra.mxu0 %v3582
        %4661 = vmatprep.subr.bf16.mxu0 0
        %4662 = vmatpush1.bf16.msra.mxu0 %v3581
        %4663 = vmatprep.subr.bf16.mxu0 0
        %4664 = vmatpush1.bf16.msra.mxu0 %v3580
        %4665 = vmatprep.subr.bf16.mxu0 0
        %4666 = vmatpush1.bf16.msra.mxu0 %v3579
        %4667 = vmatprep.subr.bf16.mxu0 0
        %4668 = vmatpush2.bf16.msra.mxu0 %v3594
        %4669 = vmatprep.subr.bf16.mxu0 0
        %4670 = vmatpush2.bf16.msra.mxu0 %v3593
        %4671 = vmatprep.subr.bf16.mxu0 0
        %4672 = vmatpush2.bf16.msra.mxu0 %v3592
        %4673 = vmatprep.subr.bf16.mxu0 0
        %4674 = vmatpush2.bf16.msra.mxu0 %v3591
        %4675 = vmatprep.subr.bf16.mxu0 0
        %4676 = vmatpush2.bf16.msra.mxu0 %v3590
        %4677 = vmatprep.subr.bf16.mxu0 0
        %4678 = vmatpush2.bf16.msra.mxu0 %v3589
        %4679 = vmatprep.subr.bf16.mxu0 0
        %4680 = vmatpush2.bf16.msra.mxu0 %v3588
        %4681 = vmatprep.subr.bf16.mxu0 0
        %4682 = vmatpush2.bf16.msra.mxu0 %v3587
        %4683 = vmatprep.mubr.bf16.mxu0 %v1376
        %4684 = vmatmul.mubr.bf16.gmra.mxu0 %v1375
        %v4685 = vpop.f32.mrf.mxu0
        %v4686 = vadd.f32 %v4646, %v4685
        %v4687 = vpop.f32.mrf.mxu0
        %v4688 = vpop.f32.mrf.mxu0
        %v4689 = vpop.f32.mrf.mxu0
        %4690 = vdwg.mxu0
        %4691 = vmatprep.subr.bf16.mxu0 0
        %4692 = vmatpush1.bf16.msra.mxu0 %v3602
        %4693 = vmatprep.subr.bf16.mxu0 0
        %4694 = vmatpush1.bf16.msra.mxu0 %v3601
        %4695 = vmatprep.subr.bf16.mxu0 0
        %4696 = vmatpush1.bf16.msra.mxu0 %v3600
        %4697 = vmatprep.subr.bf16.mxu0 0
        %4698 = vmatpush1.bf16.msra.mxu0 %v3599
        %4699 = vmatprep.subr.bf16.mxu0 0
        %4700 = vmatpush1.bf16.msra.mxu0 %v3598
        %4701 = vmatprep.subr.bf16.mxu0 0
        %4702 = vmatpush1.bf16.msra.mxu0 %v3597
        %4703 = vmatprep.subr.bf16.mxu0 0
        %4704 = vmatpush1.bf16.msra.mxu0 %v3596
        %4705 = vmatprep.subr.bf16.mxu0 0
        %4706 = vmatpush1.bf16.msra.mxu0 %v3595
        %4707 = vmatprep.subr.bf16.mxu0 0
        %4708 = vmatpush2.bf16.msra.mxu0 %v3610
        %4709 = vmatprep.subr.bf16.mxu0 0
        %4710 = vmatpush2.bf16.msra.mxu0 %v3609
        %4711 = vmatprep.subr.bf16.mxu0 0
        %4712 = vmatpush2.bf16.msra.mxu0 %v3608
        %4713 = vmatprep.subr.bf16.mxu0 0
        %4714 = vmatpush2.bf16.msra.mxu0 %v3607
        %4715 = vmatprep.subr.bf16.mxu0 0
        %4716 = vmatpush2.bf16.msra.mxu0 %v3606
        %4717 = vmatprep.subr.bf16.mxu0 0
        %4718 = vmatpush2.bf16.msra.mxu0 %v3605
        %4719 = vmatprep.subr.bf16.mxu0 0
        %4720 = vmatpush2.bf16.msra.mxu0 %v3604
        %4721 = vmatprep.subr.bf16.mxu0 0
        %4722 = vmatpush2.bf16.msra.mxu0 %v3603
        %4723 = vmatprep.mubr.bf16.mxu0 %v1378
        %4724 = vmatmul.mubr.bf16.gmra.mxu0 %v1377
        %v4725 = vpop.f32.mrf.mxu0
        %v4726 = vadd.f32 %v4686, %v4725
        %v4727 = vpop.f32.mrf.mxu0
        %v4728 = vpop.f32.mrf.mxu0
        %v4729 = vpop.f32.mrf.mxu0
        %4730 = vdwg.mxu0
        %4731 = vmatprep.subr.bf16.mxu0 0
        %4732 = vmatpush1.bf16.msra.mxu0 %v3618
        %4733 = vmatprep.subr.bf16.mxu0 0
        %4734 = vmatpush1.bf16.msra.mxu0 %v3617
        %4735 = vmatprep.subr.bf16.mxu0 0
        %4736 = vmatpush1.bf16.msra.mxu0 %v3616
        %4737 = vmatprep.subr.bf16.mxu0 0
        %4738 = vmatpush1.bf16.msra.mxu0 %v3615
        %4739 = vmatprep.subr.bf16.mxu0 0
        %4740 = vmatpush1.bf16.msra.mxu0 %v3614
        %4741 = vmatprep.subr.bf16.mxu0 0
        %4742 = vmatpush1.bf16.msra.mxu0 %v3613
        %4743 = vmatprep.subr.bf16.mxu0 0
        %4744 = vmatpush1.bf16.msra.mxu0 %v3612
        %4745 = vmatprep.subr.bf16.mxu0 0
        %4746 = vmatpush1.bf16.msra.mxu0 %v3611
        %4747 = vmatprep.subr.bf16.mxu0 0
        %4748 = vmatpush2.bf16.msra.mxu0 %v3626
        %4749 = vmatprep.subr.bf16.mxu0 0
        %4750 = vmatpush2.bf16.msra.mxu0 %v3625
        %4751 = vmatprep.subr.bf16.mxu0 0
        %4752 = vmatpush2.bf16.msra.mxu0 %v3624
        %4753 = vmatprep.subr.bf16.mxu0 0
        %4754 = vmatpush2.bf16.msra.mxu0 %v3623
        %4755 = vmatprep.subr.bf16.mxu0 0
        %4756 = vmatpush2.bf16.msra.mxu0 %v3622
        %4757 = vmatprep.subr.bf16.mxu0 0
        %4758 = vmatpush2.bf16.msra.mxu0 %v3621
        %4759 = vmatprep.subr.bf16.mxu0 0
        %4760 = vmatpush2.bf16.msra.mxu0 %v3620
        %4761 = vmatprep.subr.bf16.mxu0 0
        %4762 = vmatpush2.bf16.msra.mxu0 %v3619
        %4763 = vmatprep.mubr.bf16.mxu0 %v1380
        %4764 = vmatmul.mubr.bf16.gmra.mxu0 %v1379
        %v4765 = vpop.f32.mrf.mxu0
        %v4766 = vadd.f32 %v4726, %v4765
        %v4767 = vpop.f32.mrf.mxu0
        %v4768 = vpop.f32.mrf.mxu0
        %v4769 = vpop.f32.mrf.mxu0
        %4770 = vdwg.mxu0
        %4771 = vmatprep.subr.bf16.mxu0 0
        %4772 = vmatpush1.bf16.msra.mxu0 %v3634
        %4773 = vmatprep.subr.bf16.mxu0 0
        %4774 = vmatpush1.bf16.msra.mxu0 %v3633
        %4775 = vmatprep.subr.bf16.mxu0 0
        %4776 = vmatpush1.bf16.msra.mxu0 %v3632
        %4777 = vmatprep.subr.bf16.mxu0 0
        %4778 = vmatpush1.bf16.msra.mxu0 %v3631
        %4779 = vmatprep.subr.bf16.mxu0 0
        %4780 = vmatpush1.bf16.msra.mxu0 %v3630
        %4781 = vmatprep.subr.bf16.mxu0 0
        %4782 = vmatpush1.bf16.msra.mxu0 %v3629
        %4783 = vmatprep.subr.bf16.mxu0 0
        %4784 = vmatpush1.bf16.msra.mxu0 %v3628
        %4785 = vmatprep.subr.bf16.mxu0 0
        %4786 = vmatpush1.bf16.msra.mxu0 %v3627
        %4787 = vmatprep.subr.bf16.mxu0 0
        %4788 = vmatpush2.bf16.msra.mxu0 %v3642
        %4789 = vmatprep.subr.bf16.mxu0 0
        %4790 = vmatpush2.bf16.msra.mxu0 %v3641
        %4791 = vmatprep.subr.bf16.mxu0 0
        %4792 = vmatpush2.bf16.msra.mxu0 %v3640
        %4793 = vmatprep.subr.bf16.mxu0 0
        %4794 = vmatpush2.bf16.msra.mxu0 %v3639
        %4795 = vmatprep.subr.bf16.mxu0 0
        %4796 = vmatpush2.bf16.msra.mxu0 %v3638
        %4797 = vmatprep.subr.bf16.mxu0 0
        %4798 = vmatpush2.bf16.msra.mxu0 %v3637
        %4799 = vmatprep.subr.bf16.mxu0 0
        %4800 = vmatpush2.bf16.msra.mxu0 %v3636
        %4801 = vmatprep.subr.bf16.mxu0 0
        %4802 = vmatpush2.bf16.msra.mxu0 %v3635
        %4803 = vmatprep.mubr.bf16.mxu0 %v1382
        %4804 = vmatmul.mubr.bf16.gmra.mxu0 %v1381
        %v4805 = vpop.f32.mrf.mxu0
        %v4806 = vadd.f32 %v4766, %v4805
        %v4807 = vpop.f32.mrf.mxu0
        %v4808 = vpop.f32.mrf.mxu0
        %v4809 = vpop.f32.mrf.mxu0
        %4810 = vdwg.mxu0
        %4811 = vmatprep.subr.bf16.mxu0 0
        %4812 = vmatpush1.bf16.msra.mxu0 %v3650
        %4813 = vmatprep.subr.bf16.mxu0 0
        %4814 = vmatpush1.bf16.msra.mxu0 %v3649
        %4815 = vmatprep.subr.bf16.mxu0 0
        %4816 = vmatpush1.bf16.msra.mxu0 %v3648
        %4817 = vmatprep.subr.bf16.mxu0 0
        %4818 = vmatpush1.bf16.msra.mxu0 %v3647
        %4819 = vmatprep.subr.bf16.mxu0 0
        %4820 = vmatpush1.bf16.msra.mxu0 %v3646
        %4821 = vmatprep.subr.bf16.mxu0 0
        %4822 = vmatpush1.bf16.msra.mxu0 %v3645
        %4823 = vmatprep.subr.bf16.mxu0 0
        %4824 = vmatpush1.bf16.msra.mxu0 %v3644
        %4825 = vmatprep.subr.bf16.mxu0 0
        %4826 = vmatpush1.bf16.msra.mxu0 %v3643
        %4827 = vmatprep.subr.bf16.mxu0 0
        %4828 = vmatpush2.bf16.msra.mxu0 %v3658
        %4829 = vmatprep.subr.bf16.mxu0 0
        %4830 = vmatpush2.bf16.msra.mxu0 %v3657
        %4831 = vmatprep.subr.bf16.mxu0 0
        %4832 = vmatpush2.bf16.msra.mxu0 %v3656
        %4833 = vmatprep.subr.bf16.mxu0 0
        %4834 = vmatpush2.bf16.msra.mxu0 %v3655
        %4835 = vmatprep.subr.bf16.mxu0 0
        %4836 = vmatpush2.bf16.msra.mxu0 %v3654
        %4837 = vmatprep.subr.bf16.mxu0 0
        %4838 = vmatpush2.bf16.msra.mxu0 %v3653
        %4839 = vmatprep.subr.bf16.mxu0 0
        %4840 = vmatpush2.bf16.msra.mxu0 %v3652
        %4841 = vmatprep.subr.bf16.mxu0 0
        %4842 = vmatpush2.bf16.msra.mxu0 %v3651
        %4843 = vmatprep.mubr.bf16.mxu0 %v1384
        %4844 = vmatmul.mubr.bf16.gmra.mxu0 %v1383
        %v4845 = vpop.f32.mrf.mxu0
        %v4846 = vadd.f32 %v4806, %v4845
        %v4847 = vpop.f32.mrf.mxu0
        %v4848 = vpop.f32.mrf.mxu0
        %v4849 = vpop.f32.mrf.mxu0
        %4850 = vdwg.mxu0
        %4851 = vmatprep.subr.bf16.mxu0 0
        %4852 = vmatpush1.bf16.msra.mxu0 %v3666
        %4853 = vmatprep.subr.bf16.mxu0 0
        %4854 = vmatpush1.bf16.msra.mxu0 %v3665
        %4855 = vmatprep.subr.bf16.mxu0 0
        %4856 = vmatpush1.bf16.msra.mxu0 %v3664
        %4857 = vmatprep.subr.bf16.mxu0 0
        %4858 = vmatpush1.bf16.msra.mxu0 %v3663
        %4859 = vmatprep.subr.bf16.mxu0 0
        %4860 = vmatpush1.bf16.msra.mxu0 %v3662
        %4861 = vmatprep.subr.bf16.mxu0 0
        %4862 = vmatpush1.bf16.msra.mxu0 %v3661
        %4863 = vmatprep.subr.bf16.mxu0 0
        %4864 = vmatpush1.bf16.msra.mxu0 %v3660
        %4865 = vmatprep.subr.bf16.mxu0 0
        %4866 = vmatpush1.bf16.msra.mxu0 %v3659
        %4867 = vmatprep.subr.bf16.mxu0 0
        %4868 = vmatpush2.bf16.msra.mxu0 %v3674
        %4869 = vmatprep.subr.bf16.mxu0 0
        %4870 = vmatpush2.bf16.msra.mxu0 %v3673
        %4871 = vmatprep.subr.bf16.mxu0 0
        %4872 = vmatpush2.bf16.msra.mxu0 %v3672
        %4873 = vmatprep.subr.bf16.mxu0 0
        %4874 = vmatpush2.bf16.msra.mxu0 %v3671
        %4875 = vmatprep.subr.bf16.mxu0 0
        %4876 = vmatpush2.bf16.msra.mxu0 %v3670
        %4877 = vmatprep.subr.bf16.mxu0 0
        %4878 = vmatpush2.bf16.msra.mxu0 %v3669
        %4879 = vmatprep.subr.bf16.mxu0 0
        %4880 = vmatpush2.bf16.msra.mxu0 %v3668
        %4881 = vmatprep.subr.bf16.mxu0 0
        %4882 = vmatpush2.bf16.msra.mxu0 %v3667
        %4883 = vmatprep.mubr.bf16.mxu0 %v1386
        %4884 = vmatmul.mubr.bf16.gmra.mxu0 %v1385
        %v4885 = vpop.f32.mrf.mxu0
        %v4886 = vadd.f32 %v4846, %v4885
        %v4887 = vpop.f32.mrf.mxu0
        %v4888 = vpop.f32.mrf.mxu0
        %v4889 = vpop.f32.mrf.mxu0
        %4890 = vdwg.mxu0
        %4891 = vmatprep.subr.bf16.mxu0 0
        %4892 = vmatpush1.bf16.msra.mxu0 %v3682
        %4893 = vmatprep.subr.bf16.mxu0 0
        %4894 = vmatpush1.bf16.msra.mxu0 %v3681
        %4895 = vmatprep.subr.bf16.mxu0 0
        %4896 = vmatpush1.bf16.msra.mxu0 %v3680
        %4897 = vmatprep.subr.bf16.mxu0 0
        %4898 = vmatpush1.bf16.msra.mxu0 %v3679
        %4899 = vmatprep.subr.bf16.mxu0 0
        %4900 = vmatpush1.bf16.msra.mxu0 %v3678
        %4901 = vmatprep.subr.bf16.mxu0 0
        %4902 = vmatpush1.bf16.msra.mxu0 %v3677
        %4903 = vmatprep.subr.bf16.mxu0 0
        %4904 = vmatpush1.bf16.msra.mxu0 %v3676
        %4905 = vmatprep.subr.bf16.mxu0 0
        %4906 = vmatpush1.bf16.msra.mxu0 %v3675
        %4907 = vmatprep.subr.bf16.mxu0 0
        %4908 = vmatpush2.bf16.msra.mxu0 %v3690
        %4909 = vmatprep.subr.bf16.mxu0 0
        %4910 = vmatpush2.bf16.msra.mxu0 %v3689
        %4911 = vmatprep.subr.bf16.mxu0 0
        %4912 = vmatpush2.bf16.msra.mxu0 %v3688
        %4913 = vmatprep.subr.bf16.mxu0 0
        %4914 = vmatpush2.bf16.msra.mxu0 %v3687
        %4915 = vmatprep.subr.bf16.mxu0 0
        %4916 = vmatpush2.bf16.msra.mxu0 %v3686
        %4917 = vmatprep.subr.bf16.mxu0 0
        %4918 = vmatpush2.bf16.msra.mxu0 %v3685
        %4919 = vmatprep.subr.bf16.mxu0 0
        %4920 = vmatpush2.bf16.msra.mxu0 %v3684
        %4921 = vmatprep.subr.bf16.mxu0 0
        %4922 = vmatpush2.bf16.msra.mxu0 %v3683
        %4923 = vmatprep.mubr.bf16.mxu0 %v1388
        %4924 = vmatmul.mubr.bf16.gmra.mxu0 %v1387
        %v4925 = vpop.f32.mrf.mxu0
        %v4926 = vadd.f32 %v4886, %v4925
        %v4927 = vpop.f32.mrf.mxu0
        %v4928 = vpop.f32.mrf.mxu0
        %v4929 = vpop.f32.mrf.mxu0
        %4930 = vdwg.mxu0
        %4931 = vmatprep.subr.bf16.mxu0 0
        %4932 = vmatpush1.bf16.msra.mxu0 %v3698
        %4933 = vmatprep.subr.bf16.mxu0 0
        %4934 = vmatpush1.bf16.msra.mxu0 %v3697
        %4935 = vmatprep.subr.bf16.mxu0 0
        %4936 = vmatpush1.bf16.msra.mxu0 %v3696
        %4937 = vmatprep.subr.bf16.mxu0 0
        %4938 = vmatpush1.bf16.msra.mxu0 %v3695
        %4939 = vmatprep.subr.bf16.mxu0 0
        %4940 = vmatpush1.bf16.msra.mxu0 %v3694
        %4941 = vmatprep.subr.bf16.mxu0 0
        %4942 = vmatpush1.bf16.msra.mxu0 %v3693
        %4943 = vmatprep.subr.bf16.mxu0 0
        %4944 = vmatpush1.bf16.msra.mxu0 %v3692
        %4945 = vmatprep.subr.bf16.mxu0 0
        %4946 = vmatpush1.bf16.msra.mxu0 %v3691
        %4947 = vmatprep.subr.bf16.mxu0 0
        %4948 = vmatpush2.bf16.msra.mxu0 %v3706
        %4949 = vmatprep.subr.bf16.mxu0 0
        %4950 = vmatpush2.bf16.msra.mxu0 %v3705
        %4951 = vmatprep.subr.bf16.mxu0 0
        %4952 = vmatpush2.bf16.msra.mxu0 %v3704
        %4953 = vmatprep.subr.bf16.mxu0 0
        %4954 = vmatpush2.bf16.msra.mxu0 %v3703
        %4955 = vmatprep.subr.bf16.mxu0 0
        %4956 = vmatpush2.bf16.msra.mxu0 %v3702
        %4957 = vmatprep.subr.bf16.mxu0 0
        %4958 = vmatpush2.bf16.msra.mxu0 %v3701
        %4959 = vmatprep.subr.bf16.mxu0 0
        %4960 = vmatpush2.bf16.msra.mxu0 %v3700
        %4961 = vmatprep.subr.bf16.mxu0 0
        %4962 = vmatpush2.bf16.msra.mxu0 %v3699
        %4963 = vmatprep.mubr.bf16.mxu0 %v1390
        %4964 = vmatmul.mubr.bf16.gmra.mxu0 %v1389
        %v4965 = vpop.f32.mrf.mxu0
        %v4966 = vadd.f32 %v4926, %v4965
        %v4967 = vpop.f32.mrf.mxu0
        %v4968 = vpop.f32.mrf.mxu0
        %v4969 = vpop.f32.mrf.mxu0
        %4970 = vdwg.mxu0
        %4971 = vmatprep.subr.bf16.mxu0 0
        %4972 = vmatpush1.bf16.msra.mxu0 %v3714
        %4973 = vmatprep.subr.bf16.mxu0 0
        %4974 = vmatpush1.bf16.msra.mxu0 %v3713
        %4975 = vmatprep.subr.bf16.mxu0 0
        %4976 = vmatpush1.bf16.msra.mxu0 %v3712
        %4977 = vmatprep.subr.bf16.mxu0 0
        %4978 = vmatpush1.bf16.msra.mxu0 %v3711
        %4979 = vmatprep.subr.bf16.mxu0 0
        %4980 = vmatpush1.bf16.msra.mxu0 %v3710
        %4981 = vmatprep.subr.bf16.mxu0 0
        %4982 = vmatpush1.bf16.msra.mxu0 %v3709
        %4983 = vmatprep.subr.bf16.mxu0 0
        %4984 = vmatpush1.bf16.msra.mxu0 %v3708
        %4985 = vmatprep.subr.bf16.mxu0 0
        %4986 = vmatpush1.bf16.msra.mxu0 %v3707
        %4987 = vmatprep.subr.bf16.mxu0 0
        %4988 = vmatpush2.bf16.msra.mxu0 %v3722
        %4989 = vmatprep.subr.bf16.mxu0 0
        %4990 = vmatpush2.bf16.msra.mxu0 %v3721
        %4991 = vmatprep.subr.bf16.mxu0 0
        %4992 = vmatpush2.bf16.msra.mxu0 %v3720
        %4993 = vmatprep.subr.bf16.mxu0 0
        %4994 = vmatpush2.bf16.msra.mxu0 %v3719
        %4995 = vmatprep.subr.bf16.mxu0 0
        %4996 = vmatpush2.bf16.msra.mxu0 %v3718
        %4997 = vmatprep.subr.bf16.mxu0 0
        %4998 = vmatpush2.bf16.msra.mxu0 %v3717
        %4999 = vmatprep.subr.bf16.mxu0 0
        %5000 = vmatpush2.bf16.msra.mxu0 %v3716
        %5001 = vmatprep.subr.bf16.mxu0 0
        %5002 = vmatpush2.bf16.msra.mxu0 %v3715
        %5003 = vmatprep.mubr.bf16.mxu0 %v1392
        %5004 = vmatmul.mubr.bf16.gmra.mxu0 %v1391
        %v5005 = vpop.f32.mrf.mxu0
        %v5006 = vadd.f32 %v4966, %v5005
        %v5007 = vpop.f32.mrf.mxu0
        %v5008 = vpop.f32.mrf.mxu0
        %v5009 = vpop.f32.mrf.mxu0
        %5010 = vdwg.mxu0
        %5011 = vmatprep.subr.bf16.mxu0 0
        %5012 = vmatpush1.bf16.msra.mxu0 %v3730
        %5013 = vmatprep.subr.bf16.mxu0 0
        %5014 = vmatpush1.bf16.msra.mxu0 %v3729
        %5015 = vmatprep.subr.bf16.mxu0 0
        %5016 = vmatpush1.bf16.msra.mxu0 %v3728
        %5017 = vmatprep.subr.bf16.mxu0 0
        %5018 = vmatpush1.bf16.msra.mxu0 %v3727
        %5019 = vmatprep.subr.bf16.mxu0 0
        %5020 = vmatpush1.bf16.msra.mxu0 %v3726
        %5021 = vmatprep.subr.bf16.mxu0 0
        %5022 = vmatpush1.bf16.msra.mxu0 %v3725
        %5023 = vmatprep.subr.bf16.mxu0 0
        %5024 = vmatpush1.bf16.msra.mxu0 %v3724
        %5025 = vmatprep.subr.bf16.mxu0 0
        %5026 = vmatpush1.bf16.msra.mxu0 %v3723
        %5027 = vmatprep.subr.bf16.mxu0 0
        %5028 = vmatpush2.bf16.msra.mxu0 %v3738
        %5029 = vmatprep.subr.bf16.mxu0 0
        %5030 = vmatpush2.bf16.msra.mxu0 %v3737
        %5031 = vmatprep.subr.bf16.mxu0 0
        %5032 = vmatpush2.bf16.msra.mxu0 %v3736
        %5033 = vmatprep.subr.bf16.mxu0 0
        %5034 = vmatpush2.bf16.msra.mxu0 %v3735
        %5035 = vmatprep.subr.bf16.mxu0 0
        %5036 = vmatpush2.bf16.msra.mxu0 %v3734
        %5037 = vmatprep.subr.bf16.mxu0 0
        %5038 = vmatpush2.bf16.msra.mxu0 %v3733
        %5039 = vmatprep.subr.bf16.mxu0 0
        %5040 = vmatpush2.bf16.msra.mxu0 %v3732
        %5041 = vmatprep.subr.bf16.mxu0 0
        %5042 = vmatpush2.bf16.msra.mxu0 %v3731
        %5043 = vmatprep.mubr.bf16.mxu0 %v1394
        %5044 = vmatmul.mubr.bf16.gmra.mxu0 %v1393
        %v5045 = vpop.f32.mrf.mxu0
        %v5046 = vadd.f32 %v5006, %v5045
        %v5047 = vpop.f32.mrf.mxu0
        %v5048 = vpop.f32.mrf.mxu0
        %v5049 = vpop.f32.mrf.mxu0
        %5050 = vdwg.mxu0
        %5051 = vmatprep.subr.bf16.mxu0 0
        %5052 = vmatpush1.bf16.msra.mxu0 %v3746
        %5053 = vmatprep.subr.bf16.mxu0 0
        %5054 = vmatpush1.bf16.msra.mxu0 %v3745
        %5055 = vmatprep.subr.bf16.mxu0 0
        %5056 = vmatpush1.bf16.msra.mxu0 %v3744
        %5057 = vmatprep.subr.bf16.mxu0 0
        %5058 = vmatpush1.bf16.msra.mxu0 %v3743
        %5059 = vmatprep.subr.bf16.mxu0 0
        %5060 = vmatpush1.bf16.msra.mxu0 %v3742
        %5061 = vmatprep.subr.bf16.mxu0 0
        %5062 = vmatpush1.bf16.msra.mxu0 %v3741
        %5063 = vmatprep.subr.bf16.mxu0 0
        %5064 = vmatpush1.bf16.msra.mxu0 %v3740
        %5065 = vmatprep.subr.bf16.mxu0 0
        %5066 = vmatpush1.bf16.msra.mxu0 %v3739
        %5067 = vmatprep.subr.bf16.mxu0 0
        %5068 = vmatpush2.bf16.msra.mxu0 %v3754
        %5069 = vmatprep.subr.bf16.mxu0 0
        %5070 = vmatpush2.bf16.msra.mxu0 %v3753
        %5071 = vmatprep.subr.bf16.mxu0 0
        %5072 = vmatpush2.bf16.msra.mxu0 %v3752
        %5073 = vmatprep.subr.bf16.mxu0 0
        %5074 = vmatpush2.bf16.msra.mxu0 %v3751
        %5075 = vmatprep.subr.bf16.mxu0 0
        %5076 = vmatpush2.bf16.msra.mxu0 %v3750
        %5077 = vmatprep.subr.bf16.mxu0 0
        %5078 = vmatpush2.bf16.msra.mxu0 %v3749
        %5079 = vmatprep.subr.bf16.mxu0 0
        %5080 = vmatpush2.bf16.msra.mxu0 %v3748
        %5081 = vmatprep.subr.bf16.mxu0 0
        %5082 = vmatpush2.bf16.msra.mxu0 %v3747
        %5083 = vmatprep.mubr.bf16.mxu0 %v1396
        %5084 = vmatmul.mubr.bf16.gmra.mxu0 %v1395
        %v5085 = vpop.f32.mrf.mxu0
        %v5086 = vadd.f32 %v5046, %v5085
        %v5087 = vpop.f32.mrf.mxu0
        %v5088 = vpop.f32.mrf.mxu0
        %v5089 = vpop.f32.mrf.mxu0
        %5090 = vdwg.mxu0
        %5091 = vmatprep.subr.bf16.mxu0 0
        %5092 = vmatpush1.bf16.msra.mxu0 %v3762
        %5093 = vmatprep.subr.bf16.mxu0 0
        %5094 = vmatpush1.bf16.msra.mxu0 %v3761
        %5095 = vmatprep.subr.bf16.mxu0 0
        %5096 = vmatpush1.bf16.msra.mxu0 %v3760
        %5097 = vmatprep.subr.bf16.mxu0 0
        %5098 = vmatpush1.bf16.msra.mxu0 %v3759
        %5099 = vmatprep.subr.bf16.mxu0 0
        %5100 = vmatpush1.bf16.msra.mxu0 %v3758
        %5101 = vmatprep.subr.bf16.mxu0 0
        %5102 = vmatpush1.bf16.msra.mxu0 %v3757
        %5103 = vmatprep.subr.bf16.mxu0 0
        %5104 = vmatpush1.bf16.msra.mxu0 %v3756
        %5105 = vmatprep.subr.bf16.mxu0 0
        %5106 = vmatpush1.bf16.msra.mxu0 %v3755
        %5107 = vmatprep.subr.bf16.mxu0 0
        %5108 = vmatpush2.bf16.msra.mxu0 %v3770
        %5109 = vmatprep.subr.bf16.mxu0 0
        %5110 = vmatpush2.bf16.msra.mxu0 %v3769
        %5111 = vmatprep.subr.bf16.mxu0 0
        %5112 = vmatpush2.bf16.msra.mxu0 %v3768
        %5113 = vmatprep.subr.bf16.mxu0 0
        %5114 = vmatpush2.bf16.msra.mxu0 %v3767
        %5115 = vmatprep.subr.bf16.mxu0 0
        %5116 = vmatpush2.bf16.msra.mxu0 %v3766
        %5117 = vmatprep.subr.bf16.mxu0 0
        %5118 = vmatpush2.bf16.msra.mxu0 %v3765
        %5119 = vmatprep.subr.bf16.mxu0 0
        %5120 = vmatpush2.bf16.msra.mxu0 %v3764
        %5121 = vmatprep.subr.bf16.mxu0 0
        %5122 = vmatpush2.bf16.msra.mxu0 %v3763
        %5123 = vmatprep.mubr.bf16.mxu0 %v1398
        %5124 = vmatmul.mubr.bf16.gmra.mxu0 %v1397
        %v5125 = vpop.f32.mrf.mxu0
        %v5126 = vadd.f32 %v5086, %v5125
        %v5127 = vpop.f32.mrf.mxu0
        %v5128 = vpop.f32.mrf.mxu0
        %v5129 = vpop.f32.mrf.mxu0
        %5130 = vdwg.mxu0
        %5131 = vmatprep.subr.bf16.mxu0 0
        %5132 = vmatpush1.bf16.msra.mxu0 %v3778
        %5133 = vmatprep.subr.bf16.mxu0 0
        %5134 = vmatpush1.bf16.msra.mxu0 %v3777
        %5135 = vmatprep.subr.bf16.mxu0 0
        %5136 = vmatpush1.bf16.msra.mxu0 %v3776
        %5137 = vmatprep.subr.bf16.mxu0 0
        %5138 = vmatpush1.bf16.msra.mxu0 %v3775
        %5139 = vmatprep.subr.bf16.mxu0 0
        %5140 = vmatpush1.bf16.msra.mxu0 %v3774
        %5141 = vmatprep.subr.bf16.mxu0 0
        %5142 = vmatpush1.bf16.msra.mxu0 %v3773
        %5143 = vmatprep.subr.bf16.mxu0 0
        %5144 = vmatpush1.bf16.msra.mxu0 %v3772
        %5145 = vmatprep.subr.bf16.mxu0 0
        %5146 = vmatpush1.bf16.msra.mxu0 %v3771
        %5147 = vmatprep.subr.bf16.mxu0 0
        %5148 = vmatpush2.bf16.msra.mxu0 %v3786
        %5149 = vmatprep.subr.bf16.mxu0 0
        %5150 = vmatpush2.bf16.msra.mxu0 %v3785
        %5151 = vmatprep.subr.bf16.mxu0 0
        %5152 = vmatpush2.bf16.msra.mxu0 %v3784
        %5153 = vmatprep.subr.bf16.mxu0 0
        %5154 = vmatpush2.bf16.msra.mxu0 %v3783
        %5155 = vmatprep.subr.bf16.mxu0 0
        %5156 = vmatpush2.bf16.msra.mxu0 %v3782
        %5157 = vmatprep.subr.bf16.mxu0 0
        %5158 = vmatpush2.bf16.msra.mxu0 %v3781
        %5159 = vmatprep.subr.bf16.mxu0 0
        %5160 = vmatpush2.bf16.msra.mxu0 %v3780
        %5161 = vmatprep.subr.bf16.mxu0 0
        %5162 = vmatpush2.bf16.msra.mxu0 %v3779
        %5163 = vmatprep.mubr.bf16.mxu0 %v1400
        %5164 = vmatmul.mubr.bf16.gmra.mxu0 %v1399
        %v5165 = vpop.f32.mrf.mxu0
        %v5166 = vadd.f32 %v5126, %v5165
        %v5167 = vpop.f32.mrf.mxu0
        %v5168 = vpop.f32.mrf.mxu0
        %v5169 = vpop.f32.mrf.mxu0
        %5170 = vdwg.mxu0
        %5171 = vmatprep.subr.bf16.mxu0 0
        %5172 = vmatpush1.bf16.msra.mxu0 %v3794
        %5173 = vmatprep.subr.bf16.mxu0 0
        %5174 = vmatpush1.bf16.msra.mxu0 %v3793
        %5175 = vmatprep.subr.bf16.mxu0 0
        %5176 = vmatpush1.bf16.msra.mxu0 %v3792
        %5177 = vmatprep.subr.bf16.mxu0 0
        %5178 = vmatpush1.bf16.msra.mxu0 %v3791
        %5179 = vmatprep.subr.bf16.mxu0 0
        %5180 = vmatpush1.bf16.msra.mxu0 %v3790
        %5181 = vmatprep.subr.bf16.mxu0 0
        %5182 = vmatpush1.bf16.msra.mxu0 %v3789
        %5183 = vmatprep.subr.bf16.mxu0 0
        %5184 = vmatpush1.bf16.msra.mxu0 %v3788
        %5185 = vmatprep.subr.bf16.mxu0 0
        %5186 = vmatpush1.bf16.msra.mxu0 %v3787
        %5187 = vmatprep.subr.bf16.mxu0 0
        %5188 = vmatpush2.bf16.msra.mxu0 %v3802
        %5189 = vmatprep.subr.bf16.mxu0 0
        %5190 = vmatpush2.bf16.msra.mxu0 %v3801
        %5191 = vmatprep.subr.bf16.mxu0 0
        %5192 = vmatpush2.bf16.msra.mxu0 %v3800
        %5193 = vmatprep.subr.bf16.mxu0 0
        %5194 = vmatpush2.bf16.msra.mxu0 %v3799
        %5195 = vmatprep.subr.bf16.mxu0 0
        %5196 = vmatpush2.bf16.msra.mxu0 %v3798
        %5197 = vmatprep.subr.bf16.mxu0 0
        %5198 = vmatpush2.bf16.msra.mxu0 %v3797
        %5199 = vmatprep.subr.bf16.mxu0 0
        %5200 = vmatpush2.bf16.msra.mxu0 %v3796
        %5201 = vmatprep.subr.bf16.mxu0 0
        %5202 = vmatpush2.bf16.msra.mxu0 %v3795
        %5203 = vmatprep.mubr.bf16.mxu0 %v1402
        %5204 = vmatmul.mubr.bf16.gmra.mxu0 %v1401
        %v5205 = vpop.f32.mrf.mxu0
        %v5206 = vadd.f32 %v5166, %v5205
        %v5207 = vpop.f32.mrf.mxu0
        %v5208 = vpop.f32.mrf.mxu0
        %v5209 = vpop.f32.mrf.mxu0
        %5210 = vdwg.mxu0
        %5211 = vmatprep.subr.bf16.mxu0 0
        %5212 = vmatpush1.bf16.msra.mxu0 %v3810
        %5213 = vmatprep.subr.bf16.mxu0 0
        %5214 = vmatpush1.bf16.msra.mxu0 %v3809
        %5215 = vmatprep.subr.bf16.mxu0 0
        %5216 = vmatpush1.bf16.msra.mxu0 %v3808
        %5217 = vmatprep.subr.bf16.mxu0 0
        %5218 = vmatpush1.bf16.msra.mxu0 %v3807
        %5219 = vmatprep.subr.bf16.mxu0 0
        %5220 = vmatpush1.bf16.msra.mxu0 %v3806
        %5221 = vmatprep.subr.bf16.mxu0 0
        %5222 = vmatpush1.bf16.msra.mxu0 %v3805
        %5223 = vmatprep.subr.bf16.mxu0 0
        %5224 = vmatpush1.bf16.msra.mxu0 %v3804
        %5225 = vmatprep.subr.bf16.mxu0 0
        %5226 = vmatpush1.bf16.msra.mxu0 %v3803
        %5227 = vmatprep.subr.bf16.mxu0 0
        %5228 = vmatpush2.bf16.msra.mxu0 %v3818
        %5229 = vmatprep.subr.bf16.mxu0 0
        %5230 = vmatpush2.bf16.msra.mxu0 %v3817
        %5231 = vmatprep.subr.bf16.mxu0 0
        %5232 = vmatpush2.bf16.msra.mxu0 %v3816
        %5233 = vmatprep.subr.bf16.mxu0 0
        %5234 = vmatpush2.bf16.msra.mxu0 %v3815
        %5235 = vmatprep.subr.bf16.mxu0 0
        %5236 = vmatpush2.bf16.msra.mxu0 %v3814
        %5237 = vmatprep.subr.bf16.mxu0 0
        %5238 = vmatpush2.bf16.msra.mxu0 %v3813
        %5239 = vmatprep.subr.bf16.mxu0 0
        %5240 = vmatpush2.bf16.msra.mxu0 %v3812
        %5241 = vmatprep.subr.bf16.mxu0 0
        %5242 = vmatpush2.bf16.msra.mxu0 %v3811
        %5243 = vmatprep.mubr.bf16.mxu0 %v1404
        %5244 = vmatmul.mubr.bf16.gmra.mxu0 %v1403
        %v5245 = vpop.f32.mrf.mxu0
        %v5246 = vadd.f32 %v5206, %v5245
        %v5247 = vpop.f32.mrf.mxu0
        %v5248 = vpop.f32.mrf.mxu0
        %v5249 = vpop.f32.mrf.mxu0
        %5250 = vdwg.mxu0
        %5251 = vmatprep.subr.bf16.mxu0 0
        %5252 = vmatpush1.bf16.msra.mxu0 %v3826
        %5253 = vmatprep.subr.bf16.mxu0 0
        %5254 = vmatpush1.bf16.msra.mxu0 %v3825
        %5255 = vmatprep.subr.bf16.mxu0 0
        %5256 = vmatpush1.bf16.msra.mxu0 %v3824
        %5257 = vmatprep.subr.bf16.mxu0 0
        %5258 = vmatpush1.bf16.msra.mxu0 %v3823
        %5259 = vmatprep.subr.bf16.mxu0 0
        %5260 = vmatpush1.bf16.msra.mxu0 %v3822
        %5261 = vmatprep.subr.bf16.mxu0 0
        %5262 = vmatpush1.bf16.msra.mxu0 %v3821
        %5263 = vmatprep.subr.bf16.mxu0 0
        %5264 = vmatpush1.bf16.msra.mxu0 %v3820
        %5265 = vmatprep.subr.bf16.mxu0 0
        %5266 = vmatpush1.bf16.msra.mxu0 %v3819
        %5267 = vmatprep.subr.bf16.mxu0 0
        %5268 = vmatpush2.bf16.msra.mxu0 %v3834
        %5269 = vmatprep.subr.bf16.mxu0 0
        %5270 = vmatpush2.bf16.msra.mxu0 %v3833
        %5271 = vmatprep.subr.bf16.mxu0 0
        %5272 = vmatpush2.bf16.msra.mxu0 %v3832
        %5273 = vmatprep.subr.bf16.mxu0 0
        %5274 = vmatpush2.bf16.msra.mxu0 %v3831
        %5275 = vmatprep.subr.bf16.mxu0 0
        %5276 = vmatpush2.bf16.msra.mxu0 %v3830
        %5277 = vmatprep.subr.bf16.mxu0 0
        %5278 = vmatpush2.bf16.msra.mxu0 %v3829
        %5279 = vmatprep.subr.bf16.mxu0 0
        %5280 = vmatpush2.bf16.msra.mxu0 %v3828
        %5281 = vmatprep.subr.bf16.mxu0 0
        %5282 = vmatpush2.bf16.msra.mxu0 %v3827
        %5283 = vmatprep.mubr.bf16.mxu0 %v1406
        %5284 = vmatmul.mubr.bf16.gmra.mxu0 %v1405
        %v5285 = vpop.f32.mrf.mxu0
        %v5286 = vadd.f32 %v5246, %v5285
        %v5287 = vpop.f32.mrf.mxu0
        %v5288 = vpop.f32.mrf.mxu0
        %v5289 = vpop.f32.mrf.mxu0
        %5290 = vdwg.mxu0
        %5291 = vmatprep.subr.bf16.mxu0 0
        %5292 = vmatpush1.bf16.msra.mxu0 %v3842
        %5293 = vmatprep.subr.bf16.mxu0 0
        %5294 = vmatpush1.bf16.msra.mxu0 %v3841
        %5295 = vmatprep.subr.bf16.mxu0 0
        %5296 = vmatpush1.bf16.msra.mxu0 %v3840
        %5297 = vmatprep.subr.bf16.mxu0 0
        %5298 = vmatpush1.bf16.msra.mxu0 %v3839
        %5299 = vmatprep.subr.bf16.mxu0 0
        %5300 = vmatpush1.bf16.msra.mxu0 %v3838
        %5301 = vmatprep.subr.bf16.mxu0 0
        %5302 = vmatpush1.bf16.msra.mxu0 %v3837
        %5303 = vmatprep.subr.bf16.mxu0 0
        %5304 = vmatpush1.bf16.msra.mxu0 %v3836
        %5305 = vmatprep.subr.bf16.mxu0 0
        %5306 = vmatpush1.bf16.msra.mxu0 %v3835
        %5307 = vmatprep.subr.bf16.mxu0 0
        %5308 = vmatpush2.bf16.msra.mxu0 %v3850
        %5309 = vmatprep.subr.bf16.mxu0 0
        %5310 = vmatpush2.bf16.msra.mxu0 %v3849
        %5311 = vmatprep.subr.bf16.mxu0 0
        %5312 = vmatpush2.bf16.msra.mxu0 %v3848
        %5313 = vmatprep.subr.bf16.mxu0 0
        %5314 = vmatpush2.bf16.msra.mxu0 %v3847
        %5315 = vmatprep.subr.bf16.mxu0 0
        %5316 = vmatpush2.bf16.msra.mxu0 %v3846
        %5317 = vmatprep.subr.bf16.mxu0 0
        %5318 = vmatpush2.bf16.msra.mxu0 %v3845
        %5319 = vmatprep.subr.bf16.mxu0 0
        %5320 = vmatpush2.bf16.msra.mxu0 %v3844
        %5321 = vmatprep.subr.bf16.mxu0 0
        %5322 = vmatpush2.bf16.msra.mxu0 %v3843
        %5323 = vmatprep.mubr.bf16.mxu0 %v1408
        %5324 = vmatmul.mubr.bf16.gmra.mxu0 %v1407
        %v5325 = vpop.f32.mrf.mxu0
        %v5326 = vadd.f32 %v5286, %v5325
        %v5327 = vpop.f32.mrf.mxu0
        %v5328 = vpop.f32.mrf.mxu0
        %v5329 = vpop.f32.mrf.mxu0
        %5330 = vdwg.mxu0
        %5331 = vmatprep.subr.bf16.mxu0 0
        %5332 = vmatpush1.bf16.msra.mxu0 %v3858
        %5333 = vmatprep.subr.bf16.mxu0 0
        %5334 = vmatpush1.bf16.msra.mxu0 %v3857
        %5335 = vmatprep.subr.bf16.mxu0 0
        %5336 = vmatpush1.bf16.msra.mxu0 %v3856
        %5337 = vmatprep.subr.bf16.mxu0 0
        %5338 = vmatpush1.bf16.msra.mxu0 %v3855
        %5339 = vmatprep.subr.bf16.mxu0 0
        %5340 = vmatpush1.bf16.msra.mxu0 %v3854
        %5341 = vmatprep.subr.bf16.mxu0 0
        %5342 = vmatpush1.bf16.msra.mxu0 %v3853
        %5343 = vmatprep.subr.bf16.mxu0 0
        %5344 = vmatpush1.bf16.msra.mxu0 %v3852
        %5345 = vmatprep.subr.bf16.mxu0 0
        %5346 = vmatpush1.bf16.msra.mxu0 %v3851
        %5347 = vmatprep.subr.bf16.mxu0 0
        %5348 = vmatpush2.bf16.msra.mxu0 %v3866
        %5349 = vmatprep.subr.bf16.mxu0 0
        %5350 = vmatpush2.bf16.msra.mxu0 %v3865
        %5351 = vmatprep.subr.bf16.mxu0 0
        %5352 = vmatpush2.bf16.msra.mxu0 %v3864
        %5353 = vmatprep.subr.bf16.mxu0 0
        %5354 = vmatpush2.bf16.msra.mxu0 %v3863
        %5355 = vmatprep.subr.bf16.mxu0 0
        %5356 = vmatpush2.bf16.msra.mxu0 %v3862
        %5357 = vmatprep.subr.bf16.mxu0 0
        %5358 = vmatpush2.bf16.msra.mxu0 %v3861
        %5359 = vmatprep.subr.bf16.mxu0 0
        %5360 = vmatpush2.bf16.msra.mxu0 %v3860
        %5361 = vmatprep.subr.bf16.mxu0 0
        %5362 = vmatpush2.bf16.msra.mxu0 %v3859
        %5363 = vmatprep.mubr.bf16.mxu0 %v1410
        %5364 = vmatmul.mubr.bf16.gmra.mxu0 %v1409
        %v5365 = vpop.f32.mrf.mxu0
        %v5366 = vadd.f32 %v5326, %v5365
        %v5367 = vpop.f32.mrf.mxu0
        %v5368 = vpop.f32.mrf.mxu0
        %v5369 = vpop.f32.mrf.mxu0
        %5370 = vdwg.mxu0
        %5371 = vmatprep.subr.bf16.mxu0 0
        %5372 = vmatpush1.bf16.msra.mxu0 %v3874
        %5373 = vmatprep.subr.bf16.mxu0 0
        %5374 = vmatpush1.bf16.msra.mxu0 %v3873
        %5375 = vmatprep.subr.bf16.mxu0 0
        %5376 = vmatpush1.bf16.msra.mxu0 %v3872
        %5377 = vmatprep.subr.bf16.mxu0 0
        %5378 = vmatpush1.bf16.msra.mxu0 %v3871
        %5379 = vmatprep.subr.bf16.mxu0 0
        %5380 = vmatpush1.bf16.msra.mxu0 %v3870
        %5381 = vmatprep.subr.bf16.mxu0 0
        %5382 = vmatpush1.bf16.msra.mxu0 %v3869
        %5383 = vmatprep.subr.bf16.mxu0 0
        %5384 = vmatpush1.bf16.msra.mxu0 %v3868
        %5385 = vmatprep.subr.bf16.mxu0 0
        %5386 = vmatpush1.bf16.msra.mxu0 %v3867
        %5387 = vmatprep.subr.bf16.mxu0 0
        %5388 = vmatpush2.bf16.msra.mxu0 %v3882
        %5389 = vmatprep.subr.bf16.mxu0 0
        %5390 = vmatpush2.bf16.msra.mxu0 %v3881
        %5391 = vmatprep.subr.bf16.mxu0 0
        %5392 = vmatpush2.bf16.msra.mxu0 %v3880
        %5393 = vmatprep.subr.bf16.mxu0 0
        %5394 = vmatpush2.bf16.msra.mxu0 %v3879
        %5395 = vmatprep.subr.bf16.mxu0 0
        %5396 = vmatpush2.bf16.msra.mxu0 %v3878
        %5397 = vmatprep.subr.bf16.mxu0 0
        %5398 = vmatpush2.bf16.msra.mxu0 %v3877
        %5399 = vmatprep.subr.bf16.mxu0 0
        %5400 = vmatpush2.bf16.msra.mxu0 %v3876
        %5401 = vmatprep.subr.bf16.mxu0 0
        %5402 = vmatpush2.bf16.msra.mxu0 %v3875
        %5403 = vmatprep.mubr.bf16.mxu0 %v1412
        %5404 = vmatmul.mubr.bf16.gmra.mxu0 %v1411
        %v5405 = vpop.f32.mrf.mxu0
        %v5406 = vadd.f32 %v5366, %v5405
        %v5407 = vpop.f32.mrf.mxu0
        %v5408 = vpop.f32.mrf.mxu0
        %v5409 = vpop.f32.mrf.mxu0
        %5410 = vdwg.mxu0
        %5411 = vmatprep.subr.bf16.mxu0 0
        %5412 = vmatpush1.bf16.msra.mxu0 %v3890
        %5413 = vmatprep.subr.bf16.mxu0 0
        %5414 = vmatpush1.bf16.msra.mxu0 %v3889
        %5415 = vmatprep.subr.bf16.mxu0 0
        %5416 = vmatpush1.bf16.msra.mxu0 %v3888
        %5417 = vmatprep.subr.bf16.mxu0 0
        %5418 = vmatpush1.bf16.msra.mxu0 %v3887
        %5419 = vmatprep.subr.bf16.mxu0 0
        %5420 = vmatpush1.bf16.msra.mxu0 %v3886
        %5421 = vmatprep.subr.bf16.mxu0 0
        %5422 = vmatpush1.bf16.msra.mxu0 %v3885
        %5423 = vmatprep.subr.bf16.mxu0 0
        %5424 = vmatpush1.bf16.msra.mxu0 %v3884
        %5425 = vmatprep.subr.bf16.mxu0 0
        %5426 = vmatpush1.bf16.msra.mxu0 %v3883
        %5427 = vmatprep.subr.bf16.mxu0 0
        %5428 = vmatpush2.bf16.msra.mxu0 %v3898
        %5429 = vmatprep.subr.bf16.mxu0 0
        %5430 = vmatpush2.bf16.msra.mxu0 %v3897
        %5431 = vmatprep.subr.bf16.mxu0 0
        %5432 = vmatpush2.bf16.msra.mxu0 %v3896
        %5433 = vmatprep.subr.bf16.mxu0 0
        %5434 = vmatpush2.bf16.msra.mxu0 %v3895
        %5435 = vmatprep.subr.bf16.mxu0 0
        %5436 = vmatpush2.bf16.msra.mxu0 %v3894
        %5437 = vmatprep.subr.bf16.mxu0 0
        %5438 = vmatpush2.bf16.msra.mxu0 %v3893
        %5439 = vmatprep.subr.bf16.mxu0 0
        %5440 = vmatpush2.bf16.msra.mxu0 %v3892
        %5441 = vmatprep.subr.bf16.mxu0 0
        %5442 = vmatpush2.bf16.msra.mxu0 %v3891
        %5443 = vmatprep.mubr.bf16.mxu0 %v1414
        %5444 = vmatmul.mubr.bf16.gmra.mxu0 %v1413
        %v5445 = vpop.f32.mrf.mxu0
        %v5446 = vadd.f32 %v5406, %v5445
        %v5447 = vpop.f32.mrf.mxu0
        %v5448 = vpop.f32.mrf.mxu0
        %v5449 = vpop.f32.mrf.mxu0
        %5450 = vdwg.mxu0
        %5451 = vmatprep.subr.bf16.mxu0 0
        %5452 = vmatpush1.bf16.msra.mxu0 %v3906
        %5453 = vmatprep.subr.bf16.mxu0 0
        %5454 = vmatpush1.bf16.msra.mxu0 %v3905
        %5455 = vmatprep.subr.bf16.mxu0 0
        %5456 = vmatpush1.bf16.msra.mxu0 %v3904
        %5457 = vmatprep.subr.bf16.mxu0 0
        %5458 = vmatpush1.bf16.msra.mxu0 %v3903
        %5459 = vmatprep.subr.bf16.mxu0 0
        %5460 = vmatpush1.bf16.msra.mxu0 %v3902
        %5461 = vmatprep.subr.bf16.mxu0 0
        %5462 = vmatpush1.bf16.msra.mxu0 %v3901
        %5463 = vmatprep.subr.bf16.mxu0 0
        %5464 = vmatpush1.bf16.msra.mxu0 %v3900
        %5465 = vmatprep.subr.bf16.mxu0 0
        %5466 = vmatpush1.bf16.msra.mxu0 %v3899
        %5467 = vmatprep.subr.bf16.mxu0 0
        %5468 = vmatpush2.bf16.msra.mxu0 %v3914
        %5469 = vmatprep.subr.bf16.mxu0 0
        %5470 = vmatpush2.bf16.msra.mxu0 %v3913
        %5471 = vmatprep.subr.bf16.mxu0 0
        %5472 = vmatpush2.bf16.msra.mxu0 %v3912
        %5473 = vmatprep.subr.bf16.mxu0 0
        %5474 = vmatpush2.bf16.msra.mxu0 %v3911
        %5475 = vmatprep.subr.bf16.mxu0 0
        %5476 = vmatpush2.bf16.msra.mxu0 %v3910
        %5477 = vmatprep.subr.bf16.mxu0 0
        %5478 = vmatpush2.bf16.msra.mxu0 %v3909
        %5479 = vmatprep.subr.bf16.mxu0 0
        %5480 = vmatpush2.bf16.msra.mxu0 %v3908
        %5481 = vmatprep.subr.bf16.mxu0 0
        %5482 = vmatpush2.bf16.msra.mxu0 %v3907
        %5483 = vmatprep.mubr.bf16.mxu0 %v1416
        %5484 = vmatmul.mubr.bf16.gmra.mxu0 %v1415
        %v5485 = vpop.f32.mrf.mxu0
        %v5486 = vadd.f32 %v5446, %v5485
        %v5487 = vpop.f32.mrf.mxu0
        %v5488 = vpop.f32.mrf.mxu0
        %v5489 = vpop.f32.mrf.mxu0
        %5490 = vdwg.mxu0
        %5491 = vmatprep.subr.bf16.mxu0 0
        %5492 = vmatpush1.bf16.msra.mxu0 %v3922
        %5493 = vmatprep.subr.bf16.mxu0 0
        %5494 = vmatpush1.bf16.msra.mxu0 %v3921
        %5495 = vmatprep.subr.bf16.mxu0 0
        %5496 = vmatpush1.bf16.msra.mxu0 %v3920
        %5497 = vmatprep.subr.bf16.mxu0 0
        %5498 = vmatpush1.bf16.msra.mxu0 %v3919
        %5499 = vmatprep.subr.bf16.mxu0 0
        %5500 = vmatpush1.bf16.msra.mxu0 %v3918
        %5501 = vmatprep.subr.bf16.mxu0 0
        %5502 = vmatpush1.bf16.msra.mxu0 %v3917
        %5503 = vmatprep.subr.bf16.mxu0 0
        %5504 = vmatpush1.bf16.msra.mxu0 %v3916
        %5505 = vmatprep.subr.bf16.mxu0 0
        %5506 = vmatpush1.bf16.msra.mxu0 %v3915
        %5507 = vmatprep.subr.bf16.mxu0 0
        %5508 = vmatpush2.bf16.msra.mxu0 %v3930
        %5509 = vmatprep.subr.bf16.mxu0 0
        %5510 = vmatpush2.bf16.msra.mxu0 %v3929
        %5511 = vmatprep.subr.bf16.mxu0 0
        %5512 = vmatpush2.bf16.msra.mxu0 %v3928
        %5513 = vmatprep.subr.bf16.mxu0 0
        %5514 = vmatpush2.bf16.msra.mxu0 %v3927
        %5515 = vmatprep.subr.bf16.mxu0 0
        %5516 = vmatpush2.bf16.msra.mxu0 %v3926
        %5517 = vmatprep.subr.bf16.mxu0 0
        %5518 = vmatpush2.bf16.msra.mxu0 %v3925
        %5519 = vmatprep.subr.bf16.mxu0 0
        %5520 = vmatpush2.bf16.msra.mxu0 %v3924
        %5521 = vmatprep.subr.bf16.mxu0 0
        %5522 = vmatpush2.bf16.msra.mxu0 %v3923
        %5523 = vmatprep.mubr.bf16.mxu0 %v1418
        %5524 = vmatmul.mubr.bf16.gmra.mxu0 %v1417
        %v5525 = vpop.f32.mrf.mxu0
        %v5526 = vadd.f32 %v5486, %v5525
        %v5527 = vpop.f32.mrf.mxu0
        %v5528 = vpop.f32.mrf.mxu0
        %v5529 = vpop.f32.mrf.mxu0
        %5530 = vdwg.mxu0
        %5531 = vmatprep.subr.bf16.mxu0 0
        %5532 = vmatpush1.bf16.msra.mxu0 %v3938
        %5533 = vmatprep.subr.bf16.mxu0 0
        %5534 = vmatpush1.bf16.msra.mxu0 %v3937
        %5535 = vmatprep.subr.bf16.mxu0 0
        %5536 = vmatpush1.bf16.msra.mxu0 %v3936
        %5537 = vmatprep.subr.bf16.mxu0 0
        %5538 = vmatpush1.bf16.msra.mxu0 %v3935
        %5539 = vmatprep.subr.bf16.mxu0 0
        %5540 = vmatpush1.bf16.msra.mxu0 %v3934
        %5541 = vmatprep.subr.bf16.mxu0 0
        %5542 = vmatpush1.bf16.msra.mxu0 %v3933
        %5543 = vmatprep.subr.bf16.mxu0 0
        %5544 = vmatpush1.bf16.msra.mxu0 %v3932
        %5545 = vmatprep.subr.bf16.mxu0 0
        %5546 = vmatpush1.bf16.msra.mxu0 %v3931
        %5547 = vmatprep.subr.bf16.mxu0 0
        %5548 = vmatpush2.bf16.msra.mxu0 %v3946
        %5549 = vmatprep.subr.bf16.mxu0 0
        %5550 = vmatpush2.bf16.msra.mxu0 %v3945
        %5551 = vmatprep.subr.bf16.mxu0 0
        %5552 = vmatpush2.bf16.msra.mxu0 %v3944
        %5553 = vmatprep.subr.bf16.mxu0 0
        %5554 = vmatpush2.bf16.msra.mxu0 %v3943
        %5555 = vmatprep.subr.bf16.mxu0 0
        %5556 = vmatpush2.bf16.msra.mxu0 %v3942
        %5557 = vmatprep.subr.bf16.mxu0 0
        %5558 = vmatpush2.bf16.msra.mxu0 %v3941
        %5559 = vmatprep.subr.bf16.mxu0 0
        %5560 = vmatpush2.bf16.msra.mxu0 %v3940
        %5561 = vmatprep.subr.bf16.mxu0 0
        %5562 = vmatpush2.bf16.msra.mxu0 %v3939
        %5563 = vmatprep.mubr.bf16.mxu0 %v1420
        %5564 = vmatmul.mubr.bf16.gmra.mxu0 %v1419
        %v5565 = vpop.f32.mrf.mxu0
        %v5566 = vadd.f32 %v5526, %v5565
        %v5567 = vpop.f32.mrf.mxu0
        %v5568 = vpop.f32.mrf.mxu0
        %v5569 = vpop.f32.mrf.mxu0
        %5570 = vdwg.mxu0
        %5571 = vmatprep.subr.bf16.mxu0 0
        %5572 = vmatpush1.bf16.msra.mxu0 %v3954
        %5573 = vmatprep.subr.bf16.mxu0 0
        %5574 = vmatpush1.bf16.msra.mxu0 %v3953
        %5575 = vmatprep.subr.bf16.mxu0 0
        %5576 = vmatpush1.bf16.msra.mxu0 %v3952
        %5577 = vmatprep.subr.bf16.mxu0 0
        %5578 = vmatpush1.bf16.msra.mxu0 %v3951
        %5579 = vmatprep.subr.bf16.mxu0 0
        %5580 = vmatpush1.bf16.msra.mxu0 %v3950
        %5581 = vmatprep.subr.bf16.mxu0 0
        %5582 = vmatpush1.bf16.msra.mxu0 %v3949
        %5583 = vmatprep.subr.bf16.mxu0 0
        %5584 = vmatpush1.bf16.msra.mxu0 %v3948
        %5585 = vmatprep.subr.bf16.mxu0 0
        %5586 = vmatpush1.bf16.msra.mxu0 %v3947
        %5587 = vmatprep.subr.bf16.mxu0 0
        %5588 = vmatpush2.bf16.msra.mxu0 %v3962
        %5589 = vmatprep.subr.bf16.mxu0 0
        %5590 = vmatpush2.bf16.msra.mxu0 %v3961
        %5591 = vmatprep.subr.bf16.mxu0 0
        %5592 = vmatpush2.bf16.msra.mxu0 %v3960
        %5593 = vmatprep.subr.bf16.mxu0 0
        %5594 = vmatpush2.bf16.msra.mxu0 %v3959
        %5595 = vmatprep.subr.bf16.mxu0 0
        %5596 = vmatpush2.bf16.msra.mxu0 %v3958
        %5597 = vmatprep.subr.bf16.mxu0 0
        %5598 = vmatpush2.bf16.msra.mxu0 %v3957
        %5599 = vmatprep.subr.bf16.mxu0 0
        %5600 = vmatpush2.bf16.msra.mxu0 %v3956
        %5601 = vmatprep.subr.bf16.mxu0 0
        %5602 = vmatpush2.bf16.msra.mxu0 %v3955
        %5603 = vmatprep.mubr.bf16.mxu0 %v1422
        %5604 = vmatmul.mubr.bf16.gmra.mxu0 %v1421
        %v5605 = vpop.f32.mrf.mxu0
        %v5606 = vadd.f32 %v5566, %v5605
        %v5607 = vpop.f32.mrf.mxu0
        %v5608 = vpop.f32.mrf.mxu0
        %v5609 = vpop.f32.mrf.mxu0
        %5610 = vdwg.mxu0
        %5611 = vmatprep.subr.bf16.mxu0 0
        %5612 = vmatpush1.bf16.msra.mxu0 %v3970
        %5613 = vmatprep.subr.bf16.mxu0 0
        %5614 = vmatpush1.bf16.msra.mxu0 %v3969
        %5615 = vmatprep.subr.bf16.mxu0 0
        %5616 = vmatpush1.bf16.msra.mxu0 %v3968
        %5617 = vmatprep.subr.bf16.mxu0 0
        %5618 = vmatpush1.bf16.msra.mxu0 %v3967
        %5619 = vmatprep.subr.bf16.mxu0 0
        %5620 = vmatpush1.bf16.msra.mxu0 %v3966
        %5621 = vmatprep.subr.bf16.mxu0 0
        %5622 = vmatpush1.bf16.msra.mxu0 %v3965
        %5623 = vmatprep.subr.bf16.mxu0 0
        %5624 = vmatpush1.bf16.msra.mxu0 %v3964
        %5625 = vmatprep.subr.bf16.mxu0 0
        %5626 = vmatpush1.bf16.msra.mxu0 %v3963
        %5627 = vmatprep.subr.bf16.mxu0 0
        %5628 = vmatpush2.bf16.msra.mxu0 %v3978
        %5629 = vmatprep.subr.bf16.mxu0 0
        %5630 = vmatpush2.bf16.msra.mxu0 %v3977
        %5631 = vmatprep.subr.bf16.mxu0 0
        %5632 = vmatpush2.bf16.msra.mxu0 %v3976
        %5633 = vmatprep.subr.bf16.mxu0 0
        %5634 = vmatpush2.bf16.msra.mxu0 %v3975
        %5635 = vmatprep.subr.bf16.mxu0 0
        %5636 = vmatpush2.bf16.msra.mxu0 %v3974
        %5637 = vmatprep.subr.bf16.mxu0 0
        %5638 = vmatpush2.bf16.msra.mxu0 %v3973
        %5639 = vmatprep.subr.bf16.mxu0 0
        %5640 = vmatpush2.bf16.msra.mxu0 %v3972
        %5641 = vmatprep.subr.bf16.mxu0 0
        %5642 = vmatpush2.bf16.msra.mxu0 %v3971
        %5643 = vmatprep.mubr.bf16.mxu0 %v1424
        %5644 = vmatmul.mubr.bf16.gmra.mxu0 %v1423
        %v5645 = vpop.f32.mrf.mxu0
        %v5646 = vadd.f32 %v5606, %v5645
        %v5647 = vpop.f32.mrf.mxu0
        %v5648 = vpop.f32.mrf.mxu0
        %v5649 = vpop.f32.mrf.mxu0
        %5650 = vdwg.mxu0
        %5651 = vmatprep.subr.bf16.mxu0 0
        %5652 = vmatpush1.bf16.msra.mxu0 %v3986
        %5653 = vmatprep.subr.bf16.mxu0 0
        %5654 = vmatpush1.bf16.msra.mxu0 %v3985
        %5655 = vmatprep.subr.bf16.mxu0 0
        %5656 = vmatpush1.bf16.msra.mxu0 %v3984
        %5657 = vmatprep.subr.bf16.mxu0 0
        %5658 = vmatpush1.bf16.msra.mxu0 %v3983
        %5659 = vmatprep.subr.bf16.mxu0 0
        %5660 = vmatpush1.bf16.msra.mxu0 %v3982
        %5661 = vmatprep.subr.bf16.mxu0 0
        %5662 = vmatpush1.bf16.msra.mxu0 %v3981
        %5663 = vmatprep.subr.bf16.mxu0 0
        %5664 = vmatpush1.bf16.msra.mxu0 %v3980
        %5665 = vmatprep.subr.bf16.mxu0 0
        %5666 = vmatpush1.bf16.msra.mxu0 %v3979
        %5667 = vmatprep.subr.bf16.mxu0 0
        %5668 = vmatpush2.bf16.msra.mxu0 %v3994
        %5669 = vmatprep.subr.bf16.mxu0 0
        %5670 = vmatpush2.bf16.msra.mxu0 %v3993
        %5671 = vmatprep.subr.bf16.mxu0 0
        %5672 = vmatpush2.bf16.msra.mxu0 %v3992
        %5673 = vmatprep.subr.bf16.mxu0 0
        %5674 = vmatpush2.bf16.msra.mxu0 %v3991
        %5675 = vmatprep.subr.bf16.mxu0 0
        %5676 = vmatpush2.bf16.msra.mxu0 %v3990
        %5677 = vmatprep.subr.bf16.mxu0 0
        %5678 = vmatpush2.bf16.msra.mxu0 %v3989
        %5679 = vmatprep.subr.bf16.mxu0 0
        %5680 = vmatpush2.bf16.msra.mxu0 %v3988
        %5681 = vmatprep.subr.bf16.mxu0 0
        %5682 = vmatpush2.bf16.msra.mxu0 %v3987
        %5683 = vmatprep.mubr.bf16.mxu0 %v1426
        %5684 = vmatmul.mubr.bf16.gmra.mxu0 %v1425
        %v5685 = vpop.f32.mrf.mxu0
        %v5686 = vadd.f32 %v5646, %v5685
        %v5687 = vpop.f32.mrf.mxu0
        %v5688 = vpop.f32.mrf.mxu0
        %v5689 = vpop.f32.mrf.mxu0
        %5690 = vdwg.mxu0
        %5691 = vmatprep.subr.bf16.mxu0 0
        %5692 = vmatpush1.bf16.msra.mxu0 %v4002
        %5693 = vmatprep.subr.bf16.mxu0 0
        %5694 = vmatpush1.bf16.msra.mxu0 %v4001
        %5695 = vmatprep.subr.bf16.mxu0 0
        %5696 = vmatpush1.bf16.msra.mxu0 %v4000
        %5697 = vmatprep.subr.bf16.mxu0 0
        %5698 = vmatpush1.bf16.msra.mxu0 %v3999
        %5699 = vmatprep.subr.bf16.mxu0 0
        %5700 = vmatpush1.bf16.msra.mxu0 %v3998
        %5701 = vmatprep.subr.bf16.mxu0 0
        %5702 = vmatpush1.bf16.msra.mxu0 %v3997
        %5703 = vmatprep.subr.bf16.mxu0 0
        %5704 = vmatpush1.bf16.msra.mxu0 %v3996
        %5705 = vmatprep.subr.bf16.mxu0 0
        %5706 = vmatpush1.bf16.msra.mxu0 %v3995
        %5707 = vmatprep.subr.bf16.mxu0 0
        %5708 = vmatpush2.bf16.msra.mxu0 %v4010
        %5709 = vmatprep.subr.bf16.mxu0 0
        %5710 = vmatpush2.bf16.msra.mxu0 %v4009
        %5711 = vmatprep.subr.bf16.mxu0 0
        %5712 = vmatpush2.bf16.msra.mxu0 %v4008
        %5713 = vmatprep.subr.bf16.mxu0 0
        %5714 = vmatpush2.bf16.msra.mxu0 %v4007
        %5715 = vmatprep.subr.bf16.mxu0 0
        %5716 = vmatpush2.bf16.msra.mxu0 %v4006
        %5717 = vmatprep.subr.bf16.mxu0 0
        %5718 = vmatpush2.bf16.msra.mxu0 %v4005
        %5719 = vmatprep.subr.bf16.mxu0 0
        %5720 = vmatpush2.bf16.msra.mxu0 %v4004
        %5721 = vmatprep.subr.bf16.mxu0 0
        %5722 = vmatpush2.bf16.msra.mxu0 %v4003
        %5723 = vmatprep.mubr.bf16.mxu0 %v1428
        %5724 = vmatmul.mubr.bf16.gmra.mxu0 %v1427
        %v5725 = vpop.f32.mrf.mxu0
        %v5726 = vadd.f32 %v5686, %v5725
        %v5727 = vpop.f32.mrf.mxu0
        %v5728 = vpop.f32.mrf.mxu0
        %v5729 = vpop.f32.mrf.mxu0
        %5730 = vdwg.mxu0
        %5731 = vmatprep.subr.bf16.mxu0 0
        %5732 = vmatpush1.bf16.msra.mxu0 %v4018
        %5733 = vmatprep.subr.bf16.mxu0 0
        %5734 = vmatpush1.bf16.msra.mxu0 %v4017
        %5735 = vmatprep.subr.bf16.mxu0 0
        %5736 = vmatpush1.bf16.msra.mxu0 %v4016
        %5737 = vmatprep.subr.bf16.mxu0 0
        %5738 = vmatpush1.bf16.msra.mxu0 %v4015
        %5739 = vmatprep.subr.bf16.mxu0 0
        %5740 = vmatpush1.bf16.msra.mxu0 %v4014
        %5741 = vmatprep.subr.bf16.mxu0 0
        %5742 = vmatpush1.bf16.msra.mxu0 %v4013
        %5743 = vmatprep.subr.bf16.mxu0 0
        %5744 = vmatpush1.bf16.msra.mxu0 %v4012
        %5745 = vmatprep.subr.bf16.mxu0 0
        %5746 = vmatpush1.bf16.msra.mxu0 %v4011
        %5747 = vmatprep.subr.bf16.mxu0 0
        %5748 = vmatpush2.bf16.msra.mxu0 %v4026
        %5749 = vmatprep.subr.bf16.mxu0 0
        %5750 = vmatpush2.bf16.msra.mxu0 %v4025
        %5751 = vmatprep.subr.bf16.mxu0 0
        %5752 = vmatpush2.bf16.msra.mxu0 %v4024
        %5753 = vmatprep.subr.bf16.mxu0 0
        %5754 = vmatpush2.bf16.msra.mxu0 %v4023
        %5755 = vmatprep.subr.bf16.mxu0 0
        %5756 = vmatpush2.bf16.msra.mxu0 %v4022
        %5757 = vmatprep.subr.bf16.mxu0 0
        %5758 = vmatpush2.bf16.msra.mxu0 %v4021
        %5759 = vmatprep.subr.bf16.mxu0 0
        %5760 = vmatpush2.bf16.msra.mxu0 %v4020
        %5761 = vmatprep.subr.bf16.mxu0 0
        %5762 = vmatpush2.bf16.msra.mxu0 %v4019
        %5763 = vmatprep.mubr.bf16.mxu0 %v1430
        %5764 = vmatmul.mubr.bf16.gmra.mxu0 %v1429
        %v5765 = vpop.f32.mrf.mxu0
        %v5766 = vadd.f32 %v5726, %v5765
        %v5767 = vpop.f32.mrf.mxu0
        %v5768 = vpop.f32.mrf.mxu0
        %v5769 = vpop.f32.mrf.mxu0
        %5770 = vdwg.mxu0
        %5771 = vmatprep.subr.bf16.mxu0 0
        %5772 = vmatpush1.bf16.msra.mxu0 %v4034
        %5773 = vmatprep.subr.bf16.mxu0 0
        %5774 = vmatpush1.bf16.msra.mxu0 %v4033
        %5775 = vmatprep.subr.bf16.mxu0 0
        %5776 = vmatpush1.bf16.msra.mxu0 %v4032
        %5777 = vmatprep.subr.bf16.mxu0 0
        %5778 = vmatpush1.bf16.msra.mxu0 %v4031
        %5779 = vmatprep.subr.bf16.mxu0 0
        %5780 = vmatpush1.bf16.msra.mxu0 %v4030
        %5781 = vmatprep.subr.bf16.mxu0 0
        %5782 = vmatpush1.bf16.msra.mxu0 %v4029
        %5783 = vmatprep.subr.bf16.mxu0 0
        %5784 = vmatpush1.bf16.msra.mxu0 %v4028
        %5785 = vmatprep.subr.bf16.mxu0 0
        %5786 = vmatpush1.bf16.msra.mxu0 %v4027
        %5787 = vmatprep.subr.bf16.mxu0 0
        %5788 = vmatpush2.bf16.msra.mxu0 %v4042
        %5789 = vmatprep.subr.bf16.mxu0 0
        %5790 = vmatpush2.bf16.msra.mxu0 %v4041
        %5791 = vmatprep.subr.bf16.mxu0 0
        %5792 = vmatpush2.bf16.msra.mxu0 %v4040
        %5793 = vmatprep.subr.bf16.mxu0 0
        %5794 = vmatpush2.bf16.msra.mxu0 %v4039
        %5795 = vmatprep.subr.bf16.mxu0 0
        %5796 = vmatpush2.bf16.msra.mxu0 %v4038
        %5797 = vmatprep.subr.bf16.mxu0 0
        %5798 = vmatpush2.bf16.msra.mxu0 %v4037
        %5799 = vmatprep.subr.bf16.mxu0 0
        %5800 = vmatpush2.bf16.msra.mxu0 %v4036
        %5801 = vmatprep.subr.bf16.mxu0 0
        %5802 = vmatpush2.bf16.msra.mxu0 %v4035
        %5803 = vmatprep.mubr.bf16.mxu0 %v1432
        %5804 = vmatmul.mubr.bf16.gmra.mxu0 %v1431
        %v5805 = vpop.f32.mrf.mxu0
        %v5806 = vadd.f32 %v5766, %v5805
        %v5807 = vpop.f32.mrf.mxu0
        %v5808 = vpop.f32.mrf.mxu0
        %v5809 = vpop.f32.mrf.mxu0
        %5810 = vdwg.mxu0
        %5811 = vmatprep.subr.bf16.mxu0 0
        %5812 = vmatpush1.bf16.msra.mxu0 %v4050
        %5813 = vmatprep.subr.bf16.mxu0 0
        %5814 = vmatpush1.bf16.msra.mxu0 %v4049
        %5815 = vmatprep.subr.bf16.mxu0 0
        %5816 = vmatpush1.bf16.msra.mxu0 %v4048
        %5817 = vmatprep.subr.bf16.mxu0 0
        %5818 = vmatpush1.bf16.msra.mxu0 %v4047
        %5819 = vmatprep.subr.bf16.mxu0 0
        %5820 = vmatpush1.bf16.msra.mxu0 %v4046
        %5821 = vmatprep.subr.bf16.mxu0 0
        %5822 = vmatpush1.bf16.msra.mxu0 %v4045
        %5823 = vmatprep.subr.bf16.mxu0 0
        %5824 = vmatpush1.bf16.msra.mxu0 %v4044
        %5825 = vmatprep.subr.bf16.mxu0 0
        %5826 = vmatpush1.bf16.msra.mxu0 %v4043
        %5827 = vmatprep.subr.bf16.mxu0 0
        %5828 = vmatpush2.bf16.msra.mxu0 %v4058
        %5829 = vmatprep.subr.bf16.mxu0 0
        %5830 = vmatpush2.bf16.msra.mxu0 %v4057
        %5831 = vmatprep.subr.bf16.mxu0 0
        %5832 = vmatpush2.bf16.msra.mxu0 %v4056
        %5833 = vmatprep.subr.bf16.mxu0 0
        %5834 = vmatpush2.bf16.msra.mxu0 %v4055
        %5835 = vmatprep.subr.bf16.mxu0 0
        %5836 = vmatpush2.bf16.msra.mxu0 %v4054
        %5837 = vmatprep.subr.bf16.mxu0 0
        %5838 = vmatpush2.bf16.msra.mxu0 %v4053
        %5839 = vmatprep.subr.bf16.mxu0 0
        %5840 = vmatpush2.bf16.msra.mxu0 %v4052
        %5841 = vmatprep.subr.bf16.mxu0 0
        %5842 = vmatpush2.bf16.msra.mxu0 %v4051
        %5843 = vmatprep.mubr.bf16.mxu0 %v1434
        %5844 = vmatmul.mubr.bf16.gmra.mxu0 %v1433
        %v5845 = vpop.f32.mrf.mxu0
        %v5846 = vadd.f32 %v5806, %v5845
        %v5847 = vpop.f32.mrf.mxu0
        %v5848 = vpop.f32.mrf.mxu0
        %v5849 = vpop.f32.mrf.mxu0
        %5850 = vdwg.mxu0
        %v5851 = vadd.f32 %v218, %v5846
        %5852 = vst [vmem:[#allocation2] sm:$0xff] %v5851
        %p5853 = scmp.eq.s32.totalorder %s18, 1
        // Predicated region
        $region45: #{localizer_vit_forward.2} parent=31 // pred_check
          %p5854 = pneg %p5853
        $region46: #{localizer_vit_forward.2} parent=31 // pred_check_branch
          %5856 = sbr.rel (%p5854) target = $region48
        $region47: #{localizer_vit_forward.2} parent=31 // pred_region
          %v5857 = vld [vmem:[#allocation2] sm:$0xff]
          %v5858 = vld [vmem:[#allocation5] sm:$0x1]
          %v5860 = vlaneseq
          %v5861 = vshrl.u32 %v5860, 7
          %v5862 = vsub.s32 0, %v5861
          %v5863 = vrot.slane %v5858, %v5862
          %v5865 = vadd.f32 %v5857, %v5863
          %5866 = vst [vmem:[%s3] sm:$0xff] %v5865
        $region48: #{localizer_vit_forward.2} parent=31 // pred_fallthru
          _
        // Predicated region
        $region49: #{localizer_vit_forward.2} parent=31 // pred_check
          %p5867 = pneg %p104
        $region50: #{localizer_vit_forward.2} parent=31 // pred_check_branch
          %5869 = sbr.rel (%p5867) target = $region52
        $region51: #{localizer_vit_forward.2} parent=31 // pred_region
          _
        $region52: #{localizer_vit_forward.2} parent=31 // pred_fallthru
          _
        // Predicated region
        $region53: #{localizer_vit_forward.2} parent=31 // pred_check
          %p5870 = pneg %p104
        $region54: #{localizer_vit_forward.2} parent=31 // pred_check_branch
          %5872 = sbr.rel (%p5870) target = $region56
        $region55: #{localizer_vit_forward.2} parent=31 // pred_region
          _
        $region56: #{localizer_vit_forward.2} parent=31 // pred_fallthru
          _
      $region32: #{localizer_vit_forward.2} parent=5 // pred_fallthru
        _
      %p5873 = scmp.le.s32.totalorder 2, %s13
      // Predicated region
      $region57: #{localizer_vit_forward.2} parent=5 // pred_check
        %p5874 = pneg %p5873
      $region58: #{localizer_vit_forward.2} parent=5 // pred_check_branch
        %5876 = sbr.rel (%p5874) target = $region60
      $region59: #{localizer_vit_forward.2} parent=5 // pred_region
        %s5877 = ssub.s32 %s13, 2
      $region60: #{localizer_vit_forward.2} parent=5 // pred_fallthru
        _
    $region6: #{localizer_vit_forward.2} parent=1 // loop_footer
      %s17 = sadd.s32 1, %s13
    $region7: #{localizer_vit_forward.2} parent=1 // loop_footer_branch
      %12 = sbr.rel target = $region3
    $region8: #{localizer_vit_forward.2} parent=1 // loop_exit
      _
    %5878 = vsyncpa [#allocation4], 1
    %s5879 = scalar_lea.sflag [#allocation4], 1
    %5880 = vsyncpa %s5879, 1
    %5881 = vsyncpa [#allocation6], 1

</llo_original>
